<compile_context>
chip_gen: v7x
topology: tpu7x:2x2x1
jax: 0.10.0
libtpu: 0.0.40
codegen_flags: <defaults>
</compile_context>

<pallas_src>
import jax
import jax.numpy as jnp
from jax.experimental import pallas as pl
from jax.experimental.pallas import tpu as pltpu


def _vqa_kernel(v_ref, q_ref,
                wc1_ref, bc1_ref,          # conv1: (Cv, M) bf16, (1, M) f32
                wl1_ref, bl1_ref,          # lin1:  (Cq, M) bf16, (1, M) f32
                wc2_ref, bc2_ref,          # conv2: (M, G) bf16, (1, G) f32
                w1_ref, b1_ref,            # classifier lin1 (fused): (G*M+Cq, Hc) bf16, (1, Hc) f32
                w2_ref, b2_ref,            # classifier lin2: (Hc, NCp) bf16, (1, NCp) f32
                out_ref):
    Bt, HW, Cv = v_ref.shape
    M = wc1_ref.shape[1]
    G = wc2_ref.shape[1]
    f32, bf16 = jnp.float32, jnp.bfloat16

    # --- L2-normalize over channels, f32 elementwise (PyTorch dim=1 == channels == lane axis).
    v = v_ref[...].astype(f32).reshape(Bt * HW, Cv)
    sumsq = jnp.sum(v * v, axis=-1, keepdims=True)
    v = v * jax.lax.rsqrt(sumsq + 1e-12)   # == v / (||v||_2 + 1e-8) far below bf16 rounding

    # --- 1x1 conv / linear over channels: bf16 operands, f32 accumulate on the MXU.
    v1 = jnp.dot(v.astype(bf16), wc1_ref[...],
                 preferred_element_type=f32) + bc1_ref[...]                         # (Bt*HW, M)
    q = q_ref[...]                                                                  # (Bt, Cq) bf16
    q1 = jnp.dot(q, wl1_ref[...], preferred_element_type=f32) + bl1_ref[...]        # (Bt, M)

    v1_3d = v1.reshape(Bt, HW, M)
    fuse = jnp.maximum(v1_3d * q1[:, None, :], 0.0)                                 # (Bt, HW, M) f32

    x = jnp.dot(fuse.reshape(Bt * HW, M).astype(bf16), wc2_ref[...],
                preferred_element_type=f32) + bc2_ref[...]                          # (Bt*HW, G)
    x = x.reshape(Bt, HW, G)

    # --- Spatial softmax per (batch, glimpse): reduce over axis=1 directly
    #     (no (HW, G) -> (G, HW) relayout on the critical path).
    m = jnp.max(x, axis=1, keepdims=True)
    e = jnp.exp(x - m)
    s = jnp.sum(e, axis=1, keepdims=True)
    attn = e * pl.reciprocal(s, approx=True)                                        # (Bt, HW, G)

    # --- Attention-weighted average of conv1 features, per glimpse on VPU/XLU slack
    #     (a batched MXU contraction here is <1% fill + Bt serialized weight pushes).
    parts = [jnp.sum(attn[:, :, g:g + 1] * v1_3d, axis=1) for g in range(G)]        # G x (Bt, M)
    parts.append(q.astype(f32))
    concat = jnp.concatenate(parts, axis=-1)                                        # (Bt, G*M+Cq)

    # --- Classifier: one fused K=G*M+Cq matmul, relu, lin2 (lane-dense padded output).
    h = jnp.dot(concat.astype(bf16), w1_ref[...],
                preferred_element_type=f32) + b1_ref[...]                           # (Bt, Hc)
    h = jnp.maximum(h, 0.0)
    out = jnp.dot(h.astype(bf16), w2_ref[...],
                  preferred_element_type=f32) + b2_ref[...]                         # (Bt, NCp)
    out_ref[...] = out.astype(out_ref.dtype)


def _tensorcores_per_chip():
    try:
        kind = jax.devices()[0].device_kind.lower()
    except Exception:
        return 1
    return 2 if "v7" in kind else 1


def vivqa_forward(v_nchw, q_feat, params, *, bt=None):
    """v_nchw: (B, Cv, H, W) float32; q_feat: (B, Cq) float32."""
    B, Cv, H, W = v_nchw.shape
    HW = H * W
    Cq = q_feat.shape[1]
    M = params["wc1"].shape[1]
    G = params["wc2"].shape[1]
    Hc = params["b1"].shape[1]
    NC = params["b2"].shape[1]

    if bt is None:
        # Kernel is latency/overhead bound (~6 MFLOPs): one grid step per TensorCore.
        # v5e/v6e have 1 TC -> grid=1 (bt=B); v7x has 2 TCs -> grid=2 (bt=B/2) so
        # the "parallel" axis actually buys a second core instead of pure overhead.
        bt = B
        if _tensorcores_per_chip() >= 2 and B % 2 == 0 and (B // 2) % 8 == 0:
            bt = B // 2
    assert B % bt == 0 and (bt == B or bt % 8 == 0), (B, bt)

    # Layout: NCHW -> (B, HW, C) channels-last for the kernel.  (At real ResNet dims
    # emit channels-last upstream: this transpose is a full extra HBM pass over v.)
    v = jnp.transpose(v_nchw, (0, 2, 3, 1)).reshape(B, HW, Cv).astype(jnp.bfloat16)
    q = q_feat.astype(jnp.bfloat16)

    # Fuse classifier lin1: concat([weighted_avg (G*M), q (Cq)]) @ W1, W1 = [w1v; w1q].
    w1 = jnp.concatenate([params["w1v"].reshape(G * M, Hc), params["w1q"]], axis=0)

    # Pad classifier output to a lane-dense multiple of 128 so the per-step output
    # store is an unmasked vst; slice back after the pallas_call.
    NCp = ((NC + 127) // 128) * 128
    w2 = jnp.pad(params["w2"], ((0, 0), (0, NCp - NC)))
    b2 = jnp.pad(params["b2"], ((0, 0), (0, NCp - NC)))

    bf = lambda a: a.astype(jnp.bfloat16)   # MXU operands -> bf16 (halves weight DMA)

    # Weights/biases: constant index_maps -> DMA'd once, resident across the grid.
    def const(shape):
        return pl.BlockSpec(shape, lambda b: (0, 0))

    grid_spec = pltpu.PrefetchScalarGridSpec(
        num_scalar_prefetch=0,
        grid=(B // bt,),
        in_specs=[
            pl.BlockSpec((bt, HW, Cv), lambda b: (b, 0, 0)),   # v (channels-last, bf16)
            pl.BlockSpec((bt, Cq), lambda b: (b, 0)),          # q (bf16)
            const((Cv, M)), const((1, M)),                     # conv1 w, b
            const((Cq, M)), const((1, M)),                     # lin1 w, b
            const((M, G)), const((1, G)),                      # conv2 w, b
            const((G * M + Cq, Hc)), const((1, Hc)),           # classifier lin1 (fused) w, b
            const((Hc, NCp)), const((1, NCp)),                 # classifier lin2 w, b (padded)
        ],
        out_specs=pl.BlockSpec((bt, NCp), lambda b: (b, 0)),
    )

    out = pl.pallas_call(
        _vqa_kernel,
        out_shape=jax.ShapeDtypeStruct((B, NCp), jnp.float32),
        grid_spec=grid_spec,
        compiler_params=pltpu.CompilerParams(dimension_semantics=("parallel",)),
    )(v, q,
      bf(params["wc1"]), params["bc1"],
      bf(params["wl1"]), params["bl1"],
      bf(params["wc2"]), params["bc2"],
      bf(w1), params["b1"],
      bf(w2), b2)
    return out[:, :NC]


def vivqa_reference(v_nchw, q, params, mxu_dtype=jnp.float32):
    """Pure-JAX reference mirroring the PyTorch forward.

    mxu_dtype=jnp.bfloat16 reproduces the kernel's intentional operand rounding
    (bf16 matmul operands, f32 accumulation) for a tight kernel-correctness check;
    mxu_dtype=jnp.float32 is the exact module math.
    """
    c = lambda a: a.astype(mxu_dtype).astype(jnp.float32)
    B, Cv, H, W = v_nchw.shape
    HW = H * W
    v0 = c(v_nchw)
    q0 = c(q)
    v = v0 / (jnp.linalg.norm(v0, axis=1, keepdims=True) + 1e-8)
    vf = jnp.transpose(v, (0, 2, 3, 1)).reshape(B, HW, Cv)
    v1 = c(vf) @ c(params["wc1"]) + params["bc1"]                 # (B, HW, M)
    q1 = q0 @ c(params["wl1"]) + params["bl1"]                    # (B, M)
    fuse = jnp.maximum(v1 * q1[:, None, :], 0.0)
    x = c(fuse) @ c(params["wc2"]) + params["bc2"]                # (B, HW, G)
    attn = jax.nn.softmax(x, axis=1)                              # softmax over spatial
    wa = jnp.einsum("bsg,bsm->bgm", attn, v1).reshape(B, -1)      # (B, G*M)
    concat = jnp.concatenate([wa, q0], axis=1)
    G, M, Hc = params["w1v"].shape
    w1 = jnp.concatenate([params["w1v"].reshape(G * M, Hc), params["w1q"]], axis=0)
    h = jnp.maximum(c(concat) @ c(w1) + params["b1"], 0.0)
    return c(h) @ c(params["w2"]) + params["b2"]


def make_params(key, Cv, Cq, M, G, Hc, NC):
    ks = jax.random.split(key, 13)
    rn = lambda k, shape, scale: (scale * jax.random.normal(k, shape)).astype(jnp.float32)
    return {
        "wc1": rn(ks[0], (Cv, M), 0.1), "bc1": rn(ks[1], (1, M), 0.01),
        "wl1": rn(ks[2], (Cq, M), 0.1), "bl1": rn(ks[3], (1, M), 0.01),
        "wc2": rn(ks[4], (M, G), 0.1), "bc2": rn(ks[5], (1, G), 0.01),
        "w1v": rn(ks[6], (G, M, Hc), 0.05), "w1q": rn(ks[7], (Cq, Hc), 0.05),
        "b1": rn(ks[8], (1, Hc), 0.01),
        "w2": rn(ks[9], (Hc, NC), 0.05), "b2": rn(ks[10], (1, NC), 0.01),
    }


if __name__ == "__main__":
    # Small shapes consistent with the module:
    B, Cv, H, W = 16, 32, 8, 8     # image features (B, v_features, H, W)
    Cq = 32                        # q_features (PhoBERT feature dim, synthetic)
    M = 32                         # mid_features
    G = 2                          # num_attn_maps
    Hc = 512                       # classifier hidden (fixed at 512 in the module)
    NC = 16                        # num_classes

    key = jax.random.PRNGKey(0)
    kv, kq, kp = jax.random.split(key, 3)
    v = jax.random.normal(kv, (B, Cv, H, W), dtype=jnp.float32)
    q = jax.random.normal(kq, (B, Cq), dtype=jnp.float32)
    params = make_params(kp, Cv, Cq, M, G, Hc, NC)

    out = jax.block_until_ready(vivqa_forward(v, q, params))
    assert out.shape == (B, NC), out.shape

    # Tight check vs. a reference with matched bf16 operand rounding (isolates
    # kernel correctness from the intentional bf16 cast; residual gap is only the
    # approximate softmax reciprocal / rsqrt eps placement).
    ref_bf16 = vivqa_reference(v, q, params, mxu_dtype=jnp.bfloat16)
    err_bf16 = float(jnp.max(jnp.abs(out - ref_bf16)))
    assert jnp.allclose(out, ref_bf16, atol=3e-3, rtol=3e-3), err_bf16

    # Looser sanity check vs. the exact f32 module math; the gap is the bf16
    # operand rounding adopted for DMA/MXU throughput (review item).
    ref_f32 = vivqa_reference(v, q, params)
    err_f32 = float(jnp.max(jnp.abs(out - ref_f32)))
    assert jnp.allclose(out, ref_f32, atol=2e-2, rtol=2e-2), err_f32

    print("KERNEL_OK")
</pallas_src>

<mosaic_0001>
module attributes {stable_mosaic.version = 11 : i64} {
  func.func @_vqa_kernel(%arg0: i32, %arg1: memref<16x64x32xbf16, #tpu.memory_space<vmem>>, %arg2: memref<16x32xbf16, #tpu.memory_space<vmem>>, %arg3: memref<32x32xbf16, #tpu.memory_space<vmem>>, %arg4: memref<1x32xf32, #tpu.memory_space<vmem>>, %arg5: memref<32x32xbf16, #tpu.memory_space<vmem>>, %arg6: memref<1x32xf32, #tpu.memory_space<vmem>>, %arg7: memref<32x2xbf16, #tpu.memory_space<vmem>>, %arg8: memref<1x2xf32, #tpu.memory_space<vmem>>, %arg9: memref<96x512xbf16, #tpu.memory_space<vmem>>, %arg10: memref<1x512xf32, #tpu.memory_space<vmem>>, %arg11: memref<512x128xbf16, #tpu.memory_space<vmem>>, %arg12: memref<1x128xf32, #tpu.memory_space<vmem>>, %arg13: memref<16x128xf32, #tpu.memory_space<vmem>>) attributes {dimension_semantics = [#tpu.dimension_semantics<parallel>], iteration_bounds = array<i64: 1>, scalar_prefetch = 0 : i64, scratch_operands = 0 : i64, tpu.core_type = #tpu.core_type<tc>, window_params = [{transform_indices = @transform_0, window_bounds = array<i64: 16, 64, 32>}, {transform_indices = @transform_1, window_bounds = array<i64: 16, 32>}, {pipeline_mode = #tpu.pipeline_mode<synchronous>, transform_indices = @transform_2, window_bounds = array<i64: 32, 32>}, {pipeline_mode = #tpu.pipeline_mode<synchronous>, transform_indices = @transform_3, window_bounds = array<i64: 1, 32>}, {pipeline_mode = #tpu.pipeline_mode<synchronous>, transform_indices = @transform_4, window_bounds = array<i64: 32, 32>}, {pipeline_mode = #tpu.pipeline_mode<synchronous>, transform_indices = @transform_5, window_bounds = array<i64: 1, 32>}, {pipeline_mode = #tpu.pipeline_mode<synchronous>, transform_indices = @transform_6, window_bounds = array<i64: 32, 2>}, {pipeline_mode = #tpu.pipeline_mode<synchronous>, transform_indices = @transform_7, window_bounds = array<i64: 1, 2>}, {pipeline_mode = #tpu.pipeline_mode<synchronous>, transform_indices = @transform_8, window_bounds = array<i64: 96, 512>}, {pipeline_mode = #tpu.pipeline_mode<synchronous>, transform_indices = @transform_9, window_bounds = array<i64: 1, 512>}, {pipeline_mode = #tpu.pipeline_mode<synchronous>, transform_indices = @transform_10, window_bounds = array<i64: 512, 128>}, {pipeline_mode = #tpu.pipeline_mode<synchronous>, transform_indices = @transform_11, window_bounds = array<i64: 1, 128>}, {transform_indices = @transform_12, window_bounds = array<i64: 16, 128>}]} {
    %c0 = arith.constant 0 : index
    %c0_0 = arith.constant 0 : index
    %c0_1 = arith.constant 0 : index
    %0 = vector.load %arg1[%c0, %c0_0, %c0_1] : memref<16x64x32xbf16, #tpu.memory_space<vmem>>, vector<16x64x32xbf16>
    %1 = arith.extf %0 : vector<16x64x32xbf16> to vector<16x64x32xf32>
    %2 = vector.shape_cast %1 : vector<16x64x32xf32> to vector<1024x32xf32>
    %3 = arith.mulf %2, %2 : vector<1024x32xf32>
    %cst = arith.constant dense<0.000000e+00> : vector<1024xf32>
    %4 = vector.multi_reduction <add>, %3, %cst [1] : vector<1024x32xf32> to vector<1024xf32>
    %5 = vector.shape_cast %4 : vector<1024xf32> to vector<1024x1xf32>
    %cst_2 = arith.constant 9.99999996E-13 : f32
    %6 = vector.broadcast %cst_2 : f32 to vector<1024x1xf32>
    %7 = arith.addf %5, %6 : vector<1024x1xf32>
    %8 = math.rsqrt %7 : vector<1024x1xf32>
    %9 = vector.broadcast %8 : vector<1024x1xf32> to vector<1024x32xf32>
    %10 = arith.mulf %2, %9 : vector<1024x32xf32>
    %11 = arith.truncf %10 : vector<1024x32xf32> to vector<1024x32xbf16>
    %c0_3 = arith.constant 0 : index
    %c0_4 = arith.constant 0 : index
    %12 = vector.load %arg3[%c0_3, %c0_4] : memref<32x32xbf16, #tpu.memory_space<vmem>>, vector<32x32xbf16>
    %cst_5 = arith.constant dense<0.000000e+00> : vector<1024x32xf32>
    %13 = tpu.matmul %11, %12, %cst_5 {dimension_numbers = #tpu.dot_dimension_numbers<[1], [0], [0], [1], [0, 0, 1, 1], [], []>} : vector<1024x32xbf16>, vector<32x32xbf16>, vector<1024x32xf32> -> vector<1024x32xf32>
    %c0_6 = arith.constant 0 : index
    %c0_7 = arith.constant 0 : index
    %14 = vector.load %arg4[%c0_6, %c0_7] : memref<1x32xf32, #tpu.memory_space<vmem>>, vector<1x32xf32>
    %15 = vector.broadcast %14 : vector<1x32xf32> to vector<1024x32xf32>
    %16 = arith.addf %13, %15 : vector<1024x32xf32>
    %c0_8 = arith.constant 0 : index
    %c0_9 = arith.constant 0 : index
    %17 = vector.load %arg2[%c0_8, %c0_9] : memref<16x32xbf16, #tpu.memory_space<vmem>>, vector<16x32xbf16>
    %c0_10 = arith.constant 0 : index
    %c0_11 = arith.constant 0 : index
    %18 = vector.load %arg5[%c0_10, %c0_11] : memref<32x32xbf16, #tpu.memory_space<vmem>>, vector<32x32xbf16>
    %cst_12 = arith.constant dense<0.000000e+00> : vector<16x32xf32>
    %19 = tpu.matmul %17, %18, %cst_12 {dimension_numbers = #tpu.dot_dimension_numbers<[1], [0], [0], [1], [0, 0, 1, 1], [], []>} : vector<16x32xbf16>, vector<32x32xbf16>, vector<16x32xf32> -> vector<16x32xf32>
    %c0_13 = arith.constant 0 : index
    %c0_14 = arith.constant 0 : index
    %20 = vector.load %arg6[%c0_13, %c0_14] : memref<1x32xf32, #tpu.memory_space<vmem>>, vector<1x32xf32>
    %21 = vector.broadcast %20 : vector<1x32xf32> to vector<16x32xf32>
    %22 = arith.addf %19, %21 : vector<16x32xf32>
    %23 = vector.shape_cast %16 : vector<1024x32xf32> to vector<16x64x32xf32>
    %24 = vector.shape_cast %22 : vector<16x32xf32> to vector<16x1x32xf32>
    %25 = vector.broadcast %24 : vector<16x1x32xf32> to vector<16x64x32xf32>
    %26 = arith.mulf %23, %25 : vector<16x64x32xf32>
    %cst_15 = arith.constant 0.000000e+00 : f32
    %27 = vector.broadcast %cst_15 : f32 to vector<16x64x32xf32>
    %28 = arith.maximumf %26, %27 : vector<16x64x32xf32>
    %29 = vector.shape_cast %28 : vector<16x64x32xf32> to vector<1024x32xf32>
    %30 = arith.truncf %29 : vector<1024x32xf32> to vector<1024x32xbf16>
    %c0_16 = arith.constant 0 : index
    %c0_17 = arith.constant 0 : index
    %31 = vector.load %arg7[%c0_16, %c0_17] : memref<32x2xbf16, #tpu.memory_space<vmem>>, vector<32x2xbf16>
    %cst_18 = arith.constant dense<0.000000e+00> : vector<1024x2xf32>
    %32 = tpu.matmul %30, %31, %cst_18 {dimension_numbers = #tpu.dot_dimension_numbers<[1], [0], [0], [1], [0, 0, 1, 1], [], []>} : vector<1024x32xbf16>, vector<32x2xbf16>, vector<1024x2xf32> -> vector<1024x2xf32>
    %c0_19 = arith.constant 0 : index
    %c0_20 = arith.constant 0 : index
    %33 = vector.load %arg8[%c0_19, %c0_20] : memref<1x2xf32, #tpu.memory_space<vmem>>, vector<1x2xf32>
    %34 = vector.broadcast %33 : vector<1x2xf32> to vector<1024x2xf32>
    %35 = arith.addf %32, %34 : vector<1024x2xf32>
    %36 = vector.shape_cast %35 : vector<1024x2xf32> to vector<16x64x2xf32>
    %cst_21 = arith.constant dense<0xFF800000> : vector<16x2xf32>
    %37 = vector.multi_reduction <maximumf>, %36, %cst_21 [1] : vector<16x64x2xf32> to vector<16x2xf32>
    %38 = vector.shape_cast %37 : vector<16x2xf32> to vector<16x1x2xf32>
    %39 = vector.broadcast %38 : vector<16x1x2xf32> to vector<16x64x2xf32>
    %40 = arith.subf %36, %39 : vector<16x64x2xf32>
    %41 = math.exp %40 : vector<16x64x2xf32>
    %cst_22 = arith.constant dense<0.000000e+00> : vector<16x2xf32>
    %42 = vector.multi_reduction <add>, %41, %cst_22 [1] : vector<16x64x2xf32> to vector<16x2xf32>
    %43 = vector.shape_cast %42 : vector<16x2xf32> to vector<16x1x2xf32>
    %44 = tpu.reciprocal %43 {approx = true} : vector<16x1x2xf32> -> vector<16x1x2xf32>
    %45 = vector.broadcast %44 : vector<16x1x2xf32> to vector<16x64x2xf32>
    %46 = arith.mulf %41, %45 : vector<16x64x2xf32>
    %47 = vector.extract_strided_slice %46 {offsets = [0, 0, 0], sizes = [16, 64, 1], strides = [1, 1, 1]} : vector<16x64x2xf32> to vector<16x64x1xf32>
    %48 = vector.broadcast %47 : vector<16x64x1xf32> to vector<16x64x32xf32>
    %49 = arith.mulf %48, %23 : vector<16x64x32xf32>
    %cst_23 = arith.constant dense<0.000000e+00> : vector<16x32xf32>
    %50 = vector.multi_reduction <add>, %49, %cst_23 [1] : vector<16x64x32xf32> to vector<16x32xf32>
    %51 = vector.extract_strided_slice %46 {offsets = [0, 0, 1], sizes = [16, 64, 1], strides = [1, 1, 1]} : vector<16x64x2xf32> to vector<16x64x1xf32>
    %52 = vector.broadcast %51 : vector<16x64x1xf32> to vector<16x64x32xf32>
    %53 = arith.mulf %52, %23 : vector<16x64x32xf32>
    %cst_24 = arith.constant dense<0.000000e+00> : vector<16x32xf32>
    %54 = vector.multi_reduction <add>, %53, %cst_24 [1] : vector<16x64x32xf32> to vector<16x32xf32>
    %55 = arith.extf %17 : vector<16x32xbf16> to vector<16x32xf32>
    %56 = tpu.concatenate %50, %54, %55 in 1 : vector<16x32xf32>, vector<16x32xf32>, vector<16x32xf32> -> vector<16x96xf32>
    %57 = arith.truncf %56 : vector<16x96xf32> to vector<16x96xbf16>
    %c0_25 = arith.constant 0 : index
    %c0_26 = arith.constant 0 : index
    %58 = vector.load %arg9[%c0_25, %c0_26] : memref<96x512xbf16, #tpu.memory_space<vmem>>, vector<96x512xbf16>
    %cst_27 = arith.constant dense<0.000000e+00> : vector<16x512xf32>
    %59 = tpu.matmul %57, %58, %cst_27 {dimension_numbers = #tpu.dot_dimension_numbers<[1], [0], [0], [1], [0, 0, 1, 1], [], []>} : vector<16x96xbf16>, vector<96x512xbf16>, vector<16x512xf32> -> vector<16x512xf32>
    %c0_28 = arith.constant 0 : index
    %c0_29 = arith.constant 0 : index
    %60 = vector.load %arg10[%c0_28, %c0_29] : memref<1x512xf32, #tpu.memory_space<vmem>>, vector<1x512xf32>
    %61 = vector.broadcast %60 : vector<1x512xf32> to vector<16x512xf32>
    %62 = arith.addf %59, %61 : vector<16x512xf32>
    %cst_30 = arith.constant 0.000000e+00 : f32
    %63 = vector.broadcast %cst_30 : f32 to vector<16x512xf32>
    %64 = arith.maximumf %62, %63 : vector<16x512xf32>
    %65 = arith.truncf %64 : vector<16x512xf32> to vector<16x512xbf16>
    %c0_31 = arith.constant 0 : index
    %c0_32 = arith.constant 0 : index
    %66 = vector.load %arg11[%c0_31, %c0_32] : memref<512x128xbf16, #tpu.memory_space<vmem>>, vector<512x128xbf16>
    %cst_33 = arith.constant dense<0.000000e+00> : vector<16x128xf32>
    %67 = tpu.matmul %65, %66, %cst_33 {dimension_numbers = #tpu.dot_dimension_numbers<[1], [0], [0], [1], [0, 0, 1, 1], [], []>} : vector<16x512xbf16>, vector<512x128xbf16>, vector<16x128xf32> -> vector<16x128xf32>
    %c0_34 = arith.constant 0 : index
    %c0_35 = arith.constant 0 : index
    %68 = vector.load %arg12[%c0_34, %c0_35] : memref<1x128xf32, #tpu.memory_space<vmem>>, vector<1x128xf32>
    %69 = vector.broadcast %68 : vector<1x128xf32> to vector<16x128xf32>
    %70 = arith.addf %67, %69 : vector<16x128xf32>
    %c0_36 = arith.constant 0 : index
    %c0_37 = arith.constant 0 : index
    %71 = vector.load %arg13[%c0_36, %c0_37] : memref<16x128xf32, #tpu.memory_space<vmem>>, vector<16x128xf32>
    tpu.vector_store %arg13[%c0_36, %c0_37], %70 {strides = array<i32>} : memref<16x128xf32, #tpu.memory_space<vmem>>, vector<16x128xf32>,
    return
  }
  func.func @transform_0(%arg0: i32) -> (i32, i32, i32) {
    %c0_i32 = arith.constant 0 : i32
    %c0_i32_0 = arith.constant 0 : i32
    %c0_i32_1 = arith.constant 0 : i32
    return %arg0, %c0_i32, %c0_i32_0 : i32, i32, i32
  }
  func.func @transform_1(%arg0: i32) -> (i32, i32) {
    %c0_i32 = arith.constant 0 : i32
    %c0_i32_0 = arith.constant 0 : i32
    return %arg0, %c0_i32 : i32, i32
  }
  func.func @transform_2(%arg0: i32) -> (i32, i32) {
    %c0_i32 = arith.constant 0 : i32
    %c0_i32_0 = arith.constant 0 : i32
    %c0_i32_1 = arith.constant 0 : i32
    return %c0_i32, %c0_i32_0 : i32, i32
  }
  func.func @transform_3(%arg0: i32) -> (i32, i32) {
    %c0_i32 = arith.constant 0 : i32
    %c0_i32_0 = arith.constant 0 : i32
    %c0_i32_1 = arith.constant 0 : i32
    return %c0_i32, %c0_i32_0 : i32, i32
  }
  func.func @transform_4(%arg0: i32) -> (i32, i32) {
    %c0_i32 = arith.constant 0 : i32
    %c0_i32_0 = arith.constant 0 : i32
    %c0_i32_1 = arith.constant 0 : i32
    return %c0_i32, %c0_i32_0 : i32, i32
  }
  func.func @transform_5(%arg0: i32) -> (i32, i32) {
    %c0_i32 = arith.constant 0 : i32
    %c0_i32_0 = arith.constant 0 : i32
    %c0_i32_1 = arith.constant 0 : i32
    return %c0_i32, %c0_i32_0 : i32, i32
  }
  func.func @transform_6(%arg0: i32) -> (i32, i32) {
    %c0_i32 = arith.constant 0 : i32
    %c0_i32_0 = arith.constant 0 : i32
    %c0_i32_1 = arith.constant 0 : i32
    return %c0_i32, %c0_i32_0 : i32, i32
  }
  func.func @transform_7(%arg0: i32) -> (i32, i32) {
    %c0_i32 = arith.constant 0 : i32
    %c0_i32_0 = arith.constant 0 : i32
    %c0_i32_1 = arith.constant 0 : i32
    return %c0_i32, %c0_i32_0 : i32, i32
  }
  func.func @transform_8(%arg0: i32) -> (i32, i32) {
    %c0_i32 = arith.constant 0 : i32
    %c0_i32_0 = arith.constant 0 : i32
    %c0_i32_1 = arith.constant 0 : i32
    return %c0_i32, %c0_i32_0 : i32, i32
  }
  func.func @transform_9(%arg0: i32) -> (i32, i32) {
    %c0_i32 = arith.constant 0 : i32
    %c0_i32_0 = arith.constant 0 : i32
    %c0_i32_1 = arith.constant 0 : i32
    return %c0_i32, %c0_i32_0 : i32, i32
  }
  func.func @transform_10(%arg0: i32) -> (i32, i32) {
    %c0_i32 = arith.constant 0 : i32
    %c0_i32_0 = arith.constant 0 : i32
    %c0_i32_1 = arith.constant 0 : i32
    return %c0_i32, %c0_i32_0 : i32, i32
  }
  func.func @transform_11(%arg0: i32) -> (i32, i32) {
    %c0_i32 = arith.constant 0 : i32
    %c0_i32_0 = arith.constant 0 : i32
    %c0_i32_1 = arith.constant 0 : i32
    return %c0_i32, %c0_i32_0 : i32, i32
  }
  func.func @transform_12(%arg0: i32) -> (i32, i32) {
    %c0_i32 = arith.constant 0 : i32
    %c0_i32_0 = arith.constant 0 : i32
    return %arg0, %c0_i32 : i32, i32
  }
}

</mosaic_0001>

<llo_original>
// kernel: tpu_custom_call.1
$region0: #{tpu_custom_call.1}
  #allocation0 [shape = 'u32[]', space=smem, size = 0x4, offset = 0x4, fixed_abs, tag = 'smem constant byte address 0x4 - core index']
  #allocation1 [shape = 'u32[144,128]{1,0:T(1,128)}', space=vmem, size = 0x12000, scoped, tag = 'internal scratch']
  %s0 = inlined_call_operand.vmem [shape: bf16[16,64,32], index: 0, kind: input, shape index: {}]
  %s1 = inlined_call_operand.vmem [shape: bf16[16,32], index: 1, kind: input, shape index: {}]
  %s2 = inlined_call_operand.vmem [shape: bf16[32,32], index: 2, kind: input, shape index: {}]
  %s3 = inlined_call_operand.vmem [shape: f32[1,32], index: 3, kind: input, shape index: {}]
  %s4 = inlined_call_operand.vmem [shape: bf16[32,32], index: 4, kind: input, shape index: {}]
  %s5 = inlined_call_operand.vmem [shape: f32[1,32], index: 5, kind: input, shape index: {}]
  %s6 = inlined_call_operand.vmem [shape: bf16[32,2], index: 6, kind: input, shape index: {}]
  %s7 = inlined_call_operand.vmem [shape: f32[1,2], index: 7, kind: input, shape index: {}]
  %s8 = inlined_call_operand.vmem [shape: bf16[96,512], index: 8, kind: input, shape index: {}]
  %s9 = inlined_call_operand.vmem [shape: f32[1,512], index: 9, kind: input, shape index: {}]
  %s10 = inlined_call_operand.vmem [shape: bf16[512,128], index: 10, kind: input, shape index: {}]
  %s11 = inlined_call_operand.vmem [shape: f32[1,128], index: 11, kind: input, shape index: {}]
  %s12 = inlined_call_operand.hbm [shape: f32[16,128], index: 12, kind: output, shape index: {}]
  %s13 = sld [smem:[#allocation0]]
  $region58: #{tpu_custom_call.1} parent=0
    _
  %s15 = ssub.s32 1, %s13
  %s16 = scalar_select 0, %s15, %s13
  $region1: #{tpu_custom_call.1} parent=0
    #allocation2 [shape = 'u8[8192]{0}', space=vmem, size = 0x2000, scoped, tag = 'output window, operand 0, single buffered']
    #allocation3 [shape = 's32[1]{0}', space=sflag, size = 0x4, scoped, tag = 'scoped memory for tpu_custom_call.1']
    %17 = vsyncpa [#allocation3], 0
    // Predicated region
    $region2: #{tpu_custom_call.1} parent=1 // pred_check
      _
    $region3: #{tpu_custom_call.1} parent=1 // pred_check_branch
      %19 = sbr.rel (0) target = $region5
    $region4: #{tpu_custom_call.1} parent=1 // pred_region
      _
    $region5: #{tpu_custom_call.1} parent=1 // pred_fallthru
      _
    // Predicated region
    $region6: #{tpu_custom_call.1} parent=1 // pred_check
      _
    $region7: #{tpu_custom_call.1} parent=1 // pred_check_branch
      %21 = sbr.rel (0) target = $region9
    $region8: #{tpu_custom_call.1} parent=1 // pred_region
      _
    $region9: #{tpu_custom_call.1} parent=1 // pred_fallthru
      _
    // Predicated region
    $region10: #{tpu_custom_call.1} parent=1 // pred_check
      _
    $region11: #{tpu_custom_call.1} parent=1 // pred_check_branch
      %23 = sbr.rel (0) target = $region13
    $region12: #{tpu_custom_call.1} parent=1 // pred_region
      _
    $region13: #{tpu_custom_call.1} parent=1 // pred_fallthru
      _
    // Predicated region
    $region14: #{tpu_custom_call.1} parent=1 // pred_check
      _
    $region15: #{tpu_custom_call.1} parent=1 // pred_check_branch
      %25 = sbr.rel (0) target = $region17
    $region16: #{tpu_custom_call.1} parent=1 // pred_region
      _
    $region17: #{tpu_custom_call.1} parent=1 // pred_fallthru
      _
    // Predicated region
    $region18: #{tpu_custom_call.1} parent=1 // pred_check
      _
    $region19: #{tpu_custom_call.1} parent=1 // pred_check_branch
      %27 = sbr.rel (0) target = $region21
    $region20: #{tpu_custom_call.1} parent=1 // pred_region
      _
    $region21: #{tpu_custom_call.1} parent=1 // pred_fallthru
      _
    // Predicated region
    $region22: #{tpu_custom_call.1} parent=1 // pred_check
      _
    $region23: #{tpu_custom_call.1} parent=1 // pred_check_branch
      %29 = sbr.rel (0) target = $region25
    $region24: #{tpu_custom_call.1} parent=1 // pred_region
      _
    $region25: #{tpu_custom_call.1} parent=1 // pred_fallthru
      _
    // Predicated region
    $region26: #{tpu_custom_call.1} parent=1 // pred_check
      _
    $region27: #{tpu_custom_call.1} parent=1 // pred_check_branch
      %31 = sbr.rel (0) target = $region29
    $region28: #{tpu_custom_call.1} parent=1 // pred_region
      _
    $region29: #{tpu_custom_call.1} parent=1 // pred_fallthru
      _
    // Predicated region
    $region30: #{tpu_custom_call.1} parent=1 // pred_check
      _
    $region31: #{tpu_custom_call.1} parent=1 // pred_check_branch
      %33 = sbr.rel (0) target = $region33
    $region32: #{tpu_custom_call.1} parent=1 // pred_region
      _
    $region33: #{tpu_custom_call.1} parent=1 // pred_fallthru
      _
    // Predicated region
    $region34: #{tpu_custom_call.1} parent=1 // pred_check
      _
    $region35: #{tpu_custom_call.1} parent=1 // pred_check_branch
      %35 = sbr.rel (0) target = $region37
    $region36: #{tpu_custom_call.1} parent=1 // pred_region
      _
    $region37: #{tpu_custom_call.1} parent=1 // pred_fallthru
      _
    // Predicated region
    $region38: #{tpu_custom_call.1} parent=1 // pred_check
      _
    $region39: #{tpu_custom_call.1} parent=1 // pred_check_branch
      %37 = sbr.rel (0) target = $region41
    $region40: #{tpu_custom_call.1} parent=1 // pred_region
      _
    $region41: #{tpu_custom_call.1} parent=1 // pred_fallthru
      _
    // Predicated region
    $region42: #{tpu_custom_call.1} parent=1 // pred_check
      _
    $region43: #{tpu_custom_call.1} parent=1 // pred_check_branch
      %39 = sbr.rel (0) target = $region45
    $region44: #{tpu_custom_call.1} parent=1 // pred_region
      _
    $region45: #{tpu_custom_call.1} parent=1 // pred_fallthru
      _
    // Predicated region
    $region46: #{tpu_custom_call.1} parent=1 // pred_check
      _
    $region47: #{tpu_custom_call.1} parent=1 // pred_check_branch
      %41 = sbr.rel (0) target = $region49
    $region48: #{tpu_custom_call.1} parent=1 // pred_region
      _
    $region49: #{tpu_custom_call.1} parent=1 // pred_fallthru
      _
    %v43 = vld [vmem:[%s0] sm:$0xf]
    %v44 = vld [vmem:[%s0 + $0x4] sm:$0xf]
    %v45 = vld [vmem:[%s0 + $0x8] sm:$0xf]
    %v46 = vld [vmem:[%s0 + $0xc] sm:$0xf]
    %v47 = vld [vmem:[%s0 + $0x10] sm:$0xf]
    %v48 = vld [vmem:[%s0 + $0x14] sm:$0xf]
    %v49 = vld [vmem:[%s0 + $0x18] sm:$0xf]
    %v50 = vld [vmem:[%s0 + $0x1c] sm:$0xf]
    %v51 = vld [vmem:[%s0 + $0x20] sm:$0xf]
    %v52 = vld [vmem:[%s0 + $0x24] sm:$0xf]
    %v53 = vld [vmem:[%s0 + $0x28] sm:$0xf]
    %v54 = vld [vmem:[%s0 + $0x2c] sm:$0xf]
    %v55 = vld [vmem:[%s0 + $0x30] sm:$0xf]
    %v56 = vld [vmem:[%s0 + $0x34] sm:$0xf]
    %v57 = vld [vmem:[%s0 + $0x38] sm:$0xf]
    %v58 = vld [vmem:[%s0 + $0x3c] sm:$0xf]
    %v59 = vld [vmem:[%s0 + $0x40] sm:$0xf]
    %v60 = vld [vmem:[%s0 + $0x44] sm:$0xf]
    %v61 = vld [vmem:[%s0 + $0x48] sm:$0xf]
    %v62 = vld [vmem:[%s0 + $0x4c] sm:$0xf]
    %v63 = vld [vmem:[%s0 + $0x50] sm:$0xf]
    %v64 = vld [vmem:[%s0 + $0x54] sm:$0xf]
    %v65 = vld [vmem:[%s0 + $0x58] sm:$0xf]
    %v66 = vld [vmem:[%s0 + $0x5c] sm:$0xf]
    %v67 = vld [vmem:[%s0 + $0x60] sm:$0xf]
    %v68 = vld [vmem:[%s0 + $0x64] sm:$0xf]
    %v69 = vld [vmem:[%s0 + $0x68] sm:$0xf]
    %v70 = vld [vmem:[%s0 + $0x6c] sm:$0xf]
    %v71 = vld [vmem:[%s0 + $0x70] sm:$0xf]
    %v72 = vld [vmem:[%s0 + $0x74] sm:$0xf]
    %v73 = vld [vmem:[%s0 + $0x78] sm:$0xf]
    %v74 = vld [vmem:[%s0 + $0x7c] sm:$0xf]
    %v75 = vld [vmem:[%s0 + $0x80] sm:$0xf]
    %v76 = vld [vmem:[%s0 + $0x84] sm:$0xf]
    %v77 = vld [vmem:[%s0 + $0x88] sm:$0xf]
    %v78 = vld [vmem:[%s0 + $0x8c] sm:$0xf]
    %v79 = vld [vmem:[%s0 + $0x90] sm:$0xf]
    %v80 = vld [vmem:[%s0 + $0x94] sm:$0xf]
    %v81 = vld [vmem:[%s0 + $0x98] sm:$0xf]
    %v82 = vld [vmem:[%s0 + $0x9c] sm:$0xf]
    %v83 = vld [vmem:[%s0 + $0xa0] sm:$0xf]
    %v84 = vld [vmem:[%s0 + $0xa4] sm:$0xf]
    %v85 = vld [vmem:[%s0 + $0xa8] sm:$0xf]
    %v86 = vld [vmem:[%s0 + $0xac] sm:$0xf]
    %v87 = vld [vmem:[%s0 + $0xb0] sm:$0xf]
    %v88 = vld [vmem:[%s0 + $0xb4] sm:$0xf]
    %v89 = vld [vmem:[%s0 + $0xb8] sm:$0xf]
    %v90 = vld [vmem:[%s0 + $0xbc] sm:$0xf]
    %v91 = vld [vmem:[%s0 + $0xc0] sm:$0xf]
    %v92 = vld [vmem:[%s0 + $0xc4] sm:$0xf]
    %v93 = vld [vmem:[%s0 + $0xc8] sm:$0xf]
    %v94 = vld [vmem:[%s0 + $0xcc] sm:$0xf]
    %v95 = vld [vmem:[%s0 + $0xd0] sm:$0xf]
    %v96 = vld [vmem:[%s0 + $0xd4] sm:$0xf]
    %v97 = vld [vmem:[%s0 + $0xd8] sm:$0xf]
    %v98 = vld [vmem:[%s0 + $0xdc] sm:$0xf]
    %v99 = vld [vmem:[%s0 + $0xe0] sm:$0xf]
    %v100 = vld [vmem:[%s0 + $0xe4] sm:$0xf]
    %v101 = vld [vmem:[%s0 + $0xe8] sm:$0xf]
    %v102 = vld [vmem:[%s0 + $0xec] sm:$0xf]
    %v103 = vld [vmem:[%s0 + $0xf0] sm:$0xf]
    %v104 = vld [vmem:[%s0 + $0xf4] sm:$0xf]
    %v105 = vld [vmem:[%s0 + $0xf8] sm:$0xf]
    %v106 = vld [vmem:[%s0 + $0xfc] sm:$0xf]
    %v107 = vld [vmem:[%s0 + $0x100] sm:$0xf]
    %v108 = vld [vmem:[%s0 + $0x104] sm:$0xf]
    %v109 = vld [vmem:[%s0 + $0x108] sm:$0xf]
    %v110 = vld [vmem:[%s0 + $0x10c] sm:$0xf]
    %v111 = vld [vmem:[%s0 + $0x110] sm:$0xf]
    %v112 = vld [vmem:[%s0 + $0x114] sm:$0xf]
    %v113 = vld [vmem:[%s0 + $0x118] sm:$0xf]
    %v114 = vld [vmem:[%s0 + $0x11c] sm:$0xf]
    %v115 = vld [vmem:[%s0 + $0x120] sm:$0xf]
    %v116 = vld [vmem:[%s0 + $0x124] sm:$0xf]
    %v117 = vld [vmem:[%s0 + $0x128] sm:$0xf]
    %v118 = vld [vmem:[%s0 + $0x12c] sm:$0xf]
    %v119 = vld [vmem:[%s0 + $0x130] sm:$0xf]
    %v120 = vld [vmem:[%s0 + $0x134] sm:$0xf]
    %v121 = vld [vmem:[%s0 + $0x138] sm:$0xf]
    %v122 = vld [vmem:[%s0 + $0x13c] sm:$0xf]
    %v123 = vld [vmem:[%s0 + $0x140] sm:$0xf]
    %v124 = vld [vmem:[%s0 + $0x144] sm:$0xf]
    %v125 = vld [vmem:[%s0 + $0x148] sm:$0xf]
    %v126 = vld [vmem:[%s0 + $0x14c] sm:$0xf]
    %v127 = vld [vmem:[%s0 + $0x150] sm:$0xf]
    %v128 = vld [vmem:[%s0 + $0x154] sm:$0xf]
    %v129 = vld [vmem:[%s0 + $0x158] sm:$0xf]
    %v130 = vld [vmem:[%s0 + $0x15c] sm:$0xf]
    %v131 = vld [vmem:[%s0 + $0x160] sm:$0xf]
    %v132 = vld [vmem:[%s0 + $0x164] sm:$0xf]
    %v133 = vld [vmem:[%s0 + $0x168] sm:$0xf]
    %v134 = vld [vmem:[%s0 + $0x16c] sm:$0xf]
    %v135 = vld [vmem:[%s0 + $0x170] sm:$0xf]
    %v136 = vld [vmem:[%s0 + $0x174] sm:$0xf]
    %v137 = vld [vmem:[%s0 + $0x178] sm:$0xf]
    %v138 = vld [vmem:[%s0 + $0x17c] sm:$0xf]
    %v139 = vld [vmem:[%s0 + $0x180] sm:$0xf]
    %v140 = vld [vmem:[%s0 + $0x184] sm:$0xf]
    %v141 = vld [vmem:[%s0 + $0x188] sm:$0xf]
    %v142 = vld [vmem:[%s0 + $0x18c] sm:$0xf]
    %v143 = vld [vmem:[%s0 + $0x190] sm:$0xf]
    %v144 = vld [vmem:[%s0 + $0x194] sm:$0xf]
    %v145 = vld [vmem:[%s0 + $0x198] sm:$0xf]
    %v146 = vld [vmem:[%s0 + $0x19c] sm:$0xf]
    %v147 = vld [vmem:[%s0 + $0x1a0] sm:$0xf]
    %v148 = vld [vmem:[%s0 + $0x1a4] sm:$0xf]
    %v149 = vld [vmem:[%s0 + $0x1a8] sm:$0xf]
    %v150 = vld [vmem:[%s0 + $0x1ac] sm:$0xf]
    %v151 = vld [vmem:[%s0 + $0x1b0] sm:$0xf]
    %v152 = vld [vmem:[%s0 + $0x1b4] sm:$0xf]
    %v153 = vld [vmem:[%s0 + $0x1b8] sm:$0xf]
    %v154 = vld [vmem:[%s0 + $0x1bc] sm:$0xf]
    %v155 = vld [vmem:[%s0 + $0x1c0] sm:$0xf]
    %v156 = vld [vmem:[%s0 + $0x1c4] sm:$0xf]
    %v157 = vld [vmem:[%s0 + $0x1c8] sm:$0xf]
    %v158 = vld [vmem:[%s0 + $0x1cc] sm:$0xf]
    %v159 = vld [vmem:[%s0 + $0x1d0] sm:$0xf]
    %v160 = vld [vmem:[%s0 + $0x1d4] sm:$0xf]
    %v161 = vld [vmem:[%s0 + $0x1d8] sm:$0xf]
    %v162 = vld [vmem:[%s0 + $0x1dc] sm:$0xf]
    %v163 = vld [vmem:[%s0 + $0x1e0] sm:$0xf]
    %v164 = vld [vmem:[%s0 + $0x1e4] sm:$0xf]
    %v165 = vld [vmem:[%s0 + $0x1e8] sm:$0xf]
    %v166 = vld [vmem:[%s0 + $0x1ec] sm:$0xf]
    %v167 = vld [vmem:[%s0 + $0x1f0] sm:$0xf]
    %v168 = vld [vmem:[%s0 + $0x1f4] sm:$0xf]
    %v169 = vld [vmem:[%s0 + $0x1f8] sm:$0xf]
    %v170 = vld [vmem:[%s0 + $0x1fc] sm:$0xf]
    %v171 = vunpack.c.l.bf16 %v43
    %v172 = vunpack.c.l.bf16 %v44
    %v173 = vunpack.c.l.bf16 %v45
    %v174 = vunpack.c.l.bf16 %v46
    %v175 = vunpack.c.l.bf16 %v47
    %v176 = vunpack.c.l.bf16 %v48
    %v177 = vunpack.c.l.bf16 %v49
    %v178 = vunpack.c.l.bf16 %v50
    %v179 = vunpack.c.l.bf16 %v51
    %v180 = vunpack.c.l.bf16 %v52
    %v181 = vunpack.c.l.bf16 %v53
    %v182 = vunpack.c.l.bf16 %v54
    %v183 = vunpack.c.l.bf16 %v55
    %v184 = vunpack.c.l.bf16 %v56
    %v185 = vunpack.c.l.bf16 %v57
    %v186 = vunpack.c.l.bf16 %v58
    %v187 = vunpack.c.l.bf16 %v59
    %v188 = vunpack.c.l.bf16 %v60
    %v189 = vunpack.c.l.bf16 %v61
    %v190 = vunpack.c.l.bf16 %v62
    %v191 = vunpack.c.l.bf16 %v63
    %v192 = vunpack.c.l.bf16 %v64
    %v193 = vunpack.c.l.bf16 %v65
    %v194 = vunpack.c.l.bf16 %v66
    %v195 = vunpack.c.l.bf16 %v67
    %v196 = vunpack.c.l.bf16 %v68
    %v197 = vunpack.c.l.bf16 %v69
    %v198 = vunpack.c.l.bf16 %v70
    %v199 = vunpack.c.l.bf16 %v71
    %v200 = vunpack.c.l.bf16 %v72
    %v201 = vunpack.c.l.bf16 %v73
    %v202 = vunpack.c.l.bf16 %v74
    %v203 = vunpack.c.l.bf16 %v75
    %v204 = vunpack.c.l.bf16 %v76
    %v205 = vunpack.c.l.bf16 %v77
    %v206 = vunpack.c.l.bf16 %v78
    %v207 = vunpack.c.l.bf16 %v79
    %v208 = vunpack.c.l.bf16 %v80
    %v209 = vunpack.c.l.bf16 %v81
    %v210 = vunpack.c.l.bf16 %v82
    %v211 = vunpack.c.l.bf16 %v83
    %v212 = vunpack.c.l.bf16 %v84
    %v213 = vunpack.c.l.bf16 %v85
    %v214 = vunpack.c.l.bf16 %v86
    %v215 = vunpack.c.l.bf16 %v87
    %v216 = vunpack.c.l.bf16 %v88
    %v217 = vunpack.c.l.bf16 %v89
    %v218 = vunpack.c.l.bf16 %v90
    %v219 = vunpack.c.l.bf16 %v91
    %v220 = vunpack.c.l.bf16 %v92
    %v221 = vunpack.c.l.bf16 %v93
    %v222 = vunpack.c.l.bf16 %v94
    %v223 = vunpack.c.l.bf16 %v95
    %v224 = vunpack.c.l.bf16 %v96
    %v225 = vunpack.c.l.bf16 %v97
    %v226 = vunpack.c.l.bf16 %v98
    %v227 = vunpack.c.l.bf16 %v99
    %v228 = vunpack.c.l.bf16 %v100
    %v229 = vunpack.c.l.bf16 %v101
    %v230 = vunpack.c.l.bf16 %v102
    %v231 = vunpack.c.l.bf16 %v103
    %v232 = vunpack.c.l.bf16 %v104
    %v233 = vunpack.c.l.bf16 %v105
    %v234 = vunpack.c.l.bf16 %v106
    %v235 = vunpack.c.l.bf16 %v107
    %v236 = vunpack.c.l.bf16 %v108
    %v237 = vunpack.c.l.bf16 %v109
    %v238 = vunpack.c.l.bf16 %v110
    %v239 = vunpack.c.l.bf16 %v111
    %v240 = vunpack.c.l.bf16 %v112
    %v241 = vunpack.c.l.bf16 %v113
    %v242 = vunpack.c.l.bf16 %v114
    %v243 = vunpack.c.l.bf16 %v115
    %v244 = vunpack.c.l.bf16 %v116
    %v245 = vunpack.c.l.bf16 %v117
    %v246 = vunpack.c.l.bf16 %v118
    %v247 = vunpack.c.l.bf16 %v119
    %v248 = vunpack.c.l.bf16 %v120
    %v249 = vunpack.c.l.bf16 %v121
    %v250 = vunpack.c.l.bf16 %v122
    %v251 = vunpack.c.l.bf16 %v123
    %v252 = vunpack.c.l.bf16 %v124
    %v253 = vunpack.c.l.bf16 %v125
    %v254 = vunpack.c.l.bf16 %v126
    %v255 = vunpack.c.l.bf16 %v127
    %v256 = vunpack.c.l.bf16 %v128
    %v257 = vunpack.c.l.bf16 %v129
    %v258 = vunpack.c.l.bf16 %v130
    %v259 = vunpack.c.l.bf16 %v131
    %v260 = vunpack.c.l.bf16 %v132
    %v261 = vunpack.c.l.bf16 %v133
    %v262 = vunpack.c.l.bf16 %v134
    %v263 = vunpack.c.l.bf16 %v135
    %v264 = vunpack.c.l.bf16 %v136
    %v265 = vunpack.c.l.bf16 %v137
    %v266 = vunpack.c.l.bf16 %v138
    %v267 = vunpack.c.l.bf16 %v139
    %v268 = vunpack.c.l.bf16 %v140
    %v269 = vunpack.c.l.bf16 %v141
    %v270 = vunpack.c.l.bf16 %v142
    %v271 = vunpack.c.l.bf16 %v143
    %v272 = vunpack.c.l.bf16 %v144
    %v273 = vunpack.c.l.bf16 %v145
    %v274 = vunpack.c.l.bf16 %v146
    %v275 = vunpack.c.l.bf16 %v147
    %v276 = vunpack.c.l.bf16 %v148
    %v277 = vunpack.c.l.bf16 %v149
    %v278 = vunpack.c.l.bf16 %v150
    %v279 = vunpack.c.l.bf16 %v151
    %v280 = vunpack.c.l.bf16 %v152
    %v281 = vunpack.c.l.bf16 %v153
    %v282 = vunpack.c.l.bf16 %v154
    %v283 = vunpack.c.l.bf16 %v155
    %v284 = vunpack.c.l.bf16 %v156
    %v285 = vunpack.c.l.bf16 %v157
    %v286 = vunpack.c.l.bf16 %v158
    %v287 = vunpack.c.l.bf16 %v159
    %v288 = vunpack.c.l.bf16 %v160
    %v289 = vunpack.c.l.bf16 %v161
    %v290 = vunpack.c.l.bf16 %v162
    %v291 = vunpack.c.l.bf16 %v163
    %v292 = vunpack.c.l.bf16 %v164
    %v293 = vunpack.c.l.bf16 %v165
    %v294 = vunpack.c.l.bf16 %v166
    %v295 = vunpack.c.l.bf16 %v167
    %v296 = vunpack.c.l.bf16 %v168
    %v297 = vunpack.c.l.bf16 %v169
    %v298 = vunpack.c.l.bf16 %v170
    %v299 = vmul.f32 %v171, %v171
    %v300 = vmul.f32 %v172, %v172
    %v301 = vmul.f32 %v173, %v173
    %v302 = vmul.f32 %v174, %v174
    %v303 = vmul.f32 %v175, %v175
    %v304 = vmul.f32 %v176, %v176
    %v305 = vmul.f32 %v177, %v177
    %v306 = vmul.f32 %v178, %v178
    %v307 = vmul.f32 %v179, %v179
    %v308 = vmul.f32 %v180, %v180
    %v309 = vmul.f32 %v181, %v181
    %v310 = vmul.f32 %v182, %v182
    %v311 = vmul.f32 %v183, %v183
    %v312 = vmul.f32 %v184, %v184
    %v313 = vmul.f32 %v185, %v185
    %v314 = vmul.f32 %v186, %v186
    %v315 = vmul.f32 %v187, %v187
    %v316 = vmul.f32 %v188, %v188
    %v317 = vmul.f32 %v189, %v189
    %v318 = vmul.f32 %v190, %v190
    %v319 = vmul.f32 %v191, %v191
    %v320 = vmul.f32 %v192, %v192
    %v321 = vmul.f32 %v193, %v193
    %v322 = vmul.f32 %v194, %v194
    %v323 = vmul.f32 %v195, %v195
    %v324 = vmul.f32 %v196, %v196
    %v325 = vmul.f32 %v197, %v197
    %v326 = vmul.f32 %v198, %v198
    %v327 = vmul.f32 %v199, %v199
    %v328 = vmul.f32 %v200, %v200
    %v329 = vmul.f32 %v201, %v201
    %v330 = vmul.f32 %v202, %v202
    %v331 = vmul.f32 %v203, %v203
    %v332 = vmul.f32 %v204, %v204
    %v333 = vmul.f32 %v205, %v205
    %v334 = vmul.f32 %v206, %v206
    %v335 = vmul.f32 %v207, %v207
    %v336 = vmul.f32 %v208, %v208
    %v337 = vmul.f32 %v209, %v209
    %v338 = vmul.f32 %v210, %v210
    %v339 = vmul.f32 %v211, %v211
    %v340 = vmul.f32 %v212, %v212
    %v341 = vmul.f32 %v213, %v213
    %v342 = vmul.f32 %v214, %v214
    %v343 = vmul.f32 %v215, %v215
    %v344 = vmul.f32 %v216, %v216
    %v345 = vmul.f32 %v217, %v217
    %v346 = vmul.f32 %v218, %v218
    %v347 = vmul.f32 %v219, %v219
    %v348 = vmul.f32 %v220, %v220
    %v349 = vmul.f32 %v221, %v221
    %v350 = vmul.f32 %v222, %v222
    %v351 = vmul.f32 %v223, %v223
    %v352 = vmul.f32 %v224, %v224
    %v353 = vmul.f32 %v225, %v225
    %v354 = vmul.f32 %v226, %v226
    %v355 = vmul.f32 %v227, %v227
    %v356 = vmul.f32 %v228, %v228
    %v357 = vmul.f32 %v229, %v229
    %v358 = vmul.f32 %v230, %v230
    %v359 = vmul.f32 %v231, %v231
    %v360 = vmul.f32 %v232, %v232
    %v361 = vmul.f32 %v233, %v233
    %v362 = vmul.f32 %v234, %v234
    %v363 = vmul.f32 %v235, %v235
    %v364 = vmul.f32 %v236, %v236
    %v365 = vmul.f32 %v237, %v237
    %v366 = vmul.f32 %v238, %v238
    %v367 = vmul.f32 %v239, %v239
    %v368 = vmul.f32 %v240, %v240
    %v369 = vmul.f32 %v241, %v241
    %v370 = vmul.f32 %v242, %v242
    %v371 = vmul.f32 %v243, %v243
    %v372 = vmul.f32 %v244, %v244
    %v373 = vmul.f32 %v245, %v245
    %v374 = vmul.f32 %v246, %v246
    %v375 = vmul.f32 %v247, %v247
    %v376 = vmul.f32 %v248, %v248
    %v377 = vmul.f32 %v249, %v249
    %v378 = vmul.f32 %v250, %v250
    %v379 = vmul.f32 %v251, %v251
    %v380 = vmul.f32 %v252, %v252
    %v381 = vmul.f32 %v253, %v253
    %v382 = vmul.f32 %v254, %v254
    %v383 = vmul.f32 %v255, %v255
    %v384 = vmul.f32 %v256, %v256
    %v385 = vmul.f32 %v257, %v257
    %v386 = vmul.f32 %v258, %v258
    %v387 = vmul.f32 %v259, %v259
    %v388 = vmul.f32 %v260, %v260
    %v389 = vmul.f32 %v261, %v261
    %v390 = vmul.f32 %v262, %v262
    %v391 = vmul.f32 %v263, %v263
    %v392 = vmul.f32 %v264, %v264
    %v393 = vmul.f32 %v265, %v265
    %v394 = vmul.f32 %v266, %v266
    %v395 = vmul.f32 %v267, %v267
    %v396 = vmul.f32 %v268, %v268
    %v397 = vmul.f32 %v269, %v269
    %v398 = vmul.f32 %v270, %v270
    %v399 = vmul.f32 %v271, %v271
    %v400 = vmul.f32 %v272, %v272
    %v401 = vmul.f32 %v273, %v273
    %v402 = vmul.f32 %v274, %v274
    %v403 = vmul.f32 %v275, %v275
    %v404 = vmul.f32 %v276, %v276
    %v405 = vmul.f32 %v277, %v277
    %v406 = vmul.f32 %v278, %v278
    %v407 = vmul.f32 %v279, %v279
    %v408 = vmul.f32 %v280, %v280
    %v409 = vmul.f32 %v281, %v281
    %v410 = vmul.f32 %v282, %v282
    %v411 = vmul.f32 %v283, %v283
    %v412 = vmul.f32 %v284, %v284
    %v413 = vmul.f32 %v285, %v285
    %v414 = vmul.f32 %v286, %v286
    %v415 = vmul.f32 %v287, %v287
    %v416 = vmul.f32 %v288, %v288
    %v417 = vmul.f32 %v289, %v289
    %v418 = vmul.f32 %v290, %v290
    %v419 = vmul.f32 %v291, %v291
    %v420 = vmul.f32 %v292, %v292
    %v421 = vmul.f32 %v293, %v293
    %v422 = vmul.f32 %v294, %v294
    %v423 = vmul.f32 %v295, %v295
    %v424 = vmul.f32 %v296, %v296
    %v425 = vmul.f32 %v297, %v297
    %v426 = vmul.f32 %v298, %v298
    %vm427 = vcmask 261120
    %v428 = vsel %vm427, %v299, 0.0
    %429 = vadd.xlane.f32.xlu0 %v428
    %v430 = vpop.xlane.xlu0 %429
    %v431 = vsel %vm427, %v300, 0.0
    %432 = vadd.xlane.f32.xlu0 %v431
    %v433 = vpop.xlane.xlu0 %432
    %v434 = vsel %vm427, %v301, 0.0
    %435 = vadd.xlane.f32.xlu0 %v434
    %v436 = vpop.xlane.xlu0 %435
    %v437 = vsel %vm427, %v302, 0.0
    %438 = vadd.xlane.f32.xlu0 %v437
    %v439 = vpop.xlane.xlu0 %438
    %v440 = vsel %vm427, %v303, 0.0
    %441 = vadd.xlane.f32.xlu0 %v440
    %v442 = vpop.xlane.xlu0 %441
    %v443 = vsel %vm427, %v304, 0.0
    %444 = vadd.xlane.f32.xlu0 %v443
    %v445 = vpop.xlane.xlu0 %444
    %v446 = vsel %vm427, %v305, 0.0
    %447 = vadd.xlane.f32.xlu0 %v446
    %v448 = vpop.xlane.xlu0 %447
    %v449 = vsel %vm427, %v306, 0.0
    %450 = vadd.xlane.f32.xlu0 %v449
    %v451 = vpop.xlane.xlu0 %450
    %v452 = vsel %vm427, %v307, 0.0
    %453 = vadd.xlane.f32.xlu0 %v452
    %v454 = vpop.xlane.xlu0 %453
    %v455 = vsel %vm427, %v308, 0.0
    %456 = vadd.xlane.f32.xlu0 %v455
    %v457 = vpop.xlane.xlu0 %456
    %v458 = vsel %vm427, %v309, 0.0
    %459 = vadd.xlane.f32.xlu0 %v458
    %v460 = vpop.xlane.xlu0 %459
    %v461 = vsel %vm427, %v310, 0.0
    %462 = vadd.xlane.f32.xlu0 %v461
    %v463 = vpop.xlane.xlu0 %462
    %v464 = vsel %vm427, %v311, 0.0
    %465 = vadd.xlane.f32.xlu0 %v464
    %v466 = vpop.xlane.xlu0 %465
    %v467 = vsel %vm427, %v312, 0.0
    %468 = vadd.xlane.f32.xlu0 %v467
    %v469 = vpop.xlane.xlu0 %468
    %v470 = vsel %vm427, %v313, 0.0
    %471 = vadd.xlane.f32.xlu0 %v470
    %v472 = vpop.xlane.xlu0 %471
    %v473 = vsel %vm427, %v314, 0.0
    %474 = vadd.xlane.f32.xlu0 %v473
    %v475 = vpop.xlane.xlu0 %474
    %v476 = vsel %vm427, %v315, 0.0
    %477 = vadd.xlane.f32.xlu0 %v476
    %v478 = vpop.xlane.xlu0 %477
    %v479 = vsel %vm427, %v316, 0.0
    %480 = vadd.xlane.f32.xlu0 %v479
    %v481 = vpop.xlane.xlu0 %480
    %v482 = vsel %vm427, %v317, 0.0
    %483 = vadd.xlane.f32.xlu0 %v482
    %v484 = vpop.xlane.xlu0 %483
    %v485 = vsel %vm427, %v318, 0.0
    %486 = vadd.xlane.f32.xlu0 %v485
    %v487 = vpop.xlane.xlu0 %486
    %v488 = vsel %vm427, %v319, 0.0
    %489 = vadd.xlane.f32.xlu0 %v488
    %v490 = vpop.xlane.xlu0 %489
    %v491 = vsel %vm427, %v320, 0.0
    %492 = vadd.xlane.f32.xlu0 %v491
    %v493 = vpop.xlane.xlu0 %492
    %v494 = vsel %vm427, %v321, 0.0
    %495 = vadd.xlane.f32.xlu0 %v494
    %v496 = vpop.xlane.xlu0 %495
    %v497 = vsel %vm427, %v322, 0.0
    %498 = vadd.xlane.f32.xlu0 %v497
    %v499 = vpop.xlane.xlu0 %498
    %v500 = vsel %vm427, %v323, 0.0
    %501 = vadd.xlane.f32.xlu0 %v500
    %v502 = vpop.xlane.xlu0 %501
    %v503 = vsel %vm427, %v324, 0.0
    %504 = vadd.xlane.f32.xlu0 %v503
    %v505 = vpop.xlane.xlu0 %504
    %v506 = vsel %vm427, %v325, 0.0
    %507 = vadd.xlane.f32.xlu0 %v506
    %v508 = vpop.xlane.xlu0 %507
    %v509 = vsel %vm427, %v326, 0.0
    %510 = vadd.xlane.f32.xlu0 %v509
    %v511 = vpop.xlane.xlu0 %510
    %v512 = vsel %vm427, %v327, 0.0
    %513 = vadd.xlane.f32.xlu0 %v512
    %v514 = vpop.xlane.xlu0 %513
    %v515 = vsel %vm427, %v328, 0.0
    %516 = vadd.xlane.f32.xlu0 %v515
    %v517 = vpop.xlane.xlu0 %516
    %v518 = vsel %vm427, %v329, 0.0
    %519 = vadd.xlane.f32.xlu0 %v518
    %v520 = vpop.xlane.xlu0 %519
    %v521 = vsel %vm427, %v330, 0.0
    %522 = vadd.xlane.f32.xlu0 %v521
    %v523 = vpop.xlane.xlu0 %522
    %v524 = vsel %vm427, %v331, 0.0
    %525 = vadd.xlane.f32.xlu0 %v524
    %v526 = vpop.xlane.xlu0 %525
    %v527 = vsel %vm427, %v332, 0.0
    %528 = vadd.xlane.f32.xlu0 %v527
    %v529 = vpop.xlane.xlu0 %528
    %v530 = vsel %vm427, %v333, 0.0
    %531 = vadd.xlane.f32.xlu0 %v530
    %v532 = vpop.xlane.xlu0 %531
    %v533 = vsel %vm427, %v334, 0.0
    %534 = vadd.xlane.f32.xlu0 %v533
    %v535 = vpop.xlane.xlu0 %534
    %v536 = vsel %vm427, %v335, 0.0
    %537 = vadd.xlane.f32.xlu0 %v536
    %v538 = vpop.xlane.xlu0 %537
    %v539 = vsel %vm427, %v336, 0.0
    %540 = vadd.xlane.f32.xlu0 %v539
    %v541 = vpop.xlane.xlu0 %540
    %v542 = vsel %vm427, %v337, 0.0
    %543 = vadd.xlane.f32.xlu0 %v542
    %v544 = vpop.xlane.xlu0 %543
    %v545 = vsel %vm427, %v338, 0.0
    %546 = vadd.xlane.f32.xlu0 %v545
    %v547 = vpop.xlane.xlu0 %546
    %v548 = vsel %vm427, %v339, 0.0
    %549 = vadd.xlane.f32.xlu0 %v548
    %v550 = vpop.xlane.xlu0 %549
    %v551 = vsel %vm427, %v340, 0.0
    %552 = vadd.xlane.f32.xlu0 %v551
    %v553 = vpop.xlane.xlu0 %552
    %v554 = vsel %vm427, %v341, 0.0
    %555 = vadd.xlane.f32.xlu0 %v554
    %v556 = vpop.xlane.xlu0 %555
    %v557 = vsel %vm427, %v342, 0.0
    %558 = vadd.xlane.f32.xlu0 %v557
    %v559 = vpop.xlane.xlu0 %558
    %v560 = vsel %vm427, %v343, 0.0
    %561 = vadd.xlane.f32.xlu0 %v560
    %v562 = vpop.xlane.xlu0 %561
    %v563 = vsel %vm427, %v344, 0.0
    %564 = vadd.xlane.f32.xlu0 %v563
    %v565 = vpop.xlane.xlu0 %564
    %v566 = vsel %vm427, %v345, 0.0
    %567 = vadd.xlane.f32.xlu0 %v566
    %v568 = vpop.xlane.xlu0 %567
    %v569 = vsel %vm427, %v346, 0.0
    %570 = vadd.xlane.f32.xlu0 %v569
    %v571 = vpop.xlane.xlu0 %570
    %v572 = vsel %vm427, %v347, 0.0
    %573 = vadd.xlane.f32.xlu0 %v572
    %v574 = vpop.xlane.xlu0 %573
    %v575 = vsel %vm427, %v348, 0.0
    %576 = vadd.xlane.f32.xlu0 %v575
    %v577 = vpop.xlane.xlu0 %576
    %v578 = vsel %vm427, %v349, 0.0
    %579 = vadd.xlane.f32.xlu0 %v578
    %v580 = vpop.xlane.xlu0 %579
    %v581 = vsel %vm427, %v350, 0.0
    %582 = vadd.xlane.f32.xlu0 %v581
    %v583 = vpop.xlane.xlu0 %582
    %v584 = vsel %vm427, %v351, 0.0
    %585 = vadd.xlane.f32.xlu0 %v584
    %v586 = vpop.xlane.xlu0 %585
    %v587 = vsel %vm427, %v352, 0.0
    %588 = vadd.xlane.f32.xlu0 %v587
    %v589 = vpop.xlane.xlu0 %588
    %v590 = vsel %vm427, %v353, 0.0
    %591 = vadd.xlane.f32.xlu0 %v590
    %v592 = vpop.xlane.xlu0 %591
    %v593 = vsel %vm427, %v354, 0.0
    %594 = vadd.xlane.f32.xlu0 %v593
    %v595 = vpop.xlane.xlu0 %594
    %v596 = vsel %vm427, %v355, 0.0
    %597 = vadd.xlane.f32.xlu0 %v596
    %v598 = vpop.xlane.xlu0 %597
    %v599 = vsel %vm427, %v356, 0.0
    %600 = vadd.xlane.f32.xlu0 %v599
    %v601 = vpop.xlane.xlu0 %600
    %v602 = vsel %vm427, %v357, 0.0
    %603 = vadd.xlane.f32.xlu0 %v602
    %v604 = vpop.xlane.xlu0 %603
    %v605 = vsel %vm427, %v358, 0.0
    %606 = vadd.xlane.f32.xlu0 %v605
    %v607 = vpop.xlane.xlu0 %606
    %v608 = vsel %vm427, %v359, 0.0
    %609 = vadd.xlane.f32.xlu0 %v608
    %v610 = vpop.xlane.xlu0 %609
    %v611 = vsel %vm427, %v360, 0.0
    %612 = vadd.xlane.f32.xlu0 %v611
    %v613 = vpop.xlane.xlu0 %612
    %v614 = vsel %vm427, %v361, 0.0
    %615 = vadd.xlane.f32.xlu0 %v614
    %v616 = vpop.xlane.xlu0 %615
    %v617 = vsel %vm427, %v362, 0.0
    %618 = vadd.xlane.f32.xlu0 %v617
    %v619 = vpop.xlane.xlu0 %618
    %v620 = vsel %vm427, %v363, 0.0
    %621 = vadd.xlane.f32.xlu0 %v620
    %v622 = vpop.xlane.xlu0 %621
    %v623 = vsel %vm427, %v364, 0.0
    %624 = vadd.xlane.f32.xlu0 %v623
    %v625 = vpop.xlane.xlu0 %624
    %v626 = vsel %vm427, %v365, 0.0
    %627 = vadd.xlane.f32.xlu0 %v626
    %v628 = vpop.xlane.xlu0 %627
    %v629 = vsel %vm427, %v366, 0.0
    %630 = vadd.xlane.f32.xlu0 %v629
    %v631 = vpop.xlane.xlu0 %630
    %v632 = vsel %vm427, %v367, 0.0
    %633 = vadd.xlane.f32.xlu0 %v632
    %v634 = vpop.xlane.xlu0 %633
    %v635 = vsel %vm427, %v368, 0.0
    %636 = vadd.xlane.f32.xlu0 %v635
    %v637 = vpop.xlane.xlu0 %636
    %v638 = vsel %vm427, %v369, 0.0
    %639 = vadd.xlane.f32.xlu0 %v638
    %v640 = vpop.xlane.xlu0 %639
    %v641 = vsel %vm427, %v370, 0.0
    %642 = vadd.xlane.f32.xlu0 %v641
    %v643 = vpop.xlane.xlu0 %642
    %v644 = vsel %vm427, %v371, 0.0
    %645 = vadd.xlane.f32.xlu0 %v644
    %v646 = vpop.xlane.xlu0 %645
    %v647 = vsel %vm427, %v372, 0.0
    %648 = vadd.xlane.f32.xlu0 %v647
    %v649 = vpop.xlane.xlu0 %648
    %v650 = vsel %vm427, %v373, 0.0
    %651 = vadd.xlane.f32.xlu0 %v650
    %v652 = vpop.xlane.xlu0 %651
    %v653 = vsel %vm427, %v374, 0.0
    %654 = vadd.xlane.f32.xlu0 %v653
    %v655 = vpop.xlane.xlu0 %654
    %v656 = vsel %vm427, %v375, 0.0
    %657 = vadd.xlane.f32.xlu0 %v656
    %v658 = vpop.xlane.xlu0 %657
    %v659 = vsel %vm427, %v376, 0.0
    %660 = vadd.xlane.f32.xlu0 %v659
    %v661 = vpop.xlane.xlu0 %660
    %v662 = vsel %vm427, %v377, 0.0
    %663 = vadd.xlane.f32.xlu0 %v662
    %v664 = vpop.xlane.xlu0 %663
    %v665 = vsel %vm427, %v378, 0.0
    %666 = vadd.xlane.f32.xlu0 %v665
    %v667 = vpop.xlane.xlu0 %666
    %v668 = vsel %vm427, %v379, 0.0
    %669 = vadd.xlane.f32.xlu0 %v668
    %v670 = vpop.xlane.xlu0 %669
    %v671 = vsel %vm427, %v380, 0.0
    %672 = vadd.xlane.f32.xlu0 %v671
    %v673 = vpop.xlane.xlu0 %672
    %v674 = vsel %vm427, %v381, 0.0
    %675 = vadd.xlane.f32.xlu0 %v674
    %v676 = vpop.xlane.xlu0 %675
    %v677 = vsel %vm427, %v382, 0.0
    %678 = vadd.xlane.f32.xlu0 %v677
    %v679 = vpop.xlane.xlu0 %678
    %v680 = vsel %vm427, %v383, 0.0
    %681 = vadd.xlane.f32.xlu0 %v680
    %v682 = vpop.xlane.xlu0 %681
    %v683 = vsel %vm427, %v384, 0.0
    %684 = vadd.xlane.f32.xlu0 %v683
    %v685 = vpop.xlane.xlu0 %684
    %v686 = vsel %vm427, %v385, 0.0
    %687 = vadd.xlane.f32.xlu0 %v686
    %v688 = vpop.xlane.xlu0 %687
    %v689 = vsel %vm427, %v386, 0.0
    %690 = vadd.xlane.f32.xlu0 %v689
    %v691 = vpop.xlane.xlu0 %690
    %v692 = vsel %vm427, %v387, 0.0
    %693 = vadd.xlane.f32.xlu0 %v692
    %v694 = vpop.xlane.xlu0 %693
    %v695 = vsel %vm427, %v388, 0.0
    %696 = vadd.xlane.f32.xlu0 %v695
    %v697 = vpop.xlane.xlu0 %696
    %v698 = vsel %vm427, %v389, 0.0
    %699 = vadd.xlane.f32.xlu0 %v698
    %v700 = vpop.xlane.xlu0 %699
    %v701 = vsel %vm427, %v390, 0.0
    %702 = vadd.xlane.f32.xlu0 %v701
    %v703 = vpop.xlane.xlu0 %702
    %v704 = vsel %vm427, %v391, 0.0
    %705 = vadd.xlane.f32.xlu0 %v704
    %v706 = vpop.xlane.xlu0 %705
    %v707 = vsel %vm427, %v392, 0.0
    %708 = vadd.xlane.f32.xlu0 %v707
    %v709 = vpop.xlane.xlu0 %708
    %v710 = vsel %vm427, %v393, 0.0
    %711 = vadd.xlane.f32.xlu0 %v710
    %v712 = vpop.xlane.xlu0 %711
    %v713 = vsel %vm427, %v394, 0.0
    %714 = vadd.xlane.f32.xlu0 %v713
    %v715 = vpop.xlane.xlu0 %714
    %v716 = vsel %vm427, %v395, 0.0
    %717 = vadd.xlane.f32.xlu0 %v716
    %v718 = vpop.xlane.xlu0 %717
    %v719 = vsel %vm427, %v396, 0.0
    %720 = vadd.xlane.f32.xlu0 %v719
    %v721 = vpop.xlane.xlu0 %720
    %v722 = vsel %vm427, %v397, 0.0
    %723 = vadd.xlane.f32.xlu0 %v722
    %v724 = vpop.xlane.xlu0 %723
    %v725 = vsel %vm427, %v398, 0.0
    %726 = vadd.xlane.f32.xlu0 %v725
    %v727 = vpop.xlane.xlu0 %726
    %v728 = vsel %vm427, %v399, 0.0
    %729 = vadd.xlane.f32.xlu0 %v728
    %v730 = vpop.xlane.xlu0 %729
    %v731 = vsel %vm427, %v400, 0.0
    %732 = vadd.xlane.f32.xlu0 %v731
    %v733 = vpop.xlane.xlu0 %732
    %v734 = vsel %vm427, %v401, 0.0
    %735 = vadd.xlane.f32.xlu0 %v734
    %v736 = vpop.xlane.xlu0 %735
    %v737 = vsel %vm427, %v402, 0.0
    %738 = vadd.xlane.f32.xlu0 %v737
    %v739 = vpop.xlane.xlu0 %738
    %v740 = vsel %vm427, %v403, 0.0
    %741 = vadd.xlane.f32.xlu0 %v740
    %v742 = vpop.xlane.xlu0 %741
    %v743 = vsel %vm427, %v404, 0.0
    %744 = vadd.xlane.f32.xlu0 %v743
    %v745 = vpop.xlane.xlu0 %744
    %v746 = vsel %vm427, %v405, 0.0
    %747 = vadd.xlane.f32.xlu0 %v746
    %v748 = vpop.xlane.xlu0 %747
    %v749 = vsel %vm427, %v406, 0.0
    %750 = vadd.xlane.f32.xlu0 %v749
    %v751 = vpop.xlane.xlu0 %750
    %v752 = vsel %vm427, %v407, 0.0
    %753 = vadd.xlane.f32.xlu0 %v752
    %v754 = vpop.xlane.xlu0 %753
    %v755 = vsel %vm427, %v408, 0.0
    %756 = vadd.xlane.f32.xlu0 %v755
    %v757 = vpop.xlane.xlu0 %756
    %v758 = vsel %vm427, %v409, 0.0
    %759 = vadd.xlane.f32.xlu0 %v758
    %v760 = vpop.xlane.xlu0 %759
    %v761 = vsel %vm427, %v410, 0.0
    %762 = vadd.xlane.f32.xlu0 %v761
    %v763 = vpop.xlane.xlu0 %762
    %v764 = vsel %vm427, %v411, 0.0
    %765 = vadd.xlane.f32.xlu0 %v764
    %v766 = vpop.xlane.xlu0 %765
    %v767 = vsel %vm427, %v412, 0.0
    %768 = vadd.xlane.f32.xlu0 %v767
    %v769 = vpop.xlane.xlu0 %768
    %v770 = vsel %vm427, %v413, 0.0
    %771 = vadd.xlane.f32.xlu0 %v770
    %v772 = vpop.xlane.xlu0 %771
    %v773 = vsel %vm427, %v414, 0.0
    %774 = vadd.xlane.f32.xlu0 %v773
    %v775 = vpop.xlane.xlu0 %774
    %v776 = vsel %vm427, %v415, 0.0
    %777 = vadd.xlane.f32.xlu0 %v776
    %v778 = vpop.xlane.xlu0 %777
    %v779 = vsel %vm427, %v416, 0.0
    %780 = vadd.xlane.f32.xlu0 %v779
    %v781 = vpop.xlane.xlu0 %780
    %v782 = vsel %vm427, %v417, 0.0
    %783 = vadd.xlane.f32.xlu0 %v782
    %v784 = vpop.xlane.xlu0 %783
    %v785 = vsel %vm427, %v418, 0.0
    %786 = vadd.xlane.f32.xlu0 %v785
    %v787 = vpop.xlane.xlu0 %786
    %v788 = vsel %vm427, %v419, 0.0
    %789 = vadd.xlane.f32.xlu0 %v788
    %v790 = vpop.xlane.xlu0 %789
    %v791 = vsel %vm427, %v420, 0.0
    %792 = vadd.xlane.f32.xlu0 %v791
    %v793 = vpop.xlane.xlu0 %792
    %v794 = vsel %vm427, %v421, 0.0
    %795 = vadd.xlane.f32.xlu0 %v794
    %v796 = vpop.xlane.xlu0 %795
    %v797 = vsel %vm427, %v422, 0.0
    %798 = vadd.xlane.f32.xlu0 %v797
    %v799 = vpop.xlane.xlu0 %798
    %v800 = vsel %vm427, %v423, 0.0
    %801 = vadd.xlane.f32.xlu0 %v800
    %v802 = vpop.xlane.xlu0 %801
    %v803 = vsel %vm427, %v424, 0.0
    %804 = vadd.xlane.f32.xlu0 %v803
    %v805 = vpop.xlane.xlu0 %804
    %v806 = vsel %vm427, %v425, 0.0
    %807 = vadd.xlane.f32.xlu0 %v806
    %v808 = vpop.xlane.xlu0 %807
    %v809 = vsel %vm427, %v426, 0.0
    %810 = vadd.xlane.f32.xlu0 %v809
    %v811 = vpop.xlane.xlu0 %810
    %v812 = vadd.f32 %v430, 1e-12
    %v813 = vadd.f32 %v433, 1e-12
    %v814 = vadd.f32 %v436, 1e-12
    %v815 = vadd.f32 %v439, 1e-12
    %v816 = vadd.f32 %v442, 1e-12
    %v817 = vadd.f32 %v445, 1e-12
    %v818 = vadd.f32 %v448, 1e-12
    %v819 = vadd.f32 %v451, 1e-12
    %v820 = vadd.f32 %v454, 1e-12
    %v821 = vadd.f32 %v457, 1e-12
    %v822 = vadd.f32 %v460, 1e-12
    %v823 = vadd.f32 %v463, 1e-12
    %v824 = vadd.f32 %v466, 1e-12
    %v825 = vadd.f32 %v469, 1e-12
    %v826 = vadd.f32 %v472, 1e-12
    %v827 = vadd.f32 %v475, 1e-12
    %v828 = vadd.f32 %v478, 1e-12
    %v829 = vadd.f32 %v481, 1e-12
    %v830 = vadd.f32 %v484, 1e-12
    %v831 = vadd.f32 %v487, 1e-12
    %v832 = vadd.f32 %v490, 1e-12
    %v833 = vadd.f32 %v493, 1e-12
    %v834 = vadd.f32 %v496, 1e-12
    %v835 = vadd.f32 %v499, 1e-12
    %v836 = vadd.f32 %v502, 1e-12
    %v837 = vadd.f32 %v505, 1e-12
    %v838 = vadd.f32 %v508, 1e-12
    %v839 = vadd.f32 %v511, 1e-12
    %v840 = vadd.f32 %v514, 1e-12
    %v841 = vadd.f32 %v517, 1e-12
    %v842 = vadd.f32 %v520, 1e-12
    %v843 = vadd.f32 %v523, 1e-12
    %v844 = vadd.f32 %v526, 1e-12
    %v845 = vadd.f32 %v529, 1e-12
    %v846 = vadd.f32 %v532, 1e-12
    %v847 = vadd.f32 %v535, 1e-12
    %v848 = vadd.f32 %v538, 1e-12
    %v849 = vadd.f32 %v541, 1e-12
    %v850 = vadd.f32 %v544, 1e-12
    %v851 = vadd.f32 %v547, 1e-12
    %v852 = vadd.f32 %v550, 1e-12
    %v853 = vadd.f32 %v553, 1e-12
    %v854 = vadd.f32 %v556, 1e-12
    %v855 = vadd.f32 %v559, 1e-12
    %v856 = vadd.f32 %v562, 1e-12
    %v857 = vadd.f32 %v565, 1e-12
    %v858 = vadd.f32 %v568, 1e-12
    %v859 = vadd.f32 %v571, 1e-12
    %v860 = vadd.f32 %v574, 1e-12
    %v861 = vadd.f32 %v577, 1e-12
    %v862 = vadd.f32 %v580, 1e-12
    %v863 = vadd.f32 %v583, 1e-12
    %v864 = vadd.f32 %v586, 1e-12
    %v865 = vadd.f32 %v589, 1e-12
    %v866 = vadd.f32 %v592, 1e-12
    %v867 = vadd.f32 %v595, 1e-12
    %v868 = vadd.f32 %v598, 1e-12
    %v869 = vadd.f32 %v601, 1e-12
    %v870 = vadd.f32 %v604, 1e-12
    %v871 = vadd.f32 %v607, 1e-12
    %v872 = vadd.f32 %v610, 1e-12
    %v873 = vadd.f32 %v613, 1e-12
    %v874 = vadd.f32 %v616, 1e-12
    %v875 = vadd.f32 %v619, 1e-12
    %v876 = vadd.f32 %v622, 1e-12
    %v877 = vadd.f32 %v625, 1e-12
    %v878 = vadd.f32 %v628, 1e-12
    %v879 = vadd.f32 %v631, 1e-12
    %v880 = vadd.f32 %v634, 1e-12
    %v881 = vadd.f32 %v637, 1e-12
    %v882 = vadd.f32 %v640, 1e-12
    %v883 = vadd.f32 %v643, 1e-12
    %v884 = vadd.f32 %v646, 1e-12
    %v885 = vadd.f32 %v649, 1e-12
    %v886 = vadd.f32 %v652, 1e-12
    %v887 = vadd.f32 %v655, 1e-12
    %v888 = vadd.f32 %v658, 1e-12
    %v889 = vadd.f32 %v661, 1e-12
    %v890 = vadd.f32 %v664, 1e-12
    %v891 = vadd.f32 %v667, 1e-12
    %v892 = vadd.f32 %v670, 1e-12
    %v893 = vadd.f32 %v673, 1e-12
    %v894 = vadd.f32 %v676, 1e-12
    %v895 = vadd.f32 %v679, 1e-12
    %v896 = vadd.f32 %v682, 1e-12
    %v897 = vadd.f32 %v685, 1e-12
    %v898 = vadd.f32 %v688, 1e-12
    %v899 = vadd.f32 %v691, 1e-12
    %v900 = vadd.f32 %v694, 1e-12
    %v901 = vadd.f32 %v697, 1e-12
    %v902 = vadd.f32 %v700, 1e-12
    %v903 = vadd.f32 %v703, 1e-12
    %v904 = vadd.f32 %v706, 1e-12
    %v905 = vadd.f32 %v709, 1e-12
    %v906 = vadd.f32 %v712, 1e-12
    %v907 = vadd.f32 %v715, 1e-12
    %v908 = vadd.f32 %v718, 1e-12
    %v909 = vadd.f32 %v721, 1e-12
    %v910 = vadd.f32 %v724, 1e-12
    %v911 = vadd.f32 %v727, 1e-12
    %v912 = vadd.f32 %v730, 1e-12
    %v913 = vadd.f32 %v733, 1e-12
    %v914 = vadd.f32 %v736, 1e-12
    %v915 = vadd.f32 %v739, 1e-12
    %v916 = vadd.f32 %v742, 1e-12
    %v917 = vadd.f32 %v745, 1e-12
    %v918 = vadd.f32 %v748, 1e-12
    %v919 = vadd.f32 %v751, 1e-12
    %v920 = vadd.f32 %v754, 1e-12
    %v921 = vadd.f32 %v757, 1e-12
    %v922 = vadd.f32 %v760, 1e-12
    %v923 = vadd.f32 %v763, 1e-12
    %v924 = vadd.f32 %v766, 1e-12
    %v925 = vadd.f32 %v769, 1e-12
    %v926 = vadd.f32 %v772, 1e-12
    %v927 = vadd.f32 %v775, 1e-12
    %v928 = vadd.f32 %v778, 1e-12
    %v929 = vadd.f32 %v781, 1e-12
    %v930 = vadd.f32 %v784, 1e-12
    %v931 = vadd.f32 %v787, 1e-12
    %v932 = vadd.f32 %v790, 1e-12
    %v933 = vadd.f32 %v793, 1e-12
    %v934 = vadd.f32 %v796, 1e-12
    %v935 = vadd.f32 %v799, 1e-12
    %v936 = vadd.f32 %v802, 1e-12
    %v937 = vadd.f32 %v805, 1e-12
    %v938 = vadd.f32 %v808, 1e-12
    %v939 = vadd.f32 %v811, 1e-12
    %v940 = vrsqrt.pop %v812
    %v941 = vrsqrt.pop %v813
    %v942 = vrsqrt.pop %v814
    %v943 = vrsqrt.pop %v815
    %v944 = vrsqrt.pop %v816
    %v945 = vrsqrt.pop %v817
    %v946 = vrsqrt.pop %v818
    %v947 = vrsqrt.pop %v819
    %v948 = vrsqrt.pop %v820
    %v949 = vrsqrt.pop %v821
    %v950 = vrsqrt.pop %v822
    %v951 = vrsqrt.pop %v823
    %v952 = vrsqrt.pop %v824
    %v953 = vrsqrt.pop %v825
    %v954 = vrsqrt.pop %v826
    %v955 = vrsqrt.pop %v827
    %v956 = vrsqrt.pop %v828
    %v957 = vrsqrt.pop %v829
    %v958 = vrsqrt.pop %v830
    %v959 = vrsqrt.pop %v831
    %v960 = vrsqrt.pop %v832
    %v961 = vrsqrt.pop %v833
    %v962 = vrsqrt.pop %v834
    %v963 = vrsqrt.pop %v835
    %v964 = vrsqrt.pop %v836
    %v965 = vrsqrt.pop %v837
    %v966 = vrsqrt.pop %v838
    %v967 = vrsqrt.pop %v839
    %v968 = vrsqrt.pop %v840
    %v969 = vrsqrt.pop %v841
    %v970 = vrsqrt.pop %v842
    %v971 = vrsqrt.pop %v843
    %v972 = vrsqrt.pop %v844
    %v973 = vrsqrt.pop %v845
    %v974 = vrsqrt.pop %v846
    %v975 = vrsqrt.pop %v847
    %v976 = vrsqrt.pop %v848
    %v977 = vrsqrt.pop %v849
    %v978 = vrsqrt.pop %v850
    %v979 = vrsqrt.pop %v851
    %v980 = vrsqrt.pop %v852
    %v981 = vrsqrt.pop %v853
    %v982 = vrsqrt.pop %v854
    %v983 = vrsqrt.pop %v855
    %v984 = vrsqrt.pop %v856
    %v985 = vrsqrt.pop %v857
    %v986 = vrsqrt.pop %v858
    %v987 = vrsqrt.pop %v859
    %v988 = vrsqrt.pop %v860
    %v989 = vrsqrt.pop %v861
    %v990 = vrsqrt.pop %v862
    %v991 = vrsqrt.pop %v863
    %v992 = vrsqrt.pop %v864
    %v993 = vrsqrt.pop %v865
    %v994 = vrsqrt.pop %v866
    %v995 = vrsqrt.pop %v867
    %v996 = vrsqrt.pop %v868
    %v997 = vrsqrt.pop %v869
    %v998 = vrsqrt.pop %v870
    %v999 = vrsqrt.pop %v871
    %v1000 = vrsqrt.pop %v872
    %v1001 = vrsqrt.pop %v873
    %v1002 = vrsqrt.pop %v874
    %v1003 = vrsqrt.pop %v875
    %v1004 = vrsqrt.pop %v876
    %v1005 = vrsqrt.pop %v877
    %v1006 = vrsqrt.pop %v878
    %v1007 = vrsqrt.pop %v879
    %v1008 = vrsqrt.pop %v880
    %v1009 = vrsqrt.pop %v881
    %v1010 = vrsqrt.pop %v882
    %v1011 = vrsqrt.pop %v883
    %v1012 = vrsqrt.pop %v884
    %v1013 = vrsqrt.pop %v885
    %v1014 = vrsqrt.pop %v886
    %v1015 = vrsqrt.pop %v887
    %v1016 = vrsqrt.pop %v888
    %v1017 = vrsqrt.pop %v889
    %v1018 = vrsqrt.pop %v890
    %v1019 = vrsqrt.pop %v891
    %v1020 = vrsqrt.pop %v892
    %v1021 = vrsqrt.pop %v893
    %v1022 = vrsqrt.pop %v894
    %v1023 = vrsqrt.pop %v895
    %v1024 = vrsqrt.pop %v896
    %v1025 = vrsqrt.pop %v897
    %v1026 = vrsqrt.pop %v898
    %v1027 = vrsqrt.pop %v899
    %v1028 = vrsqrt.pop %v900
    %v1029 = vrsqrt.pop %v901
    %v1030 = vrsqrt.pop %v902
    %v1031 = vrsqrt.pop %v903
    %v1032 = vrsqrt.pop %v904
    %v1033 = vrsqrt.pop %v905
    %v1034 = vrsqrt.pop %v906
    %v1035 = vrsqrt.pop %v907
    %v1036 = vrsqrt.pop %v908
    %v1037 = vrsqrt.pop %v909
    %v1038 = vrsqrt.pop %v910
    %v1039 = vrsqrt.pop %v911
    %v1040 = vrsqrt.pop %v912
    %v1041 = vrsqrt.pop %v913
    %v1042 = vrsqrt.pop %v914
    %v1043 = vrsqrt.pop %v915
    %v1044 = vrsqrt.pop %v916
    %v1045 = vrsqrt.pop %v917
    %v1046 = vrsqrt.pop %v918
    %v1047 = vrsqrt.pop %v919
    %v1048 = vrsqrt.pop %v920
    %v1049 = vrsqrt.pop %v921
    %v1050 = vrsqrt.pop %v922
    %v1051 = vrsqrt.pop %v923
    %v1052 = vrsqrt.pop %v924
    %v1053 = vrsqrt.pop %v925
    %v1054 = vrsqrt.pop %v926
    %v1055 = vrsqrt.pop %v927
    %v1056 = vrsqrt.pop %v928
    %v1057 = vrsqrt.pop %v929
    %v1058 = vrsqrt.pop %v930
    %v1059 = vrsqrt.pop %v931
    %v1060 = vrsqrt.pop %v932
    %v1061 = vrsqrt.pop %v933
    %v1062 = vrsqrt.pop %v934
    %v1063 = vrsqrt.pop %v935
    %v1064 = vrsqrt.pop %v936
    %v1065 = vrsqrt.pop %v937
    %v1066 = vrsqrt.pop %v938
    %v1067 = vrsqrt.pop %v939
    %v1068 = vmul.f32 %v171, %v940
    %v1069 = vmul.f32 %v172, %v941
    %v1070 = vmul.f32 %v173, %v942
    %v1071 = vmul.f32 %v174, %v943
    %v1072 = vmul.f32 %v175, %v944
    %v1073 = vmul.f32 %v176, %v945
    %v1074 = vmul.f32 %v177, %v946
    %v1075 = vmul.f32 %v178, %v947
    %v1076 = vmul.f32 %v179, %v948
    %v1077 = vmul.f32 %v180, %v949
    %v1078 = vmul.f32 %v181, %v950
    %v1079 = vmul.f32 %v182, %v951
    %v1080 = vmul.f32 %v183, %v952
    %v1081 = vmul.f32 %v184, %v953
    %v1082 = vmul.f32 %v185, %v954
    %v1083 = vmul.f32 %v186, %v955
    %v1084 = vmul.f32 %v187, %v956
    %v1085 = vmul.f32 %v188, %v957
    %v1086 = vmul.f32 %v189, %v958
    %v1087 = vmul.f32 %v190, %v959
    %v1088 = vmul.f32 %v191, %v960
    %v1089 = vmul.f32 %v192, %v961
    %v1090 = vmul.f32 %v193, %v962
    %v1091 = vmul.f32 %v194, %v963
    %v1092 = vmul.f32 %v195, %v964
    %v1093 = vmul.f32 %v196, %v965
    %v1094 = vmul.f32 %v197, %v966
    %v1095 = vmul.f32 %v198, %v967
    %v1096 = vmul.f32 %v199, %v968
    %v1097 = vmul.f32 %v200, %v969
    %v1098 = vmul.f32 %v201, %v970
    %v1099 = vmul.f32 %v202, %v971
    %v1100 = vmul.f32 %v203, %v972
    %v1101 = vmul.f32 %v204, %v973
    %v1102 = vmul.f32 %v205, %v974
    %v1103 = vmul.f32 %v206, %v975
    %v1104 = vmul.f32 %v207, %v976
    %v1105 = vmul.f32 %v208, %v977
    %v1106 = vmul.f32 %v209, %v978
    %v1107 = vmul.f32 %v210, %v979
    %v1108 = vmul.f32 %v211, %v980
    %v1109 = vmul.f32 %v212, %v981
    %v1110 = vmul.f32 %v213, %v982
    %v1111 = vmul.f32 %v214, %v983
    %v1112 = vmul.f32 %v215, %v984
    %v1113 = vmul.f32 %v216, %v985
    %v1114 = vmul.f32 %v217, %v986
    %v1115 = vmul.f32 %v218, %v987
    %v1116 = vmul.f32 %v219, %v988
    %v1117 = vmul.f32 %v220, %v989
    %v1118 = vmul.f32 %v221, %v990
    %v1119 = vmul.f32 %v222, %v991
    %v1120 = vmul.f32 %v223, %v992
    %v1121 = vmul.f32 %v224, %v993
    %v1122 = vmul.f32 %v225, %v994
    %v1123 = vmul.f32 %v226, %v995
    %v1124 = vmul.f32 %v227, %v996
    %v1125 = vmul.f32 %v228, %v997
    %v1126 = vmul.f32 %v229, %v998
    %v1127 = vmul.f32 %v230, %v999
    %v1128 = vmul.f32 %v231, %v1000
    %v1129 = vmul.f32 %v232, %v1001
    %v1130 = vmul.f32 %v233, %v1002
    %v1131 = vmul.f32 %v234, %v1003
    %v1132 = vmul.f32 %v235, %v1004
    %v1133 = vmul.f32 %v236, %v1005
    %v1134 = vmul.f32 %v237, %v1006
    %v1135 = vmul.f32 %v238, %v1007
    %v1136 = vmul.f32 %v239, %v1008
    %v1137 = vmul.f32 %v240, %v1009
    %v1138 = vmul.f32 %v241, %v1010
    %v1139 = vmul.f32 %v242, %v1011
    %v1140 = vmul.f32 %v243, %v1012
    %v1141 = vmul.f32 %v244, %v1013
    %v1142 = vmul.f32 %v245, %v1014
    %v1143 = vmul.f32 %v246, %v1015
    %v1144 = vmul.f32 %v247, %v1016
    %v1145 = vmul.f32 %v248, %v1017
    %v1146 = vmul.f32 %v249, %v1018
    %v1147 = vmul.f32 %v250, %v1019
    %v1148 = vmul.f32 %v251, %v1020
    %v1149 = vmul.f32 %v252, %v1021
    %v1150 = vmul.f32 %v253, %v1022
    %v1151 = vmul.f32 %v254, %v1023
    %v1152 = vmul.f32 %v255, %v1024
    %v1153 = vmul.f32 %v256, %v1025
    %v1154 = vmul.f32 %v257, %v1026
    %v1155 = vmul.f32 %v258, %v1027
    %v1156 = vmul.f32 %v259, %v1028
    %v1157 = vmul.f32 %v260, %v1029
    %v1158 = vmul.f32 %v261, %v1030
    %v1159 = vmul.f32 %v262, %v1031
    %v1160 = vmul.f32 %v263, %v1032
    %v1161 = vmul.f32 %v264, %v1033
    %v1162 = vmul.f32 %v265, %v1034
    %v1163 = vmul.f32 %v266, %v1035
    %v1164 = vmul.f32 %v267, %v1036
    %v1165 = vmul.f32 %v268, %v1037
    %v1166 = vmul.f32 %v269, %v1038
    %v1167 = vmul.f32 %v270, %v1039
    %v1168 = vmul.f32 %v271, %v1040
    %v1169 = vmul.f32 %v272, %v1041
    %v1170 = vmul.f32 %v273, %v1042
    %v1171 = vmul.f32 %v274, %v1043
    %v1172 = vmul.f32 %v275, %v1044
    %v1173 = vmul.f32 %v276, %v1045
    %v1174 = vmul.f32 %v277, %v1046
    %v1175 = vmul.f32 %v278, %v1047
    %v1176 = vmul.f32 %v279, %v1048
    %v1177 = vmul.f32 %v280, %v1049
    %v1178 = vmul.f32 %v281, %v1050
    %v1179 = vmul.f32 %v282, %v1051
    %v1180 = vmul.f32 %v283, %v1052
    %v1181 = vmul.f32 %v284, %v1053
    %v1182 = vmul.f32 %v285, %v1054
    %v1183 = vmul.f32 %v286, %v1055
    %v1184 = vmul.f32 %v287, %v1056
    %v1185 = vmul.f32 %v288, %v1057
    %v1186 = vmul.f32 %v289, %v1058
    %v1187 = vmul.f32 %v290, %v1059
    %v1188 = vmul.f32 %v291, %v1060
    %v1189 = vmul.f32 %v292, %v1061
    %v1190 = vmul.f32 %v293, %v1062
    %v1191 = vmul.f32 %v294, %v1063
    %v1192 = vmul.f32 %v295, %v1064
    %v1193 = vmul.f32 %v296, %v1065
    %v1194 = vmul.f32 %v297, %v1066
    %v1195 = vmul.f32 %v298, %v1067
    %v1196 = vpack.c.bf16 %v1069, %v1068
    %v1197 = vpack.c.bf16 %v1071, %v1070
    %v1198 = vpack.c.bf16 %v1073, %v1072
    %v1199 = vpack.c.bf16 %v1075, %v1074
    %v1200 = vpack.c.bf16 %v1077, %v1076
    %v1201 = vpack.c.bf16 %v1079, %v1078
    %v1202 = vpack.c.bf16 %v1081, %v1080
    %v1203 = vpack.c.bf16 %v1083, %v1082
    %v1204 = vpack.c.bf16 %v1085, %v1084
    %v1205 = vpack.c.bf16 %v1087, %v1086
    %v1206 = vpack.c.bf16 %v1089, %v1088
    %v1207 = vpack.c.bf16 %v1091, %v1090
    %v1208 = vpack.c.bf16 %v1093, %v1092
    %v1209 = vpack.c.bf16 %v1095, %v1094
    %v1210 = vpack.c.bf16 %v1097, %v1096
    %v1211 = vpack.c.bf16 %v1099, %v1098
    %v1212 = vpack.c.bf16 %v1101, %v1100
    %v1213 = vpack.c.bf16 %v1103, %v1102
    %v1214 = vpack.c.bf16 %v1105, %v1104
    %v1215 = vpack.c.bf16 %v1107, %v1106
    %v1216 = vpack.c.bf16 %v1109, %v1108
    %v1217 = vpack.c.bf16 %v1111, %v1110
    %v1218 = vpack.c.bf16 %v1113, %v1112
    %v1219 = vpack.c.bf16 %v1115, %v1114
    %v1220 = vpack.c.bf16 %v1117, %v1116
    %v1221 = vpack.c.bf16 %v1119, %v1118
    %v1222 = vpack.c.bf16 %v1121, %v1120
    %v1223 = vpack.c.bf16 %v1123, %v1122
    %v1224 = vpack.c.bf16 %v1125, %v1124
    %v1225 = vpack.c.bf16 %v1127, %v1126
    %v1226 = vpack.c.bf16 %v1129, %v1128
    %v1227 = vpack.c.bf16 %v1131, %v1130
    %v1228 = vpack.c.bf16 %v1133, %v1132
    %v1229 = vpack.c.bf16 %v1135, %v1134
    %v1230 = vpack.c.bf16 %v1137, %v1136
    %v1231 = vpack.c.bf16 %v1139, %v1138
    %v1232 = vpack.c.bf16 %v1141, %v1140
    %v1233 = vpack.c.bf16 %v1143, %v1142
    %v1234 = vpack.c.bf16 %v1145, %v1144
    %v1235 = vpack.c.bf16 %v1147, %v1146
    %v1236 = vpack.c.bf16 %v1149, %v1148
    %v1237 = vpack.c.bf16 %v1151, %v1150
    %v1238 = vpack.c.bf16 %v1153, %v1152
    %v1239 = vpack.c.bf16 %v1155, %v1154
    %v1240 = vpack.c.bf16 %v1157, %v1156
    %v1241 = vpack.c.bf16 %v1159, %v1158
    %v1242 = vpack.c.bf16 %v1161, %v1160
    %v1243 = vpack.c.bf16 %v1163, %v1162
    %v1244 = vpack.c.bf16 %v1165, %v1164
    %v1245 = vpack.c.bf16 %v1167, %v1166
    %v1246 = vpack.c.bf16 %v1169, %v1168
    %v1247 = vpack.c.bf16 %v1171, %v1170
    %v1248 = vpack.c.bf16 %v1173, %v1172
    %v1249 = vpack.c.bf16 %v1175, %v1174
    %v1250 = vpack.c.bf16 %v1177, %v1176
    %v1251 = vpack.c.bf16 %v1179, %v1178
    %v1252 = vpack.c.bf16 %v1181, %v1180
    %v1253 = vpack.c.bf16 %v1183, %v1182
    %v1254 = vpack.c.bf16 %v1185, %v1184
    %v1255 = vpack.c.bf16 %v1187, %v1186
    %v1256 = vpack.c.bf16 %v1189, %v1188
    %v1257 = vpack.c.bf16 %v1191, %v1190
    %v1258 = vpack.c.bf16 %v1193, %v1192
    %v1259 = vpack.c.bf16 %v1195, %v1194
    %v1260 = vld [vmem:[%s2] sm:$0xf]
    %v1261 = vld [vmem:[%s2 + $0x4] sm:$0xf]
    %v1262 = vld [vmem:[%s2 + $0x8] sm:$0xf]
    %v1263 = vld [vmem:[%s2 + $0xc] sm:$0xf]
    %v1264 = vld [vmem:[%s3] sm:$0x1]
    %v1266 = vlaneseq
    %v1267 = vshrl.u32 %v1266, 7
    %v1268 = vsub.s32 0, %v1267
    %v1269 = vrot.slane %v1264, %v1268
    %v1275 = vunpack.c.l.b16 %v1260
    %v1276 = vunpack.c.l.b16 %v1261
    %v1277 = vunpack.c.l.b16 %v1262
    %v1278 = vunpack.c.l.b16 %v1263
    %v1279 = vpack.c.b16 %v1276, %v1275
    %v1280 = vpack.c.b16 %v1278, %v1277
    %v1284 = vsel %vm427, %v1196, 0
    %v1287 = vsel %vm427, %v1197, 0
    %v1290 = vsel %vm427, %v1198, 0
    %v1293 = vsel %vm427, %v1199, 0
    %v1296 = vsel %vm427, %v1200, 0
    %v1299 = vsel %vm427, %v1201, 0
    %v1302 = vsel %vm427, %v1202, 0
    %v1305 = vsel %vm427, %v1203, 0
    %v1308 = vsel %vm427, %v1204, 0
    %v1311 = vsel %vm427, %v1205, 0
    %v1314 = vsel %vm427, %v1206, 0
    %v1317 = vsel %vm427, %v1207, 0
    %v1320 = vsel %vm427, %v1208, 0
    %v1323 = vsel %vm427, %v1209, 0
    %v1326 = vsel %vm427, %v1210, 0
    %v1329 = vsel %vm427, %v1211, 0
    %v1332 = vsel %vm427, %v1212, 0
    %v1335 = vsel %vm427, %v1213, 0
    %v1338 = vsel %vm427, %v1214, 0
    %v1341 = vsel %vm427, %v1215, 0
    %v1344 = vsel %vm427, %v1216, 0
    %v1347 = vsel %vm427, %v1217, 0
    %v1350 = vsel %vm427, %v1218, 0
    %v1353 = vsel %vm427, %v1219, 0
    %v1356 = vsel %vm427, %v1220, 0
    %v1359 = vsel %vm427, %v1221, 0
    %v1362 = vsel %vm427, %v1222, 0
    %v1365 = vsel %vm427, %v1223, 0
    %v1368 = vsel %vm427, %v1224, 0
    %v1371 = vsel %vm427, %v1225, 0
    %v1374 = vsel %vm427, %v1226, 0
    %v1377 = vsel %vm427, %v1227, 0
    %v1380 = vsel %vm427, %v1228, 0
    %v1383 = vsel %vm427, %v1229, 0
    %v1386 = vsel %vm427, %v1230, 0
    %v1389 = vsel %vm427, %v1231, 0
    %v1392 = vsel %vm427, %v1232, 0
    %v1395 = vsel %vm427, %v1233, 0
    %v1398 = vsel %vm427, %v1234, 0
    %v1401 = vsel %vm427, %v1235, 0
    %v1404 = vsel %vm427, %v1236, 0
    %v1407 = vsel %vm427, %v1237, 0
    %v1410 = vsel %vm427, %v1238, 0
    %v1413 = vsel %vm427, %v1239, 0
    %v1416 = vsel %vm427, %v1240, 0
    %v1419 = vsel %vm427, %v1241, 0
    %v1422 = vsel %vm427, %v1242, 0
    %v1425 = vsel %vm427, %v1243, 0
    %v1428 = vsel %vm427, %v1244, 0
    %v1431 = vsel %vm427, %v1245, 0
    %v1434 = vsel %vm427, %v1246, 0
    %v1437 = vsel %vm427, %v1247, 0
    %v1440 = vsel %vm427, %v1248, 0
    %v1443 = vsel %vm427, %v1249, 0
    %v1446 = vsel %vm427, %v1250, 0
    %v1449 = vsel %vm427, %v1251, 0
    %v1452 = vsel %vm427, %v1252, 0
    %v1455 = vsel %vm427, %v1253, 0
    %v1458 = vsel %vm427, %v1254, 0
    %v1461 = vsel %vm427, %v1255, 0
    %v1464 = vsel %vm427, %v1256, 0
    %v1467 = vsel %vm427, %v1257, 0
    %v1470 = vsel %vm427, %v1258, 0
    %v1473 = vsel %vm427, %v1259, 0
    %1475 = vmatprep.subr.bf16.mxu0 0
    %1476 = vmatpush1.bf16.msra.mxu0 %v1279
    %1477 = vmatprep.subr.bf16.mxu0 0
    %1478 = vmatpush1.bf16.msra.mxu0 %v1280
    %1479 = vmatprep.subr.bf16.mxu0 0
    %1480 = vmatpush1.bf16.msra.mxu0 0
    %1481 = vmatprep.subr.bf16.mxu0 0
    %1482 = vmatpush1.bf16.msra.mxu0 0
    %1483 = vmatprep.subr.bf16.mxu0 0
    %1484 = vmatpush1.bf16.msra.mxu0 0
    %1485 = vmatprep.subr.bf16.mxu0 0
    %1486 = vmatpush1.bf16.msra.mxu0 0
    %1487 = vmatprep.subr.bf16.mxu0 0
    %1488 = vmatpush1.bf16.msra.mxu0 0
    %1489 = vmatprep.subr.bf16.mxu0 0
    %1490 = vmatpush1.bf16.msra.mxu0 0
    %1491 = vmatprep.subr.bf16.mxu0 0
    %1492 = vmatpush1.bf16.msra.mxu0 0
    %1493 = vmatprep.subr.bf16.mxu0 0
    %1494 = vmatpush1.bf16.msra.mxu0 0
    %1495 = vmatprep.subr.bf16.mxu0 0
    %1496 = vmatpush1.bf16.msra.mxu0 0
    %1497 = vmatprep.subr.bf16.mxu0 0
    %1498 = vmatpush1.bf16.msra.mxu0 0
    %1499 = vmatprep.subr.bf16.mxu0 0
    %1500 = vmatpush1.bf16.msra.mxu0 0
    %1501 = vmatprep.subr.bf16.mxu0 0
    %1502 = vmatpush1.bf16.msra.mxu0 0
    %1503 = vmatprep.subr.bf16.mxu0 0
    %1504 = vmatpush1.bf16.msra.mxu0 0
    %1505 = vmatprep.subr.bf16.mxu0 0
    %1506 = vmatpush1.bf16.msra.mxu0 0
    %1507 = vmatprep.mubr.bf16.mxu0 0
    %1508 = vmatmul.mubr.bf16.gmra.mrb[0].mxu0 %v1284
    %v1509 = vpop.f32.mrb[0].mxu0
    %v1510 = vadd.f32 %v1269, %v1509
    %v1511 = vpop.f32.mrb[0].mxu0
    %v1512 = vpop.f32.mrb[0].mxu0
    %v1513 = vadd.f32 %v1269, %v1512
    %v1514 = vpop.f32.mrb[0].mxu0
    %1515 = vmatprep.mubr.bf16.mxu0 0
    %1516 = vmatmul.mubr.bf16.gmra.mrb[0].mxu0 %v1287
    %v1517 = vpop.f32.mrb[0].mxu0
    %v1518 = vadd.f32 %v1269, %v1517
    %v1519 = vpop.f32.mrb[0].mxu0
    %v1520 = vpop.f32.mrb[0].mxu0
    %v1521 = vadd.f32 %v1269, %v1520
    %v1522 = vpop.f32.mrb[0].mxu0
    %1523 = vmatprep.mubr.bf16.mxu0 0
    %1524 = vmatmul.mubr.bf16.gmra.mrb[0].mxu0 %v1290
    %v1525 = vpop.f32.mrb[0].mxu0
    %v1526 = vadd.f32 %v1269, %v1525
    %v1527 = vpop.f32.mrb[0].mxu0
    %v1528 = vpop.f32.mrb[0].mxu0
    %v1529 = vadd.f32 %v1269, %v1528
    %v1530 = vpop.f32.mrb[0].mxu0
    %1531 = vmatprep.mubr.bf16.mxu0 0
    %1532 = vmatmul.mubr.bf16.gmra.mrb[0].mxu0 %v1293
    %v1533 = vpop.f32.mrb[0].mxu0
    %v1534 = vadd.f32 %v1269, %v1533
    %v1535 = vpop.f32.mrb[0].mxu0
    %v1536 = vpop.f32.mrb[0].mxu0
    %v1537 = vadd.f32 %v1269, %v1536
    %v1538 = vpop.f32.mrb[0].mxu0
    %1539 = vmatprep.mubr.bf16.mxu0 0
    %1540 = vmatmul.mubr.bf16.gmra.mrb[0].mxu0 %v1296
    %v1541 = vpop.f32.mrb[0].mxu0
    %v1542 = vadd.f32 %v1269, %v1541
    %v1543 = vpop.f32.mrb[0].mxu0
    %v1544 = vpop.f32.mrb[0].mxu0
    %v1545 = vadd.f32 %v1269, %v1544
    %v1546 = vpop.f32.mrb[0].mxu0
    %1547 = vmatprep.mubr.bf16.mxu0 0
    %1548 = vmatmul.mubr.bf16.gmra.mrb[0].mxu0 %v1299
    %v1549 = vpop.f32.mrb[0].mxu0
    %v1550 = vadd.f32 %v1269, %v1549
    %v1551 = vpop.f32.mrb[0].mxu0
    %v1552 = vpop.f32.mrb[0].mxu0
    %v1553 = vadd.f32 %v1269, %v1552
    %v1554 = vpop.f32.mrb[0].mxu0
    %1555 = vmatprep.mubr.bf16.mxu0 0
    %1556 = vmatmul.mubr.bf16.gmra.mrb[0].mxu0 %v1302
    %v1557 = vpop.f32.mrb[0].mxu0
    %v1558 = vadd.f32 %v1269, %v1557
    %v1559 = vpop.f32.mrb[0].mxu0
    %v1560 = vpop.f32.mrb[0].mxu0
    %v1561 = vadd.f32 %v1269, %v1560
    %v1562 = vpop.f32.mrb[0].mxu0
    %1563 = vmatprep.mubr.bf16.mxu0 0
    %1564 = vmatmul.mubr.bf16.gmra.mrb[0].mxu0 %v1305
    %v1565 = vpop.f32.mrb[0].mxu0
    %v1566 = vadd.f32 %v1269, %v1565
    %v1567 = vpop.f32.mrb[0].mxu0
    %v1568 = vpop.f32.mrb[0].mxu0
    %v1569 = vadd.f32 %v1269, %v1568
    %v1570 = vpop.f32.mrb[0].mxu0
    %1571 = vmatprep.mubr.bf16.mxu0 0
    %1572 = vmatmul.mubr.bf16.gmra.mrb[0].mxu0 %v1308
    %v1573 = vpop.f32.mrb[0].mxu0
    %v1574 = vadd.f32 %v1269, %v1573
    %v1575 = vpop.f32.mrb[0].mxu0
    %v1576 = vpop.f32.mrb[0].mxu0
    %v1577 = vadd.f32 %v1269, %v1576
    %v1578 = vpop.f32.mrb[0].mxu0
    %1579 = vmatprep.mubr.bf16.mxu0 0
    %1580 = vmatmul.mubr.bf16.gmra.mrb[0].mxu0 %v1311
    %v1581 = vpop.f32.mrb[0].mxu0
    %v1582 = vadd.f32 %v1269, %v1581
    %v1583 = vpop.f32.mrb[0].mxu0
    %v1584 = vpop.f32.mrb[0].mxu0
    %v1585 = vadd.f32 %v1269, %v1584
    %v1586 = vpop.f32.mrb[0].mxu0
    %1587 = vmatprep.mubr.bf16.mxu0 0
    %1588 = vmatmul.mubr.bf16.gmra.mrb[0].mxu0 %v1314
    %v1589 = vpop.f32.mrb[0].mxu0
    %v1590 = vadd.f32 %v1269, %v1589
    %v1591 = vpop.f32.mrb[0].mxu0
    %v1592 = vpop.f32.mrb[0].mxu0
    %v1593 = vadd.f32 %v1269, %v1592
    %v1594 = vpop.f32.mrb[0].mxu0
    %1595 = vmatprep.mubr.bf16.mxu0 0
    %1596 = vmatmul.mubr.bf16.gmra.mrb[0].mxu0 %v1317
    %v1597 = vpop.f32.mrb[0].mxu0
    %v1598 = vadd.f32 %v1269, %v1597
    %v1599 = vpop.f32.mrb[0].mxu0
    %v1600 = vpop.f32.mrb[0].mxu0
    %v1601 = vadd.f32 %v1269, %v1600
    %v1602 = vpop.f32.mrb[0].mxu0
    %1603 = vmatprep.mubr.bf16.mxu0 0
    %1604 = vmatmul.mubr.bf16.gmra.mrb[0].mxu0 %v1320
    %v1605 = vpop.f32.mrb[0].mxu0
    %v1606 = vadd.f32 %v1269, %v1605
    %v1607 = vpop.f32.mrb[0].mxu0
    %v1608 = vpop.f32.mrb[0].mxu0
    %v1609 = vadd.f32 %v1269, %v1608
    %v1610 = vpop.f32.mrb[0].mxu0
    %1611 = vmatprep.mubr.bf16.mxu0 0
    %1612 = vmatmul.mubr.bf16.gmra.mrb[0].mxu0 %v1323
    %v1613 = vpop.f32.mrb[0].mxu0
    %v1614 = vadd.f32 %v1269, %v1613
    %v1615 = vpop.f32.mrb[0].mxu0
    %v1616 = vpop.f32.mrb[0].mxu0
    %v1617 = vadd.f32 %v1269, %v1616
    %v1618 = vpop.f32.mrb[0].mxu0
    %1619 = vmatprep.mubr.bf16.mxu0 0
    %1620 = vmatmul.mubr.bf16.gmra.mrb[0].mxu0 %v1326
    %v1621 = vpop.f32.mrb[0].mxu0
    %v1622 = vadd.f32 %v1269, %v1621
    %v1623 = vpop.f32.mrb[0].mxu0
    %v1624 = vpop.f32.mrb[0].mxu0
    %v1625 = vadd.f32 %v1269, %v1624
    %v1626 = vpop.f32.mrb[0].mxu0
    %1627 = vmatprep.mubr.bf16.mxu0 0
    %1628 = vmatmul.mubr.bf16.gmra.mrb[0].mxu0 %v1329
    %v1629 = vpop.f32.mrb[0].mxu0
    %v1630 = vadd.f32 %v1269, %v1629
    %v1631 = vpop.f32.mrb[0].mxu0
    %v1632 = vpop.f32.mrb[0].mxu0
    %v1633 = vadd.f32 %v1269, %v1632
    %v1634 = vpop.f32.mrb[0].mxu0
    %1635 = vmatprep.mubr.bf16.mxu0 0
    %1636 = vmatmul.mubr.bf16.gmra.mrb[0].mxu0 %v1332
    %v1637 = vpop.f32.mrb[0].mxu0
    %v1638 = vadd.f32 %v1269, %v1637
    %v1639 = vpop.f32.mrb[0].mxu0
    %v1640 = vpop.f32.mrb[0].mxu0
    %v1641 = vadd.f32 %v1269, %v1640
    %v1642 = vpop.f32.mrb[0].mxu0
    %1643 = vmatprep.mubr.bf16.mxu0 0
    %1644 = vmatmul.mubr.bf16.gmra.mrb[0].mxu0 %v1335
    %v1645 = vpop.f32.mrb[0].mxu0
    %v1646 = vadd.f32 %v1269, %v1645
    %v1647 = vpop.f32.mrb[0].mxu0
    %v1648 = vpop.f32.mrb[0].mxu0
    %v1649 = vadd.f32 %v1269, %v1648
    %v1650 = vpop.f32.mrb[0].mxu0
    %1651 = vmatprep.mubr.bf16.mxu0 0
    %1652 = vmatmul.mubr.bf16.gmra.mrb[0].mxu0 %v1338
    %v1653 = vpop.f32.mrb[0].mxu0
    %v1654 = vadd.f32 %v1269, %v1653
    %v1655 = vpop.f32.mrb[0].mxu0
    %v1656 = vpop.f32.mrb[0].mxu0
    %v1657 = vadd.f32 %v1269, %v1656
    %v1658 = vpop.f32.mrb[0].mxu0
    %1659 = vmatprep.mubr.bf16.mxu0 0
    %1660 = vmatmul.mubr.bf16.gmra.mrb[0].mxu0 %v1341
    %v1661 = vpop.f32.mrb[0].mxu0
    %v1662 = vadd.f32 %v1269, %v1661
    %v1663 = vpop.f32.mrb[0].mxu0
    %v1664 = vpop.f32.mrb[0].mxu0
    %v1665 = vadd.f32 %v1269, %v1664
    %v1666 = vpop.f32.mrb[0].mxu0
    %1667 = vmatprep.mubr.bf16.mxu0 0
    %1668 = vmatmul.mubr.bf16.gmra.mrb[0].mxu0 %v1344
    %v1669 = vpop.f32.mrb[0].mxu0
    %v1670 = vadd.f32 %v1269, %v1669
    %v1671 = vpop.f32.mrb[0].mxu0
    %v1672 = vpop.f32.mrb[0].mxu0
    %v1673 = vadd.f32 %v1269, %v1672
    %v1674 = vpop.f32.mrb[0].mxu0
    %1675 = vmatprep.mubr.bf16.mxu0 0
    %1676 = vmatmul.mubr.bf16.gmra.mrb[0].mxu0 %v1347
    %v1677 = vpop.f32.mrb[0].mxu0
    %v1678 = vadd.f32 %v1269, %v1677
    %v1679 = vpop.f32.mrb[0].mxu0
    %v1680 = vpop.f32.mrb[0].mxu0
    %v1681 = vadd.f32 %v1269, %v1680
    %v1682 = vpop.f32.mrb[0].mxu0
    %1683 = vmatprep.mubr.bf16.mxu0 0
    %1684 = vmatmul.mubr.bf16.gmra.mrb[0].mxu0 %v1350
    %v1685 = vpop.f32.mrb[0].mxu0
    %v1686 = vadd.f32 %v1269, %v1685
    %v1687 = vpop.f32.mrb[0].mxu0
    %v1688 = vpop.f32.mrb[0].mxu0
    %v1689 = vadd.f32 %v1269, %v1688
    %v1690 = vpop.f32.mrb[0].mxu0
    %1691 = vmatprep.mubr.bf16.mxu0 0
    %1692 = vmatmul.mubr.bf16.gmra.mrb[0].mxu0 %v1353
    %v1693 = vpop.f32.mrb[0].mxu0
    %v1694 = vadd.f32 %v1269, %v1693
    %v1695 = vpop.f32.mrb[0].mxu0
    %v1696 = vpop.f32.mrb[0].mxu0
    %v1697 = vadd.f32 %v1269, %v1696
    %v1698 = vpop.f32.mrb[0].mxu0
    %1699 = vmatprep.mubr.bf16.mxu0 0
    %1700 = vmatmul.mubr.bf16.gmra.mrb[0].mxu0 %v1356
    %v1701 = vpop.f32.mrb[0].mxu0
    %v1702 = vadd.f32 %v1269, %v1701
    %v1703 = vpop.f32.mrb[0].mxu0
    %v1704 = vpop.f32.mrb[0].mxu0
    %v1705 = vadd.f32 %v1269, %v1704
    %v1706 = vpop.f32.mrb[0].mxu0
    %1707 = vmatprep.mubr.bf16.mxu0 0
    %1708 = vmatmul.mubr.bf16.gmra.mrb[0].mxu0 %v1359
    %v1709 = vpop.f32.mrb[0].mxu0
    %v1710 = vadd.f32 %v1269, %v1709
    %v1711 = vpop.f32.mrb[0].mxu0
    %v1712 = vpop.f32.mrb[0].mxu0
    %v1713 = vadd.f32 %v1269, %v1712
    %v1714 = vpop.f32.mrb[0].mxu0
    %1715 = vmatprep.mubr.bf16.mxu0 0
    %1716 = vmatmul.mubr.bf16.gmra.mrb[0].mxu0 %v1362
    %v1717 = vpop.f32.mrb[0].mxu0
    %v1718 = vadd.f32 %v1269, %v1717
    %v1719 = vpop.f32.mrb[0].mxu0
    %v1720 = vpop.f32.mrb[0].mxu0
    %v1721 = vadd.f32 %v1269, %v1720
    %v1722 = vpop.f32.mrb[0].mxu0
    %1723 = vmatprep.mubr.bf16.mxu0 0
    %1724 = vmatmul.mubr.bf16.gmra.mrb[0].mxu0 %v1365
    %v1725 = vpop.f32.mrb[0].mxu0
    %v1726 = vadd.f32 %v1269, %v1725
    %v1727 = vpop.f32.mrb[0].mxu0
    %v1728 = vpop.f32.mrb[0].mxu0
    %v1729 = vadd.f32 %v1269, %v1728
    %v1730 = vpop.f32.mrb[0].mxu0
    %1731 = vmatprep.mubr.bf16.mxu0 0
    %1732 = vmatmul.mubr.bf16.gmra.mrb[0].mxu0 %v1368
    %v1733 = vpop.f32.mrb[0].mxu0
    %v1734 = vadd.f32 %v1269, %v1733
    %v1735 = vpop.f32.mrb[0].mxu0
    %v1736 = vpop.f32.mrb[0].mxu0
    %v1737 = vadd.f32 %v1269, %v1736
    %v1738 = vpop.f32.mrb[0].mxu0
    %1739 = vmatprep.mubr.bf16.mxu0 0
    %1740 = vmatmul.mubr.bf16.gmra.mrb[0].mxu0 %v1371
    %v1741 = vpop.f32.mrb[0].mxu0
    %v1742 = vadd.f32 %v1269, %v1741
    %v1743 = vpop.f32.mrb[0].mxu0
    %v1744 = vpop.f32.mrb[0].mxu0
    %v1745 = vadd.f32 %v1269, %v1744
    %v1746 = vpop.f32.mrb[0].mxu0
    %1747 = vmatprep.mubr.bf16.mxu0 0
    %1748 = vmatmul.mubr.bf16.gmra.mrb[0].mxu0 %v1374
    %v1749 = vpop.f32.mrb[0].mxu0
    %v1750 = vadd.f32 %v1269, %v1749
    %v1751 = vpop.f32.mrb[0].mxu0
    %v1752 = vpop.f32.mrb[0].mxu0
    %v1753 = vadd.f32 %v1269, %v1752
    %v1754 = vpop.f32.mrb[0].mxu0
    %1755 = vmatprep.mubr.bf16.mxu0 0
    %1756 = vmatmul.mubr.bf16.gmra.mrb[0].mxu0 %v1377
    %v1757 = vpop.f32.mrb[0].mxu0
    %v1758 = vadd.f32 %v1269, %v1757
    %v1759 = vpop.f32.mrb[0].mxu0
    %v1760 = vpop.f32.mrb[0].mxu0
    %v1761 = vadd.f32 %v1269, %v1760
    %v1762 = vpop.f32.mrb[0].mxu0
    %1763 = vmatprep.mubr.bf16.mxu0 0
    %1764 = vmatmul.mubr.bf16.gmra.mrb[0].mxu0 %v1380
    %v1765 = vpop.f32.mrb[0].mxu0
    %v1766 = vadd.f32 %v1269, %v1765
    %v1767 = vpop.f32.mrb[0].mxu0
    %v1768 = vpop.f32.mrb[0].mxu0
    %v1769 = vadd.f32 %v1269, %v1768
    %v1770 = vpop.f32.mrb[0].mxu0
    %1771 = vmatprep.mubr.bf16.mxu0 0
    %1772 = vmatmul.mubr.bf16.gmra.mrb[0].mxu0 %v1383
    %v1773 = vpop.f32.mrb[0].mxu0
    %v1774 = vadd.f32 %v1269, %v1773
    %v1775 = vpop.f32.mrb[0].mxu0
    %v1776 = vpop.f32.mrb[0].mxu0
    %v1777 = vadd.f32 %v1269, %v1776
    %v1778 = vpop.f32.mrb[0].mxu0
    %1779 = vmatprep.mubr.bf16.mxu0 0
    %1780 = vmatmul.mubr.bf16.gmra.mrb[0].mxu0 %v1386
    %v1781 = vpop.f32.mrb[0].mxu0
    %v1782 = vadd.f32 %v1269, %v1781
    %v1783 = vpop.f32.mrb[0].mxu0
    %v1784 = vpop.f32.mrb[0].mxu0
    %v1785 = vadd.f32 %v1269, %v1784
    %v1786 = vpop.f32.mrb[0].mxu0
    %1787 = vmatprep.mubr.bf16.mxu0 0
    %1788 = vmatmul.mubr.bf16.gmra.mrb[0].mxu0 %v1389
    %v1789 = vpop.f32.mrb[0].mxu0
    %v1790 = vadd.f32 %v1269, %v1789
    %v1791 = vpop.f32.mrb[0].mxu0
    %v1792 = vpop.f32.mrb[0].mxu0
    %v1793 = vadd.f32 %v1269, %v1792
    %v1794 = vpop.f32.mrb[0].mxu0
    %1795 = vmatprep.mubr.bf16.mxu0 0
    %1796 = vmatmul.mubr.bf16.gmra.mrb[0].mxu0 %v1392
    %v1797 = vpop.f32.mrb[0].mxu0
    %v1798 = vadd.f32 %v1269, %v1797
    %v1799 = vpop.f32.mrb[0].mxu0
    %v1800 = vpop.f32.mrb[0].mxu0
    %v1801 = vadd.f32 %v1269, %v1800
    %v1802 = vpop.f32.mrb[0].mxu0
    %1803 = vmatprep.mubr.bf16.mxu0 0
    %1804 = vmatmul.mubr.bf16.gmra.mrb[0].mxu0 %v1395
    %v1805 = vpop.f32.mrb[0].mxu0
    %v1806 = vadd.f32 %v1269, %v1805
    %v1807 = vpop.f32.mrb[0].mxu0
    %v1808 = vpop.f32.mrb[0].mxu0
    %v1809 = vadd.f32 %v1269, %v1808
    %v1810 = vpop.f32.mrb[0].mxu0
    %1811 = vmatprep.mubr.bf16.mxu0 0
    %1812 = vmatmul.mubr.bf16.gmra.mrb[0].mxu0 %v1398
    %v1813 = vpop.f32.mrb[0].mxu0
    %v1814 = vadd.f32 %v1269, %v1813
    %v1815 = vpop.f32.mrb[0].mxu0
    %v1816 = vpop.f32.mrb[0].mxu0
    %v1817 = vadd.f32 %v1269, %v1816
    %v1818 = vpop.f32.mrb[0].mxu0
    %1819 = vmatprep.mubr.bf16.mxu0 0
    %1820 = vmatmul.mubr.bf16.gmra.mrb[0].mxu0 %v1401
    %v1821 = vpop.f32.mrb[0].mxu0
    %v1822 = vadd.f32 %v1269, %v1821
    %v1823 = vpop.f32.mrb[0].mxu0
    %v1824 = vpop.f32.mrb[0].mxu0
    %v1825 = vadd.f32 %v1269, %v1824
    %v1826 = vpop.f32.mrb[0].mxu0
    %1827 = vmatprep.mubr.bf16.mxu0 0
    %1828 = vmatmul.mubr.bf16.gmra.mrb[0].mxu0 %v1404
    %v1829 = vpop.f32.mrb[0].mxu0
    %v1830 = vadd.f32 %v1269, %v1829
    %v1831 = vpop.f32.mrb[0].mxu0
    %v1832 = vpop.f32.mrb[0].mxu0
    %v1833 = vadd.f32 %v1269, %v1832
    %v1834 = vpop.f32.mrb[0].mxu0
    %1835 = vmatprep.mubr.bf16.mxu0 0
    %1836 = vmatmul.mubr.bf16.gmra.mrb[0].mxu0 %v1407
    %v1837 = vpop.f32.mrb[0].mxu0
    %v1838 = vadd.f32 %v1269, %v1837
    %v1839 = vpop.f32.mrb[0].mxu0
    %v1840 = vpop.f32.mrb[0].mxu0
    %v1841 = vadd.f32 %v1269, %v1840
    %v1842 = vpop.f32.mrb[0].mxu0
    %1843 = vmatprep.mubr.bf16.mxu0 0
    %1844 = vmatmul.mubr.bf16.gmra.mrb[0].mxu0 %v1410
    %v1845 = vpop.f32.mrb[0].mxu0
    %v1846 = vadd.f32 %v1269, %v1845
    %v1847 = vpop.f32.mrb[0].mxu0
    %v1848 = vpop.f32.mrb[0].mxu0
    %v1849 = vadd.f32 %v1269, %v1848
    %v1850 = vpop.f32.mrb[0].mxu0
    %1851 = vmatprep.mubr.bf16.mxu0 0
    %1852 = vmatmul.mubr.bf16.gmra.mrb[0].mxu0 %v1413
    %v1853 = vpop.f32.mrb[0].mxu0
    %v1854 = vadd.f32 %v1269, %v1853
    %v1855 = vpop.f32.mrb[0].mxu0
    %v1856 = vpop.f32.mrb[0].mxu0
    %v1857 = vadd.f32 %v1269, %v1856
    %v1858 = vpop.f32.mrb[0].mxu0
    %1859 = vmatprep.mubr.bf16.mxu0 0
    %1860 = vmatmul.mubr.bf16.gmra.mrb[0].mxu0 %v1416
    %v1861 = vpop.f32.mrb[0].mxu0
    %v1862 = vadd.f32 %v1269, %v1861
    %v1863 = vpop.f32.mrb[0].mxu0
    %v1864 = vpop.f32.mrb[0].mxu0
    %v1865 = vadd.f32 %v1269, %v1864
    %v1866 = vpop.f32.mrb[0].mxu0
    %1867 = vmatprep.mubr.bf16.mxu0 0
    %1868 = vmatmul.mubr.bf16.gmra.mrb[0].mxu0 %v1419
    %v1869 = vpop.f32.mrb[0].mxu0
    %v1870 = vadd.f32 %v1269, %v1869
    %v1871 = vpop.f32.mrb[0].mxu0
    %v1872 = vpop.f32.mrb[0].mxu0
    %v1873 = vadd.f32 %v1269, %v1872
    %v1874 = vpop.f32.mrb[0].mxu0
    %1875 = vmatprep.mubr.bf16.mxu0 0
    %1876 = vmatmul.mubr.bf16.gmra.mrb[0].mxu0 %v1422
    %v1877 = vpop.f32.mrb[0].mxu0
    %v1878 = vadd.f32 %v1269, %v1877
    %v1879 = vpop.f32.mrb[0].mxu0
    %v1880 = vpop.f32.mrb[0].mxu0
    %v1881 = vadd.f32 %v1269, %v1880
    %v1882 = vpop.f32.mrb[0].mxu0
    %1883 = vmatprep.mubr.bf16.mxu0 0
    %1884 = vmatmul.mubr.bf16.gmra.mrb[0].mxu0 %v1425
    %v1885 = vpop.f32.mrb[0].mxu0
    %v1886 = vadd.f32 %v1269, %v1885
    %v1887 = vpop.f32.mrb[0].mxu0
    %v1888 = vpop.f32.mrb[0].mxu0
    %v1889 = vadd.f32 %v1269, %v1888
    %v1890 = vpop.f32.mrb[0].mxu0
    %1891 = vmatprep.mubr.bf16.mxu0 0
    %1892 = vmatmul.mubr.bf16.gmra.mrb[0].mxu0 %v1428
    %v1893 = vpop.f32.mrb[0].mxu0
    %v1894 = vadd.f32 %v1269, %v1893
    %v1895 = vpop.f32.mrb[0].mxu0
    %v1896 = vpop.f32.mrb[0].mxu0
    %v1897 = vadd.f32 %v1269, %v1896
    %v1898 = vpop.f32.mrb[0].mxu0
    %1899 = vmatprep.mubr.bf16.mxu0 0
    %1900 = vmatmul.mubr.bf16.gmra.mrb[0].mxu0 %v1431
    %v1901 = vpop.f32.mrb[0].mxu0
    %v1902 = vadd.f32 %v1269, %v1901
    %v1903 = vpop.f32.mrb[0].mxu0
    %v1904 = vpop.f32.mrb[0].mxu0
    %v1905 = vadd.f32 %v1269, %v1904
    %v1906 = vpop.f32.mrb[0].mxu0
    %1907 = vmatprep.mubr.bf16.mxu0 0
    %1908 = vmatmul.mubr.bf16.gmra.mrb[0].mxu0 %v1434
    %v1909 = vpop.f32.mrb[0].mxu0
    %v1910 = vadd.f32 %v1269, %v1909
    %v1911 = vpop.f32.mrb[0].mxu0
    %v1912 = vpop.f32.mrb[0].mxu0
    %v1913 = vadd.f32 %v1269, %v1912
    %v1914 = vpop.f32.mrb[0].mxu0
    %1915 = vmatprep.mubr.bf16.mxu0 0
    %1916 = vmatmul.mubr.bf16.gmra.mrb[0].mxu0 %v1437
    %v1917 = vpop.f32.mrb[0].mxu0
    %v1918 = vadd.f32 %v1269, %v1917
    %v1919 = vpop.f32.mrb[0].mxu0
    %v1920 = vpop.f32.mrb[0].mxu0
    %v1921 = vadd.f32 %v1269, %v1920
    %v1922 = vpop.f32.mrb[0].mxu0
    %1923 = vmatprep.mubr.bf16.mxu0 0
    %1924 = vmatmul.mubr.bf16.gmra.mrb[0].mxu0 %v1440
    %v1925 = vpop.f32.mrb[0].mxu0
    %v1926 = vadd.f32 %v1269, %v1925
    %v1927 = vpop.f32.mrb[0].mxu0
    %v1928 = vpop.f32.mrb[0].mxu0
    %v1929 = vadd.f32 %v1269, %v1928
    %v1930 = vpop.f32.mrb[0].mxu0
    %1931 = vmatprep.mubr.bf16.mxu0 0
    %1932 = vmatmul.mubr.bf16.gmra.mrb[0].mxu0 %v1443
    %v1933 = vpop.f32.mrb[0].mxu0
    %v1934 = vadd.f32 %v1269, %v1933
    %v1935 = vpop.f32.mrb[0].mxu0
    %v1936 = vpop.f32.mrb[0].mxu0
    %v1937 = vadd.f32 %v1269, %v1936
    %v1938 = vpop.f32.mrb[0].mxu0
    %1939 = vmatprep.mubr.bf16.mxu0 0
    %1940 = vmatmul.mubr.bf16.gmra.mrb[0].mxu0 %v1446
    %v1941 = vpop.f32.mrb[0].mxu0
    %v1942 = vadd.f32 %v1269, %v1941
    %v1943 = vpop.f32.mrb[0].mxu0
    %v1944 = vpop.f32.mrb[0].mxu0
    %v1945 = vadd.f32 %v1269, %v1944
    %v1946 = vpop.f32.mrb[0].mxu0
    %1947 = vmatprep.mubr.bf16.mxu0 0
    %1948 = vmatmul.mubr.bf16.gmra.mrb[0].mxu0 %v1449
    %v1949 = vpop.f32.mrb[0].mxu0
    %v1950 = vadd.f32 %v1269, %v1949
    %v1951 = vpop.f32.mrb[0].mxu0
    %v1952 = vpop.f32.mrb[0].mxu0
    %v1953 = vadd.f32 %v1269, %v1952
    %v1954 = vpop.f32.mrb[0].mxu0
    %1955 = vmatprep.mubr.bf16.mxu0 0
    %1956 = vmatmul.mubr.bf16.gmra.mrb[0].mxu0 %v1452
    %v1957 = vpop.f32.mrb[0].mxu0
    %v1958 = vadd.f32 %v1269, %v1957
    %v1959 = vpop.f32.mrb[0].mxu0
    %v1960 = vpop.f32.mrb[0].mxu0
    %v1961 = vadd.f32 %v1269, %v1960
    %v1962 = vpop.f32.mrb[0].mxu0
    %1963 = vmatprep.mubr.bf16.mxu0 0
    %1964 = vmatmul.mubr.bf16.gmra.mrb[0].mxu0 %v1455
    %v1965 = vpop.f32.mrb[0].mxu0
    %v1966 = vadd.f32 %v1269, %v1965
    %v1967 = vpop.f32.mrb[0].mxu0
    %v1968 = vpop.f32.mrb[0].mxu0
    %v1969 = vadd.f32 %v1269, %v1968
    %v1970 = vpop.f32.mrb[0].mxu0
    %1971 = vmatprep.mubr.bf16.mxu0 0
    %1972 = vmatmul.mubr.bf16.gmra.mrb[0].mxu0 %v1458
    %v1973 = vpop.f32.mrb[0].mxu0
    %v1974 = vadd.f32 %v1269, %v1973
    %v1975 = vpop.f32.mrb[0].mxu0
    %v1976 = vpop.f32.mrb[0].mxu0
    %v1977 = vadd.f32 %v1269, %v1976
    %v1978 = vpop.f32.mrb[0].mxu0
    %1979 = vmatprep.mubr.bf16.mxu0 0
    %1980 = vmatmul.mubr.bf16.gmra.mrb[0].mxu0 %v1461
    %v1981 = vpop.f32.mrb[0].mxu0
    %v1982 = vadd.f32 %v1269, %v1981
    %v1983 = vpop.f32.mrb[0].mxu0
    %v1984 = vpop.f32.mrb[0].mxu0
    %v1985 = vadd.f32 %v1269, %v1984
    %v1986 = vpop.f32.mrb[0].mxu0
    %1987 = vmatprep.mubr.bf16.mxu0 0
    %1988 = vmatmul.mubr.bf16.gmra.mrb[0].mxu0 %v1464
    %v1989 = vpop.f32.mrb[0].mxu0
    %v1990 = vadd.f32 %v1269, %v1989
    %v1991 = vpop.f32.mrb[0].mxu0
    %v1992 = vpop.f32.mrb[0].mxu0
    %v1993 = vadd.f32 %v1269, %v1992
    %v1994 = vpop.f32.mrb[0].mxu0
    %1995 = vmatprep.mubr.bf16.mxu0 0
    %1996 = vmatmul.mubr.bf16.gmra.mrb[0].mxu0 %v1467
    %v1997 = vpop.f32.mrb[0].mxu0
    %v1998 = vadd.f32 %v1269, %v1997
    %v1999 = vpop.f32.mrb[0].mxu0
    %v2000 = vpop.f32.mrb[0].mxu0
    %v2001 = vadd.f32 %v1269, %v2000
    %v2002 = vpop.f32.mrb[0].mxu0
    %2003 = vmatprep.mubr.bf16.mxu0 0
    %2004 = vmatmul.mubr.bf16.gmra.mrb[0].mxu0 %v1470
    %v2005 = vpop.f32.mrb[0].mxu0
    %v2006 = vadd.f32 %v1269, %v2005
    %v2007 = vpop.f32.mrb[0].mxu0
    %v2008 = vpop.f32.mrb[0].mxu0
    %v2009 = vadd.f32 %v1269, %v2008
    %v2010 = vpop.f32.mrb[0].mxu0
    %2011 = vmatprep.mubr.bf16.mxu0 0
    %2012 = vmatmul.mubr.bf16.gmra.mrb[0].mxu0 %v1473
    %v2013 = vpop.f32.mrb[0].mxu0
    %v2014 = vadd.f32 %v1269, %v2013
    %v2015 = vpop.f32.mrb[0].mxu0
    %v2016 = vpop.f32.mrb[0].mxu0
    %v2017 = vadd.f32 %v1269, %v2016
    %v2018 = vpop.f32.mrb[0].mxu0
    %2019 = vdwg.mxu0
    %v2020 = vld [vmem:[%s1] sm:$0xf]
    %v2021 = vld [vmem:[%s1 + $0x4] sm:$0xf]
    %v2022 = vld [vmem:[%s4] sm:$0xf]
    %v2023 = vld [vmem:[%s4 + $0x4] sm:$0xf]
    %v2024 = vld [vmem:[%s4 + $0x8] sm:$0xf]
    %v2025 = vld [vmem:[%s4 + $0xc] sm:$0xf]
    %v2026 = vld [vmem:[%s5] sm:$0x1]
    %v2028 = vlaneseq
    %v2029 = vshrl.u32 %v2028, 7
    %v2030 = vsub.s32 0, %v2029
    %v2031 = vrot.slane %v2026, %v2030
    %v2035 = vunpack.c.l.b16 %v2020
    %v2036 = vunpack.c.l.b16 %v2021
    %v2037 = vpack.c.b16 %v2036, %v2035
    %v2042 = vunpack.c.l.b16 %v2022
    %v2043 = vunpack.c.l.b16 %v2023
    %v2044 = vunpack.c.l.b16 %v2024
    %v2045 = vunpack.c.l.b16 %v2025
    %v2046 = vpack.c.b16 %v2043, %v2042
    %v2047 = vpack.c.b16 %v2045, %v2044
    %v2051 = vsel %vm427, %v2037, 0
    %2053 = vmatprep.subr.bf16.mxu0 0
    %2054 = vmatpush1.bf16.msra.mxu0 %v2046
    %2055 = vmatprep.subr.bf16.mxu0 0
    %2056 = vmatpush1.bf16.msra.mxu0 %v2047
    %2057 = vmatprep.subr.bf16.mxu0 0
    %2058 = vmatpush1.bf16.msra.mxu0 0
    %2059 = vmatprep.subr.bf16.mxu0 0
    %2060 = vmatpush1.bf16.msra.mxu0 0
    %2061 = vmatprep.subr.bf16.mxu0 0
    %2062 = vmatpush1.bf16.msra.mxu0 0
    %2063 = vmatprep.subr.bf16.mxu0 0
    %2064 = vmatpush1.bf16.msra.mxu0 0
    %2065 = vmatprep.subr.bf16.mxu0 0
    %2066 = vmatpush1.bf16.msra.mxu0 0
    %2067 = vmatprep.subr.bf16.mxu0 0
    %2068 = vmatpush1.bf16.msra.mxu0 0
    %2069 = vmatprep.subr.bf16.mxu0 0
    %2070 = vmatpush1.bf16.msra.mxu0 0
    %2071 = vmatprep.subr.bf16.mxu0 0
    %2072 = vmatpush1.bf16.msra.mxu0 0
    %2073 = vmatprep.subr.bf16.mxu0 0
    %2074 = vmatpush1.bf16.msra.mxu0 0
    %2075 = vmatprep.subr.bf16.mxu0 0
    %2076 = vmatpush1.bf16.msra.mxu0 0
    %2077 = vmatprep.subr.bf16.mxu0 0
    %2078 = vmatpush1.bf16.msra.mxu0 0
    %2079 = vmatprep.subr.bf16.mxu0 0
    %2080 = vmatpush1.bf16.msra.mxu0 0
    %2081 = vmatprep.subr.bf16.mxu0 0
    %2082 = vmatpush1.bf16.msra.mxu0 0
    %2083 = vmatprep.subr.bf16.mxu0 0
    %2084 = vmatpush1.bf16.msra.mxu0 0
    %2085 = vmatprep.mubr.bf16.mxu0 0
    %2086 = vmatmul.mubr.bf16.gmra.mrb[0].mxu0 %v2051
    %v2087 = vpop.f32.mrb[0].mxu0
    %v2088 = vadd.f32 %v2031, %v2087
    %v2089 = vpop.f32.mrb[0].mxu0
    %v2090 = vpop.f32.mrb[0].mxu0
    %v2091 = vadd.f32 %v2031, %v2090
    %v2092 = vpop.f32.mrb[0].mxu0
    %2093 = vdwg.mxu0
    %v2096 = vcombine.high %v2088, %v2088
    %v2098 = vunpack.c.l.s4 1966171168
    %v2099 = vunpack.c.0.s8 %v2098
    %v2100 = vlaneseq
    %v2101 = vshrl.u32 %v2100, 7
    %v2102 = vsub.s32 %v2099, %v2101
    %v2103 = vrot.slane %v2088, %v2102
    %v2105 = vunpack.c.l.s4 1966171168
    %v2106 = vunpack.c.0.s8 %v2105
    %v2107 = vlaneseq
    %v2108 = vshrl.u32 %v2107, 7
    %v2109 = vsub.s32 %v2106, %v2108
    %v2110 = vrot.slane %v2096, %v2109
    %v2111 = vcombine.high %v2103, %v2103
    %v2112 = vcombine.high %v2110, %v2110
    %v2114 = vunpack.c.l.s4 1966171168
    %v2115 = vunpack.c.0.s8 %v2114
    %v2116 = vlaneseq
    %v2117 = vshrl.u32 %v2116, 7
    %v2118 = vsub.s32 %v2115, %v2117
    %v2119 = vrot.slane %v2103, %v2118
    %v2121 = vunpack.c.l.s4 1966171168
    %v2122 = vunpack.c.0.s8 %v2121
    %v2123 = vlaneseq
    %v2124 = vshrl.u32 %v2123, 7
    %v2125 = vsub.s32 %v2122, %v2124
    %v2126 = vrot.slane %v2110, %v2125
    %v2128 = vunpack.c.l.s4 1966171168
    %v2129 = vunpack.c.0.s8 %v2128
    %v2130 = vlaneseq
    %v2131 = vshrl.u32 %v2130, 7
    %v2132 = vsub.s32 %v2129, %v2131
    %v2133 = vrot.slane %v2111, %v2132
    %v2135 = vunpack.c.l.s4 1966171168
    %v2136 = vunpack.c.0.s8 %v2135
    %v2137 = vlaneseq
    %v2138 = vshrl.u32 %v2137, 7
    %v2139 = vsub.s32 %v2136, %v2138
    %v2140 = vrot.slane %v2112, %v2139
    %v2141 = vcombine.high %v2119, %v2119
    %v2142 = vcombine.high %v2126, %v2126
    %v2143 = vcombine.high %v2133, %v2133
    %v2144 = vcombine.high %v2140, %v2140
    %v2145 = vcombine.high %v2091, %v2091
    %v2147 = vunpack.c.l.s4 1966171168
    %v2148 = vunpack.c.0.s8 %v2147
    %v2149 = vlaneseq
    %v2150 = vshrl.u32 %v2149, 7
    %v2151 = vsub.s32 %v2148, %v2150
    %v2152 = vrot.slane %v2091, %v2151
    %v2154 = vunpack.c.l.s4 1966171168
    %v2155 = vunpack.c.0.s8 %v2154
    %v2156 = vlaneseq
    %v2157 = vshrl.u32 %v2156, 7
    %v2158 = vsub.s32 %v2155, %v2157
    %v2159 = vrot.slane %v2145, %v2158
    %v2160 = vcombine.high %v2152, %v2152
    %v2161 = vcombine.high %v2159, %v2159
    %v2163 = vunpack.c.l.s4 1966171168
    %v2164 = vunpack.c.0.s8 %v2163
    %v2165 = vlaneseq
    %v2166 = vshrl.u32 %v2165, 7
    %v2167 = vsub.s32 %v2164, %v2166
    %v2168 = vrot.slane %v2152, %v2167
    %v2170 = vunpack.c.l.s4 1966171168
    %v2171 = vunpack.c.0.s8 %v2170
    %v2172 = vlaneseq
    %v2173 = vshrl.u32 %v2172, 7
    %v2174 = vsub.s32 %v2171, %v2173
    %v2175 = vrot.slane %v2159, %v2174
    %v2177 = vunpack.c.l.s4 1966171168
    %v2178 = vunpack.c.0.s8 %v2177
    %v2179 = vlaneseq
    %v2180 = vshrl.u32 %v2179, 7
    %v2181 = vsub.s32 %v2178, %v2180
    %v2182 = vrot.slane %v2160, %v2181
    %v2184 = vunpack.c.l.s4 1966171168
    %v2185 = vunpack.c.0.s8 %v2184
    %v2186 = vlaneseq
    %v2187 = vshrl.u32 %v2186, 7
    %v2188 = vsub.s32 %v2185, %v2187
    %v2189 = vrot.slane %v2161, %v2188
    %v2190 = vcombine.high %v2168, %v2168
    %v2191 = vcombine.high %v2175, %v2175
    %v2192 = vcombine.high %v2182, %v2182
    %v2193 = vcombine.high %v2189, %v2189
    %v2194 = vlaneseq
    %v2195 = vshrl.u32 %v2194, 7
    %v2196 = vsub.s32 0, %v2195
    %v2197 = vrot.slane %v2119, %v2196
    %v2198 = vlaneseq
    %v2199 = vshrl.u32 %v2198, 7
    %v2200 = vsub.s32 0, %v2199
    %v2201 = vrot.slane %v2133, %v2200
    %v2202 = vlaneseq
    %v2203 = vshrl.u32 %v2202, 7
    %v2204 = vsub.s32 0, %v2203
    %v2205 = vrot.slane %v2141, %v2204
    %v2206 = vlaneseq
    %v2207 = vshrl.u32 %v2206, 7
    %v2208 = vsub.s32 0, %v2207
    %v2209 = vrot.slane %v2143, %v2208
    %v2210 = vlaneseq
    %v2211 = vshrl.u32 %v2210, 7
    %v2212 = vsub.s32 0, %v2211
    %v2213 = vrot.slane %v2126, %v2212
    %v2214 = vlaneseq
    %v2215 = vshrl.u32 %v2214, 7
    %v2216 = vsub.s32 0, %v2215
    %v2217 = vrot.slane %v2140, %v2216
    %v2218 = vlaneseq
    %v2219 = vshrl.u32 %v2218, 7
    %v2220 = vsub.s32 0, %v2219
    %v2221 = vrot.slane %v2142, %v2220
    %v2222 = vlaneseq
    %v2223 = vshrl.u32 %v2222, 7
    %v2224 = vsub.s32 0, %v2223
    %v2225 = vrot.slane %v2144, %v2224
    %v2226 = vlaneseq
    %v2227 = vshrl.u32 %v2226, 7
    %v2228 = vsub.s32 0, %v2227
    %v2229 = vrot.slane %v2168, %v2228
    %v2230 = vlaneseq
    %v2231 = vshrl.u32 %v2230, 7
    %v2232 = vsub.s32 0, %v2231
    %v2233 = vrot.slane %v2182, %v2232
    %v2234 = vlaneseq
    %v2235 = vshrl.u32 %v2234, 7
    %v2236 = vsub.s32 0, %v2235
    %v2237 = vrot.slane %v2190, %v2236
    %v2238 = vlaneseq
    %v2239 = vshrl.u32 %v2238, 7
    %v2240 = vsub.s32 0, %v2239
    %v2241 = vrot.slane %v2192, %v2240
    %v2242 = vlaneseq
    %v2243 = vshrl.u32 %v2242, 7
    %v2244 = vsub.s32 0, %v2243
    %v2245 = vrot.slane %v2175, %v2244
    %v2246 = vlaneseq
    %v2247 = vshrl.u32 %v2246, 7
    %v2248 = vsub.s32 0, %v2247
    %v2249 = vrot.slane %v2189, %v2248
    %v2250 = vlaneseq
    %v2251 = vshrl.u32 %v2250, 7
    %v2252 = vsub.s32 0, %v2251
    %v2253 = vrot.slane %v2191, %v2252
    %v2254 = vlaneseq
    %v2255 = vshrl.u32 %v2254, 7
    %v2256 = vsub.s32 0, %v2255
    %v2257 = vrot.slane %v2193, %v2256
    %v2274 = vmul.f32 %v1510, %v2197
    %v2275 = vmul.f32 %v1513, %v2197
    %v2276 = vmul.f32 %v1518, %v2197
    %v2277 = vmul.f32 %v1521, %v2197
    %v2278 = vmul.f32 %v1526, %v2197
    %v2279 = vmul.f32 %v1529, %v2197
    %v2280 = vmul.f32 %v1534, %v2197
    %v2281 = vmul.f32 %v1537, %v2197
    %v2282 = vmul.f32 %v1542, %v2201
    %v2283 = vmul.f32 %v1545, %v2201
    %v2284 = vmul.f32 %v1550, %v2201
    %v2285 = vmul.f32 %v1553, %v2201
    %v2286 = vmul.f32 %v1558, %v2201
    %v2287 = vmul.f32 %v1561, %v2201
    %v2288 = vmul.f32 %v1566, %v2201
    %v2289 = vmul.f32 %v1569, %v2201
    %v2290 = vmul.f32 %v1574, %v2205
    %v2291 = vmul.f32 %v1577, %v2205
    %v2292 = vmul.f32 %v1582, %v2205
    %v2293 = vmul.f32 %v1585, %v2205
    %v2294 = vmul.f32 %v1590, %v2205
    %v2295 = vmul.f32 %v1593, %v2205
    %v2296 = vmul.f32 %v1598, %v2205
    %v2297 = vmul.f32 %v1601, %v2205
    %v2298 = vmul.f32 %v1606, %v2209
    %v2299 = vmul.f32 %v1609, %v2209
    %v2300 = vmul.f32 %v1614, %v2209
    %v2301 = vmul.f32 %v1617, %v2209
    %v2302 = vmul.f32 %v1622, %v2209
    %v2303 = vmul.f32 %v1625, %v2209
    %v2304 = vmul.f32 %v1630, %v2209
    %v2305 = vmul.f32 %v1633, %v2209
    %v2306 = vmul.f32 %v1638, %v2213
    %v2307 = vmul.f32 %v1641, %v2213
    %v2308 = vmul.f32 %v1646, %v2213
    %v2309 = vmul.f32 %v1649, %v2213
    %v2310 = vmul.f32 %v1654, %v2213
    %v2311 = vmul.f32 %v1657, %v2213
    %v2312 = vmul.f32 %v1662, %v2213
    %v2313 = vmul.f32 %v1665, %v2213
    %v2314 = vmul.f32 %v1670, %v2217
    %v2315 = vmul.f32 %v1673, %v2217
    %v2316 = vmul.f32 %v1678, %v2217
    %v2317 = vmul.f32 %v1681, %v2217
    %v2318 = vmul.f32 %v1686, %v2217
    %v2319 = vmul.f32 %v1689, %v2217
    %v2320 = vmul.f32 %v1694, %v2217
    %v2321 = vmul.f32 %v1697, %v2217
    %v2322 = vmul.f32 %v1702, %v2221
    %v2323 = vmul.f32 %v1705, %v2221
    %v2324 = vmul.f32 %v1710, %v2221
    %v2325 = vmul.f32 %v1713, %v2221
    %v2326 = vmul.f32 %v1718, %v2221
    %v2327 = vmul.f32 %v1721, %v2221
    %v2328 = vmul.f32 %v1726, %v2221
    %v2329 = vmul.f32 %v1729, %v2221
    %v2330 = vmul.f32 %v1734, %v2225
    %v2331 = vmul.f32 %v1737, %v2225
    %v2332 = vmul.f32 %v1742, %v2225
    %v2333 = vmul.f32 %v1745, %v2225
    %v2334 = vmul.f32 %v1750, %v2225
    %v2335 = vmul.f32 %v1753, %v2225
    %v2336 = vmul.f32 %v1758, %v2225
    %v2337 = vmul.f32 %v1761, %v2225
    %v2338 = vmul.f32 %v1766, %v2229
    %v2339 = vmul.f32 %v1769, %v2229
    %v2340 = vmul.f32 %v1774, %v2229
    %v2341 = vmul.f32 %v1777, %v2229
    %v2342 = vmul.f32 %v1782, %v2229
    %v2343 = vmul.f32 %v1785, %v2229
    %v2344 = vmul.f32 %v1790, %v2229
    %v2345 = vmul.f32 %v1793, %v2229
    %v2346 = vmul.f32 %v1798, %v2233
    %v2347 = vmul.f32 %v1801, %v2233
    %v2348 = vmul.f32 %v1806, %v2233
    %v2349 = vmul.f32 %v1809, %v2233
    %v2350 = vmul.f32 %v1814, %v2233
    %v2351 = vmul.f32 %v1817, %v2233
    %v2352 = vmul.f32 %v1822, %v2233
    %v2353 = vmul.f32 %v1825, %v2233
    %v2354 = vmul.f32 %v1830, %v2237
    %v2355 = vmul.f32 %v1833, %v2237
    %v2356 = vmul.f32 %v1838, %v2237
    %v2357 = vmul.f32 %v1841, %v2237
    %v2358 = vmul.f32 %v1846, %v2237
    %v2359 = vmul.f32 %v1849, %v2237
    %v2360 = vmul.f32 %v1854, %v2237
    %v2361 = vmul.f32 %v1857, %v2237
    %v2362 = vmul.f32 %v1862, %v2241
    %v2363 = vmul.f32 %v1865, %v2241
    %v2364 = vmul.f32 %v1870, %v2241
    %v2365 = vmul.f32 %v1873, %v2241
    %v2366 = vmul.f32 %v1878, %v2241
    %v2367 = vmul.f32 %v1881, %v2241
    %v2368 = vmul.f32 %v1886, %v2241
    %v2369 = vmul.f32 %v1889, %v2241
    %v2370 = vmul.f32 %v1894, %v2245
    %v2371 = vmul.f32 %v1897, %v2245
    %v2372 = vmul.f32 %v1902, %v2245
    %v2373 = vmul.f32 %v1905, %v2245
    %v2374 = vmul.f32 %v1910, %v2245
    %v2375 = vmul.f32 %v1913, %v2245
    %v2376 = vmul.f32 %v1918, %v2245
    %v2377 = vmul.f32 %v1921, %v2245
    %v2378 = vmul.f32 %v1926, %v2249
    %v2379 = vmul.f32 %v1929, %v2249
    %v2380 = vmul.f32 %v1934, %v2249
    %v2381 = vmul.f32 %v1937, %v2249
    %v2382 = vmul.f32 %v1942, %v2249
    %v2383 = vmul.f32 %v1945, %v2249
    %v2384 = vmul.f32 %v1950, %v2249
    %v2385 = vmul.f32 %v1953, %v2249
    %v2386 = vmul.f32 %v1958, %v2253
    %v2387 = vmul.f32 %v1961, %v2253
    %v2388 = vmul.f32 %v1966, %v2253
    %v2389 = vmul.f32 %v1969, %v2253
    %v2390 = vmul.f32 %v1974, %v2253
    %v2391 = vmul.f32 %v1977, %v2253
    %v2392 = vmul.f32 %v1982, %v2253
    %v2393 = vmul.f32 %v1985, %v2253
    %v2394 = vmul.f32 %v1990, %v2257
    %v2395 = vmul.f32 %v1993, %v2257
    %v2396 = vmul.f32 %v1998, %v2257
    %v2397 = vmul.f32 %v2001, %v2257
    %v2398 = vmul.f32 %v2006, %v2257
    %v2399 = vmul.f32 %v2009, %v2257
    %v2400 = vmul.f32 %v2014, %v2257
    %v2401 = vmul.f32 %v2017, %v2257
    %v2402 = vmax.f32 %v2274, 0.0
    %v2403 = vmax.f32 %v2275, 0.0
    %v2404 = vmax.f32 %v2276, 0.0
    %v2405 = vmax.f32 %v2277, 0.0
    %v2406 = vmax.f32 %v2278, 0.0
    %v2407 = vmax.f32 %v2279, 0.0
    %v2408 = vmax.f32 %v2280, 0.0
    %v2409 = vmax.f32 %v2281, 0.0
    %v2410 = vmax.f32 %v2282, 0.0
    %v2411 = vmax.f32 %v2283, 0.0
    %v2412 = vmax.f32 %v2284, 0.0
    %v2413 = vmax.f32 %v2285, 0.0
    %v2414 = vmax.f32 %v2286, 0.0
    %v2415 = vmax.f32 %v2287, 0.0
    %v2416 = vmax.f32 %v2288, 0.0
    %v2417 = vmax.f32 %v2289, 0.0
    %v2418 = vmax.f32 %v2290, 0.0
    %v2419 = vmax.f32 %v2291, 0.0
    %v2420 = vmax.f32 %v2292, 0.0
    %v2421 = vmax.f32 %v2293, 0.0
    %v2422 = vmax.f32 %v2294, 0.0
    %v2423 = vmax.f32 %v2295, 0.0
    %v2424 = vmax.f32 %v2296, 0.0
    %v2425 = vmax.f32 %v2297, 0.0
    %v2426 = vmax.f32 %v2298, 0.0
    %v2427 = vmax.f32 %v2299, 0.0
    %v2428 = vmax.f32 %v2300, 0.0
    %v2429 = vmax.f32 %v2301, 0.0
    %v2430 = vmax.f32 %v2302, 0.0
    %v2431 = vmax.f32 %v2303, 0.0
    %v2432 = vmax.f32 %v2304, 0.0
    %v2433 = vmax.f32 %v2305, 0.0
    %v2434 = vmax.f32 %v2306, 0.0
    %v2435 = vmax.f32 %v2307, 0.0
    %v2436 = vmax.f32 %v2308, 0.0
    %v2437 = vmax.f32 %v2309, 0.0
    %v2438 = vmax.f32 %v2310, 0.0
    %v2439 = vmax.f32 %v2311, 0.0
    %v2440 = vmax.f32 %v2312, 0.0
    %v2441 = vmax.f32 %v2313, 0.0
    %v2442 = vmax.f32 %v2314, 0.0
    %v2443 = vmax.f32 %v2315, 0.0
    %v2444 = vmax.f32 %v2316, 0.0
    %v2445 = vmax.f32 %v2317, 0.0
    %v2446 = vmax.f32 %v2318, 0.0
    %v2447 = vmax.f32 %v2319, 0.0
    %v2448 = vmax.f32 %v2320, 0.0
    %v2449 = vmax.f32 %v2321, 0.0
    %v2450 = vmax.f32 %v2322, 0.0
    %v2451 = vmax.f32 %v2323, 0.0
    %v2452 = vmax.f32 %v2324, 0.0
    %v2453 = vmax.f32 %v2325, 0.0
    %v2454 = vmax.f32 %v2326, 0.0
    %v2455 = vmax.f32 %v2327, 0.0
    %v2456 = vmax.f32 %v2328, 0.0
    %v2457 = vmax.f32 %v2329, 0.0
    %v2458 = vmax.f32 %v2330, 0.0
    %v2459 = vmax.f32 %v2331, 0.0
    %v2460 = vmax.f32 %v2332, 0.0
    %v2461 = vmax.f32 %v2333, 0.0
    %v2462 = vmax.f32 %v2334, 0.0
    %v2463 = vmax.f32 %v2335, 0.0
    %v2464 = vmax.f32 %v2336, 0.0
    %v2465 = vmax.f32 %v2337, 0.0
    %v2466 = vmax.f32 %v2338, 0.0
    %v2467 = vmax.f32 %v2339, 0.0
    %v2468 = vmax.f32 %v2340, 0.0
    %v2469 = vmax.f32 %v2341, 0.0
    %v2470 = vmax.f32 %v2342, 0.0
    %v2471 = vmax.f32 %v2343, 0.0
    %v2472 = vmax.f32 %v2344, 0.0
    %v2473 = vmax.f32 %v2345, 0.0
    %v2474 = vmax.f32 %v2346, 0.0
    %v2475 = vmax.f32 %v2347, 0.0
    %v2476 = vmax.f32 %v2348, 0.0
    %v2477 = vmax.f32 %v2349, 0.0
    %v2478 = vmax.f32 %v2350, 0.0
    %v2479 = vmax.f32 %v2351, 0.0
    %v2480 = vmax.f32 %v2352, 0.0
    %v2481 = vmax.f32 %v2353, 0.0
    %v2482 = vmax.f32 %v2354, 0.0
    %v2483 = vmax.f32 %v2355, 0.0
    %v2484 = vmax.f32 %v2356, 0.0
    %v2485 = vmax.f32 %v2357, 0.0
    %v2486 = vmax.f32 %v2358, 0.0
    %v2487 = vmax.f32 %v2359, 0.0
    %v2488 = vmax.f32 %v2360, 0.0
    %v2489 = vmax.f32 %v2361, 0.0
    %v2490 = vmax.f32 %v2362, 0.0
    %v2491 = vmax.f32 %v2363, 0.0
    %v2492 = vmax.f32 %v2364, 0.0
    %v2493 = vmax.f32 %v2365, 0.0
    %v2494 = vmax.f32 %v2366, 0.0
    %v2495 = vmax.f32 %v2367, 0.0
    %v2496 = vmax.f32 %v2368, 0.0
    %v2497 = vmax.f32 %v2369, 0.0
    %v2498 = vmax.f32 %v2370, 0.0
    %v2499 = vmax.f32 %v2371, 0.0
    %v2500 = vmax.f32 %v2372, 0.0
    %v2501 = vmax.f32 %v2373, 0.0
    %v2502 = vmax.f32 %v2374, 0.0
    %v2503 = vmax.f32 %v2375, 0.0
    %v2504 = vmax.f32 %v2376, 0.0
    %v2505 = vmax.f32 %v2377, 0.0
    %v2506 = vmax.f32 %v2378, 0.0
    %v2507 = vmax.f32 %v2379, 0.0
    %v2508 = vmax.f32 %v2380, 0.0
    %v2509 = vmax.f32 %v2381, 0.0
    %v2510 = vmax.f32 %v2382, 0.0
    %v2511 = vmax.f32 %v2383, 0.0
    %v2512 = vmax.f32 %v2384, 0.0
    %v2513 = vmax.f32 %v2385, 0.0
    %v2514 = vmax.f32 %v2386, 0.0
    %v2515 = vmax.f32 %v2387, 0.0
    %v2516 = vmax.f32 %v2388, 0.0
    %v2517 = vmax.f32 %v2389, 0.0
    %v2518 = vmax.f32 %v2390, 0.0
    %v2519 = vmax.f32 %v2391, 0.0
    %v2520 = vmax.f32 %v2392, 0.0
    %v2521 = vmax.f32 %v2393, 0.0
    %v2522 = vmax.f32 %v2394, 0.0
    %v2523 = vmax.f32 %v2395, 0.0
    %v2524 = vmax.f32 %v2396, 0.0
    %v2525 = vmax.f32 %v2397, 0.0
    %v2526 = vmax.f32 %v2398, 0.0
    %v2527 = vmax.f32 %v2399, 0.0
    %v2528 = vmax.f32 %v2400, 0.0
    %v2529 = vmax.f32 %v2401, 0.0
    %v2530 = vpack.c.bf16 %v2403, %v2402
    %v2531 = vpack.c.bf16 %v2405, %v2404
    %v2532 = vpack.c.bf16 %v2407, %v2406
    %v2533 = vpack.c.bf16 %v2409, %v2408
    %v2534 = vpack.c.bf16 %v2411, %v2410
    %v2535 = vpack.c.bf16 %v2413, %v2412
    %v2536 = vpack.c.bf16 %v2415, %v2414
    %v2537 = vpack.c.bf16 %v2417, %v2416
    %v2538 = vpack.c.bf16 %v2419, %v2418
    %v2539 = vpack.c.bf16 %v2421, %v2420
    %v2540 = vpack.c.bf16 %v2423, %v2422
    %v2541 = vpack.c.bf16 %v2425, %v2424
    %v2542 = vpack.c.bf16 %v2427, %v2426
    %v2543 = vpack.c.bf16 %v2429, %v2428
    %v2544 = vpack.c.bf16 %v2431, %v2430
    %v2545 = vpack.c.bf16 %v2433, %v2432
    %v2546 = vpack.c.bf16 %v2435, %v2434
    %v2547 = vpack.c.bf16 %v2437, %v2436
    %v2548 = vpack.c.bf16 %v2439, %v2438
    %v2549 = vpack.c.bf16 %v2441, %v2440
    %v2550 = vpack.c.bf16 %v2443, %v2442
    %v2551 = vpack.c.bf16 %v2445, %v2444
    %v2552 = vpack.c.bf16 %v2447, %v2446
    %v2553 = vpack.c.bf16 %v2449, %v2448
    %v2554 = vpack.c.bf16 %v2451, %v2450
    %v2555 = vpack.c.bf16 %v2453, %v2452
    %v2556 = vpack.c.bf16 %v2455, %v2454
    %v2557 = vpack.c.bf16 %v2457, %v2456
    %v2558 = vpack.c.bf16 %v2459, %v2458
    %v2559 = vpack.c.bf16 %v2461, %v2460
    %v2560 = vpack.c.bf16 %v2463, %v2462
    %v2561 = vpack.c.bf16 %v2465, %v2464
    %v2562 = vpack.c.bf16 %v2467, %v2466
    %v2563 = vpack.c.bf16 %v2469, %v2468
    %v2564 = vpack.c.bf16 %v2471, %v2470
    %v2565 = vpack.c.bf16 %v2473, %v2472
    %v2566 = vpack.c.bf16 %v2475, %v2474
    %v2567 = vpack.c.bf16 %v2477, %v2476
    %v2568 = vpack.c.bf16 %v2479, %v2478
    %v2569 = vpack.c.bf16 %v2481, %v2480
    %v2570 = vpack.c.bf16 %v2483, %v2482
    %v2571 = vpack.c.bf16 %v2485, %v2484
    %v2572 = vpack.c.bf16 %v2487, %v2486
    %v2573 = vpack.c.bf16 %v2489, %v2488
    %v2574 = vpack.c.bf16 %v2491, %v2490
    %v2575 = vpack.c.bf16 %v2493, %v2492
    %v2576 = vpack.c.bf16 %v2495, %v2494
    %v2577 = vpack.c.bf16 %v2497, %v2496
    %v2578 = vpack.c.bf16 %v2499, %v2498
    %v2579 = vpack.c.bf16 %v2501, %v2500
    %v2580 = vpack.c.bf16 %v2503, %v2502
    %v2581 = vpack.c.bf16 %v2505, %v2504
    %v2582 = vpack.c.bf16 %v2507, %v2506
    %v2583 = vpack.c.bf16 %v2509, %v2508
    %v2584 = vpack.c.bf16 %v2511, %v2510
    %v2585 = vpack.c.bf16 %v2513, %v2512
    %v2586 = vpack.c.bf16 %v2515, %v2514
    %v2587 = vpack.c.bf16 %v2517, %v2516
    %v2588 = vpack.c.bf16 %v2519, %v2518
    %v2589 = vpack.c.bf16 %v2521, %v2520
    %v2590 = vpack.c.bf16 %v2523, %v2522
    %v2591 = vpack.c.bf16 %v2525, %v2524
    %v2592 = vpack.c.bf16 %v2527, %v2526
    %v2593 = vpack.c.bf16 %v2529, %v2528
    %v2594 = vld [vmem:[%s6] sm:$0xf]
    %v2595 = vld [vmem:[%s6 + $0x4] sm:$0xf]
    %v2596 = vld [vmem:[%s6 + $0x8] sm:$0xf]
    %v2597 = vld [vmem:[%s6 + $0xc] sm:$0xf]
    %v2598 = vld [vmem:[%s7] sm:$0x1]
    %v2600 = vlaneseq
    %v2601 = vshrl.u32 %v2600, 7
    %v2602 = vsub.s32 0, %v2601
    %v2603 = vrot.slane %v2598, %v2602
    %v2609 = vunpack.c.l.b16 %v2594
    %v2610 = vunpack.c.l.b16 %v2595
    %v2611 = vunpack.c.l.b16 %v2596
    %v2612 = vunpack.c.l.b16 %v2597
    %v2613 = vpack.c.b16 %v2610, %v2609
    %v2614 = vpack.c.b16 %v2612, %v2611
    %v2618 = vsel %vm427, %v2530, 0
    %v2621 = vsel %vm427, %v2531, 0
    %v2624 = vsel %vm427, %v2532, 0
    %v2627 = vsel %vm427, %v2533, 0
    %v2630 = vsel %vm427, %v2534, 0
    %v2633 = vsel %vm427, %v2535, 0
    %v2636 = vsel %vm427, %v2536, 0
    %v2639 = vsel %vm427, %v2537, 0
    %v2642 = vsel %vm427, %v2538, 0
    %v2645 = vsel %vm427, %v2539, 0
    %v2648 = vsel %vm427, %v2540, 0
    %v2651 = vsel %vm427, %v2541, 0
    %v2654 = vsel %vm427, %v2542, 0
    %v2657 = vsel %vm427, %v2543, 0
    %v2660 = vsel %vm427, %v2544, 0
    %v2663 = vsel %vm427, %v2545, 0
    %v2666 = vsel %vm427, %v2546, 0
    %v2669 = vsel %vm427, %v2547, 0
    %v2672 = vsel %vm427, %v2548, 0
    %v2675 = vsel %vm427, %v2549, 0
    %v2678 = vsel %vm427, %v2550, 0
    %v2681 = vsel %vm427, %v2551, 0
    %v2684 = vsel %vm427, %v2552, 0
    %v2687 = vsel %vm427, %v2553, 0
    %v2690 = vsel %vm427, %v2554, 0
    %v2693 = vsel %vm427, %v2555, 0
    %v2696 = vsel %vm427, %v2556, 0
    %v2699 = vsel %vm427, %v2557, 0
    %v2702 = vsel %vm427, %v2558, 0
    %v2705 = vsel %vm427, %v2559, 0
    %v2708 = vsel %vm427, %v2560, 0
    %v2711 = vsel %vm427, %v2561, 0
    %v2714 = vsel %vm427, %v2562, 0
    %v2717 = vsel %vm427, %v2563, 0
    %v2720 = vsel %vm427, %v2564, 0
    %v2723 = vsel %vm427, %v2565, 0
    %v2726 = vsel %vm427, %v2566, 0
    %v2729 = vsel %vm427, %v2567, 0
    %v2732 = vsel %vm427, %v2568, 0
    %v2735 = vsel %vm427, %v2569, 0
    %v2738 = vsel %vm427, %v2570, 0
    %v2741 = vsel %vm427, %v2571, 0
    %v2744 = vsel %vm427, %v2572, 0
    %v2747 = vsel %vm427, %v2573, 0
    %v2750 = vsel %vm427, %v2574, 0
    %v2753 = vsel %vm427, %v2575, 0
    %v2756 = vsel %vm427, %v2576, 0
    %v2759 = vsel %vm427, %v2577, 0
    %v2762 = vsel %vm427, %v2578, 0
    %v2765 = vsel %vm427, %v2579, 0
    %v2768 = vsel %vm427, %v2580, 0
    %v2771 = vsel %vm427, %v2581, 0
    %v2774 = vsel %vm427, %v2582, 0
    %v2777 = vsel %vm427, %v2583, 0
    %v2780 = vsel %vm427, %v2584, 0
    %v2783 = vsel %vm427, %v2585, 0
    %v2786 = vsel %vm427, %v2586, 0
    %v2789 = vsel %vm427, %v2587, 0
    %v2792 = vsel %vm427, %v2588, 0
    %v2795 = vsel %vm427, %v2589, 0
    %v2798 = vsel %vm427, %v2590, 0
    %v2801 = vsel %vm427, %v2591, 0
    %v2804 = vsel %vm427, %v2592, 0
    %v2807 = vsel %vm427, %v2593, 0
    %2809 = vmatprep.subr.bf16.mxu0 0
    %2810 = vmatpush1.bf16.msra.mxu0 %v2613
    %2811 = vmatprep.subr.bf16.mxu0 0
    %2812 = vmatpush1.bf16.msra.mxu0 %v2614
    %2813 = vmatprep.subr.bf16.mxu0 0
    %2814 = vmatpush1.bf16.msra.mxu0 0
    %2815 = vmatprep.subr.bf16.mxu0 0
    %2816 = vmatpush1.bf16.msra.mxu0 0
    %2817 = vmatprep.subr.bf16.mxu0 0
    %2818 = vmatpush1.bf16.msra.mxu0 0
    %2819 = vmatprep.subr.bf16.mxu0 0
    %2820 = vmatpush1.bf16.msra.mxu0 0
    %2821 = vmatprep.subr.bf16.mxu0 0
    %2822 = vmatpush1.bf16.msra.mxu0 0
    %2823 = vmatprep.subr.bf16.mxu0 0
    %2824 = vmatpush1.bf16.msra.mxu0 0
    %2825 = vmatprep.subr.bf16.mxu0 0
    %2826 = vmatpush1.bf16.msra.mxu0 0
    %2827 = vmatprep.subr.bf16.mxu0 0
    %2828 = vmatpush1.bf16.msra.mxu0 0
    %2829 = vmatprep.subr.bf16.mxu0 0
    %2830 = vmatpush1.bf16.msra.mxu0 0
    %2831 = vmatprep.subr.bf16.mxu0 0
    %2832 = vmatpush1.bf16.msra.mxu0 0
    %2833 = vmatprep.subr.bf16.mxu0 0
    %2834 = vmatpush1.bf16.msra.mxu0 0
    %2835 = vmatprep.subr.bf16.mxu0 0
    %2836 = vmatpush1.bf16.msra.mxu0 0
    %2837 = vmatprep.subr.bf16.mxu0 0
    %2838 = vmatpush1.bf16.msra.mxu0 0
    %2839 = vmatprep.subr.bf16.mxu0 0
    %2840 = vmatpush1.bf16.msra.mxu0 0
    %2841 = vmatprep.mubr.bf16.mxu0 0
    %2842 = vmatmul.mubr.bf16.gmra.mrb[0].mxu0 %v2618
    %v2843 = vpop.f32.mrb[0].mxu0
    %v2844 = vadd.f32 %v2603, %v2843
    %v2845 = vpop.f32.mrb[0].mxu0
    %v2846 = vpop.f32.mrb[0].mxu0
    %v2847 = vadd.f32 %v2603, %v2846
    %v2848 = vpop.f32.mrb[0].mxu0
    %2849 = vmatprep.mubr.bf16.mxu0 0
    %2850 = vmatmul.mubr.bf16.gmra.mrb[0].mxu0 %v2621
    %v2851 = vpop.f32.mrb[0].mxu0
    %v2852 = vadd.f32 %v2603, %v2851
    %v2853 = vpop.f32.mrb[0].mxu0
    %v2854 = vpop.f32.mrb[0].mxu0
    %v2855 = vadd.f32 %v2603, %v2854
    %v2856 = vpop.f32.mrb[0].mxu0
    %2857 = vmatprep.mubr.bf16.mxu0 0
    %2858 = vmatmul.mubr.bf16.gmra.mrb[0].mxu0 %v2624
    %v2859 = vpop.f32.mrb[0].mxu0
    %v2860 = vadd.f32 %v2603, %v2859
    %v2861 = vpop.f32.mrb[0].mxu0
    %v2862 = vpop.f32.mrb[0].mxu0
    %v2863 = vadd.f32 %v2603, %v2862
    %v2864 = vpop.f32.mrb[0].mxu0
    %2865 = vmatprep.mubr.bf16.mxu0 0
    %2866 = vmatmul.mubr.bf16.gmra.mrb[0].mxu0 %v2627
    %v2867 = vpop.f32.mrb[0].mxu0
    %v2868 = vadd.f32 %v2603, %v2867
    %v2869 = vpop.f32.mrb[0].mxu0
    %v2870 = vpop.f32.mrb[0].mxu0
    %v2871 = vadd.f32 %v2603, %v2870
    %v2872 = vpop.f32.mrb[0].mxu0
    %2873 = vmatprep.mubr.bf16.mxu0 0
    %2874 = vmatmul.mubr.bf16.gmra.mrb[0].mxu0 %v2630
    %v2875 = vpop.f32.mrb[0].mxu0
    %v2876 = vadd.f32 %v2603, %v2875
    %v2877 = vpop.f32.mrb[0].mxu0
    %v2878 = vpop.f32.mrb[0].mxu0
    %v2879 = vadd.f32 %v2603, %v2878
    %v2880 = vpop.f32.mrb[0].mxu0
    %2881 = vmatprep.mubr.bf16.mxu0 0
    %2882 = vmatmul.mubr.bf16.gmra.mrb[0].mxu0 %v2633
    %v2883 = vpop.f32.mrb[0].mxu0
    %v2884 = vadd.f32 %v2603, %v2883
    %v2885 = vpop.f32.mrb[0].mxu0
    %v2886 = vpop.f32.mrb[0].mxu0
    %v2887 = vadd.f32 %v2603, %v2886
    %v2888 = vpop.f32.mrb[0].mxu0
    %2889 = vmatprep.mubr.bf16.mxu0 0
    %2890 = vmatmul.mubr.bf16.gmra.mrb[0].mxu0 %v2636
    %v2891 = vpop.f32.mrb[0].mxu0
    %v2892 = vadd.f32 %v2603, %v2891
    %v2893 = vpop.f32.mrb[0].mxu0
    %v2894 = vpop.f32.mrb[0].mxu0
    %v2895 = vadd.f32 %v2603, %v2894
    %v2896 = vpop.f32.mrb[0].mxu0
    %2897 = vmatprep.mubr.bf16.mxu0 0
    %2898 = vmatmul.mubr.bf16.gmra.mrb[0].mxu0 %v2639
    %v2899 = vpop.f32.mrb[0].mxu0
    %v2900 = vadd.f32 %v2603, %v2899
    %v2901 = vpop.f32.mrb[0].mxu0
    %v2902 = vpop.f32.mrb[0].mxu0
    %v2903 = vadd.f32 %v2603, %v2902
    %v2904 = vpop.f32.mrb[0].mxu0
    %2905 = vmatprep.mubr.bf16.mxu0 0
    %2906 = vmatmul.mubr.bf16.gmra.mrb[0].mxu0 %v2642
    %v2907 = vpop.f32.mrb[0].mxu0
    %v2908 = vadd.f32 %v2603, %v2907
    %v2909 = vpop.f32.mrb[0].mxu0
    %v2910 = vpop.f32.mrb[0].mxu0
    %v2911 = vadd.f32 %v2603, %v2910
    %v2912 = vpop.f32.mrb[0].mxu0
    %2913 = vmatprep.mubr.bf16.mxu0 0
    %2914 = vmatmul.mubr.bf16.gmra.mrb[0].mxu0 %v2645
    %v2915 = vpop.f32.mrb[0].mxu0
    %v2916 = vadd.f32 %v2603, %v2915
    %v2917 = vpop.f32.mrb[0].mxu0
    %v2918 = vpop.f32.mrb[0].mxu0
    %v2919 = vadd.f32 %v2603, %v2918
    %v2920 = vpop.f32.mrb[0].mxu0
    %2921 = vmatprep.mubr.bf16.mxu0 0
    %2922 = vmatmul.mubr.bf16.gmra.mrb[0].mxu0 %v2648
    %v2923 = vpop.f32.mrb[0].mxu0
    %v2924 = vadd.f32 %v2603, %v2923
    %v2925 = vpop.f32.mrb[0].mxu0
    %v2926 = vpop.f32.mrb[0].mxu0
    %v2927 = vadd.f32 %v2603, %v2926
    %v2928 = vpop.f32.mrb[0].mxu0
    %2929 = vmatprep.mubr.bf16.mxu0 0
    %2930 = vmatmul.mubr.bf16.gmra.mrb[0].mxu0 %v2651
    %v2931 = vpop.f32.mrb[0].mxu0
    %v2932 = vadd.f32 %v2603, %v2931
    %v2933 = vpop.f32.mrb[0].mxu0
    %v2934 = vpop.f32.mrb[0].mxu0
    %v2935 = vadd.f32 %v2603, %v2934
    %v2936 = vpop.f32.mrb[0].mxu0
    %2937 = vmatprep.mubr.bf16.mxu0 0
    %2938 = vmatmul.mubr.bf16.gmra.mrb[0].mxu0 %v2654
    %v2939 = vpop.f32.mrb[0].mxu0
    %v2940 = vadd.f32 %v2603, %v2939
    %v2941 = vpop.f32.mrb[0].mxu0
    %v2942 = vpop.f32.mrb[0].mxu0
    %v2943 = vadd.f32 %v2603, %v2942
    %v2944 = vpop.f32.mrb[0].mxu0
    %2945 = vmatprep.mubr.bf16.mxu0 0
    %2946 = vmatmul.mubr.bf16.gmra.mrb[0].mxu0 %v2657
    %v2947 = vpop.f32.mrb[0].mxu0
    %v2948 = vadd.f32 %v2603, %v2947
    %v2949 = vpop.f32.mrb[0].mxu0
    %v2950 = vpop.f32.mrb[0].mxu0
    %v2951 = vadd.f32 %v2603, %v2950
    %v2952 = vpop.f32.mrb[0].mxu0
    %2953 = vmatprep.mubr.bf16.mxu0 0
    %2954 = vmatmul.mubr.bf16.gmra.mrb[0].mxu0 %v2660
    %v2955 = vpop.f32.mrb[0].mxu0
    %v2956 = vadd.f32 %v2603, %v2955
    %v2957 = vpop.f32.mrb[0].mxu0
    %v2958 = vpop.f32.mrb[0].mxu0
    %v2959 = vadd.f32 %v2603, %v2958
    %v2960 = vpop.f32.mrb[0].mxu0
    %2961 = vmatprep.mubr.bf16.mxu0 0
    %2962 = vmatmul.mubr.bf16.gmra.mrb[0].mxu0 %v2663
    %v2963 = vpop.f32.mrb[0].mxu0
    %v2964 = vadd.f32 %v2603, %v2963
    %v2965 = vpop.f32.mrb[0].mxu0
    %v2966 = vpop.f32.mrb[0].mxu0
    %v2967 = vadd.f32 %v2603, %v2966
    %v2968 = vpop.f32.mrb[0].mxu0
    %2969 = vmatprep.mubr.bf16.mxu0 0
    %2970 = vmatmul.mubr.bf16.gmra.mrb[0].mxu0 %v2666
    %v2971 = vpop.f32.mrb[0].mxu0
    %v2972 = vadd.f32 %v2603, %v2971
    %v2973 = vpop.f32.mrb[0].mxu0
    %v2974 = vpop.f32.mrb[0].mxu0
    %v2975 = vadd.f32 %v2603, %v2974
    %v2976 = vpop.f32.mrb[0].mxu0
    %2977 = vmatprep.mubr.bf16.mxu0 0
    %2978 = vmatmul.mubr.bf16.gmra.mrb[0].mxu0 %v2669
    %v2979 = vpop.f32.mrb[0].mxu0
    %v2980 = vadd.f32 %v2603, %v2979
    %v2981 = vpop.f32.mrb[0].mxu0
    %v2982 = vpop.f32.mrb[0].mxu0
    %v2983 = vadd.f32 %v2603, %v2982
    %v2984 = vpop.f32.mrb[0].mxu0
    %2985 = vmatprep.mubr.bf16.mxu0 0
    %2986 = vmatmul.mubr.bf16.gmra.mrb[0].mxu0 %v2672
    %v2987 = vpop.f32.mrb[0].mxu0
    %v2988 = vadd.f32 %v2603, %v2987
    %v2989 = vpop.f32.mrb[0].mxu0
    %v2990 = vpop.f32.mrb[0].mxu0
    %v2991 = vadd.f32 %v2603, %v2990
    %v2992 = vpop.f32.mrb[0].mxu0
    %2993 = vmatprep.mubr.bf16.mxu0 0
    %2994 = vmatmul.mubr.bf16.gmra.mrb[0].mxu0 %v2675
    %v2995 = vpop.f32.mrb[0].mxu0
    %v2996 = vadd.f32 %v2603, %v2995
    %v2997 = vpop.f32.mrb[0].mxu0
    %v2998 = vpop.f32.mrb[0].mxu0
    %v2999 = vadd.f32 %v2603, %v2998
    %v3000 = vpop.f32.mrb[0].mxu0
    %3001 = vmatprep.mubr.bf16.mxu0 0
    %3002 = vmatmul.mubr.bf16.gmra.mrb[0].mxu0 %v2678
    %v3003 = vpop.f32.mrb[0].mxu0
    %v3004 = vadd.f32 %v2603, %v3003
    %v3005 = vpop.f32.mrb[0].mxu0
    %v3006 = vpop.f32.mrb[0].mxu0
    %v3007 = vadd.f32 %v2603, %v3006
    %v3008 = vpop.f32.mrb[0].mxu0
    %3009 = vmatprep.mubr.bf16.mxu0 0
    %3010 = vmatmul.mubr.bf16.gmra.mrb[0].mxu0 %v2681
    %v3011 = vpop.f32.mrb[0].mxu0
    %v3012 = vadd.f32 %v2603, %v3011
    %v3013 = vpop.f32.mrb[0].mxu0
    %v3014 = vpop.f32.mrb[0].mxu0
    %v3015 = vadd.f32 %v2603, %v3014
    %v3016 = vpop.f32.mrb[0].mxu0
    %3017 = vmatprep.mubr.bf16.mxu0 0
    %3018 = vmatmul.mubr.bf16.gmra.mrb[0].mxu0 %v2684
    %v3019 = vpop.f32.mrb[0].mxu0
    %v3020 = vadd.f32 %v2603, %v3019
    %v3021 = vpop.f32.mrb[0].mxu0
    %v3022 = vpop.f32.mrb[0].mxu0
    %v3023 = vadd.f32 %v2603, %v3022
    %v3024 = vpop.f32.mrb[0].mxu0
    %3025 = vmatprep.mubr.bf16.mxu0 0
    %3026 = vmatmul.mubr.bf16.gmra.mrb[0].mxu0 %v2687
    %v3027 = vpop.f32.mrb[0].mxu0
    %v3028 = vadd.f32 %v2603, %v3027
    %v3029 = vpop.f32.mrb[0].mxu0
    %v3030 = vpop.f32.mrb[0].mxu0
    %v3031 = vadd.f32 %v2603, %v3030
    %v3032 = vpop.f32.mrb[0].mxu0
    %3033 = vmatprep.mubr.bf16.mxu0 0
    %3034 = vmatmul.mubr.bf16.gmra.mrb[0].mxu0 %v2690
    %v3035 = vpop.f32.mrb[0].mxu0
    %v3036 = vadd.f32 %v2603, %v3035
    %v3037 = vpop.f32.mrb[0].mxu0
    %v3038 = vpop.f32.mrb[0].mxu0
    %v3039 = vadd.f32 %v2603, %v3038
    %v3040 = vpop.f32.mrb[0].mxu0
    %3041 = vmatprep.mubr.bf16.mxu0 0
    %3042 = vmatmul.mubr.bf16.gmra.mrb[0].mxu0 %v2693
    %v3043 = vpop.f32.mrb[0].mxu0
    %v3044 = vadd.f32 %v2603, %v3043
    %v3045 = vpop.f32.mrb[0].mxu0
    %v3046 = vpop.f32.mrb[0].mxu0
    %v3047 = vadd.f32 %v2603, %v3046
    %v3048 = vpop.f32.mrb[0].mxu0
    %3049 = vmatprep.mubr.bf16.mxu0 0
    %3050 = vmatmul.mubr.bf16.gmra.mrb[0].mxu0 %v2696
    %v3051 = vpop.f32.mrb[0].mxu0
    %v3052 = vadd.f32 %v2603, %v3051
    %v3053 = vpop.f32.mrb[0].mxu0
    %v3054 = vpop.f32.mrb[0].mxu0
    %v3055 = vadd.f32 %v2603, %v3054
    %v3056 = vpop.f32.mrb[0].mxu0
    %3057 = vmatprep.mubr.bf16.mxu0 0
    %3058 = vmatmul.mubr.bf16.gmra.mrb[0].mxu0 %v2699
    %v3059 = vpop.f32.mrb[0].mxu0
    %v3060 = vadd.f32 %v2603, %v3059
    %v3061 = vpop.f32.mrb[0].mxu0
    %v3062 = vpop.f32.mrb[0].mxu0
    %v3063 = vadd.f32 %v2603, %v3062
    %v3064 = vpop.f32.mrb[0].mxu0
    %3065 = vmatprep.mubr.bf16.mxu0 0
    %3066 = vmatmul.mubr.bf16.gmra.mrb[0].mxu0 %v2702
    %v3067 = vpop.f32.mrb[0].mxu0
    %v3068 = vadd.f32 %v2603, %v3067
    %v3069 = vpop.f32.mrb[0].mxu0
    %v3070 = vpop.f32.mrb[0].mxu0
    %v3071 = vadd.f32 %v2603, %v3070
    %v3072 = vpop.f32.mrb[0].mxu0
    %3073 = vmatprep.mubr.bf16.mxu0 0
    %3074 = vmatmul.mubr.bf16.gmra.mrb[0].mxu0 %v2705
    %v3075 = vpop.f32.mrb[0].mxu0
    %v3076 = vadd.f32 %v2603, %v3075
    %v3077 = vpop.f32.mrb[0].mxu0
    %v3078 = vpop.f32.mrb[0].mxu0
    %v3079 = vadd.f32 %v2603, %v3078
    %v3080 = vpop.f32.mrb[0].mxu0
    %3081 = vmatprep.mubr.bf16.mxu0 0
    %3082 = vmatmul.mubr.bf16.gmra.mrb[0].mxu0 %v2708
    %v3083 = vpop.f32.mrb[0].mxu0
    %v3084 = vadd.f32 %v2603, %v3083
    %v3085 = vpop.f32.mrb[0].mxu0
    %v3086 = vpop.f32.mrb[0].mxu0
    %v3087 = vadd.f32 %v2603, %v3086
    %v3088 = vpop.f32.mrb[0].mxu0
    %3089 = vmatprep.mubr.bf16.mxu0 0
    %3090 = vmatmul.mubr.bf16.gmra.mrb[0].mxu0 %v2711
    %v3091 = vpop.f32.mrb[0].mxu0
    %v3092 = vadd.f32 %v2603, %v3091
    %v3093 = vpop.f32.mrb[0].mxu0
    %v3094 = vpop.f32.mrb[0].mxu0
    %v3095 = vadd.f32 %v2603, %v3094
    %v3096 = vpop.f32.mrb[0].mxu0
    %3097 = vmatprep.mubr.bf16.mxu0 0
    %3098 = vmatmul.mubr.bf16.gmra.mrb[0].mxu0 %v2714
    %v3099 = vpop.f32.mrb[0].mxu0
    %v3100 = vadd.f32 %v2603, %v3099
    %v3101 = vpop.f32.mrb[0].mxu0
    %v3102 = vpop.f32.mrb[0].mxu0
    %v3103 = vadd.f32 %v2603, %v3102
    %v3104 = vpop.f32.mrb[0].mxu0
    %3105 = vmatprep.mubr.bf16.mxu0 0
    %3106 = vmatmul.mubr.bf16.gmra.mrb[0].mxu0 %v2717
    %v3107 = vpop.f32.mrb[0].mxu0
    %v3108 = vadd.f32 %v2603, %v3107
    %v3109 = vpop.f32.mrb[0].mxu0
    %v3110 = vpop.f32.mrb[0].mxu0
    %v3111 = vadd.f32 %v2603, %v3110
    %v3112 = vpop.f32.mrb[0].mxu0
    %3113 = vmatprep.mubr.bf16.mxu0 0
    %3114 = vmatmul.mubr.bf16.gmra.mrb[0].mxu0 %v2720
    %v3115 = vpop.f32.mrb[0].mxu0
    %v3116 = vadd.f32 %v2603, %v3115
    %v3117 = vpop.f32.mrb[0].mxu0
    %v3118 = vpop.f32.mrb[0].mxu0
    %v3119 = vadd.f32 %v2603, %v3118
    %v3120 = vpop.f32.mrb[0].mxu0
    %3121 = vmatprep.mubr.bf16.mxu0 0
    %3122 = vmatmul.mubr.bf16.gmra.mrb[0].mxu0 %v2723
    %v3123 = vpop.f32.mrb[0].mxu0
    %v3124 = vadd.f32 %v2603, %v3123
    %v3125 = vpop.f32.mrb[0].mxu0
    %v3126 = vpop.f32.mrb[0].mxu0
    %v3127 = vadd.f32 %v2603, %v3126
    %v3128 = vpop.f32.mrb[0].mxu0
    %3129 = vmatprep.mubr.bf16.mxu0 0
    %3130 = vmatmul.mubr.bf16.gmra.mrb[0].mxu0 %v2726
    %v3131 = vpop.f32.mrb[0].mxu0
    %v3132 = vadd.f32 %v2603, %v3131
    %v3133 = vpop.f32.mrb[0].mxu0
    %v3134 = vpop.f32.mrb[0].mxu0
    %v3135 = vadd.f32 %v2603, %v3134
    %v3136 = vpop.f32.mrb[0].mxu0
    %3137 = vmatprep.mubr.bf16.mxu0 0
    %3138 = vmatmul.mubr.bf16.gmra.mrb[0].mxu0 %v2729
    %v3139 = vpop.f32.mrb[0].mxu0
    %v3140 = vadd.f32 %v2603, %v3139
    %v3141 = vpop.f32.mrb[0].mxu0
    %v3142 = vpop.f32.mrb[0].mxu0
    %v3143 = vadd.f32 %v2603, %v3142
    %v3144 = vpop.f32.mrb[0].mxu0
    %3145 = vmatprep.mubr.bf16.mxu0 0
    %3146 = vmatmul.mubr.bf16.gmra.mrb[0].mxu0 %v2732
    %v3147 = vpop.f32.mrb[0].mxu0
    %v3148 = vadd.f32 %v2603, %v3147
    %v3149 = vpop.f32.mrb[0].mxu0
    %v3150 = vpop.f32.mrb[0].mxu0
    %v3151 = vadd.f32 %v2603, %v3150
    %v3152 = vpop.f32.mrb[0].mxu0
    %3153 = vmatprep.mubr.bf16.mxu0 0
    %3154 = vmatmul.mubr.bf16.gmra.mrb[0].mxu0 %v2735
    %v3155 = vpop.f32.mrb[0].mxu0
    %v3156 = vadd.f32 %v2603, %v3155
    %v3157 = vpop.f32.mrb[0].mxu0
    %v3158 = vpop.f32.mrb[0].mxu0
    %v3159 = vadd.f32 %v2603, %v3158
    %v3160 = vpop.f32.mrb[0].mxu0
    %3161 = vmatprep.mubr.bf16.mxu0 0
    %3162 = vmatmul.mubr.bf16.gmra.mrb[0].mxu0 %v2738
    %v3163 = vpop.f32.mrb[0].mxu0
    %v3164 = vadd.f32 %v2603, %v3163
    %v3165 = vpop.f32.mrb[0].mxu0
    %v3166 = vpop.f32.mrb[0].mxu0
    %v3167 = vadd.f32 %v2603, %v3166
    %v3168 = vpop.f32.mrb[0].mxu0
    %3169 = vmatprep.mubr.bf16.mxu0 0
    %3170 = vmatmul.mubr.bf16.gmra.mrb[0].mxu0 %v2741
    %v3171 = vpop.f32.mrb[0].mxu0
    %v3172 = vadd.f32 %v2603, %v3171
    %v3173 = vpop.f32.mrb[0].mxu0
    %v3174 = vpop.f32.mrb[0].mxu0
    %v3175 = vadd.f32 %v2603, %v3174
    %v3176 = vpop.f32.mrb[0].mxu0
    %3177 = vmatprep.mubr.bf16.mxu0 0
    %3178 = vmatmul.mubr.bf16.gmra.mrb[0].mxu0 %v2744
    %v3179 = vpop.f32.mrb[0].mxu0
    %v3180 = vadd.f32 %v2603, %v3179
    %v3181 = vpop.f32.mrb[0].mxu0
    %v3182 = vpop.f32.mrb[0].mxu0
    %v3183 = vadd.f32 %v2603, %v3182
    %v3184 = vpop.f32.mrb[0].mxu0
    %3185 = vmatprep.mubr.bf16.mxu0 0
    %3186 = vmatmul.mubr.bf16.gmra.mrb[0].mxu0 %v2747
    %v3187 = vpop.f32.mrb[0].mxu0
    %v3188 = vadd.f32 %v2603, %v3187
    %v3189 = vpop.f32.mrb[0].mxu0
    %v3190 = vpop.f32.mrb[0].mxu0
    %v3191 = vadd.f32 %v2603, %v3190
    %v3192 = vpop.f32.mrb[0].mxu0
    %3193 = vmatprep.mubr.bf16.mxu0 0
    %3194 = vmatmul.mubr.bf16.gmra.mrb[0].mxu0 %v2750
    %v3195 = vpop.f32.mrb[0].mxu0
    %v3196 = vadd.f32 %v2603, %v3195
    %v3197 = vpop.f32.mrb[0].mxu0
    %v3198 = vpop.f32.mrb[0].mxu0
    %v3199 = vadd.f32 %v2603, %v3198
    %v3200 = vpop.f32.mrb[0].mxu0
    %3201 = vmatprep.mubr.bf16.mxu0 0
    %3202 = vmatmul.mubr.bf16.gmra.mrb[0].mxu0 %v2753
    %v3203 = vpop.f32.mrb[0].mxu0
    %v3204 = vadd.f32 %v2603, %v3203
    %v3205 = vpop.f32.mrb[0].mxu0
    %v3206 = vpop.f32.mrb[0].mxu0
    %v3207 = vadd.f32 %v2603, %v3206
    %v3208 = vpop.f32.mrb[0].mxu0
    %3209 = vmatprep.mubr.bf16.mxu0 0
    %3210 = vmatmul.mubr.bf16.gmra.mrb[0].mxu0 %v2756
    %v3211 = vpop.f32.mrb[0].mxu0
    %v3212 = vadd.f32 %v2603, %v3211
    %v3213 = vpop.f32.mrb[0].mxu0
    %v3214 = vpop.f32.mrb[0].mxu0
    %v3215 = vadd.f32 %v2603, %v3214
    %v3216 = vpop.f32.mrb[0].mxu0
    %3217 = vmatprep.mubr.bf16.mxu0 0
    %3218 = vmatmul.mubr.bf16.gmra.mrb[0].mxu0 %v2759
    %v3219 = vpop.f32.mrb[0].mxu0
    %v3220 = vadd.f32 %v2603, %v3219
    %v3221 = vpop.f32.mrb[0].mxu0
    %v3222 = vpop.f32.mrb[0].mxu0
    %v3223 = vadd.f32 %v2603, %v3222
    %v3224 = vpop.f32.mrb[0].mxu0
    %3225 = vmatprep.mubr.bf16.mxu0 0
    %3226 = vmatmul.mubr.bf16.gmra.mrb[0].mxu0 %v2762
    %v3227 = vpop.f32.mrb[0].mxu0
    %v3228 = vadd.f32 %v2603, %v3227
    %v3229 = vpop.f32.mrb[0].mxu0
    %v3230 = vpop.f32.mrb[0].mxu0
    %v3231 = vadd.f32 %v2603, %v3230
    %v3232 = vpop.f32.mrb[0].mxu0
    %3233 = vmatprep.mubr.bf16.mxu0 0
    %3234 = vmatmul.mubr.bf16.gmra.mrb[0].mxu0 %v2765
    %v3235 = vpop.f32.mrb[0].mxu0
    %v3236 = vadd.f32 %v2603, %v3235
    %v3237 = vpop.f32.mrb[0].mxu0
    %v3238 = vpop.f32.mrb[0].mxu0
    %v3239 = vadd.f32 %v2603, %v3238
    %v3240 = vpop.f32.mrb[0].mxu0
    %3241 = vmatprep.mubr.bf16.mxu0 0
    %3242 = vmatmul.mubr.bf16.gmra.mrb[0].mxu0 %v2768
    %v3243 = vpop.f32.mrb[0].mxu0
    %v3244 = vadd.f32 %v2603, %v3243
    %v3245 = vpop.f32.mrb[0].mxu0
    %v3246 = vpop.f32.mrb[0].mxu0
    %v3247 = vadd.f32 %v2603, %v3246
    %v3248 = vpop.f32.mrb[0].mxu0
    %3249 = vmatprep.mubr.bf16.mxu0 0
    %3250 = vmatmul.mubr.bf16.gmra.mrb[0].mxu0 %v2771
    %v3251 = vpop.f32.mrb[0].mxu0
    %v3252 = vadd.f32 %v2603, %v3251
    %v3253 = vpop.f32.mrb[0].mxu0
    %v3254 = vpop.f32.mrb[0].mxu0
    %v3255 = vadd.f32 %v2603, %v3254
    %v3256 = vpop.f32.mrb[0].mxu0
    %3257 = vmatprep.mubr.bf16.mxu0 0
    %3258 = vmatmul.mubr.bf16.gmra.mrb[0].mxu0 %v2774
    %v3259 = vpop.f32.mrb[0].mxu0
    %v3260 = vadd.f32 %v2603, %v3259
    %v3261 = vpop.f32.mrb[0].mxu0
    %v3262 = vpop.f32.mrb[0].mxu0
    %v3263 = vadd.f32 %v2603, %v3262
    %v3264 = vpop.f32.mrb[0].mxu0
    %3265 = vmatprep.mubr.bf16.mxu0 0
    %3266 = vmatmul.mubr.bf16.gmra.mrb[0].mxu0 %v2777
    %v3267 = vpop.f32.mrb[0].mxu0
    %v3268 = vadd.f32 %v2603, %v3267
    %v3269 = vpop.f32.mrb[0].mxu0
    %v3270 = vpop.f32.mrb[0].mxu0
    %v3271 = vadd.f32 %v2603, %v3270
    %v3272 = vpop.f32.mrb[0].mxu0
    %3273 = vmatprep.mubr.bf16.mxu0 0
    %3274 = vmatmul.mubr.bf16.gmra.mrb[0].mxu0 %v2780
    %v3275 = vpop.f32.mrb[0].mxu0
    %v3276 = vadd.f32 %v2603, %v3275
    %v3277 = vpop.f32.mrb[0].mxu0
    %v3278 = vpop.f32.mrb[0].mxu0
    %v3279 = vadd.f32 %v2603, %v3278
    %v3280 = vpop.f32.mrb[0].mxu0
    %3281 = vmatprep.mubr.bf16.mxu0 0
    %3282 = vmatmul.mubr.bf16.gmra.mrb[0].mxu0 %v2783
    %v3283 = vpop.f32.mrb[0].mxu0
    %v3284 = vadd.f32 %v2603, %v3283
    %v3285 = vpop.f32.mrb[0].mxu0
    %v3286 = vpop.f32.mrb[0].mxu0
    %v3287 = vadd.f32 %v2603, %v3286
    %v3288 = vpop.f32.mrb[0].mxu0
    %3289 = vmatprep.mubr.bf16.mxu0 0
    %3290 = vmatmul.mubr.bf16.gmra.mrb[0].mxu0 %v2786
    %v3291 = vpop.f32.mrb[0].mxu0
    %v3292 = vadd.f32 %v2603, %v3291
    %v3293 = vpop.f32.mrb[0].mxu0
    %v3294 = vpop.f32.mrb[0].mxu0
    %v3295 = vadd.f32 %v2603, %v3294
    %v3296 = vpop.f32.mrb[0].mxu0
    %3297 = vmatprep.mubr.bf16.mxu0 0
    %3298 = vmatmul.mubr.bf16.gmra.mrb[0].mxu0 %v2789
    %v3299 = vpop.f32.mrb[0].mxu0
    %v3300 = vadd.f32 %v2603, %v3299
    %v3301 = vpop.f32.mrb[0].mxu0
    %v3302 = vpop.f32.mrb[0].mxu0
    %v3303 = vadd.f32 %v2603, %v3302
    %v3304 = vpop.f32.mrb[0].mxu0
    %3305 = vmatprep.mubr.bf16.mxu0 0
    %3306 = vmatmul.mubr.bf16.gmra.mrb[0].mxu0 %v2792
    %v3307 = vpop.f32.mrb[0].mxu0
    %v3308 = vadd.f32 %v2603, %v3307
    %v3309 = vpop.f32.mrb[0].mxu0
    %v3310 = vpop.f32.mrb[0].mxu0
    %v3311 = vadd.f32 %v2603, %v3310
    %v3312 = vpop.f32.mrb[0].mxu0
    %3313 = vmatprep.mubr.bf16.mxu0 0
    %3314 = vmatmul.mubr.bf16.gmra.mrb[0].mxu0 %v2795
    %v3315 = vpop.f32.mrb[0].mxu0
    %v3316 = vadd.f32 %v2603, %v3315
    %v3317 = vpop.f32.mrb[0].mxu0
    %v3318 = vpop.f32.mrb[0].mxu0
    %v3319 = vadd.f32 %v2603, %v3318
    %v3320 = vpop.f32.mrb[0].mxu0
    %3321 = vmatprep.mubr.bf16.mxu0 0
    %3322 = vmatmul.mubr.bf16.gmra.mrb[0].mxu0 %v2798
    %v3323 = vpop.f32.mrb[0].mxu0
    %v3324 = vadd.f32 %v2603, %v3323
    %v3325 = vpop.f32.mrb[0].mxu0
    %v3326 = vpop.f32.mrb[0].mxu0
    %v3327 = vadd.f32 %v2603, %v3326
    %v3328 = vpop.f32.mrb[0].mxu0
    %3329 = vmatprep.mubr.bf16.mxu0 0
    %3330 = vmatmul.mubr.bf16.gmra.mrb[0].mxu0 %v2801
    %v3331 = vpop.f32.mrb[0].mxu0
    %v3332 = vadd.f32 %v2603, %v3331
    %v3333 = vpop.f32.mrb[0].mxu0
    %v3334 = vpop.f32.mrb[0].mxu0
    %v3335 = vadd.f32 %v2603, %v3334
    %v3336 = vpop.f32.mrb[0].mxu0
    %3337 = vmatprep.mubr.bf16.mxu0 0
    %3338 = vmatmul.mubr.bf16.gmra.mrb[0].mxu0 %v2804
    %v3339 = vpop.f32.mrb[0].mxu0
    %v3340 = vadd.f32 %v2603, %v3339
    %v3341 = vpop.f32.mrb[0].mxu0
    %v3342 = vpop.f32.mrb[0].mxu0
    %v3343 = vadd.f32 %v2603, %v3342
    %v3344 = vpop.f32.mrb[0].mxu0
    %3345 = vmatprep.mubr.bf16.mxu0 0
    %3346 = vmatmul.mubr.bf16.gmra.mrb[0].mxu0 %v2807
    %v3347 = vpop.f32.mrb[0].mxu0
    %v3348 = vadd.f32 %v2603, %v3347
    %v3349 = vpop.f32.mrb[0].mxu0
    %v3350 = vpop.f32.mrb[0].mxu0
    %v3351 = vadd.f32 %v2603, %v3350
    %v3352 = vpop.f32.mrb[0].mxu0
    %3353 = vdwg.mxu0
    %vm3354 = vcmask 15360
    %v3355 = vsel %vm3354, %v2844, -inf
    %v3356 = vsel %vm3354, %v2847, -inf
    %v3357 = vmax.f32 %v3355, %v3356
    %v3358 = vsel %vm3354, %v2852, -inf
    %v3359 = vmax.f32 %v3357, %v3358
    %v3360 = vsel %vm3354, %v2855, -inf
    %v3361 = vmax.f32 %v3359, %v3360
    %v3362 = vsel %vm3354, %v2860, -inf
    %v3363 = vmax.f32 %v3361, %v3362
    %v3364 = vsel %vm3354, %v2863, -inf
    %v3365 = vmax.f32 %v3363, %v3364
    %v3366 = vsel %vm3354, %v2868, -inf
    %v3367 = vmax.f32 %v3365, %v3366
    %v3368 = vsel %vm3354, %v2871, -inf
    %v3369 = vmax.f32 %v3367, %v3368
    %v3370 = vrot.slane %v3369, 4
    %v3371 = vmax.f32 %v3369, %v3370
    %v3372 = vrot.slane %v3371, 2
    %v3373 = vmax.f32 %v3371, %v3372
    %v3374 = vrot.slane %v3373, 1
    %v3375 = vmax.f32 %v3373, %v3374
    %v3376 = vsel %vm3354, %v2876, -inf
    %v3377 = vsel %vm3354, %v2879, -inf
    %v3378 = vmax.f32 %v3376, %v3377
    %v3379 = vsel %vm3354, %v2884, -inf
    %v3380 = vmax.f32 %v3378, %v3379
    %v3381 = vsel %vm3354, %v2887, -inf
    %v3382 = vmax.f32 %v3380, %v3381
    %v3383 = vsel %vm3354, %v2892, -inf
    %v3384 = vmax.f32 %v3382, %v3383
    %v3385 = vsel %vm3354, %v2895, -inf
    %v3386 = vmax.f32 %v3384, %v3385
    %v3387 = vsel %vm3354, %v2900, -inf
    %v3388 = vmax.f32 %v3386, %v3387
    %v3389 = vsel %vm3354, %v2903, -inf
    %v3390 = vmax.f32 %v3388, %v3389
    %v3391 = vrot.slane %v3390, 4
    %v3392 = vmax.f32 %v3390, %v3391
    %v3393 = vrot.slane %v3392, 2
    %v3394 = vmax.f32 %v3392, %v3393
    %v3395 = vrot.slane %v3394, 1
    %v3396 = vmax.f32 %v3394, %v3395
    %v3397 = vsel %vm3354, %v2908, -inf
    %v3398 = vsel %vm3354, %v2911, -inf
    %v3399 = vmax.f32 %v3397, %v3398
    %v3400 = vsel %vm3354, %v2916, -inf
    %v3401 = vmax.f32 %v3399, %v3400
    %v3402 = vsel %vm3354, %v2919, -inf
    %v3403 = vmax.f32 %v3401, %v3402
    %v3404 = vsel %vm3354, %v2924, -inf
    %v3405 = vmax.f32 %v3403, %v3404
    %v3406 = vsel %vm3354, %v2927, -inf
    %v3407 = vmax.f32 %v3405, %v3406
    %v3408 = vsel %vm3354, %v2932, -inf
    %v3409 = vmax.f32 %v3407, %v3408
    %v3410 = vsel %vm3354, %v2935, -inf
    %v3411 = vmax.f32 %v3409, %v3410
    %v3412 = vrot.slane %v3411, 4
    %v3413 = vmax.f32 %v3411, %v3412
    %v3414 = vrot.slane %v3413, 2
    %v3415 = vmax.f32 %v3413, %v3414
    %v3416 = vrot.slane %v3415, 1
    %v3417 = vmax.f32 %v3415, %v3416
    %v3418 = vsel %vm3354, %v2940, -inf
    %v3419 = vsel %vm3354, %v2943, -inf
    %v3420 = vmax.f32 %v3418, %v3419
    %v3421 = vsel %vm3354, %v2948, -inf
    %v3422 = vmax.f32 %v3420, %v3421
    %v3423 = vsel %vm3354, %v2951, -inf
    %v3424 = vmax.f32 %v3422, %v3423
    %v3425 = vsel %vm3354, %v2956, -inf
    %v3426 = vmax.f32 %v3424, %v3425
    %v3427 = vsel %vm3354, %v2959, -inf
    %v3428 = vmax.f32 %v3426, %v3427
    %v3429 = vsel %vm3354, %v2964, -inf
    %v3430 = vmax.f32 %v3428, %v3429
    %v3431 = vsel %vm3354, %v2967, -inf
    %v3432 = vmax.f32 %v3430, %v3431
    %v3433 = vrot.slane %v3432, 4
    %v3434 = vmax.f32 %v3432, %v3433
    %v3435 = vrot.slane %v3434, 2
    %v3436 = vmax.f32 %v3434, %v3435
    %v3437 = vrot.slane %v3436, 1
    %v3438 = vmax.f32 %v3436, %v3437
    %v3439 = vsel %vm3354, %v2972, -inf
    %v3440 = vsel %vm3354, %v2975, -inf
    %v3441 = vmax.f32 %v3439, %v3440
    %v3442 = vsel %vm3354, %v2980, -inf
    %v3443 = vmax.f32 %v3441, %v3442
    %v3444 = vsel %vm3354, %v2983, -inf
    %v3445 = vmax.f32 %v3443, %v3444
    %v3446 = vsel %vm3354, %v2988, -inf
    %v3447 = vmax.f32 %v3445, %v3446
    %v3448 = vsel %vm3354, %v2991, -inf
    %v3449 = vmax.f32 %v3447, %v3448
    %v3450 = vsel %vm3354, %v2996, -inf
    %v3451 = vmax.f32 %v3449, %v3450
    %v3452 = vsel %vm3354, %v2999, -inf
    %v3453 = vmax.f32 %v3451, %v3452
    %v3454 = vrot.slane %v3453, 4
    %v3455 = vmax.f32 %v3453, %v3454
    %v3456 = vrot.slane %v3455, 2
    %v3457 = vmax.f32 %v3455, %v3456
    %v3458 = vrot.slane %v3457, 1
    %v3459 = vmax.f32 %v3457, %v3458
    %v3460 = vsel %vm3354, %v3004, -inf
    %v3461 = vsel %vm3354, %v3007, -inf
    %v3462 = vmax.f32 %v3460, %v3461
    %v3463 = vsel %vm3354, %v3012, -inf
    %v3464 = vmax.f32 %v3462, %v3463
    %v3465 = vsel %vm3354, %v3015, -inf
    %v3466 = vmax.f32 %v3464, %v3465
    %v3467 = vsel %vm3354, %v3020, -inf
    %v3468 = vmax.f32 %v3466, %v3467
    %v3469 = vsel %vm3354, %v3023, -inf
    %v3470 = vmax.f32 %v3468, %v3469
    %v3471 = vsel %vm3354, %v3028, -inf
    %v3472 = vmax.f32 %v3470, %v3471
    %v3473 = vsel %vm3354, %v3031, -inf
    %v3474 = vmax.f32 %v3472, %v3473
    %v3475 = vrot.slane %v3474, 4
    %v3476 = vmax.f32 %v3474, %v3475
    %v3477 = vrot.slane %v3476, 2
    %v3478 = vmax.f32 %v3476, %v3477
    %v3479 = vrot.slane %v3478, 1
    %v3480 = vmax.f32 %v3478, %v3479
    %v3481 = vsel %vm3354, %v3036, -inf
    %v3482 = vsel %vm3354, %v3039, -inf
    %v3483 = vmax.f32 %v3481, %v3482
    %v3484 = vsel %vm3354, %v3044, -inf
    %v3485 = vmax.f32 %v3483, %v3484
    %v3486 = vsel %vm3354, %v3047, -inf
    %v3487 = vmax.f32 %v3485, %v3486
    %v3488 = vsel %vm3354, %v3052, -inf
    %v3489 = vmax.f32 %v3487, %v3488
    %v3490 = vsel %vm3354, %v3055, -inf
    %v3491 = vmax.f32 %v3489, %v3490
    %v3492 = vsel %vm3354, %v3060, -inf
    %v3493 = vmax.f32 %v3491, %v3492
    %v3494 = vsel %vm3354, %v3063, -inf
    %v3495 = vmax.f32 %v3493, %v3494
    %v3496 = vrot.slane %v3495, 4
    %v3497 = vmax.f32 %v3495, %v3496
    %v3498 = vrot.slane %v3497, 2
    %v3499 = vmax.f32 %v3497, %v3498
    %v3500 = vrot.slane %v3499, 1
    %v3501 = vmax.f32 %v3499, %v3500
    %v3502 = vsel %vm3354, %v3068, -inf
    %v3503 = vsel %vm3354, %v3071, -inf
    %v3504 = vmax.f32 %v3502, %v3503
    %v3505 = vsel %vm3354, %v3076, -inf
    %v3506 = vmax.f32 %v3504, %v3505
    %v3507 = vsel %vm3354, %v3079, -inf
    %v3508 = vmax.f32 %v3506, %v3507
    %v3509 = vsel %vm3354, %v3084, -inf
    %v3510 = vmax.f32 %v3508, %v3509
    %v3511 = vsel %vm3354, %v3087, -inf
    %v3512 = vmax.f32 %v3510, %v3511
    %v3513 = vsel %vm3354, %v3092, -inf
    %v3514 = vmax.f32 %v3512, %v3513
    %v3515 = vsel %vm3354, %v3095, -inf
    %v3516 = vmax.f32 %v3514, %v3515
    %v3517 = vrot.slane %v3516, 4
    %v3518 = vmax.f32 %v3516, %v3517
    %v3519 = vrot.slane %v3518, 2
    %v3520 = vmax.f32 %v3518, %v3519
    %v3521 = vrot.slane %v3520, 1
    %v3522 = vmax.f32 %v3520, %v3521
    %v3523 = vsel %vm3354, %v3100, -inf
    %v3524 = vsel %vm3354, %v3103, -inf
    %v3525 = vmax.f32 %v3523, %v3524
    %v3526 = vsel %vm3354, %v3108, -inf
    %v3527 = vmax.f32 %v3525, %v3526
    %v3528 = vsel %vm3354, %v3111, -inf
    %v3529 = vmax.f32 %v3527, %v3528
    %v3530 = vsel %vm3354, %v3116, -inf
    %v3531 = vmax.f32 %v3529, %v3530
    %v3532 = vsel %vm3354, %v3119, -inf
    %v3533 = vmax.f32 %v3531, %v3532
    %v3534 = vsel %vm3354, %v3124, -inf
    %v3535 = vmax.f32 %v3533, %v3534
    %v3536 = vsel %vm3354, %v3127, -inf
    %v3537 = vmax.f32 %v3535, %v3536
    %v3538 = vrot.slane %v3537, 4
    %v3539 = vmax.f32 %v3537, %v3538
    %v3540 = vrot.slane %v3539, 2
    %v3541 = vmax.f32 %v3539, %v3540
    %v3542 = vrot.slane %v3541, 1
    %v3543 = vmax.f32 %v3541, %v3542
    %v3544 = vsel %vm3354, %v3132, -inf
    %v3545 = vsel %vm3354, %v3135, -inf
    %v3546 = vmax.f32 %v3544, %v3545
    %v3547 = vsel %vm3354, %v3140, -inf
    %v3548 = vmax.f32 %v3546, %v3547
    %v3549 = vsel %vm3354, %v3143, -inf
    %v3550 = vmax.f32 %v3548, %v3549
    %v3551 = vsel %vm3354, %v3148, -inf
    %v3552 = vmax.f32 %v3550, %v3551
    %v3553 = vsel %vm3354, %v3151, -inf
    %v3554 = vmax.f32 %v3552, %v3553
    %v3555 = vsel %vm3354, %v3156, -inf
    %v3556 = vmax.f32 %v3554, %v3555
    %v3557 = vsel %vm3354, %v3159, -inf
    %v3558 = vmax.f32 %v3556, %v3557
    %v3559 = vrot.slane %v3558, 4
    %v3560 = vmax.f32 %v3558, %v3559
    %v3561 = vrot.slane %v3560, 2
    %v3562 = vmax.f32 %v3560, %v3561
    %v3563 = vrot.slane %v3562, 1
    %v3564 = vmax.f32 %v3562, %v3563
    %v3565 = vsel %vm3354, %v3164, -inf
    %v3566 = vsel %vm3354, %v3167, -inf
    %v3567 = vmax.f32 %v3565, %v3566
    %v3568 = vsel %vm3354, %v3172, -inf
    %v3569 = vmax.f32 %v3567, %v3568
    %v3570 = vsel %vm3354, %v3175, -inf
    %v3571 = vmax.f32 %v3569, %v3570
    %v3572 = vsel %vm3354, %v3180, -inf
    %v3573 = vmax.f32 %v3571, %v3572
    %v3574 = vsel %vm3354, %v3183, -inf
    %v3575 = vmax.f32 %v3573, %v3574
    %v3576 = vsel %vm3354, %v3188, -inf
    %v3577 = vmax.f32 %v3575, %v3576
    %v3578 = vsel %vm3354, %v3191, -inf
    %v3579 = vmax.f32 %v3577, %v3578
    %v3580 = vrot.slane %v3579, 4
    %v3581 = vmax.f32 %v3579, %v3580
    %v3582 = vrot.slane %v3581, 2
    %v3583 = vmax.f32 %v3581, %v3582
    %v3584 = vrot.slane %v3583, 1
    %v3585 = vmax.f32 %v3583, %v3584
    %v3586 = vsel %vm3354, %v3196, -inf
    %v3587 = vsel %vm3354, %v3199, -inf
    %v3588 = vmax.f32 %v3586, %v3587
    %v3589 = vsel %vm3354, %v3204, -inf
    %v3590 = vmax.f32 %v3588, %v3589
    %v3591 = vsel %vm3354, %v3207, -inf
    %v3592 = vmax.f32 %v3590, %v3591
    %v3593 = vsel %vm3354, %v3212, -inf
    %v3594 = vmax.f32 %v3592, %v3593
    %v3595 = vsel %vm3354, %v3215, -inf
    %v3596 = vmax.f32 %v3594, %v3595
    %v3597 = vsel %vm3354, %v3220, -inf
    %v3598 = vmax.f32 %v3596, %v3597
    %v3599 = vsel %vm3354, %v3223, -inf
    %v3600 = vmax.f32 %v3598, %v3599
    %v3601 = vrot.slane %v3600, 4
    %v3602 = vmax.f32 %v3600, %v3601
    %v3603 = vrot.slane %v3602, 2
    %v3604 = vmax.f32 %v3602, %v3603
    %v3605 = vrot.slane %v3604, 1
    %v3606 = vmax.f32 %v3604, %v3605
    %v3607 = vsel %vm3354, %v3228, -inf
    %v3608 = vsel %vm3354, %v3231, -inf
    %v3609 = vmax.f32 %v3607, %v3608
    %v3610 = vsel %vm3354, %v3236, -inf
    %v3611 = vmax.f32 %v3609, %v3610
    %v3612 = vsel %vm3354, %v3239, -inf
    %v3613 = vmax.f32 %v3611, %v3612
    %v3614 = vsel %vm3354, %v3244, -inf
    %v3615 = vmax.f32 %v3613, %v3614
    %v3616 = vsel %vm3354, %v3247, -inf
    %v3617 = vmax.f32 %v3615, %v3616
    %v3618 = vsel %vm3354, %v3252, -inf
    %v3619 = vmax.f32 %v3617, %v3618
    %v3620 = vsel %vm3354, %v3255, -inf
    %v3621 = vmax.f32 %v3619, %v3620
    %v3622 = vrot.slane %v3621, 4
    %v3623 = vmax.f32 %v3621, %v3622
    %v3624 = vrot.slane %v3623, 2
    %v3625 = vmax.f32 %v3623, %v3624
    %v3626 = vrot.slane %v3625, 1
    %v3627 = vmax.f32 %v3625, %v3626
    %v3628 = vsel %vm3354, %v3260, -inf
    %v3629 = vsel %vm3354, %v3263, -inf
    %v3630 = vmax.f32 %v3628, %v3629
    %v3631 = vsel %vm3354, %v3268, -inf
    %v3632 = vmax.f32 %v3630, %v3631
    %v3633 = vsel %vm3354, %v3271, -inf
    %v3634 = vmax.f32 %v3632, %v3633
    %v3635 = vsel %vm3354, %v3276, -inf
    %v3636 = vmax.f32 %v3634, %v3635
    %v3637 = vsel %vm3354, %v3279, -inf
    %v3638 = vmax.f32 %v3636, %v3637
    %v3639 = vsel %vm3354, %v3284, -inf
    %v3640 = vmax.f32 %v3638, %v3639
    %v3641 = vsel %vm3354, %v3287, -inf
    %v3642 = vmax.f32 %v3640, %v3641
    %v3643 = vrot.slane %v3642, 4
    %v3644 = vmax.f32 %v3642, %v3643
    %v3645 = vrot.slane %v3644, 2
    %v3646 = vmax.f32 %v3644, %v3645
    %v3647 = vrot.slane %v3646, 1
    %v3648 = vmax.f32 %v3646, %v3647
    %v3649 = vsel %vm3354, %v3292, -inf
    %v3650 = vsel %vm3354, %v3295, -inf
    %v3651 = vmax.f32 %v3649, %v3650
    %v3652 = vsel %vm3354, %v3300, -inf
    %v3653 = vmax.f32 %v3651, %v3652
    %v3654 = vsel %vm3354, %v3303, -inf
    %v3655 = vmax.f32 %v3653, %v3654
    %v3656 = vsel %vm3354, %v3308, -inf
    %v3657 = vmax.f32 %v3655, %v3656
    %v3658 = vsel %vm3354, %v3311, -inf
    %v3659 = vmax.f32 %v3657, %v3658
    %v3660 = vsel %vm3354, %v3316, -inf
    %v3661 = vmax.f32 %v3659, %v3660
    %v3662 = vsel %vm3354, %v3319, -inf
    %v3663 = vmax.f32 %v3661, %v3662
    %v3664 = vrot.slane %v3663, 4
    %v3665 = vmax.f32 %v3663, %v3664
    %v3666 = vrot.slane %v3665, 2
    %v3667 = vmax.f32 %v3665, %v3666
    %v3668 = vrot.slane %v3667, 1
    %v3669 = vmax.f32 %v3667, %v3668
    %v3670 = vsel %vm3354, %v3324, -inf
    %v3671 = vsel %vm3354, %v3327, -inf
    %v3672 = vmax.f32 %v3670, %v3671
    %v3673 = vsel %vm3354, %v3332, -inf
    %v3674 = vmax.f32 %v3672, %v3673
    %v3675 = vsel %vm3354, %v3335, -inf
    %v3676 = vmax.f32 %v3674, %v3675
    %v3677 = vsel %vm3354, %v3340, -inf
    %v3678 = vmax.f32 %v3676, %v3677
    %v3679 = vsel %vm3354, %v3343, -inf
    %v3680 = vmax.f32 %v3678, %v3679
    %v3681 = vsel %vm3354, %v3348, -inf
    %v3682 = vmax.f32 %v3680, %v3681
    %v3683 = vsel %vm3354, %v3351, -inf
    %v3684 = vmax.f32 %v3682, %v3683
    %v3685 = vrot.slane %v3684, 4
    %v3686 = vmax.f32 %v3684, %v3685
    %v3687 = vrot.slane %v3686, 2
    %v3688 = vmax.f32 %v3686, %v3687
    %v3689 = vrot.slane %v3688, 1
    %v3690 = vmax.f32 %v3688, %v3689
    %v3691 = vsub.f32 %v2844, %v3375
    %v3692 = vsub.f32 %v2847, %v3375
    %v3693 = vsub.f32 %v2852, %v3375
    %v3694 = vsub.f32 %v2855, %v3375
    %v3695 = vsub.f32 %v2860, %v3375
    %v3696 = vsub.f32 %v2863, %v3375
    %v3697 = vsub.f32 %v2868, %v3375
    %v3698 = vsub.f32 %v2871, %v3375
    %v3699 = vsub.f32 %v2876, %v3396
    %v3700 = vsub.f32 %v2879, %v3396
    %v3701 = vsub.f32 %v2884, %v3396
    %v3702 = vsub.f32 %v2887, %v3396
    %v3703 = vsub.f32 %v2892, %v3396
    %v3704 = vsub.f32 %v2895, %v3396
    %v3705 = vsub.f32 %v2900, %v3396
    %v3706 = vsub.f32 %v2903, %v3396
    %v3707 = vsub.f32 %v2908, %v3417
    %v3708 = vsub.f32 %v2911, %v3417
    %v3709 = vsub.f32 %v2916, %v3417
    %v3710 = vsub.f32 %v2919, %v3417
    %v3711 = vsub.f32 %v2924, %v3417
    %v3712 = vsub.f32 %v2927, %v3417
    %v3713 = vsub.f32 %v2932, %v3417
    %v3714 = vsub.f32 %v2935, %v3417
    %v3715 = vsub.f32 %v2940, %v3438
    %v3716 = vsub.f32 %v2943, %v3438
    %v3717 = vsub.f32 %v2948, %v3438
    %v3718 = vsub.f32 %v2951, %v3438
    %v3719 = vsub.f32 %v2956, %v3438
    %v3720 = vsub.f32 %v2959, %v3438
    %v3721 = vsub.f32 %v2964, %v3438
    %v3722 = vsub.f32 %v2967, %v3438
    %v3723 = vsub.f32 %v2972, %v3459
    %v3724 = vsub.f32 %v2975, %v3459
    %v3725 = vsub.f32 %v2980, %v3459
    %v3726 = vsub.f32 %v2983, %v3459
    %v3727 = vsub.f32 %v2988, %v3459
    %v3728 = vsub.f32 %v2991, %v3459
    %v3729 = vsub.f32 %v2996, %v3459
    %v3730 = vsub.f32 %v2999, %v3459
    %v3731 = vsub.f32 %v3004, %v3480
    %v3732 = vsub.f32 %v3007, %v3480
    %v3733 = vsub.f32 %v3012, %v3480
    %v3734 = vsub.f32 %v3015, %v3480
    %v3735 = vsub.f32 %v3020, %v3480
    %v3736 = vsub.f32 %v3023, %v3480
    %v3737 = vsub.f32 %v3028, %v3480
    %v3738 = vsub.f32 %v3031, %v3480
    %v3739 = vsub.f32 %v3036, %v3501
    %v3740 = vsub.f32 %v3039, %v3501
    %v3741 = vsub.f32 %v3044, %v3501
    %v3742 = vsub.f32 %v3047, %v3501
    %v3743 = vsub.f32 %v3052, %v3501
    %v3744 = vsub.f32 %v3055, %v3501
    %v3745 = vsub.f32 %v3060, %v3501
    %v3746 = vsub.f32 %v3063, %v3501
    %v3747 = vsub.f32 %v3068, %v3522
    %v3748 = vsub.f32 %v3071, %v3522
    %v3749 = vsub.f32 %v3076, %v3522
    %v3750 = vsub.f32 %v3079, %v3522
    %v3751 = vsub.f32 %v3084, %v3522
    %v3752 = vsub.f32 %v3087, %v3522
    %v3753 = vsub.f32 %v3092, %v3522
    %v3754 = vsub.f32 %v3095, %v3522
    %v3755 = vsub.f32 %v3100, %v3543
    %v3756 = vsub.f32 %v3103, %v3543
    %v3757 = vsub.f32 %v3108, %v3543
    %v3758 = vsub.f32 %v3111, %v3543
    %v3759 = vsub.f32 %v3116, %v3543
    %v3760 = vsub.f32 %v3119, %v3543
    %v3761 = vsub.f32 %v3124, %v3543
    %v3762 = vsub.f32 %v3127, %v3543
    %v3763 = vsub.f32 %v3132, %v3564
    %v3764 = vsub.f32 %v3135, %v3564
    %v3765 = vsub.f32 %v3140, %v3564
    %v3766 = vsub.f32 %v3143, %v3564
    %v3767 = vsub.f32 %v3148, %v3564
    %v3768 = vsub.f32 %v3151, %v3564
    %v3769 = vsub.f32 %v3156, %v3564
    %v3770 = vsub.f32 %v3159, %v3564
    %v3771 = vsub.f32 %v3164, %v3585
    %v3772 = vsub.f32 %v3167, %v3585
    %v3773 = vsub.f32 %v3172, %v3585
    %v3774 = vsub.f32 %v3175, %v3585
    %v3775 = vsub.f32 %v3180, %v3585
    %v3776 = vsub.f32 %v3183, %v3585
    %v3777 = vsub.f32 %v3188, %v3585
    %v3778 = vsub.f32 %v3191, %v3585
    %v3779 = vsub.f32 %v3196, %v3606
    %v3780 = vsub.f32 %v3199, %v3606
    %v3781 = vsub.f32 %v3204, %v3606
    %v3782 = vsub.f32 %v3207, %v3606
    %v3783 = vsub.f32 %v3212, %v3606
    %v3784 = vsub.f32 %v3215, %v3606
    %v3785 = vsub.f32 %v3220, %v3606
    %v3786 = vsub.f32 %v3223, %v3606
    %v3787 = vsub.f32 %v3228, %v3627
    %v3788 = vsub.f32 %v3231, %v3627
    %v3789 = vsub.f32 %v3236, %v3627
    %v3790 = vsub.f32 %v3239, %v3627
    %v3791 = vsub.f32 %v3244, %v3627
    %v3792 = vsub.f32 %v3247, %v3627
    %v3793 = vsub.f32 %v3252, %v3627
    %v3794 = vsub.f32 %v3255, %v3627
    %v3795 = vsub.f32 %v3260, %v3648
    %v3796 = vsub.f32 %v3263, %v3648
    %v3797 = vsub.f32 %v3268, %v3648
    %v3798 = vsub.f32 %v3271, %v3648
    %v3799 = vsub.f32 %v3276, %v3648
    %v3800 = vsub.f32 %v3279, %v3648
    %v3801 = vsub.f32 %v3284, %v3648
    %v3802 = vsub.f32 %v3287, %v3648
    %v3803 = vsub.f32 %v3292, %v3669
    %v3804 = vsub.f32 %v3295, %v3669
    %v3805 = vsub.f32 %v3300, %v3669
    %v3806 = vsub.f32 %v3303, %v3669
    %v3807 = vsub.f32 %v3308, %v3669
    %v3808 = vsub.f32 %v3311, %v3669
    %v3809 = vsub.f32 %v3316, %v3669
    %v3810 = vsub.f32 %v3319, %v3669
    %v3811 = vsub.f32 %v3324, %v3690
    %v3812 = vsub.f32 %v3327, %v3690
    %v3813 = vsub.f32 %v3332, %v3690
    %v3814 = vsub.f32 %v3335, %v3690
    %v3815 = vsub.f32 %v3340, %v3690
    %v3816 = vsub.f32 %v3343, %v3690
    %v3817 = vsub.f32 %v3348, %v3690
    %v3818 = vsub.f32 %v3351, %v3690
    %v3819 = vmul.f32 %v3691, 1.442695
    %v3820 = vpow.pop %v3819
    %v3821 = vmul.f32 %v3692, 1.442695
    %v3822 = vpow.pop %v3821
    %v3823 = vmul.f32 %v3693, 1.442695
    %v3824 = vpow.pop %v3823
    %v3825 = vmul.f32 %v3694, 1.442695
    %v3826 = vpow.pop %v3825
    %v3827 = vmul.f32 %v3695, 1.442695
    %v3828 = vpow.pop %v3827
    %v3829 = vmul.f32 %v3696, 1.442695
    %v3830 = vpow.pop %v3829
    %v3831 = vmul.f32 %v3697, 1.442695
    %v3832 = vpow.pop %v3831
    %v3833 = vmul.f32 %v3698, 1.442695
    %v3834 = vpow.pop %v3833
    %v3835 = vmul.f32 %v3699, 1.442695
    %v3836 = vpow.pop %v3835
    %v3837 = vmul.f32 %v3700, 1.442695
    %v3838 = vpow.pop %v3837
    %v3839 = vmul.f32 %v3701, 1.442695
    %v3840 = vpow.pop %v3839
    %v3841 = vmul.f32 %v3702, 1.442695
    %v3842 = vpow.pop %v3841
    %v3843 = vmul.f32 %v3703, 1.442695
    %v3844 = vpow.pop %v3843
    %v3845 = vmul.f32 %v3704, 1.442695
    %v3846 = vpow.pop %v3845
    %v3847 = vmul.f32 %v3705, 1.442695
    %v3848 = vpow.pop %v3847
    %v3849 = vmul.f32 %v3706, 1.442695
    %v3850 = vpow.pop %v3849
    %v3851 = vmul.f32 %v3707, 1.442695
    %v3852 = vpow.pop %v3851
    %v3853 = vmul.f32 %v3708, 1.442695
    %v3854 = vpow.pop %v3853
    %v3855 = vmul.f32 %v3709, 1.442695
    %v3856 = vpow.pop %v3855
    %v3857 = vmul.f32 %v3710, 1.442695
    %v3858 = vpow.pop %v3857
    %v3859 = vmul.f32 %v3711, 1.442695
    %v3860 = vpow.pop %v3859
    %v3861 = vmul.f32 %v3712, 1.442695
    %v3862 = vpow.pop %v3861
    %v3863 = vmul.f32 %v3713, 1.442695
    %v3864 = vpow.pop %v3863
    %v3865 = vmul.f32 %v3714, 1.442695
    %v3866 = vpow.pop %v3865
    %v3867 = vmul.f32 %v3715, 1.442695
    %v3868 = vpow.pop %v3867
    %v3869 = vmul.f32 %v3716, 1.442695
    %v3870 = vpow.pop %v3869
    %v3871 = vmul.f32 %v3717, 1.442695
    %v3872 = vpow.pop %v3871
    %v3873 = vmul.f32 %v3718, 1.442695
    %v3874 = vpow.pop %v3873
    %v3875 = vmul.f32 %v3719, 1.442695
    %v3876 = vpow.pop %v3875
    %v3877 = vmul.f32 %v3720, 1.442695
    %v3878 = vpow.pop %v3877
    %v3879 = vmul.f32 %v3721, 1.442695
    %v3880 = vpow.pop %v3879
    %v3881 = vmul.f32 %v3722, 1.442695
    %v3882 = vpow.pop %v3881
    %v3883 = vmul.f32 %v3723, 1.442695
    %v3884 = vpow.pop %v3883
    %v3885 = vmul.f32 %v3724, 1.442695
    %v3886 = vpow.pop %v3885
    %v3887 = vmul.f32 %v3725, 1.442695
    %v3888 = vpow.pop %v3887
    %v3889 = vmul.f32 %v3726, 1.442695
    %v3890 = vpow.pop %v3889
    %v3891 = vmul.f32 %v3727, 1.442695
    %v3892 = vpow.pop %v3891
    %v3893 = vmul.f32 %v3728, 1.442695
    %v3894 = vpow.pop %v3893
    %v3895 = vmul.f32 %v3729, 1.442695
    %v3896 = vpow.pop %v3895
    %v3897 = vmul.f32 %v3730, 1.442695
    %v3898 = vpow.pop %v3897
    %v3899 = vmul.f32 %v3731, 1.442695
    %v3900 = vpow.pop %v3899
    %v3901 = vmul.f32 %v3732, 1.442695
    %v3902 = vpow.pop %v3901
    %v3903 = vmul.f32 %v3733, 1.442695
    %v3904 = vpow.pop %v3903
    %v3905 = vmul.f32 %v3734, 1.442695
    %v3906 = vpow.pop %v3905
    %v3907 = vmul.f32 %v3735, 1.442695
    %v3908 = vpow.pop %v3907
    %v3909 = vmul.f32 %v3736, 1.442695
    %v3910 = vpow.pop %v3909
    %v3911 = vmul.f32 %v3737, 1.442695
    %v3912 = vpow.pop %v3911
    %v3913 = vmul.f32 %v3738, 1.442695
    %v3914 = vpow.pop %v3913
    %v3915 = vmul.f32 %v3739, 1.442695
    %v3916 = vpow.pop %v3915
    %v3917 = vmul.f32 %v3740, 1.442695
    %v3918 = vpow.pop %v3917
    %v3919 = vmul.f32 %v3741, 1.442695
    %v3920 = vpow.pop %v3919
    %v3921 = vmul.f32 %v3742, 1.442695
    %v3922 = vpow.pop %v3921
    %v3923 = vmul.f32 %v3743, 1.442695
    %v3924 = vpow.pop %v3923
    %v3925 = vmul.f32 %v3744, 1.442695
    %v3926 = vpow.pop %v3925
    %v3927 = vmul.f32 %v3745, 1.442695
    %v3928 = vpow.pop %v3927
    %v3929 = vmul.f32 %v3746, 1.442695
    %v3930 = vpow.pop %v3929
    %v3931 = vmul.f32 %v3747, 1.442695
    %v3932 = vpow.pop %v3931
    %v3933 = vmul.f32 %v3748, 1.442695
    %v3934 = vpow.pop %v3933
    %v3935 = vmul.f32 %v3749, 1.442695
    %v3936 = vpow.pop %v3935
    %v3937 = vmul.f32 %v3750, 1.442695
    %v3938 = vpow.pop %v3937
    %v3939 = vmul.f32 %v3751, 1.442695
    %v3940 = vpow.pop %v3939
    %v3941 = vmul.f32 %v3752, 1.442695
    %v3942 = vpow.pop %v3941
    %v3943 = vmul.f32 %v3753, 1.442695
    %v3944 = vpow.pop %v3943
    %v3945 = vmul.f32 %v3754, 1.442695
    %v3946 = vpow.pop %v3945
    %v3947 = vmul.f32 %v3755, 1.442695
    %v3948 = vpow.pop %v3947
    %v3949 = vmul.f32 %v3756, 1.442695
    %v3950 = vpow.pop %v3949
    %v3951 = vmul.f32 %v3757, 1.442695
    %v3952 = vpow.pop %v3951
    %v3953 = vmul.f32 %v3758, 1.442695
    %v3954 = vpow.pop %v3953
    %v3955 = vmul.f32 %v3759, 1.442695
    %v3956 = vpow.pop %v3955
    %v3957 = vmul.f32 %v3760, 1.442695
    %v3958 = vpow.pop %v3957
    %v3959 = vmul.f32 %v3761, 1.442695
    %v3960 = vpow.pop %v3959
    %v3961 = vmul.f32 %v3762, 1.442695
    %v3962 = vpow.pop %v3961
    %v3963 = vmul.f32 %v3763, 1.442695
    %v3964 = vpow.pop %v3963
    %v3965 = vmul.f32 %v3764, 1.442695
    %v3966 = vpow.pop %v3965
    %v3967 = vmul.f32 %v3765, 1.442695
    %v3968 = vpow.pop %v3967
    %v3969 = vmul.f32 %v3766, 1.442695
    %v3970 = vpow.pop %v3969
    %v3971 = vmul.f32 %v3767, 1.442695
    %v3972 = vpow.pop %v3971
    %v3973 = vmul.f32 %v3768, 1.442695
    %v3974 = vpow.pop %v3973
    %v3975 = vmul.f32 %v3769, 1.442695
    %v3976 = vpow.pop %v3975
    %v3977 = vmul.f32 %v3770, 1.442695
    %v3978 = vpow.pop %v3977
    %v3979 = vmul.f32 %v3771, 1.442695
    %v3980 = vpow.pop %v3979
    %v3981 = vmul.f32 %v3772, 1.442695
    %v3982 = vpow.pop %v3981
    %v3983 = vmul.f32 %v3773, 1.442695
    %v3984 = vpow.pop %v3983
    %v3985 = vmul.f32 %v3774, 1.442695
    %v3986 = vpow.pop %v3985
    %v3987 = vmul.f32 %v3775, 1.442695
    %v3988 = vpow.pop %v3987
    %v3989 = vmul.f32 %v3776, 1.442695
    %v3990 = vpow.pop %v3989
    %v3991 = vmul.f32 %v3777, 1.442695
    %v3992 = vpow.pop %v3991
    %v3993 = vmul.f32 %v3778, 1.442695
    %v3994 = vpow.pop %v3993
    %v3995 = vmul.f32 %v3779, 1.442695
    %v3996 = vpow.pop %v3995
    %v3997 = vmul.f32 %v3780, 1.442695
    %v3998 = vpow.pop %v3997
    %v3999 = vmul.f32 %v3781, 1.442695
    %v4000 = vpow.pop %v3999
    %v4001 = vmul.f32 %v3782, 1.442695
    %v4002 = vpow.pop %v4001
    %v4003 = vmul.f32 %v3783, 1.442695
    %v4004 = vpow.pop %v4003
    %v4005 = vmul.f32 %v3784, 1.442695
    %v4006 = vpow.pop %v4005
    %v4007 = vmul.f32 %v3785, 1.442695
    %v4008 = vpow.pop %v4007
    %v4009 = vmul.f32 %v3786, 1.442695
    %v4010 = vpow.pop %v4009
    %v4011 = vmul.f32 %v3787, 1.442695
    %v4012 = vpow.pop %v4011
    %v4013 = vmul.f32 %v3788, 1.442695
    %v4014 = vpow.pop %v4013
    %v4015 = vmul.f32 %v3789, 1.442695
    %v4016 = vpow.pop %v4015
    %v4017 = vmul.f32 %v3790, 1.442695
    %v4018 = vpow.pop %v4017
    %v4019 = vmul.f32 %v3791, 1.442695
    %v4020 = vpow.pop %v4019
    %v4021 = vmul.f32 %v3792, 1.442695
    %v4022 = vpow.pop %v4021
    %v4023 = vmul.f32 %v3793, 1.442695
    %v4024 = vpow.pop %v4023
    %v4025 = vmul.f32 %v3794, 1.442695
    %v4026 = vpow.pop %v4025
    %v4027 = vmul.f32 %v3795, 1.442695
    %v4028 = vpow.pop %v4027
    %v4029 = vmul.f32 %v3796, 1.442695
    %v4030 = vpow.pop %v4029
    %v4031 = vmul.f32 %v3797, 1.442695
    %v4032 = vpow.pop %v4031
    %v4033 = vmul.f32 %v3798, 1.442695
    %v4034 = vpow.pop %v4033
    %v4035 = vmul.f32 %v3799, 1.442695
    %v4036 = vpow.pop %v4035
    %v4037 = vmul.f32 %v3800, 1.442695
    %v4038 = vpow.pop %v4037
    %v4039 = vmul.f32 %v3801, 1.442695
    %v4040 = vpow.pop %v4039
    %v4041 = vmul.f32 %v3802, 1.442695
    %v4042 = vpow.pop %v4041
    %v4043 = vmul.f32 %v3803, 1.442695
    %v4044 = vpow.pop %v4043
    %v4045 = vmul.f32 %v3804, 1.442695
    %v4046 = vpow.pop %v4045
    %v4047 = vmul.f32 %v3805, 1.442695
    %v4048 = vpow.pop %v4047
    %v4049 = vmul.f32 %v3806, 1.442695
    %v4050 = vpow.pop %v4049
    %v4051 = vmul.f32 %v3807, 1.442695
    %v4052 = vpow.pop %v4051
    %v4053 = vmul.f32 %v3808, 1.442695
    %v4054 = vpow.pop %v4053
    %v4055 = vmul.f32 %v3809, 1.442695
    %v4056 = vpow.pop %v4055
    %v4057 = vmul.f32 %v3810, 1.442695
    %v4058 = vpow.pop %v4057
    %v4059 = vmul.f32 %v3811, 1.442695
    %v4060 = vpow.pop %v4059
    %v4061 = vmul.f32 %v3812, 1.442695
    %v4062 = vpow.pop %v4061
    %v4063 = vmul.f32 %v3813, 1.442695
    %v4064 = vpow.pop %v4063
    %v4065 = vmul.f32 %v3814, 1.442695
    %v4066 = vpow.pop %v4065
    %v4067 = vmul.f32 %v3815, 1.442695
    %v4068 = vpow.pop %v4067
    %v4069 = vmul.f32 %v3816, 1.442695
    %v4070 = vpow.pop %v4069
    %v4071 = vmul.f32 %v3817, 1.442695
    %v4072 = vpow.pop %v4071
    %v4073 = vmul.f32 %v3818, 1.442695
    %v4074 = vpow.pop %v4073
    %v4075 = vsel %vm3354, %v3820, 0.0
    %v4076 = vsel %vm3354, %v3822, 0.0
    %v4077 = vadd.f32 %v4075, %v4076
    %v4078 = vsel %vm3354, %v3824, 0.0
    %v4079 = vadd.f32 %v4077, %v4078
    %v4080 = vsel %vm3354, %v3826, 0.0
    %v4081 = vadd.f32 %v4079, %v4080
    %v4082 = vsel %vm3354, %v3828, 0.0
    %v4083 = vadd.f32 %v4081, %v4082
    %v4084 = vsel %vm3354, %v3830, 0.0
    %v4085 = vadd.f32 %v4083, %v4084
    %v4086 = vsel %vm3354, %v3832, 0.0
    %v4087 = vadd.f32 %v4085, %v4086
    %v4088 = vsel %vm3354, %v3834, 0.0
    %v4089 = vadd.f32 %v4087, %v4088
    %v4090 = vrot.slane %v4089, 4
    %v4091 = vadd.f32 %v4089, %v4090
    %v4092 = vrot.slane %v4091, 2
    %v4093 = vadd.f32 %v4091, %v4092
    %v4094 = vrot.slane %v4093, 1
    %v4095 = vadd.f32 %v4093, %v4094
    %v4096 = vsel %vm3354, %v3836, 0.0
    %v4097 = vsel %vm3354, %v3838, 0.0
    %v4098 = vadd.f32 %v4096, %v4097
    %v4099 = vsel %vm3354, %v3840, 0.0
    %v4100 = vadd.f32 %v4098, %v4099
    %v4101 = vsel %vm3354, %v3842, 0.0
    %v4102 = vadd.f32 %v4100, %v4101
    %v4103 = vsel %vm3354, %v3844, 0.0
    %v4104 = vadd.f32 %v4102, %v4103
    %v4105 = vsel %vm3354, %v3846, 0.0
    %v4106 = vadd.f32 %v4104, %v4105
    %v4107 = vsel %vm3354, %v3848, 0.0
    %v4108 = vadd.f32 %v4106, %v4107
    %v4109 = vsel %vm3354, %v3850, 0.0
    %v4110 = vadd.f32 %v4108, %v4109
    %v4111 = vrot.slane %v4110, 4
    %v4112 = vadd.f32 %v4110, %v4111
    %v4113 = vrot.slane %v4112, 2
    %v4114 = vadd.f32 %v4112, %v4113
    %v4115 = vrot.slane %v4114, 1
    %v4116 = vadd.f32 %v4114, %v4115
    %v4117 = vsel %vm3354, %v3852, 0.0
    %v4118 = vsel %vm3354, %v3854, 0.0
    %v4119 = vadd.f32 %v4117, %v4118
    %v4120 = vsel %vm3354, %v3856, 0.0
    %v4121 = vadd.f32 %v4119, %v4120
    %v4122 = vsel %vm3354, %v3858, 0.0
    %v4123 = vadd.f32 %v4121, %v4122
    %v4124 = vsel %vm3354, %v3860, 0.0
    %v4125 = vadd.f32 %v4123, %v4124
    %v4126 = vsel %vm3354, %v3862, 0.0
    %v4127 = vadd.f32 %v4125, %v4126
    %v4128 = vsel %vm3354, %v3864, 0.0
    %v4129 = vadd.f32 %v4127, %v4128
    %v4130 = vsel %vm3354, %v3866, 0.0
    %v4131 = vadd.f32 %v4129, %v4130
    %v4132 = vrot.slane %v4131, 4
    %v4133 = vadd.f32 %v4131, %v4132
    %v4134 = vrot.slane %v4133, 2
    %v4135 = vadd.f32 %v4133, %v4134
    %v4136 = vrot.slane %v4135, 1
    %v4137 = vadd.f32 %v4135, %v4136
    %v4138 = vsel %vm3354, %v3868, 0.0
    %v4139 = vsel %vm3354, %v3870, 0.0
    %v4140 = vadd.f32 %v4138, %v4139
    %v4141 = vsel %vm3354, %v3872, 0.0
    %v4142 = vadd.f32 %v4140, %v4141
    %v4143 = vsel %vm3354, %v3874, 0.0
    %v4144 = vadd.f32 %v4142, %v4143
    %v4145 = vsel %vm3354, %v3876, 0.0
    %v4146 = vadd.f32 %v4144, %v4145
    %v4147 = vsel %vm3354, %v3878, 0.0
    %v4148 = vadd.f32 %v4146, %v4147
    %v4149 = vsel %vm3354, %v3880, 0.0
    %v4150 = vadd.f32 %v4148, %v4149
    %v4151 = vsel %vm3354, %v3882, 0.0
    %v4152 = vadd.f32 %v4150, %v4151
    %v4153 = vrot.slane %v4152, 4
    %v4154 = vadd.f32 %v4152, %v4153
    %v4155 = vrot.slane %v4154, 2
    %v4156 = vadd.f32 %v4154, %v4155
    %v4157 = vrot.slane %v4156, 1
    %v4158 = vadd.f32 %v4156, %v4157
    %v4159 = vsel %vm3354, %v3884, 0.0
    %v4160 = vsel %vm3354, %v3886, 0.0
    %v4161 = vadd.f32 %v4159, %v4160
    %v4162 = vsel %vm3354, %v3888, 0.0
    %v4163 = vadd.f32 %v4161, %v4162
    %v4164 = vsel %vm3354, %v3890, 0.0
    %v4165 = vadd.f32 %v4163, %v4164
    %v4166 = vsel %vm3354, %v3892, 0.0
    %v4167 = vadd.f32 %v4165, %v4166
    %v4168 = vsel %vm3354, %v3894, 0.0
    %v4169 = vadd.f32 %v4167, %v4168
    %v4170 = vsel %vm3354, %v3896, 0.0
    %v4171 = vadd.f32 %v4169, %v4170
    %v4172 = vsel %vm3354, %v3898, 0.0
    %v4173 = vadd.f32 %v4171, %v4172
    %v4174 = vrot.slane %v4173, 4
    %v4175 = vadd.f32 %v4173, %v4174
    %v4176 = vrot.slane %v4175, 2
    %v4177 = vadd.f32 %v4175, %v4176
    %v4178 = vrot.slane %v4177, 1
    %v4179 = vadd.f32 %v4177, %v4178
    %v4180 = vsel %vm3354, %v3900, 0.0
    %v4181 = vsel %vm3354, %v3902, 0.0
    %v4182 = vadd.f32 %v4180, %v4181
    %v4183 = vsel %vm3354, %v3904, 0.0
    %v4184 = vadd.f32 %v4182, %v4183
    %v4185 = vsel %vm3354, %v3906, 0.0
    %v4186 = vadd.f32 %v4184, %v4185
    %v4187 = vsel %vm3354, %v3908, 0.0
    %v4188 = vadd.f32 %v4186, %v4187
    %v4189 = vsel %vm3354, %v3910, 0.0
    %v4190 = vadd.f32 %v4188, %v4189
    %v4191 = vsel %vm3354, %v3912, 0.0
    %v4192 = vadd.f32 %v4190, %v4191
    %v4193 = vsel %vm3354, %v3914, 0.0
    %v4194 = vadd.f32 %v4192, %v4193
    %v4195 = vrot.slane %v4194, 4
    %v4196 = vadd.f32 %v4194, %v4195
    %v4197 = vrot.slane %v4196, 2
    %v4198 = vadd.f32 %v4196, %v4197
    %v4199 = vrot.slane %v4198, 1
    %v4200 = vadd.f32 %v4198, %v4199
    %v4201 = vsel %vm3354, %v3916, 0.0
    %v4202 = vsel %vm3354, %v3918, 0.0
    %v4203 = vadd.f32 %v4201, %v4202
    %v4204 = vsel %vm3354, %v3920, 0.0
    %v4205 = vadd.f32 %v4203, %v4204
    %v4206 = vsel %vm3354, %v3922, 0.0
    %v4207 = vadd.f32 %v4205, %v4206
    %v4208 = vsel %vm3354, %v3924, 0.0
    %v4209 = vadd.f32 %v4207, %v4208
    %v4210 = vsel %vm3354, %v3926, 0.0
    %v4211 = vadd.f32 %v4209, %v4210
    %v4212 = vsel %vm3354, %v3928, 0.0
    %v4213 = vadd.f32 %v4211, %v4212
    %v4214 = vsel %vm3354, %v3930, 0.0
    %v4215 = vadd.f32 %v4213, %v4214
    %v4216 = vrot.slane %v4215, 4
    %v4217 = vadd.f32 %v4215, %v4216
    %v4218 = vrot.slane %v4217, 2
    %v4219 = vadd.f32 %v4217, %v4218
    %v4220 = vrot.slane %v4219, 1
    %v4221 = vadd.f32 %v4219, %v4220
    %v4222 = vsel %vm3354, %v3932, 0.0
    %v4223 = vsel %vm3354, %v3934, 0.0
    %v4224 = vadd.f32 %v4222, %v4223
    %v4225 = vsel %vm3354, %v3936, 0.0
    %v4226 = vadd.f32 %v4224, %v4225
    %v4227 = vsel %vm3354, %v3938, 0.0
    %v4228 = vadd.f32 %v4226, %v4227
    %v4229 = vsel %vm3354, %v3940, 0.0
    %v4230 = vadd.f32 %v4228, %v4229
    %v4231 = vsel %vm3354, %v3942, 0.0
    %v4232 = vadd.f32 %v4230, %v4231
    %v4233 = vsel %vm3354, %v3944, 0.0
    %v4234 = vadd.f32 %v4232, %v4233
    %v4235 = vsel %vm3354, %v3946, 0.0
    %v4236 = vadd.f32 %v4234, %v4235
    %v4237 = vrot.slane %v4236, 4
    %v4238 = vadd.f32 %v4236, %v4237
    %v4239 = vrot.slane %v4238, 2
    %v4240 = vadd.f32 %v4238, %v4239
    %v4241 = vrot.slane %v4240, 1
    %v4242 = vadd.f32 %v4240, %v4241
    %v4243 = vsel %vm3354, %v3948, 0.0
    %v4244 = vsel %vm3354, %v3950, 0.0
    %v4245 = vadd.f32 %v4243, %v4244
    %v4246 = vsel %vm3354, %v3952, 0.0
    %v4247 = vadd.f32 %v4245, %v4246
    %v4248 = vsel %vm3354, %v3954, 0.0
    %v4249 = vadd.f32 %v4247, %v4248
    %v4250 = vsel %vm3354, %v3956, 0.0
    %v4251 = vadd.f32 %v4249, %v4250
    %v4252 = vsel %vm3354, %v3958, 0.0
    %v4253 = vadd.f32 %v4251, %v4252
    %v4254 = vsel %vm3354, %v3960, 0.0
    %v4255 = vadd.f32 %v4253, %v4254
    %v4256 = vsel %vm3354, %v3962, 0.0
    %v4257 = vadd.f32 %v4255, %v4256
    %v4258 = vrot.slane %v4257, 4
    %v4259 = vadd.f32 %v4257, %v4258
    %v4260 = vrot.slane %v4259, 2
    %v4261 = vadd.f32 %v4259, %v4260
    %v4262 = vrot.slane %v4261, 1
    %v4263 = vadd.f32 %v4261, %v4262
    %v4264 = vsel %vm3354, %v3964, 0.0
    %v4265 = vsel %vm3354, %v3966, 0.0
    %v4266 = vadd.f32 %v4264, %v4265
    %v4267 = vsel %vm3354, %v3968, 0.0
    %v4268 = vadd.f32 %v4266, %v4267
    %v4269 = vsel %vm3354, %v3970, 0.0
    %v4270 = vadd.f32 %v4268, %v4269
    %v4271 = vsel %vm3354, %v3972, 0.0
    %v4272 = vadd.f32 %v4270, %v4271
    %v4273 = vsel %vm3354, %v3974, 0.0
    %v4274 = vadd.f32 %v4272, %v4273
    %v4275 = vsel %vm3354, %v3976, 0.0
    %v4276 = vadd.f32 %v4274, %v4275
    %v4277 = vsel %vm3354, %v3978, 0.0
    %v4278 = vadd.f32 %v4276, %v4277
    %v4279 = vrot.slane %v4278, 4
    %v4280 = vadd.f32 %v4278, %v4279
    %v4281 = vrot.slane %v4280, 2
    %v4282 = vadd.f32 %v4280, %v4281
    %v4283 = vrot.slane %v4282, 1
    %v4284 = vadd.f32 %v4282, %v4283
    %v4285 = vsel %vm3354, %v3980, 0.0
    %v4286 = vsel %vm3354, %v3982, 0.0
    %v4287 = vadd.f32 %v4285, %v4286
    %v4288 = vsel %vm3354, %v3984, 0.0
    %v4289 = vadd.f32 %v4287, %v4288
    %v4290 = vsel %vm3354, %v3986, 0.0
    %v4291 = vadd.f32 %v4289, %v4290
    %v4292 = vsel %vm3354, %v3988, 0.0
    %v4293 = vadd.f32 %v4291, %v4292
    %v4294 = vsel %vm3354, %v3990, 0.0
    %v4295 = vadd.f32 %v4293, %v4294
    %v4296 = vsel %vm3354, %v3992, 0.0
    %v4297 = vadd.f32 %v4295, %v4296
    %v4298 = vsel %vm3354, %v3994, 0.0
    %v4299 = vadd.f32 %v4297, %v4298
    %v4300 = vrot.slane %v4299, 4
    %v4301 = vadd.f32 %v4299, %v4300
    %v4302 = vrot.slane %v4301, 2
    %v4303 = vadd.f32 %v4301, %v4302
    %v4304 = vrot.slane %v4303, 1
    %v4305 = vadd.f32 %v4303, %v4304
    %v4306 = vsel %vm3354, %v3996, 0.0
    %v4307 = vsel %vm3354, %v3998, 0.0
    %v4308 = vadd.f32 %v4306, %v4307
    %v4309 = vsel %vm3354, %v4000, 0.0
    %v4310 = vadd.f32 %v4308, %v4309
    %v4311 = vsel %vm3354, %v4002, 0.0
    %v4312 = vadd.f32 %v4310, %v4311
    %v4313 = vsel %vm3354, %v4004, 0.0
    %v4314 = vadd.f32 %v4312, %v4313
    %v4315 = vsel %vm3354, %v4006, 0.0
    %v4316 = vadd.f32 %v4314, %v4315
    %v4317 = vsel %vm3354, %v4008, 0.0
    %v4318 = vadd.f32 %v4316, %v4317
    %v4319 = vsel %vm3354, %v4010, 0.0
    %v4320 = vadd.f32 %v4318, %v4319
    %v4321 = vrot.slane %v4320, 4
    %v4322 = vadd.f32 %v4320, %v4321
    %v4323 = vrot.slane %v4322, 2
    %v4324 = vadd.f32 %v4322, %v4323
    %v4325 = vrot.slane %v4324, 1
    %v4326 = vadd.f32 %v4324, %v4325
    %v4327 = vsel %vm3354, %v4012, 0.0
    %v4328 = vsel %vm3354, %v4014, 0.0
    %v4329 = vadd.f32 %v4327, %v4328
    %v4330 = vsel %vm3354, %v4016, 0.0
    %v4331 = vadd.f32 %v4329, %v4330
    %v4332 = vsel %vm3354, %v4018, 0.0
    %v4333 = vadd.f32 %v4331, %v4332
    %v4334 = vsel %vm3354, %v4020, 0.0
    %v4335 = vadd.f32 %v4333, %v4334
    %v4336 = vsel %vm3354, %v4022, 0.0
    %v4337 = vadd.f32 %v4335, %v4336
    %v4338 = vsel %vm3354, %v4024, 0.0
    %v4339 = vadd.f32 %v4337, %v4338
    %v4340 = vsel %vm3354, %v4026, 0.0
    %v4341 = vadd.f32 %v4339, %v4340
    %v4342 = vrot.slane %v4341, 4
    %v4343 = vadd.f32 %v4341, %v4342
    %v4344 = vrot.slane %v4343, 2
    %v4345 = vadd.f32 %v4343, %v4344
    %v4346 = vrot.slane %v4345, 1
    %v4347 = vadd.f32 %v4345, %v4346
    %v4348 = vsel %vm3354, %v4028, 0.0
    %v4349 = vsel %vm3354, %v4030, 0.0
    %v4350 = vadd.f32 %v4348, %v4349
    %v4351 = vsel %vm3354, %v4032, 0.0
    %v4352 = vadd.f32 %v4350, %v4351
    %v4353 = vsel %vm3354, %v4034, 0.0
    %v4354 = vadd.f32 %v4352, %v4353
    %v4355 = vsel %vm3354, %v4036, 0.0
    %v4356 = vadd.f32 %v4354, %v4355
    %v4357 = vsel %vm3354, %v4038, 0.0
    %v4358 = vadd.f32 %v4356, %v4357
    %v4359 = vsel %vm3354, %v4040, 0.0
    %v4360 = vadd.f32 %v4358, %v4359
    %v4361 = vsel %vm3354, %v4042, 0.0
    %v4362 = vadd.f32 %v4360, %v4361
    %v4363 = vrot.slane %v4362, 4
    %v4364 = vadd.f32 %v4362, %v4363
    %v4365 = vrot.slane %v4364, 2
    %v4366 = vadd.f32 %v4364, %v4365
    %v4367 = vrot.slane %v4366, 1
    %v4368 = vadd.f32 %v4366, %v4367
    %v4369 = vsel %vm3354, %v4044, 0.0
    %v4370 = vsel %vm3354, %v4046, 0.0
    %v4371 = vadd.f32 %v4369, %v4370
    %v4372 = vsel %vm3354, %v4048, 0.0
    %v4373 = vadd.f32 %v4371, %v4372
    %v4374 = vsel %vm3354, %v4050, 0.0
    %v4375 = vadd.f32 %v4373, %v4374
    %v4376 = vsel %vm3354, %v4052, 0.0
    %v4377 = vadd.f32 %v4375, %v4376
    %v4378 = vsel %vm3354, %v4054, 0.0
    %v4379 = vadd.f32 %v4377, %v4378
    %v4380 = vsel %vm3354, %v4056, 0.0
    %v4381 = vadd.f32 %v4379, %v4380
    %v4382 = vsel %vm3354, %v4058, 0.0
    %v4383 = vadd.f32 %v4381, %v4382
    %v4384 = vrot.slane %v4383, 4
    %v4385 = vadd.f32 %v4383, %v4384
    %v4386 = vrot.slane %v4385, 2
    %v4387 = vadd.f32 %v4385, %v4386
    %v4388 = vrot.slane %v4387, 1
    %v4389 = vadd.f32 %v4387, %v4388
    %v4390 = vsel %vm3354, %v4060, 0.0
    %v4391 = vsel %vm3354, %v4062, 0.0
    %v4392 = vadd.f32 %v4390, %v4391
    %v4393 = vsel %vm3354, %v4064, 0.0
    %v4394 = vadd.f32 %v4392, %v4393
    %v4395 = vsel %vm3354, %v4066, 0.0
    %v4396 = vadd.f32 %v4394, %v4395
    %v4397 = vsel %vm3354, %v4068, 0.0
    %v4398 = vadd.f32 %v4396, %v4397
    %v4399 = vsel %vm3354, %v4070, 0.0
    %v4400 = vadd.f32 %v4398, %v4399
    %v4401 = vsel %vm3354, %v4072, 0.0
    %v4402 = vadd.f32 %v4400, %v4401
    %v4403 = vsel %vm3354, %v4074, 0.0
    %v4404 = vadd.f32 %v4402, %v4403
    %v4405 = vrot.slane %v4404, 4
    %v4406 = vadd.f32 %v4404, %v4405
    %v4407 = vrot.slane %v4406, 2
    %v4408 = vadd.f32 %v4406, %v4407
    %v4409 = vrot.slane %v4408, 1
    %v4410 = vadd.f32 %v4408, %v4409
    %v4411 = vrcp.pop %v4095
    %v4412 = vrcp.pop %v4116
    %v4413 = vrcp.pop %v4137
    %v4414 = vrcp.pop %v4158
    %v4415 = vrcp.pop %v4179
    %v4416 = vrcp.pop %v4200
    %v4417 = vrcp.pop %v4221
    %v4418 = vrcp.pop %v4242
    %v4419 = vrcp.pop %v4263
    %v4420 = vrcp.pop %v4284
    %v4421 = vrcp.pop %v4305
    %v4422 = vrcp.pop %v4326
    %v4423 = vrcp.pop %v4347
    %v4424 = vrcp.pop %v4368
    %v4425 = vrcp.pop %v4389
    %v4426 = vrcp.pop %v4410
    %v4427 = vmul.f32 %v3820, %v4411
    %v4428 = vmul.f32 %v3822, %v4411
    %v4429 = vmul.f32 %v3824, %v4411
    %v4430 = vmul.f32 %v3826, %v4411
    %v4431 = vmul.f32 %v3828, %v4411
    %v4432 = vmul.f32 %v3830, %v4411
    %v4433 = vmul.f32 %v3832, %v4411
    %v4434 = vmul.f32 %v3834, %v4411
    %v4435 = vmul.f32 %v3836, %v4412
    %v4436 = vmul.f32 %v3838, %v4412
    %v4437 = vmul.f32 %v3840, %v4412
    %v4438 = vmul.f32 %v3842, %v4412
    %v4439 = vmul.f32 %v3844, %v4412
    %v4440 = vmul.f32 %v3846, %v4412
    %v4441 = vmul.f32 %v3848, %v4412
    %v4442 = vmul.f32 %v3850, %v4412
    %v4443 = vmul.f32 %v3852, %v4413
    %v4444 = vmul.f32 %v3854, %v4413
    %v4445 = vmul.f32 %v3856, %v4413
    %v4446 = vmul.f32 %v3858, %v4413
    %v4447 = vmul.f32 %v3860, %v4413
    %v4448 = vmul.f32 %v3862, %v4413
    %v4449 = vmul.f32 %v3864, %v4413
    %v4450 = vmul.f32 %v3866, %v4413
    %v4451 = vmul.f32 %v3868, %v4414
    %v4452 = vmul.f32 %v3870, %v4414
    %v4453 = vmul.f32 %v3872, %v4414
    %v4454 = vmul.f32 %v3874, %v4414
    %v4455 = vmul.f32 %v3876, %v4414
    %v4456 = vmul.f32 %v3878, %v4414
    %v4457 = vmul.f32 %v3880, %v4414
    %v4458 = vmul.f32 %v3882, %v4414
    %v4459 = vmul.f32 %v3884, %v4415
    %v4460 = vmul.f32 %v3886, %v4415
    %v4461 = vmul.f32 %v3888, %v4415
    %v4462 = vmul.f32 %v3890, %v4415
    %v4463 = vmul.f32 %v3892, %v4415
    %v4464 = vmul.f32 %v3894, %v4415
    %v4465 = vmul.f32 %v3896, %v4415
    %v4466 = vmul.f32 %v3898, %v4415
    %v4467 = vmul.f32 %v3900, %v4416
    %v4468 = vmul.f32 %v3902, %v4416
    %v4469 = vmul.f32 %v3904, %v4416
    %v4470 = vmul.f32 %v3906, %v4416
    %v4471 = vmul.f32 %v3908, %v4416
    %v4472 = vmul.f32 %v3910, %v4416
    %v4473 = vmul.f32 %v3912, %v4416
    %v4474 = vmul.f32 %v3914, %v4416
    %v4475 = vmul.f32 %v3916, %v4417
    %v4476 = vmul.f32 %v3918, %v4417
    %v4477 = vmul.f32 %v3920, %v4417
    %v4478 = vmul.f32 %v3922, %v4417
    %v4479 = vmul.f32 %v3924, %v4417
    %v4480 = vmul.f32 %v3926, %v4417
    %v4481 = vmul.f32 %v3928, %v4417
    %v4482 = vmul.f32 %v3930, %v4417
    %v4483 = vmul.f32 %v3932, %v4418
    %v4484 = vmul.f32 %v3934, %v4418
    %v4485 = vmul.f32 %v3936, %v4418
    %v4486 = vmul.f32 %v3938, %v4418
    %v4487 = vmul.f32 %v3940, %v4418
    %v4488 = vmul.f32 %v3942, %v4418
    %v4489 = vmul.f32 %v3944, %v4418
    %v4490 = vmul.f32 %v3946, %v4418
    %v4491 = vmul.f32 %v3948, %v4419
    %v4492 = vmul.f32 %v3950, %v4419
    %v4493 = vmul.f32 %v3952, %v4419
    %v4494 = vmul.f32 %v3954, %v4419
    %v4495 = vmul.f32 %v3956, %v4419
    %v4496 = vmul.f32 %v3958, %v4419
    %v4497 = vmul.f32 %v3960, %v4419
    %v4498 = vmul.f32 %v3962, %v4419
    %v4499 = vmul.f32 %v3964, %v4420
    %v4500 = vmul.f32 %v3966, %v4420
    %v4501 = vmul.f32 %v3968, %v4420
    %v4502 = vmul.f32 %v3970, %v4420
    %v4503 = vmul.f32 %v3972, %v4420
    %v4504 = vmul.f32 %v3974, %v4420
    %v4505 = vmul.f32 %v3976, %v4420
    %v4506 = vmul.f32 %v3978, %v4420
    %v4507 = vmul.f32 %v3980, %v4421
    %v4508 = vmul.f32 %v3982, %v4421
    %v4509 = vmul.f32 %v3984, %v4421
    %v4510 = vmul.f32 %v3986, %v4421
    %v4511 = vmul.f32 %v3988, %v4421
    %v4512 = vmul.f32 %v3990, %v4421
    %v4513 = vmul.f32 %v3992, %v4421
    %v4514 = vmul.f32 %v3994, %v4421
    %v4515 = vmul.f32 %v3996, %v4422
    %v4516 = vmul.f32 %v3998, %v4422
    %v4517 = vmul.f32 %v4000, %v4422
    %v4518 = vmul.f32 %v4002, %v4422
    %v4519 = vmul.f32 %v4004, %v4422
    %v4520 = vmul.f32 %v4006, %v4422
    %v4521 = vmul.f32 %v4008, %v4422
    %v4522 = vmul.f32 %v4010, %v4422
    %v4523 = vmul.f32 %v4012, %v4423
    %v4524 = vmul.f32 %v4014, %v4423
    %v4525 = vmul.f32 %v4016, %v4423
    %v4526 = vmul.f32 %v4018, %v4423
    %v4527 = vmul.f32 %v4020, %v4423
    %v4528 = vmul.f32 %v4022, %v4423
    %v4529 = vmul.f32 %v4024, %v4423
    %v4530 = vmul.f32 %v4026, %v4423
    %v4531 = vmul.f32 %v4028, %v4424
    %v4532 = vmul.f32 %v4030, %v4424
    %v4533 = vmul.f32 %v4032, %v4424
    %v4534 = vmul.f32 %v4034, %v4424
    %v4535 = vmul.f32 %v4036, %v4424
    %v4536 = vmul.f32 %v4038, %v4424
    %v4537 = vmul.f32 %v4040, %v4424
    %v4538 = vmul.f32 %v4042, %v4424
    %v4539 = vmul.f32 %v4044, %v4425
    %v4540 = vmul.f32 %v4046, %v4425
    %v4541 = vmul.f32 %v4048, %v4425
    %v4542 = vmul.f32 %v4050, %v4425
    %v4543 = vmul.f32 %v4052, %v4425
    %v4544 = vmul.f32 %v4054, %v4425
    %v4545 = vmul.f32 %v4056, %v4425
    %v4546 = vmul.f32 %v4058, %v4425
    %v4547 = vmul.f32 %v4060, %v4426
    %v4548 = vmul.f32 %v4062, %v4426
    %v4549 = vmul.f32 %v4064, %v4426
    %v4550 = vmul.f32 %v4066, %v4426
    %v4551 = vmul.f32 %v4068, %v4426
    %v4552 = vmul.f32 %v4070, %v4426
    %v4553 = vmul.f32 %v4072, %v4426
    %v4554 = vmul.f32 %v4074, %v4426
    %4556 = vset.pattern.permute.xlu0 0
    %4557 = vperm.xlu0 %4556, %v4427
    %v4558 = vpop.permute.xlu0 %4557
    %4561 = vset.pattern.permute.xlu0 0
    %4562 = vperm.xlu0 %4561, %v4428
    %v4563 = vpop.permute.xlu0 %4562
    %4566 = vset.pattern.permute.xlu0 0
    %4567 = vperm.xlu0 %4566, %v4429
    %v4568 = vpop.permute.xlu0 %4567
    %4571 = vset.pattern.permute.xlu0 0
    %4572 = vperm.xlu0 %4571, %v4430
    %v4573 = vpop.permute.xlu0 %4572
    %4576 = vset.pattern.permute.xlu0 0
    %4577 = vperm.xlu0 %4576, %v4431
    %v4578 = vpop.permute.xlu0 %4577
    %4581 = vset.pattern.permute.xlu0 0
    %4582 = vperm.xlu0 %4581, %v4432
    %v4583 = vpop.permute.xlu0 %4582
    %4586 = vset.pattern.permute.xlu0 0
    %4587 = vperm.xlu0 %4586, %v4433
    %v4588 = vpop.permute.xlu0 %4587
    %4591 = vset.pattern.permute.xlu0 0
    %4592 = vperm.xlu0 %4591, %v4434
    %v4593 = vpop.permute.xlu0 %4592
    %4596 = vset.pattern.permute.xlu0 0
    %4597 = vperm.xlu0 %4596, %v4435
    %v4598 = vpop.permute.xlu0 %4597
    %4601 = vset.pattern.permute.xlu0 0
    %4602 = vperm.xlu0 %4601, %v4436
    %v4603 = vpop.permute.xlu0 %4602
    %4606 = vset.pattern.permute.xlu0 0
    %4607 = vperm.xlu0 %4606, %v4437
    %v4608 = vpop.permute.xlu0 %4607
    %4611 = vset.pattern.permute.xlu0 0
    %4612 = vperm.xlu0 %4611, %v4438
    %v4613 = vpop.permute.xlu0 %4612
    %4616 = vset.pattern.permute.xlu0 0
    %4617 = vperm.xlu0 %4616, %v4439
    %v4618 = vpop.permute.xlu0 %4617
    %4621 = vset.pattern.permute.xlu0 0
    %4622 = vperm.xlu0 %4621, %v4440
    %v4623 = vpop.permute.xlu0 %4622
    %4626 = vset.pattern.permute.xlu0 0
    %4627 = vperm.xlu0 %4626, %v4441
    %v4628 = vpop.permute.xlu0 %4627
    %4631 = vset.pattern.permute.xlu0 0
    %4632 = vperm.xlu0 %4631, %v4442
    %v4633 = vpop.permute.xlu0 %4632
    %4636 = vset.pattern.permute.xlu0 0
    %4637 = vperm.xlu0 %4636, %v4443
    %v4638 = vpop.permute.xlu0 %4637
    %4641 = vset.pattern.permute.xlu0 0
    %4642 = vperm.xlu0 %4641, %v4444
    %v4643 = vpop.permute.xlu0 %4642
    %4646 = vset.pattern.permute.xlu0 0
    %4647 = vperm.xlu0 %4646, %v4445
    %v4648 = vpop.permute.xlu0 %4647
    %4651 = vset.pattern.permute.xlu0 0
    %4652 = vperm.xlu0 %4651, %v4446
    %v4653 = vpop.permute.xlu0 %4652
    %4656 = vset.pattern.permute.xlu0 0
    %4657 = vperm.xlu0 %4656, %v4447
    %v4658 = vpop.permute.xlu0 %4657
    %4661 = vset.pattern.permute.xlu0 0
    %4662 = vperm.xlu0 %4661, %v4448
    %v4663 = vpop.permute.xlu0 %4662
    %4666 = vset.pattern.permute.xlu0 0
    %4667 = vperm.xlu0 %4666, %v4449
    %v4668 = vpop.permute.xlu0 %4667
    %4671 = vset.pattern.permute.xlu0 0
    %4672 = vperm.xlu0 %4671, %v4450
    %v4673 = vpop.permute.xlu0 %4672
    %4676 = vset.pattern.permute.xlu0 0
    %4677 = vperm.xlu0 %4676, %v4451
    %v4678 = vpop.permute.xlu0 %4677
    %4681 = vset.pattern.permute.xlu0 0
    %4682 = vperm.xlu0 %4681, %v4452
    %v4683 = vpop.permute.xlu0 %4682
    %4686 = vset.pattern.permute.xlu0 0
    %4687 = vperm.xlu0 %4686, %v4453
    %v4688 = vpop.permute.xlu0 %4687
    %4691 = vset.pattern.permute.xlu0 0
    %4692 = vperm.xlu0 %4691, %v4454
    %v4693 = vpop.permute.xlu0 %4692
    %4696 = vset.pattern.permute.xlu0 0
    %4697 = vperm.xlu0 %4696, %v4455
    %v4698 = vpop.permute.xlu0 %4697
    %4701 = vset.pattern.permute.xlu0 0
    %4702 = vperm.xlu0 %4701, %v4456
    %v4703 = vpop.permute.xlu0 %4702
    %4706 = vset.pattern.permute.xlu0 0
    %4707 = vperm.xlu0 %4706, %v4457
    %v4708 = vpop.permute.xlu0 %4707
    %4711 = vset.pattern.permute.xlu0 0
    %4712 = vperm.xlu0 %4711, %v4458
    %v4713 = vpop.permute.xlu0 %4712
    %4716 = vset.pattern.permute.xlu0 0
    %4717 = vperm.xlu0 %4716, %v4459
    %v4718 = vpop.permute.xlu0 %4717
    %4721 = vset.pattern.permute.xlu0 0
    %4722 = vperm.xlu0 %4721, %v4460
    %v4723 = vpop.permute.xlu0 %4722
    %4726 = vset.pattern.permute.xlu0 0
    %4727 = vperm.xlu0 %4726, %v4461
    %v4728 = vpop.permute.xlu0 %4727
    %4731 = vset.pattern.permute.xlu0 0
    %4732 = vperm.xlu0 %4731, %v4462
    %v4733 = vpop.permute.xlu0 %4732
    %4736 = vset.pattern.permute.xlu0 0
    %4737 = vperm.xlu0 %4736, %v4463
    %v4738 = vpop.permute.xlu0 %4737
    %4741 = vset.pattern.permute.xlu0 0
    %4742 = vperm.xlu0 %4741, %v4464
    %v4743 = vpop.permute.xlu0 %4742
    %4746 = vset.pattern.permute.xlu0 0
    %4747 = vperm.xlu0 %4746, %v4465
    %v4748 = vpop.permute.xlu0 %4747
    %4751 = vset.pattern.permute.xlu0 0
    %4752 = vperm.xlu0 %4751, %v4466
    %v4753 = vpop.permute.xlu0 %4752
    %4756 = vset.pattern.permute.xlu0 0
    %4757 = vperm.xlu0 %4756, %v4467
    %v4758 = vpop.permute.xlu0 %4757
    %4761 = vset.pattern.permute.xlu0 0
    %4762 = vperm.xlu0 %4761, %v4468
    %v4763 = vpop.permute.xlu0 %4762
    %4766 = vset.pattern.permute.xlu0 0
    %4767 = vperm.xlu0 %4766, %v4469
    %v4768 = vpop.permute.xlu0 %4767
    %4771 = vset.pattern.permute.xlu0 0
    %4772 = vperm.xlu0 %4771, %v4470
    %v4773 = vpop.permute.xlu0 %4772
    %4776 = vset.pattern.permute.xlu0 0
    %4777 = vperm.xlu0 %4776, %v4471
    %v4778 = vpop.permute.xlu0 %4777
    %4781 = vset.pattern.permute.xlu0 0
    %4782 = vperm.xlu0 %4781, %v4472
    %v4783 = vpop.permute.xlu0 %4782
    %4786 = vset.pattern.permute.xlu0 0
    %4787 = vperm.xlu0 %4786, %v4473
    %v4788 = vpop.permute.xlu0 %4787
    %4791 = vset.pattern.permute.xlu0 0
    %4792 = vperm.xlu0 %4791, %v4474
    %v4793 = vpop.permute.xlu0 %4792
    %4796 = vset.pattern.permute.xlu0 0
    %4797 = vperm.xlu0 %4796, %v4475
    %v4798 = vpop.permute.xlu0 %4797
    %4801 = vset.pattern.permute.xlu0 0
    %4802 = vperm.xlu0 %4801, %v4476
    %v4803 = vpop.permute.xlu0 %4802
    %4806 = vset.pattern.permute.xlu0 0
    %4807 = vperm.xlu0 %4806, %v4477
    %v4808 = vpop.permute.xlu0 %4807
    %4811 = vset.pattern.permute.xlu0 0
    %4812 = vperm.xlu0 %4811, %v4478
    %v4813 = vpop.permute.xlu0 %4812
    %4816 = vset.pattern.permute.xlu0 0
    %4817 = vperm.xlu0 %4816, %v4479
    %v4818 = vpop.permute.xlu0 %4817
    %4821 = vset.pattern.permute.xlu0 0
    %4822 = vperm.xlu0 %4821, %v4480
    %v4823 = vpop.permute.xlu0 %4822
    %4826 = vset.pattern.permute.xlu0 0
    %4827 = vperm.xlu0 %4826, %v4481
    %v4828 = vpop.permute.xlu0 %4827
    %4831 = vset.pattern.permute.xlu0 0
    %4832 = vperm.xlu0 %4831, %v4482
    %v4833 = vpop.permute.xlu0 %4832
    %4836 = vset.pattern.permute.xlu0 0
    %4837 = vperm.xlu0 %4836, %v4483
    %v4838 = vpop.permute.xlu0 %4837
    %4841 = vset.pattern.permute.xlu0 0
    %4842 = vperm.xlu0 %4841, %v4484
    %v4843 = vpop.permute.xlu0 %4842
    %4846 = vset.pattern.permute.xlu0 0
    %4847 = vperm.xlu0 %4846, %v4485
    %v4848 = vpop.permute.xlu0 %4847
    %4851 = vset.pattern.permute.xlu0 0
    %4852 = vperm.xlu0 %4851, %v4486
    %v4853 = vpop.permute.xlu0 %4852
    %4856 = vset.pattern.permute.xlu0 0
    %4857 = vperm.xlu0 %4856, %v4487
    %v4858 = vpop.permute.xlu0 %4857
    %4861 = vset.pattern.permute.xlu0 0
    %4862 = vperm.xlu0 %4861, %v4488
    %v4863 = vpop.permute.xlu0 %4862
    %4866 = vset.pattern.permute.xlu0 0
    %4867 = vperm.xlu0 %4866, %v4489
    %v4868 = vpop.permute.xlu0 %4867
    %4871 = vset.pattern.permute.xlu0 0
    %4872 = vperm.xlu0 %4871, %v4490
    %v4873 = vpop.permute.xlu0 %4872
    %4876 = vset.pattern.permute.xlu0 0
    %4877 = vperm.xlu0 %4876, %v4491
    %v4878 = vpop.permute.xlu0 %4877
    %4881 = vset.pattern.permute.xlu0 0
    %4882 = vperm.xlu0 %4881, %v4492
    %v4883 = vpop.permute.xlu0 %4882
    %4886 = vset.pattern.permute.xlu0 0
    %4887 = vperm.xlu0 %4886, %v4493
    %v4888 = vpop.permute.xlu0 %4887
    %4891 = vset.pattern.permute.xlu0 0
    %4892 = vperm.xlu0 %4891, %v4494
    %v4893 = vpop.permute.xlu0 %4892
    %4896 = vset.pattern.permute.xlu0 0
    %4897 = vperm.xlu0 %4896, %v4495
    %v4898 = vpop.permute.xlu0 %4897
    %4901 = vset.pattern.permute.xlu0 0
    %4902 = vperm.xlu0 %4901, %v4496
    %v4903 = vpop.permute.xlu0 %4902
    %4906 = vset.pattern.permute.xlu0 0
    %4907 = vperm.xlu0 %4906, %v4497
    %v4908 = vpop.permute.xlu0 %4907
    %4911 = vset.pattern.permute.xlu0 0
    %4912 = vperm.xlu0 %4911, %v4498
    %v4913 = vpop.permute.xlu0 %4912
    %4916 = vset.pattern.permute.xlu0 0
    %4917 = vperm.xlu0 %4916, %v4499
    %v4918 = vpop.permute.xlu0 %4917
    %4921 = vset.pattern.permute.xlu0 0
    %4922 = vperm.xlu0 %4921, %v4500
    %v4923 = vpop.permute.xlu0 %4922
    %4926 = vset.pattern.permute.xlu0 0
    %4927 = vperm.xlu0 %4926, %v4501
    %v4928 = vpop.permute.xlu0 %4927
    %4931 = vset.pattern.permute.xlu0 0
    %4932 = vperm.xlu0 %4931, %v4502
    %v4933 = vpop.permute.xlu0 %4932
    %4936 = vset.pattern.permute.xlu0 0
    %4937 = vperm.xlu0 %4936, %v4503
    %v4938 = vpop.permute.xlu0 %4937
    %4941 = vset.pattern.permute.xlu0 0
    %4942 = vperm.xlu0 %4941, %v4504
    %v4943 = vpop.permute.xlu0 %4942
    %4946 = vset.pattern.permute.xlu0 0
    %4947 = vperm.xlu0 %4946, %v4505
    %v4948 = vpop.permute.xlu0 %4947
    %4951 = vset.pattern.permute.xlu0 0
    %4952 = vperm.xlu0 %4951, %v4506
    %v4953 = vpop.permute.xlu0 %4952
    %4956 = vset.pattern.permute.xlu0 0
    %4957 = vperm.xlu0 %4956, %v4507
    %v4958 = vpop.permute.xlu0 %4957
    %4961 = vset.pattern.permute.xlu0 0
    %4962 = vperm.xlu0 %4961, %v4508
    %v4963 = vpop.permute.xlu0 %4962
    %4966 = vset.pattern.permute.xlu0 0
    %4967 = vperm.xlu0 %4966, %v4509
    %v4968 = vpop.permute.xlu0 %4967
    %4971 = vset.pattern.permute.xlu0 0
    %4972 = vperm.xlu0 %4971, %v4510
    %v4973 = vpop.permute.xlu0 %4972
    %4976 = vset.pattern.permute.xlu0 0
    %4977 = vperm.xlu0 %4976, %v4511
    %v4978 = vpop.permute.xlu0 %4977
    %4981 = vset.pattern.permute.xlu0 0
    %4982 = vperm.xlu0 %4981, %v4512
    %v4983 = vpop.permute.xlu0 %4982
    %4986 = vset.pattern.permute.xlu0 0
    %4987 = vperm.xlu0 %4986, %v4513
    %v4988 = vpop.permute.xlu0 %4987
    %4991 = vset.pattern.permute.xlu0 0
    %4992 = vperm.xlu0 %4991, %v4514
    %v4993 = vpop.permute.xlu0 %4992
    %4996 = vset.pattern.permute.xlu0 0
    %4997 = vperm.xlu0 %4996, %v4515
    %v4998 = vpop.permute.xlu0 %4997
    %5001 = vset.pattern.permute.xlu0 0
    %5002 = vperm.xlu0 %5001, %v4516
    %v5003 = vpop.permute.xlu0 %5002
    %5006 = vset.pattern.permute.xlu0 0
    %5007 = vperm.xlu0 %5006, %v4517
    %v5008 = vpop.permute.xlu0 %5007
    %5011 = vset.pattern.permute.xlu0 0
    %5012 = vperm.xlu0 %5011, %v4518
    %v5013 = vpop.permute.xlu0 %5012
    %5016 = vset.pattern.permute.xlu0 0
    %5017 = vperm.xlu0 %5016, %v4519
    %v5018 = vpop.permute.xlu0 %5017
    %5021 = vset.pattern.permute.xlu0 0
    %5022 = vperm.xlu0 %5021, %v4520
    %v5023 = vpop.permute.xlu0 %5022
    %5026 = vset.pattern.permute.xlu0 0
    %5027 = vperm.xlu0 %5026, %v4521
    %v5028 = vpop.permute.xlu0 %5027
    %5031 = vset.pattern.permute.xlu0 0
    %5032 = vperm.xlu0 %5031, %v4522
    %v5033 = vpop.permute.xlu0 %5032
    %5036 = vset.pattern.permute.xlu0 0
    %5037 = vperm.xlu0 %5036, %v4523
    %v5038 = vpop.permute.xlu0 %5037
    %5041 = vset.pattern.permute.xlu0 0
    %5042 = vperm.xlu0 %5041, %v4524
    %v5043 = vpop.permute.xlu0 %5042
    %5046 = vset.pattern.permute.xlu0 0
    %5047 = vperm.xlu0 %5046, %v4525
    %v5048 = vpop.permute.xlu0 %5047
    %5051 = vset.pattern.permute.xlu0 0
    %5052 = vperm.xlu0 %5051, %v4526
    %v5053 = vpop.permute.xlu0 %5052
    %5056 = vset.pattern.permute.xlu0 0
    %5057 = vperm.xlu0 %5056, %v4527
    %v5058 = vpop.permute.xlu0 %5057
    %5061 = vset.pattern.permute.xlu0 0
    %5062 = vperm.xlu0 %5061, %v4528
    %v5063 = vpop.permute.xlu0 %5062
    %5066 = vset.pattern.permute.xlu0 0
    %5067 = vperm.xlu0 %5066, %v4529
    %v5068 = vpop.permute.xlu0 %5067
    %5071 = vset.pattern.permute.xlu0 0
    %5072 = vperm.xlu0 %5071, %v4530
    %v5073 = vpop.permute.xlu0 %5072
    %5076 = vset.pattern.permute.xlu0 0
    %5077 = vperm.xlu0 %5076, %v4531
    %v5078 = vpop.permute.xlu0 %5077
    %5081 = vset.pattern.permute.xlu0 0
    %5082 = vperm.xlu0 %5081, %v4532
    %v5083 = vpop.permute.xlu0 %5082
    %5086 = vset.pattern.permute.xlu0 0
    %5087 = vperm.xlu0 %5086, %v4533
    %v5088 = vpop.permute.xlu0 %5087
    %5091 = vset.pattern.permute.xlu0 0
    %5092 = vperm.xlu0 %5091, %v4534
    %v5093 = vpop.permute.xlu0 %5092
    %5096 = vset.pattern.permute.xlu0 0
    %5097 = vperm.xlu0 %5096, %v4535
    %v5098 = vpop.permute.xlu0 %5097
    %5101 = vset.pattern.permute.xlu0 0
    %5102 = vperm.xlu0 %5101, %v4536
    %v5103 = vpop.permute.xlu0 %5102
    %5106 = vset.pattern.permute.xlu0 0
    %5107 = vperm.xlu0 %5106, %v4537
    %v5108 = vpop.permute.xlu0 %5107
    %5111 = vset.pattern.permute.xlu0 0
    %5112 = vperm.xlu0 %5111, %v4538
    %v5113 = vpop.permute.xlu0 %5112
    %5116 = vset.pattern.permute.xlu0 0
    %5117 = vperm.xlu0 %5116, %v4539
    %v5118 = vpop.permute.xlu0 %5117
    %5121 = vset.pattern.permute.xlu0 0
    %5122 = vperm.xlu0 %5121, %v4540
    %v5123 = vpop.permute.xlu0 %5122
    %5126 = vset.pattern.permute.xlu0 0
    %5127 = vperm.xlu0 %5126, %v4541
    %v5128 = vpop.permute.xlu0 %5127
    %5131 = vset.pattern.permute.xlu0 0
    %5132 = vperm.xlu0 %5131, %v4542
    %v5133 = vpop.permute.xlu0 %5132
    %5136 = vset.pattern.permute.xlu0 0
    %5137 = vperm.xlu0 %5136, %v4543
    %v5138 = vpop.permute.xlu0 %5137
    %5141 = vset.pattern.permute.xlu0 0
    %5142 = vperm.xlu0 %5141, %v4544
    %v5143 = vpop.permute.xlu0 %5142
    %5146 = vset.pattern.permute.xlu0 0
    %5147 = vperm.xlu0 %5146, %v4545
    %v5148 = vpop.permute.xlu0 %5147
    %5151 = vset.pattern.permute.xlu0 0
    %5152 = vperm.xlu0 %5151, %v4546
    %v5153 = vpop.permute.xlu0 %5152
    %5156 = vset.pattern.permute.xlu0 0
    %5157 = vperm.xlu0 %5156, %v4547
    %v5158 = vpop.permute.xlu0 %5157
    %5161 = vset.pattern.permute.xlu0 0
    %5162 = vperm.xlu0 %5161, %v4548
    %v5163 = vpop.permute.xlu0 %5162
    %5166 = vset.pattern.permute.xlu0 0
    %5167 = vperm.xlu0 %5166, %v4549
    %v5168 = vpop.permute.xlu0 %5167
    %5171 = vset.pattern.permute.xlu0 0
    %5172 = vperm.xlu0 %5171, %v4550
    %v5173 = vpop.permute.xlu0 %5172
    %5176 = vset.pattern.permute.xlu0 0
    %5177 = vperm.xlu0 %5176, %v4551
    %v5178 = vpop.permute.xlu0 %5177
    %5181 = vset.pattern.permute.xlu0 0
    %5182 = vperm.xlu0 %5181, %v4552
    %v5183 = vpop.permute.xlu0 %5182
    %5186 = vset.pattern.permute.xlu0 0
    %5187 = vperm.xlu0 %5186, %v4553
    %v5188 = vpop.permute.xlu0 %5187
    %5191 = vset.pattern.permute.xlu0 0
    %5192 = vperm.xlu0 %5191, %v4554
    %v5193 = vpop.permute.xlu0 %5192
    %v5195 = vmul.f32 %v4558, %v1510
    %v5196 = vmul.f32 %v4563, %v1513
    %v5197 = vmul.f32 %v4568, %v1518
    %v5198 = vmul.f32 %v4573, %v1521
    %v5199 = vmul.f32 %v4578, %v1526
    %v5200 = vmul.f32 %v4583, %v1529
    %v5201 = vmul.f32 %v4588, %v1534
    %v5202 = vmul.f32 %v4593, %v1537
    %v5203 = vmul.f32 %v4598, %v1542
    %v5204 = vmul.f32 %v4603, %v1545
    %v5205 = vmul.f32 %v4608, %v1550
    %v5206 = vmul.f32 %v4613, %v1553
    %v5207 = vmul.f32 %v4618, %v1558
    %v5208 = vmul.f32 %v4623, %v1561
    %v5209 = vmul.f32 %v4628, %v1566
    %v5210 = vmul.f32 %v4633, %v1569
    %v5211 = vmul.f32 %v4638, %v1574
    %v5212 = vmul.f32 %v4643, %v1577
    %v5213 = vmul.f32 %v4648, %v1582
    %v5214 = vmul.f32 %v4653, %v1585
    %v5215 = vmul.f32 %v4658, %v1590
    %v5216 = vmul.f32 %v4663, %v1593
    %v5217 = vmul.f32 %v4668, %v1598
    %v5218 = vmul.f32 %v4673, %v1601
    %v5219 = vmul.f32 %v4678, %v1606
    %v5220 = vmul.f32 %v4683, %v1609
    %v5221 = vmul.f32 %v4688, %v1614
    %v5222 = vmul.f32 %v4693, %v1617
    %v5223 = vmul.f32 %v4698, %v1622
    %v5224 = vmul.f32 %v4703, %v1625
    %v5225 = vmul.f32 %v4708, %v1630
    %v5226 = vmul.f32 %v4713, %v1633
    %v5227 = vmul.f32 %v4718, %v1638
    %v5228 = vmul.f32 %v4723, %v1641
    %v5229 = vmul.f32 %v4728, %v1646
    %v5230 = vmul.f32 %v4733, %v1649
    %v5231 = vmul.f32 %v4738, %v1654
    %v5232 = vmul.f32 %v4743, %v1657
    %v5233 = vmul.f32 %v4748, %v1662
    %v5234 = vmul.f32 %v4753, %v1665
    %v5235 = vmul.f32 %v4758, %v1670
    %v5236 = vmul.f32 %v4763, %v1673
    %v5237 = vmul.f32 %v4768, %v1678
    %v5238 = vmul.f32 %v4773, %v1681
    %v5239 = vmul.f32 %v4778, %v1686
    %v5240 = vmul.f32 %v4783, %v1689
    %v5241 = vmul.f32 %v4788, %v1694
    %v5242 = vmul.f32 %v4793, %v1697
    %v5243 = vmul.f32 %v4798, %v1702
    %v5244 = vmul.f32 %v4803, %v1705
    %v5245 = vmul.f32 %v4808, %v1710
    %v5246 = vmul.f32 %v4813, %v1713
    %v5247 = vmul.f32 %v4818, %v1718
    %v5248 = vmul.f32 %v4823, %v1721
    %v5249 = vmul.f32 %v4828, %v1726
    %v5250 = vmul.f32 %v4833, %v1729
    %v5251 = vmul.f32 %v4838, %v1734
    %v5252 = vmul.f32 %v4843, %v1737
    %v5253 = vmul.f32 %v4848, %v1742
    %v5254 = vmul.f32 %v4853, %v1745
    %v5255 = vmul.f32 %v4858, %v1750
    %v5256 = vmul.f32 %v4863, %v1753
    %v5257 = vmul.f32 %v4868, %v1758
    %v5258 = vmul.f32 %v4873, %v1761
    %v5259 = vmul.f32 %v4878, %v1766
    %v5260 = vmul.f32 %v4883, %v1769
    %v5261 = vmul.f32 %v4888, %v1774
    %v5262 = vmul.f32 %v4893, %v1777
    %v5263 = vmul.f32 %v4898, %v1782
    %v5264 = vmul.f32 %v4903, %v1785
    %v5265 = vmul.f32 %v4908, %v1790
    %v5266 = vmul.f32 %v4913, %v1793
    %v5267 = vmul.f32 %v4918, %v1798
    %v5268 = vmul.f32 %v4923, %v1801
    %v5269 = vmul.f32 %v4928, %v1806
    %v5270 = vmul.f32 %v4933, %v1809
    %v5271 = vmul.f32 %v4938, %v1814
    %v5272 = vmul.f32 %v4943, %v1817
    %v5273 = vmul.f32 %v4948, %v1822
    %v5274 = vmul.f32 %v4953, %v1825
    %v5275 = vmul.f32 %v4958, %v1830
    %v5276 = vmul.f32 %v4963, %v1833
    %v5277 = vmul.f32 %v4968, %v1838
    %v5278 = vmul.f32 %v4973, %v1841
    %v5279 = vmul.f32 %v4978, %v1846
    %v5280 = vmul.f32 %v4983, %v1849
    %v5281 = vmul.f32 %v4988, %v1854
    %v5282 = vmul.f32 %v4993, %v1857
    %v5283 = vmul.f32 %v4998, %v1862
    %v5284 = vmul.f32 %v5003, %v1865
    %v5285 = vmul.f32 %v5008, %v1870
    %v5286 = vmul.f32 %v5013, %v1873
    %v5287 = vmul.f32 %v5018, %v1878
    %v5288 = vmul.f32 %v5023, %v1881
    %v5289 = vmul.f32 %v5028, %v1886
    %v5290 = vmul.f32 %v5033, %v1889
    %v5291 = vmul.f32 %v5038, %v1894
    %v5292 = vmul.f32 %v5043, %v1897
    %v5293 = vmul.f32 %v5048, %v1902
    %v5294 = vmul.f32 %v5053, %v1905
    %v5295 = vmul.f32 %v5058, %v1910
    %v5296 = vmul.f32 %v5063, %v1913
    %v5297 = vmul.f32 %v5068, %v1918
    %v5298 = vmul.f32 %v5073, %v1921
    %v5299 = vmul.f32 %v5078, %v1926
    %v5300 = vmul.f32 %v5083, %v1929
    %v5301 = vmul.f32 %v5088, %v1934
    %v5302 = vmul.f32 %v5093, %v1937
    %v5303 = vmul.f32 %v5098, %v1942
    %v5304 = vmul.f32 %v5103, %v1945
    %v5305 = vmul.f32 %v5108, %v1950
    %v5306 = vmul.f32 %v5113, %v1953
    %v5307 = vmul.f32 %v5118, %v1958
    %v5308 = vmul.f32 %v5123, %v1961
    %v5309 = vmul.f32 %v5128, %v1966
    %v5310 = vmul.f32 %v5133, %v1969
    %v5311 = vmul.f32 %v5138, %v1974
    %v5312 = vmul.f32 %v5143, %v1977
    %v5313 = vmul.f32 %v5148, %v1982
    %v5314 = vmul.f32 %v5153, %v1985
    %v5315 = vmul.f32 %v5158, %v1990
    %v5316 = vmul.f32 %v5163, %v1993
    %v5317 = vmul.f32 %v5168, %v1998
    %v5318 = vmul.f32 %v5173, %v2001
    %v5319 = vmul.f32 %v5178, %v2006
    %v5320 = vmul.f32 %v5183, %v2009
    %v5321 = vmul.f32 %v5188, %v2014
    %v5322 = vmul.f32 %v5193, %v2017
    %v5323 = vsel %vm427, %v5195, 0.0
    %v5324 = vsel %vm427, %v5196, 0.0
    %v5325 = vadd.f32 %v5323, %v5324
    %v5326 = vsel %vm427, %v5197, 0.0
    %v5327 = vadd.f32 %v5325, %v5326
    %v5328 = vsel %vm427, %v5198, 0.0
    %v5329 = vadd.f32 %v5327, %v5328
    %v5330 = vsel %vm427, %v5199, 0.0
    %v5331 = vadd.f32 %v5329, %v5330
    %v5332 = vsel %vm427, %v5200, 0.0
    %v5333 = vadd.f32 %v5331, %v5332
    %v5334 = vsel %vm427, %v5201, 0.0
    %v5335 = vadd.f32 %v5333, %v5334
    %v5336 = vsel %vm427, %v5202, 0.0
    %v5337 = vadd.f32 %v5335, %v5336
    %v5338 = vrot.slane %v5337, 4
    %v5339 = vadd.f32 %v5337, %v5338
    %v5340 = vrot.slane %v5339, 2
    %v5341 = vadd.f32 %v5339, %v5340
    %v5342 = vrot.slane %v5341, 1
    %v5343 = vadd.f32 %v5341, %v5342
    %v5344 = vsel %vm427, %v5203, 0.0
    %v5345 = vsel %vm427, %v5204, 0.0
    %v5346 = vadd.f32 %v5344, %v5345
    %v5347 = vsel %vm427, %v5205, 0.0
    %v5348 = vadd.f32 %v5346, %v5347
    %v5349 = vsel %vm427, %v5206, 0.0
    %v5350 = vadd.f32 %v5348, %v5349
    %v5351 = vsel %vm427, %v5207, 0.0
    %v5352 = vadd.f32 %v5350, %v5351
    %v5353 = vsel %vm427, %v5208, 0.0
    %v5354 = vadd.f32 %v5352, %v5353
    %v5355 = vsel %vm427, %v5209, 0.0
    %v5356 = vadd.f32 %v5354, %v5355
    %v5357 = vsel %vm427, %v5210, 0.0
    %v5358 = vadd.f32 %v5356, %v5357
    %v5359 = vrot.slane %v5358, 4
    %v5360 = vadd.f32 %v5358, %v5359
    %v5361 = vrot.slane %v5360, 2
    %v5362 = vadd.f32 %v5360, %v5361
    %v5363 = vrot.slane %v5362, 1
    %v5364 = vadd.f32 %v5362, %v5363
    %v5365 = vsel %vm427, %v5211, 0.0
    %v5366 = vsel %vm427, %v5212, 0.0
    %v5367 = vadd.f32 %v5365, %v5366
    %v5368 = vsel %vm427, %v5213, 0.0
    %v5369 = vadd.f32 %v5367, %v5368
    %v5370 = vsel %vm427, %v5214, 0.0
    %v5371 = vadd.f32 %v5369, %v5370
    %v5372 = vsel %vm427, %v5215, 0.0
    %v5373 = vadd.f32 %v5371, %v5372
    %v5374 = vsel %vm427, %v5216, 0.0
    %v5375 = vadd.f32 %v5373, %v5374
    %v5376 = vsel %vm427, %v5217, 0.0
    %v5377 = vadd.f32 %v5375, %v5376
    %v5378 = vsel %vm427, %v5218, 0.0
    %v5379 = vadd.f32 %v5377, %v5378
    %v5380 = vrot.slane %v5379, 4
    %v5381 = vadd.f32 %v5379, %v5380
    %v5382 = vrot.slane %v5381, 2
    %v5383 = vadd.f32 %v5381, %v5382
    %v5384 = vrot.slane %v5383, 1
    %v5385 = vadd.f32 %v5383, %v5384
    %v5386 = vsel %vm427, %v5219, 0.0
    %v5387 = vsel %vm427, %v5220, 0.0
    %v5388 = vadd.f32 %v5386, %v5387
    %v5389 = vsel %vm427, %v5221, 0.0
    %v5390 = vadd.f32 %v5388, %v5389
    %v5391 = vsel %vm427, %v5222, 0.0
    %v5392 = vadd.f32 %v5390, %v5391
    %v5393 = vsel %vm427, %v5223, 0.0
    %v5394 = vadd.f32 %v5392, %v5393
    %v5395 = vsel %vm427, %v5224, 0.0
    %v5396 = vadd.f32 %v5394, %v5395
    %v5397 = vsel %vm427, %v5225, 0.0
    %v5398 = vadd.f32 %v5396, %v5397
    %v5399 = vsel %vm427, %v5226, 0.0
    %v5400 = vadd.f32 %v5398, %v5399
    %v5401 = vrot.slane %v5400, 4
    %v5402 = vadd.f32 %v5400, %v5401
    %v5403 = vrot.slane %v5402, 2
    %v5404 = vadd.f32 %v5402, %v5403
    %v5405 = vrot.slane %v5404, 1
    %v5406 = vadd.f32 %v5404, %v5405
    %v5407 = vsel %vm427, %v5227, 0.0
    %v5408 = vsel %vm427, %v5228, 0.0
    %v5409 = vadd.f32 %v5407, %v5408
    %v5410 = vsel %vm427, %v5229, 0.0
    %v5411 = vadd.f32 %v5409, %v5410
    %v5412 = vsel %vm427, %v5230, 0.0
    %v5413 = vadd.f32 %v5411, %v5412
    %v5414 = vsel %vm427, %v5231, 0.0
    %v5415 = vadd.f32 %v5413, %v5414
    %v5416 = vsel %vm427, %v5232, 0.0
    %v5417 = vadd.f32 %v5415, %v5416
    %v5418 = vsel %vm427, %v5233, 0.0
    %v5419 = vadd.f32 %v5417, %v5418
    %v5420 = vsel %vm427, %v5234, 0.0
    %v5421 = vadd.f32 %v5419, %v5420
    %v5422 = vrot.slane %v5421, 4
    %v5423 = vadd.f32 %v5421, %v5422
    %v5424 = vrot.slane %v5423, 2
    %v5425 = vadd.f32 %v5423, %v5424
    %v5426 = vrot.slane %v5425, 1
    %v5427 = vadd.f32 %v5425, %v5426
    %v5428 = vsel %vm427, %v5235, 0.0
    %v5429 = vsel %vm427, %v5236, 0.0
    %v5430 = vadd.f32 %v5428, %v5429
    %v5431 = vsel %vm427, %v5237, 0.0
    %v5432 = vadd.f32 %v5430, %v5431
    %v5433 = vsel %vm427, %v5238, 0.0
    %v5434 = vadd.f32 %v5432, %v5433
    %v5435 = vsel %vm427, %v5239, 0.0
    %v5436 = vadd.f32 %v5434, %v5435
    %v5437 = vsel %vm427, %v5240, 0.0
    %v5438 = vadd.f32 %v5436, %v5437
    %v5439 = vsel %vm427, %v5241, 0.0
    %v5440 = vadd.f32 %v5438, %v5439
    %v5441 = vsel %vm427, %v5242, 0.0
    %v5442 = vadd.f32 %v5440, %v5441
    %v5443 = vrot.slane %v5442, 4
    %v5444 = vadd.f32 %v5442, %v5443
    %v5445 = vrot.slane %v5444, 2
    %v5446 = vadd.f32 %v5444, %v5445
    %v5447 = vrot.slane %v5446, 1
    %v5448 = vadd.f32 %v5446, %v5447
    %v5449 = vsel %vm427, %v5243, 0.0
    %v5450 = vsel %vm427, %v5244, 0.0
    %v5451 = vadd.f32 %v5449, %v5450
    %v5452 = vsel %vm427, %v5245, 0.0
    %v5453 = vadd.f32 %v5451, %v5452
    %v5454 = vsel %vm427, %v5246, 0.0
    %v5455 = vadd.f32 %v5453, %v5454
    %v5456 = vsel %vm427, %v5247, 0.0
    %v5457 = vadd.f32 %v5455, %v5456
    %v5458 = vsel %vm427, %v5248, 0.0
    %v5459 = vadd.f32 %v5457, %v5458
    %v5460 = vsel %vm427, %v5249, 0.0
    %v5461 = vadd.f32 %v5459, %v5460
    %v5462 = vsel %vm427, %v5250, 0.0
    %v5463 = vadd.f32 %v5461, %v5462
    %v5464 = vrot.slane %v5463, 4
    %v5465 = vadd.f32 %v5463, %v5464
    %v5466 = vrot.slane %v5465, 2
    %v5467 = vadd.f32 %v5465, %v5466
    %v5468 = vrot.slane %v5467, 1
    %v5469 = vadd.f32 %v5467, %v5468
    %v5470 = vsel %vm427, %v5251, 0.0
    %v5471 = vsel %vm427, %v5252, 0.0
    %v5472 = vadd.f32 %v5470, %v5471
    %v5473 = vsel %vm427, %v5253, 0.0
    %v5474 = vadd.f32 %v5472, %v5473
    %v5475 = vsel %vm427, %v5254, 0.0
    %v5476 = vadd.f32 %v5474, %v5475
    %v5477 = vsel %vm427, %v5255, 0.0
    %v5478 = vadd.f32 %v5476, %v5477
    %v5479 = vsel %vm427, %v5256, 0.0
    %v5480 = vadd.f32 %v5478, %v5479
    %v5481 = vsel %vm427, %v5257, 0.0
    %v5482 = vadd.f32 %v5480, %v5481
    %v5483 = vsel %vm427, %v5258, 0.0
    %v5484 = vadd.f32 %v5482, %v5483
    %v5485 = vrot.slane %v5484, 4
    %v5486 = vadd.f32 %v5484, %v5485
    %v5487 = vrot.slane %v5486, 2
    %v5488 = vadd.f32 %v5486, %v5487
    %v5489 = vrot.slane %v5488, 1
    %v5490 = vadd.f32 %v5488, %v5489
    %v5491 = vsel %vm427, %v5259, 0.0
    %v5492 = vsel %vm427, %v5260, 0.0
    %v5493 = vadd.f32 %v5491, %v5492
    %v5494 = vsel %vm427, %v5261, 0.0
    %v5495 = vadd.f32 %v5493, %v5494
    %v5496 = vsel %vm427, %v5262, 0.0
    %v5497 = vadd.f32 %v5495, %v5496
    %v5498 = vsel %vm427, %v5263, 0.0
    %v5499 = vadd.f32 %v5497, %v5498
    %v5500 = vsel %vm427, %v5264, 0.0
    %v5501 = vadd.f32 %v5499, %v5500
    %v5502 = vsel %vm427, %v5265, 0.0
    %v5503 = vadd.f32 %v5501, %v5502
    %v5504 = vsel %vm427, %v5266, 0.0
    %v5505 = vadd.f32 %v5503, %v5504
    %v5506 = vrot.slane %v5505, 4
    %v5507 = vadd.f32 %v5505, %v5506
    %v5508 = vrot.slane %v5507, 2
    %v5509 = vadd.f32 %v5507, %v5508
    %v5510 = vrot.slane %v5509, 1
    %v5511 = vadd.f32 %v5509, %v5510
    %v5512 = vsel %vm427, %v5267, 0.0
    %v5513 = vsel %vm427, %v5268, 0.0
    %v5514 = vadd.f32 %v5512, %v5513
    %v5515 = vsel %vm427, %v5269, 0.0
    %v5516 = vadd.f32 %v5514, %v5515
    %v5517 = vsel %vm427, %v5270, 0.0
    %v5518 = vadd.f32 %v5516, %v5517
    %v5519 = vsel %vm427, %v5271, 0.0
    %v5520 = vadd.f32 %v5518, %v5519
    %v5521 = vsel %vm427, %v5272, 0.0
    %v5522 = vadd.f32 %v5520, %v5521
    %v5523 = vsel %vm427, %v5273, 0.0
    %v5524 = vadd.f32 %v5522, %v5523
    %v5525 = vsel %vm427, %v5274, 0.0
    %v5526 = vadd.f32 %v5524, %v5525
    %v5527 = vrot.slane %v5526, 4
    %v5528 = vadd.f32 %v5526, %v5527
    %v5529 = vrot.slane %v5528, 2
    %v5530 = vadd.f32 %v5528, %v5529
    %v5531 = vrot.slane %v5530, 1
    %v5532 = vadd.f32 %v5530, %v5531
    %v5533 = vsel %vm427, %v5275, 0.0
    %v5534 = vsel %vm427, %v5276, 0.0
    %v5535 = vadd.f32 %v5533, %v5534
    %v5536 = vsel %vm427, %v5277, 0.0
    %v5537 = vadd.f32 %v5535, %v5536
    %v5538 = vsel %vm427, %v5278, 0.0
    %v5539 = vadd.f32 %v5537, %v5538
    %v5540 = vsel %vm427, %v5279, 0.0
    %v5541 = vadd.f32 %v5539, %v5540
    %v5542 = vsel %vm427, %v5280, 0.0
    %v5543 = vadd.f32 %v5541, %v5542
    %v5544 = vsel %vm427, %v5281, 0.0
    %v5545 = vadd.f32 %v5543, %v5544
    %v5546 = vsel %vm427, %v5282, 0.0
    %v5547 = vadd.f32 %v5545, %v5546
    %v5548 = vrot.slane %v5547, 4
    %v5549 = vadd.f32 %v5547, %v5548
    %v5550 = vrot.slane %v5549, 2
    %v5551 = vadd.f32 %v5549, %v5550
    %v5552 = vrot.slane %v5551, 1
    %v5553 = vadd.f32 %v5551, %v5552
    %v5554 = vsel %vm427, %v5283, 0.0
    %v5555 = vsel %vm427, %v5284, 0.0
    %v5556 = vadd.f32 %v5554, %v5555
    %v5557 = vsel %vm427, %v5285, 0.0
    %v5558 = vadd.f32 %v5556, %v5557
    %v5559 = vsel %vm427, %v5286, 0.0
    %v5560 = vadd.f32 %v5558, %v5559
    %v5561 = vsel %vm427, %v5287, 0.0
    %v5562 = vadd.f32 %v5560, %v5561
    %v5563 = vsel %vm427, %v5288, 0.0
    %v5564 = vadd.f32 %v5562, %v5563
    %v5565 = vsel %vm427, %v5289, 0.0
    %v5566 = vadd.f32 %v5564, %v5565
    %v5567 = vsel %vm427, %v5290, 0.0
    %v5568 = vadd.f32 %v5566, %v5567
    %v5569 = vrot.slane %v5568, 4
    %v5570 = vadd.f32 %v5568, %v5569
    %v5571 = vrot.slane %v5570, 2
    %v5572 = vadd.f32 %v5570, %v5571
    %v5573 = vrot.slane %v5572, 1
    %v5574 = vadd.f32 %v5572, %v5573
    %v5575 = vsel %vm427, %v5291, 0.0
    %v5576 = vsel %vm427, %v5292, 0.0
    %v5577 = vadd.f32 %v5575, %v5576
    %v5578 = vsel %vm427, %v5293, 0.0
    %v5579 = vadd.f32 %v5577, %v5578
    %v5580 = vsel %vm427, %v5294, 0.0
    %v5581 = vadd.f32 %v5579, %v5580
    %v5582 = vsel %vm427, %v5295, 0.0
    %v5583 = vadd.f32 %v5581, %v5582
    %v5584 = vsel %vm427, %v5296, 0.0
    %v5585 = vadd.f32 %v5583, %v5584
    %v5586 = vsel %vm427, %v5297, 0.0
    %v5587 = vadd.f32 %v5585, %v5586
    %v5588 = vsel %vm427, %v5298, 0.0
    %v5589 = vadd.f32 %v5587, %v5588
    %v5590 = vrot.slane %v5589, 4
    %v5591 = vadd.f32 %v5589, %v5590
    %v5592 = vrot.slane %v5591, 2
    %v5593 = vadd.f32 %v5591, %v5592
    %v5594 = vrot.slane %v5593, 1
    %v5595 = vadd.f32 %v5593, %v5594
    %v5596 = vsel %vm427, %v5299, 0.0
    %v5597 = vsel %vm427, %v5300, 0.0
    %v5598 = vadd.f32 %v5596, %v5597
    %v5599 = vsel %vm427, %v5301, 0.0
    %v5600 = vadd.f32 %v5598, %v5599
    %v5601 = vsel %vm427, %v5302, 0.0
    %v5602 = vadd.f32 %v5600, %v5601
    %v5603 = vsel %vm427, %v5303, 0.0
    %v5604 = vadd.f32 %v5602, %v5603
    %v5605 = vsel %vm427, %v5304, 0.0
    %v5606 = vadd.f32 %v5604, %v5605
    %v5607 = vsel %vm427, %v5305, 0.0
    %v5608 = vadd.f32 %v5606, %v5607
    %v5609 = vsel %vm427, %v5306, 0.0
    %v5610 = vadd.f32 %v5608, %v5609
    %v5611 = vrot.slane %v5610, 4
    %v5612 = vadd.f32 %v5610, %v5611
    %v5613 = vrot.slane %v5612, 2
    %v5614 = vadd.f32 %v5612, %v5613
    %v5615 = vrot.slane %v5614, 1
    %v5616 = vadd.f32 %v5614, %v5615
    %v5617 = vsel %vm427, %v5307, 0.0
    %v5618 = vsel %vm427, %v5308, 0.0
    %v5619 = vadd.f32 %v5617, %v5618
    %v5620 = vsel %vm427, %v5309, 0.0
    %v5621 = vadd.f32 %v5619, %v5620
    %v5622 = vsel %vm427, %v5310, 0.0
    %v5623 = vadd.f32 %v5621, %v5622
    %v5624 = vsel %vm427, %v5311, 0.0
    %v5625 = vadd.f32 %v5623, %v5624
    %v5626 = vsel %vm427, %v5312, 0.0
    %v5627 = vadd.f32 %v5625, %v5626
    %v5628 = vsel %vm427, %v5313, 0.0
    %v5629 = vadd.f32 %v5627, %v5628
    %v5630 = vsel %vm427, %v5314, 0.0
    %v5631 = vadd.f32 %v5629, %v5630
    %v5632 = vrot.slane %v5631, 4
    %v5633 = vadd.f32 %v5631, %v5632
    %v5634 = vrot.slane %v5633, 2
    %v5635 = vadd.f32 %v5633, %v5634
    %v5636 = vrot.slane %v5635, 1
    %v5637 = vadd.f32 %v5635, %v5636
    %v5638 = vsel %vm427, %v5315, 0.0
    %v5639 = vsel %vm427, %v5316, 0.0
    %v5640 = vadd.f32 %v5638, %v5639
    %v5641 = vsel %vm427, %v5317, 0.0
    %v5642 = vadd.f32 %v5640, %v5641
    %v5643 = vsel %vm427, %v5318, 0.0
    %v5644 = vadd.f32 %v5642, %v5643
    %v5645 = vsel %vm427, %v5319, 0.0
    %v5646 = vadd.f32 %v5644, %v5645
    %v5647 = vsel %vm427, %v5320, 0.0
    %v5648 = vadd.f32 %v5646, %v5647
    %v5649 = vsel %vm427, %v5321, 0.0
    %v5650 = vadd.f32 %v5648, %v5649
    %v5651 = vsel %vm427, %v5322, 0.0
    %v5652 = vadd.f32 %v5650, %v5651
    %v5653 = vrot.slane %v5652, 4
    %v5654 = vadd.f32 %v5652, %v5653
    %v5655 = vrot.slane %v5654, 2
    %v5656 = vadd.f32 %v5654, %v5655
    %v5657 = vrot.slane %v5656, 1
    %v5658 = vadd.f32 %v5656, %v5657
    %5659 = vset.pattern.permute.xlu0 1
    %5660 = vperm.xlu0 %5659, %v4427
    %v5661 = vpop.permute.xlu0 %5660
    %5663 = vset.pattern.permute.xlu0 1
    %5664 = vperm.xlu0 %5663, %v4428
    %v5665 = vpop.permute.xlu0 %5664
    %5667 = vset.pattern.permute.xlu0 1
    %5668 = vperm.xlu0 %5667, %v4429
    %v5669 = vpop.permute.xlu0 %5668
    %5671 = vset.pattern.permute.xlu0 1
    %5672 = vperm.xlu0 %5671, %v4430
    %v5673 = vpop.permute.xlu0 %5672
    %5675 = vset.pattern.permute.xlu0 1
    %5676 = vperm.xlu0 %5675, %v4431
    %v5677 = vpop.permute.xlu0 %5676
    %5679 = vset.pattern.permute.xlu0 1
    %5680 = vperm.xlu0 %5679, %v4432
    %v5681 = vpop.permute.xlu0 %5680
    %5683 = vset.pattern.permute.xlu0 1
    %5684 = vperm.xlu0 %5683, %v4433
    %v5685 = vpop.permute.xlu0 %5684
    %5687 = vset.pattern.permute.xlu0 1
    %5688 = vperm.xlu0 %5687, %v4434
    %v5689 = vpop.permute.xlu0 %5688
    %5691 = vset.pattern.permute.xlu0 1
    %5692 = vperm.xlu0 %5691, %v4435
    %v5693 = vpop.permute.xlu0 %5692
    %5695 = vset.pattern.permute.xlu0 1
    %5696 = vperm.xlu0 %5695, %v4436
    %v5697 = vpop.permute.xlu0 %5696
    %5699 = vset.pattern.permute.xlu0 1
    %5700 = vperm.xlu0 %5699, %v4437
    %v5701 = vpop.permute.xlu0 %5700
    %5703 = vset.pattern.permute.xlu0 1
    %5704 = vperm.xlu0 %5703, %v4438
    %v5705 = vpop.permute.xlu0 %5704
    %5707 = vset.pattern.permute.xlu0 1
    %5708 = vperm.xlu0 %5707, %v4439
    %v5709 = vpop.permute.xlu0 %5708
    %5711 = vset.pattern.permute.xlu0 1
    %5712 = vperm.xlu0 %5711, %v4440
    %v5713 = vpop.permute.xlu0 %5712
    %5715 = vset.pattern.permute.xlu0 1
    %5716 = vperm.xlu0 %5715, %v4441
    %v5717 = vpop.permute.xlu0 %5716
    %5719 = vset.pattern.permute.xlu0 1
    %5720 = vperm.xlu0 %5719, %v4442
    %v5721 = vpop.permute.xlu0 %5720
    %5723 = vset.pattern.permute.xlu0 1
    %5724 = vperm.xlu0 %5723, %v4443
    %v5725 = vpop.permute.xlu0 %5724
    %5727 = vset.pattern.permute.xlu0 1
    %5728 = vperm.xlu0 %5727, %v4444
    %v5729 = vpop.permute.xlu0 %5728
    %5731 = vset.pattern.permute.xlu0 1
    %5732 = vperm.xlu0 %5731, %v4445
    %v5733 = vpop.permute.xlu0 %5732
    %5735 = vset.pattern.permute.xlu0 1
    %5736 = vperm.xlu0 %5735, %v4446
    %v5737 = vpop.permute.xlu0 %5736
    %5739 = vset.pattern.permute.xlu0 1
    %5740 = vperm.xlu0 %5739, %v4447
    %v5741 = vpop.permute.xlu0 %5740
    %5743 = vset.pattern.permute.xlu0 1
    %5744 = vperm.xlu0 %5743, %v4448
    %v5745 = vpop.permute.xlu0 %5744
    %5747 = vset.pattern.permute.xlu0 1
    %5748 = vperm.xlu0 %5747, %v4449
    %v5749 = vpop.permute.xlu0 %5748
    %5751 = vset.pattern.permute.xlu0 1
    %5752 = vperm.xlu0 %5751, %v4450
    %v5753 = vpop.permute.xlu0 %5752
    %5755 = vset.pattern.permute.xlu0 1
    %5756 = vperm.xlu0 %5755, %v4451
    %v5757 = vpop.permute.xlu0 %5756
    %5759 = vset.pattern.permute.xlu0 1
    %5760 = vperm.xlu0 %5759, %v4452
    %v5761 = vpop.permute.xlu0 %5760
    %5763 = vset.pattern.permute.xlu0 1
    %5764 = vperm.xlu0 %5763, %v4453
    %v5765 = vpop.permute.xlu0 %5764
    %5767 = vset.pattern.permute.xlu0 1
    %5768 = vperm.xlu0 %5767, %v4454
    %v5769 = vpop.permute.xlu0 %5768
    %5771 = vset.pattern.permute.xlu0 1
    %5772 = vperm.xlu0 %5771, %v4455
    %v5773 = vpop.permute.xlu0 %5772
    %5775 = vset.pattern.permute.xlu0 1
    %5776 = vperm.xlu0 %5775, %v4456
    %v5777 = vpop.permute.xlu0 %5776
    %5779 = vset.pattern.permute.xlu0 1
    %5780 = vperm.xlu0 %5779, %v4457
    %v5781 = vpop.permute.xlu0 %5780
    %5783 = vset.pattern.permute.xlu0 1
    %5784 = vperm.xlu0 %5783, %v4458
    %v5785 = vpop.permute.xlu0 %5784
    %5787 = vset.pattern.permute.xlu0 1
    %5788 = vperm.xlu0 %5787, %v4459
    %v5789 = vpop.permute.xlu0 %5788
    %5791 = vset.pattern.permute.xlu0 1
    %5792 = vperm.xlu0 %5791, %v4460
    %v5793 = vpop.permute.xlu0 %5792
    %5795 = vset.pattern.permute.xlu0 1
    %5796 = vperm.xlu0 %5795, %v4461
    %v5797 = vpop.permute.xlu0 %5796
    %5799 = vset.pattern.permute.xlu0 1
    %5800 = vperm.xlu0 %5799, %v4462
    %v5801 = vpop.permute.xlu0 %5800
    %5803 = vset.pattern.permute.xlu0 1
    %5804 = vperm.xlu0 %5803, %v4463
    %v5805 = vpop.permute.xlu0 %5804
    %5807 = vset.pattern.permute.xlu0 1
    %5808 = vperm.xlu0 %5807, %v4464
    %v5809 = vpop.permute.xlu0 %5808
    %5811 = vset.pattern.permute.xlu0 1
    %5812 = vperm.xlu0 %5811, %v4465
    %v5813 = vpop.permute.xlu0 %5812
    %5815 = vset.pattern.permute.xlu0 1
    %5816 = vperm.xlu0 %5815, %v4466
    %v5817 = vpop.permute.xlu0 %5816
    %5819 = vset.pattern.permute.xlu0 1
    %5820 = vperm.xlu0 %5819, %v4467
    %v5821 = vpop.permute.xlu0 %5820
    %5823 = vset.pattern.permute.xlu0 1
    %5824 = vperm.xlu0 %5823, %v4468
    %v5825 = vpop.permute.xlu0 %5824
    %5827 = vset.pattern.permute.xlu0 1
    %5828 = vperm.xlu0 %5827, %v4469
    %v5829 = vpop.permute.xlu0 %5828
    %5831 = vset.pattern.permute.xlu0 1
    %5832 = vperm.xlu0 %5831, %v4470
    %v5833 = vpop.permute.xlu0 %5832
    %5835 = vset.pattern.permute.xlu0 1
    %5836 = vperm.xlu0 %5835, %v4471
    %v5837 = vpop.permute.xlu0 %5836
    %5839 = vset.pattern.permute.xlu0 1
    %5840 = vperm.xlu0 %5839, %v4472
    %v5841 = vpop.permute.xlu0 %5840
    %5843 = vset.pattern.permute.xlu0 1
    %5844 = vperm.xlu0 %5843, %v4473
    %v5845 = vpop.permute.xlu0 %5844
    %5847 = vset.pattern.permute.xlu0 1
    %5848 = vperm.xlu0 %5847, %v4474
    %v5849 = vpop.permute.xlu0 %5848
    %5851 = vset.pattern.permute.xlu0 1
    %5852 = vperm.xlu0 %5851, %v4475
    %v5853 = vpop.permute.xlu0 %5852
    %5855 = vset.pattern.permute.xlu0 1
    %5856 = vperm.xlu0 %5855, %v4476
    %v5857 = vpop.permute.xlu0 %5856
    %5859 = vset.pattern.permute.xlu0 1
    %5860 = vperm.xlu0 %5859, %v4477
    %v5861 = vpop.permute.xlu0 %5860
    %5863 = vset.pattern.permute.xlu0 1
    %5864 = vperm.xlu0 %5863, %v4478
    %v5865 = vpop.permute.xlu0 %5864
    %5867 = vset.pattern.permute.xlu0 1
    %5868 = vperm.xlu0 %5867, %v4479
    %v5869 = vpop.permute.xlu0 %5868
    %5871 = vset.pattern.permute.xlu0 1
    %5872 = vperm.xlu0 %5871, %v4480
    %v5873 = vpop.permute.xlu0 %5872
    %5875 = vset.pattern.permute.xlu0 1
    %5876 = vperm.xlu0 %5875, %v4481
    %v5877 = vpop.permute.xlu0 %5876
    %5879 = vset.pattern.permute.xlu0 1
    %5880 = vperm.xlu0 %5879, %v4482
    %v5881 = vpop.permute.xlu0 %5880
    %5883 = vset.pattern.permute.xlu0 1
    %5884 = vperm.xlu0 %5883, %v4483
    %v5885 = vpop.permute.xlu0 %5884
    %5887 = vset.pattern.permute.xlu0 1
    %5888 = vperm.xlu0 %5887, %v4484
    %v5889 = vpop.permute.xlu0 %5888
    %5891 = vset.pattern.permute.xlu0 1
    %5892 = vperm.xlu0 %5891, %v4485
    %v5893 = vpop.permute.xlu0 %5892
    %5895 = vset.pattern.permute.xlu0 1
    %5896 = vperm.xlu0 %5895, %v4486
    %v5897 = vpop.permute.xlu0 %5896
    %5899 = vset.pattern.permute.xlu0 1
    %5900 = vperm.xlu0 %5899, %v4487
    %v5901 = vpop.permute.xlu0 %5900
    %5903 = vset.pattern.permute.xlu0 1
    %5904 = vperm.xlu0 %5903, %v4488
    %v5905 = vpop.permute.xlu0 %5904
    %5907 = vset.pattern.permute.xlu0 1
    %5908 = vperm.xlu0 %5907, %v4489
    %v5909 = vpop.permute.xlu0 %5908
    %5911 = vset.pattern.permute.xlu0 1
    %5912 = vperm.xlu0 %5911, %v4490
    %v5913 = vpop.permute.xlu0 %5912
    %5915 = vset.pattern.permute.xlu0 1
    %5916 = vperm.xlu0 %5915, %v4491
    %v5917 = vpop.permute.xlu0 %5916
    %5919 = vset.pattern.permute.xlu0 1
    %5920 = vperm.xlu0 %5919, %v4492
    %v5921 = vpop.permute.xlu0 %5920
    %5923 = vset.pattern.permute.xlu0 1
    %5924 = vperm.xlu0 %5923, %v4493
    %v5925 = vpop.permute.xlu0 %5924
    %5927 = vset.pattern.permute.xlu0 1
    %5928 = vperm.xlu0 %5927, %v4494
    %v5929 = vpop.permute.xlu0 %5928
    %5931 = vset.pattern.permute.xlu0 1
    %5932 = vperm.xlu0 %5931, %v4495
    %v5933 = vpop.permute.xlu0 %5932
    %5935 = vset.pattern.permute.xlu0 1
    %5936 = vperm.xlu0 %5935, %v4496
    %v5937 = vpop.permute.xlu0 %5936
    %5939 = vset.pattern.permute.xlu0 1
    %5940 = vperm.xlu0 %5939, %v4497
    %v5941 = vpop.permute.xlu0 %5940
    %5943 = vset.pattern.permute.xlu0 1
    %5944 = vperm.xlu0 %5943, %v4498
    %v5945 = vpop.permute.xlu0 %5944
    %5947 = vset.pattern.permute.xlu0 1
    %5948 = vperm.xlu0 %5947, %v4499
    %v5949 = vpop.permute.xlu0 %5948
    %5951 = vset.pattern.permute.xlu0 1
    %5952 = vperm.xlu0 %5951, %v4500
    %v5953 = vpop.permute.xlu0 %5952
    %5955 = vset.pattern.permute.xlu0 1
    %5956 = vperm.xlu0 %5955, %v4501
    %v5957 = vpop.permute.xlu0 %5956
    %5959 = vset.pattern.permute.xlu0 1
    %5960 = vperm.xlu0 %5959, %v4502
    %v5961 = vpop.permute.xlu0 %5960
    %5963 = vset.pattern.permute.xlu0 1
    %5964 = vperm.xlu0 %5963, %v4503
    %v5965 = vpop.permute.xlu0 %5964
    %5967 = vset.pattern.permute.xlu0 1
    %5968 = vperm.xlu0 %5967, %v4504
    %v5969 = vpop.permute.xlu0 %5968
    %5971 = vset.pattern.permute.xlu0 1
    %5972 = vperm.xlu0 %5971, %v4505
    %v5973 = vpop.permute.xlu0 %5972
    %5975 = vset.pattern.permute.xlu0 1
    %5976 = vperm.xlu0 %5975, %v4506
    %v5977 = vpop.permute.xlu0 %5976
    %5979 = vset.pattern.permute.xlu0 1
    %5980 = vperm.xlu0 %5979, %v4507
    %v5981 = vpop.permute.xlu0 %5980
    %5983 = vset.pattern.permute.xlu0 1
    %5984 = vperm.xlu0 %5983, %v4508
    %v5985 = vpop.permute.xlu0 %5984
    %5987 = vset.pattern.permute.xlu0 1
    %5988 = vperm.xlu0 %5987, %v4509
    %v5989 = vpop.permute.xlu0 %5988
    %5991 = vset.pattern.permute.xlu0 1
    %5992 = vperm.xlu0 %5991, %v4510
    %v5993 = vpop.permute.xlu0 %5992
    %5995 = vset.pattern.permute.xlu0 1
    %5996 = vperm.xlu0 %5995, %v4511
    %v5997 = vpop.permute.xlu0 %5996
    %5999 = vset.pattern.permute.xlu0 1
    %6000 = vperm.xlu0 %5999, %v4512
    %v6001 = vpop.permute.xlu0 %6000
    %6003 = vset.pattern.permute.xlu0 1
    %6004 = vperm.xlu0 %6003, %v4513
    %v6005 = vpop.permute.xlu0 %6004
    %6007 = vset.pattern.permute.xlu0 1
    %6008 = vperm.xlu0 %6007, %v4514
    %v6009 = vpop.permute.xlu0 %6008
    %6011 = vset.pattern.permute.xlu0 1
    %6012 = vperm.xlu0 %6011, %v4515
    %v6013 = vpop.permute.xlu0 %6012
    %6015 = vset.pattern.permute.xlu0 1
    %6016 = vperm.xlu0 %6015, %v4516
    %v6017 = vpop.permute.xlu0 %6016
    %6019 = vset.pattern.permute.xlu0 1
    %6020 = vperm.xlu0 %6019, %v4517
    %v6021 = vpop.permute.xlu0 %6020
    %6023 = vset.pattern.permute.xlu0 1
    %6024 = vperm.xlu0 %6023, %v4518
    %v6025 = vpop.permute.xlu0 %6024
    %6027 = vset.pattern.permute.xlu0 1
    %6028 = vperm.xlu0 %6027, %v4519
    %v6029 = vpop.permute.xlu0 %6028
    %6031 = vset.pattern.permute.xlu0 1
    %6032 = vperm.xlu0 %6031, %v4520
    %v6033 = vpop.permute.xlu0 %6032
    %6035 = vset.pattern.permute.xlu0 1
    %6036 = vperm.xlu0 %6035, %v4521
    %v6037 = vpop.permute.xlu0 %6036
    %6039 = vset.pattern.permute.xlu0 1
    %6040 = vperm.xlu0 %6039, %v4522
    %v6041 = vpop.permute.xlu0 %6040
    %6043 = vset.pattern.permute.xlu0 1
    %6044 = vperm.xlu0 %6043, %v4523
    %v6045 = vpop.permute.xlu0 %6044
    %6047 = vset.pattern.permute.xlu0 1
    %6048 = vperm.xlu0 %6047, %v4524
    %v6049 = vpop.permute.xlu0 %6048
    %6051 = vset.pattern.permute.xlu0 1
    %6052 = vperm.xlu0 %6051, %v4525
    %v6053 = vpop.permute.xlu0 %6052
    %6055 = vset.pattern.permute.xlu0 1
    %6056 = vperm.xlu0 %6055, %v4526
    %v6057 = vpop.permute.xlu0 %6056
    %6059 = vset.pattern.permute.xlu0 1
    %6060 = vperm.xlu0 %6059, %v4527
    %v6061 = vpop.permute.xlu0 %6060
    %6063 = vset.pattern.permute.xlu0 1
    %6064 = vperm.xlu0 %6063, %v4528
    %v6065 = vpop.permute.xlu0 %6064
    %6067 = vset.pattern.permute.xlu0 1
    %6068 = vperm.xlu0 %6067, %v4529
    %v6069 = vpop.permute.xlu0 %6068
    %6071 = vset.pattern.permute.xlu0 1
    %6072 = vperm.xlu0 %6071, %v4530
    %v6073 = vpop.permute.xlu0 %6072
    %6075 = vset.pattern.permute.xlu0 1
    %6076 = vperm.xlu0 %6075, %v4531
    %v6077 = vpop.permute.xlu0 %6076
    %6079 = vset.pattern.permute.xlu0 1
    %6080 = vperm.xlu0 %6079, %v4532
    %v6081 = vpop.permute.xlu0 %6080
    %6083 = vset.pattern.permute.xlu0 1
    %6084 = vperm.xlu0 %6083, %v4533
    %v6085 = vpop.permute.xlu0 %6084
    %6087 = vset.pattern.permute.xlu0 1
    %6088 = vperm.xlu0 %6087, %v4534
    %v6089 = vpop.permute.xlu0 %6088
    %6091 = vset.pattern.permute.xlu0 1
    %6092 = vperm.xlu0 %6091, %v4535
    %v6093 = vpop.permute.xlu0 %6092
    %6095 = vset.pattern.permute.xlu0 1
    %6096 = vperm.xlu0 %6095, %v4536
    %v6097 = vpop.permute.xlu0 %6096
    %6099 = vset.pattern.permute.xlu0 1
    %6100 = vperm.xlu0 %6099, %v4537
    %v6101 = vpop.permute.xlu0 %6100
    %6103 = vset.pattern.permute.xlu0 1
    %6104 = vperm.xlu0 %6103, %v4538
    %v6105 = vpop.permute.xlu0 %6104
    %6107 = vset.pattern.permute.xlu0 1
    %6108 = vperm.xlu0 %6107, %v4539
    %v6109 = vpop.permute.xlu0 %6108
    %6111 = vset.pattern.permute.xlu0 1
    %6112 = vperm.xlu0 %6111, %v4540
    %v6113 = vpop.permute.xlu0 %6112
    %6115 = vset.pattern.permute.xlu0 1
    %6116 = vperm.xlu0 %6115, %v4541
    %v6117 = vpop.permute.xlu0 %6116
    %6119 = vset.pattern.permute.xlu0 1
    %6120 = vperm.xlu0 %6119, %v4542
    %v6121 = vpop.permute.xlu0 %6120
    %6123 = vset.pattern.permute.xlu0 1
    %6124 = vperm.xlu0 %6123, %v4543
    %v6125 = vpop.permute.xlu0 %6124
    %6127 = vset.pattern.permute.xlu0 1
    %6128 = vperm.xlu0 %6127, %v4544
    %v6129 = vpop.permute.xlu0 %6128
    %6131 = vset.pattern.permute.xlu0 1
    %6132 = vperm.xlu0 %6131, %v4545
    %v6133 = vpop.permute.xlu0 %6132
    %6135 = vset.pattern.permute.xlu0 1
    %6136 = vperm.xlu0 %6135, %v4546
    %v6137 = vpop.permute.xlu0 %6136
    %6139 = vset.pattern.permute.xlu0 1
    %6140 = vperm.xlu0 %6139, %v4547
    %v6141 = vpop.permute.xlu0 %6140
    %6143 = vset.pattern.permute.xlu0 1
    %6144 = vperm.xlu0 %6143, %v4548
    %v6145 = vpop.permute.xlu0 %6144
    %6147 = vset.pattern.permute.xlu0 1
    %6148 = vperm.xlu0 %6147, %v4549
    %v6149 = vpop.permute.xlu0 %6148
    %6151 = vset.pattern.permute.xlu0 1
    %6152 = vperm.xlu0 %6151, %v4550
    %v6153 = vpop.permute.xlu0 %6152
    %6155 = vset.pattern.permute.xlu0 1
    %6156 = vperm.xlu0 %6155, %v4551
    %v6157 = vpop.permute.xlu0 %6156
    %6159 = vset.pattern.permute.xlu0 1
    %6160 = vperm.xlu0 %6159, %v4552
    %v6161 = vpop.permute.xlu0 %6160
    %6163 = vset.pattern.permute.xlu0 1
    %6164 = vperm.xlu0 %6163, %v4553
    %v6165 = vpop.permute.xlu0 %6164
    %6167 = vset.pattern.permute.xlu0 1
    %6168 = vperm.xlu0 %6167, %v4554
    %v6169 = vpop.permute.xlu0 %6168
    %v6171 = vmul.f32 %v5661, %v1510
    %v6172 = vmul.f32 %v5665, %v1513
    %v6173 = vmul.f32 %v5669, %v1518
    %v6174 = vmul.f32 %v5673, %v1521
    %v6175 = vmul.f32 %v5677, %v1526
    %v6176 = vmul.f32 %v5681, %v1529
    %v6177 = vmul.f32 %v5685, %v1534
    %v6178 = vmul.f32 %v5689, %v1537
    %v6179 = vmul.f32 %v5693, %v1542
    %v6180 = vmul.f32 %v5697, %v1545
    %v6181 = vmul.f32 %v5701, %v1550
    %v6182 = vmul.f32 %v5705, %v1553
    %v6183 = vmul.f32 %v5709, %v1558
    %v6184 = vmul.f32 %v5713, %v1561
    %v6185 = vmul.f32 %v5717, %v1566
    %v6186 = vmul.f32 %v5721, %v1569
    %v6187 = vmul.f32 %v5725, %v1574
    %v6188 = vmul.f32 %v5729, %v1577
    %v6189 = vmul.f32 %v5733, %v1582
    %v6190 = vmul.f32 %v5737, %v1585
    %v6191 = vmul.f32 %v5741, %v1590
    %v6192 = vmul.f32 %v5745, %v1593
    %v6193 = vmul.f32 %v5749, %v1598
    %v6194 = vmul.f32 %v5753, %v1601
    %v6195 = vmul.f32 %v5757, %v1606
    %v6196 = vmul.f32 %v5761, %v1609
    %v6197 = vmul.f32 %v5765, %v1614
    %v6198 = vmul.f32 %v5769, %v1617
    %v6199 = vmul.f32 %v5773, %v1622
    %v6200 = vmul.f32 %v5777, %v1625
    %v6201 = vmul.f32 %v5781, %v1630
    %v6202 = vmul.f32 %v5785, %v1633
    %v6203 = vmul.f32 %v5789, %v1638
    %v6204 = vmul.f32 %v5793, %v1641
    %v6205 = vmul.f32 %v5797, %v1646
    %v6206 = vmul.f32 %v5801, %v1649
    %v6207 = vmul.f32 %v5805, %v1654
    %v6208 = vmul.f32 %v5809, %v1657
    %v6209 = vmul.f32 %v5813, %v1662
    %v6210 = vmul.f32 %v5817, %v1665
    %v6211 = vmul.f32 %v5821, %v1670
    %v6212 = vmul.f32 %v5825, %v1673
    %v6213 = vmul.f32 %v5829, %v1678
    %v6214 = vmul.f32 %v5833, %v1681
    %v6215 = vmul.f32 %v5837, %v1686
    %v6216 = vmul.f32 %v5841, %v1689
    %v6217 = vmul.f32 %v5845, %v1694
    %v6218 = vmul.f32 %v5849, %v1697
    %v6219 = vmul.f32 %v5853, %v1702
    %v6220 = vmul.f32 %v5857, %v1705
    %v6221 = vmul.f32 %v5861, %v1710
    %v6222 = vmul.f32 %v5865, %v1713
    %v6223 = vmul.f32 %v5869, %v1718
    %v6224 = vmul.f32 %v5873, %v1721
    %v6225 = vmul.f32 %v5877, %v1726
    %v6226 = vmul.f32 %v5881, %v1729
    %v6227 = vmul.f32 %v5885, %v1734
    %v6228 = vmul.f32 %v5889, %v1737
    %v6229 = vmul.f32 %v5893, %v1742
    %v6230 = vmul.f32 %v5897, %v1745
    %v6231 = vmul.f32 %v5901, %v1750
    %v6232 = vmul.f32 %v5905, %v1753
    %v6233 = vmul.f32 %v5909, %v1758
    %v6234 = vmul.f32 %v5913, %v1761
    %v6235 = vmul.f32 %v5917, %v1766
    %v6236 = vmul.f32 %v5921, %v1769
    %v6237 = vmul.f32 %v5925, %v1774
    %v6238 = vmul.f32 %v5929, %v1777
    %v6239 = vmul.f32 %v5933, %v1782
    %v6240 = vmul.f32 %v5937, %v1785
    %v6241 = vmul.f32 %v5941, %v1790
    %v6242 = vmul.f32 %v5945, %v1793
    %v6243 = vmul.f32 %v5949, %v1798
    %v6244 = vmul.f32 %v5953, %v1801
    %v6245 = vmul.f32 %v5957, %v1806
    %v6246 = vmul.f32 %v5961, %v1809
    %v6247 = vmul.f32 %v5965, %v1814
    %v6248 = vmul.f32 %v5969, %v1817
    %v6249 = vmul.f32 %v5973, %v1822
    %v6250 = vmul.f32 %v5977, %v1825
    %v6251 = vmul.f32 %v5981, %v1830
    %v6252 = vmul.f32 %v5985, %v1833
    %v6253 = vmul.f32 %v5989, %v1838
    %v6254 = vmul.f32 %v5993, %v1841
    %v6255 = vmul.f32 %v5997, %v1846
    %v6256 = vmul.f32 %v6001, %v1849
    %v6257 = vmul.f32 %v6005, %v1854
    %v6258 = vmul.f32 %v6009, %v1857
    %v6259 = vmul.f32 %v6013, %v1862
    %v6260 = vmul.f32 %v6017, %v1865
    %v6261 = vmul.f32 %v6021, %v1870
    %v6262 = vmul.f32 %v6025, %v1873
    %v6263 = vmul.f32 %v6029, %v1878
    %v6264 = vmul.f32 %v6033, %v1881
    %v6265 = vmul.f32 %v6037, %v1886
    %v6266 = vmul.f32 %v6041, %v1889
    %v6267 = vmul.f32 %v6045, %v1894
    %v6268 = vmul.f32 %v6049, %v1897
    %v6269 = vmul.f32 %v6053, %v1902
    %v6270 = vmul.f32 %v6057, %v1905
    %v6271 = vmul.f32 %v6061, %v1910
    %v6272 = vmul.f32 %v6065, %v1913
    %v6273 = vmul.f32 %v6069, %v1918
    %v6274 = vmul.f32 %v6073, %v1921
    %v6275 = vmul.f32 %v6077, %v1926
    %v6276 = vmul.f32 %v6081, %v1929
    %v6277 = vmul.f32 %v6085, %v1934
    %v6278 = vmul.f32 %v6089, %v1937
    %v6279 = vmul.f32 %v6093, %v1942
    %v6280 = vmul.f32 %v6097, %v1945
    %v6281 = vmul.f32 %v6101, %v1950
    %v6282 = vmul.f32 %v6105, %v1953
    %v6283 = vmul.f32 %v6109, %v1958
    %v6284 = vmul.f32 %v6113, %v1961
    %v6285 = vmul.f32 %v6117, %v1966
    %v6286 = vmul.f32 %v6121, %v1969
    %v6287 = vmul.f32 %v6125, %v1974
    %v6288 = vmul.f32 %v6129, %v1977
    %v6289 = vmul.f32 %v6133, %v1982
    %v6290 = vmul.f32 %v6137, %v1985
    %v6291 = vmul.f32 %v6141, %v1990
    %v6292 = vmul.f32 %v6145, %v1993
    %v6293 = vmul.f32 %v6149, %v1998
    %v6294 = vmul.f32 %v6153, %v2001
    %v6295 = vmul.f32 %v6157, %v2006
    %v6296 = vmul.f32 %v6161, %v2009
    %v6297 = vmul.f32 %v6165, %v2014
    %v6298 = vmul.f32 %v6169, %v2017
    %v6299 = vsel %vm427, %v6171, 0.0
    %v6300 = vsel %vm427, %v6172, 0.0
    %v6301 = vadd.f32 %v6299, %v6300
    %v6302 = vsel %vm427, %v6173, 0.0
    %v6303 = vadd.f32 %v6301, %v6302
    %v6304 = vsel %vm427, %v6174, 0.0
    %v6305 = vadd.f32 %v6303, %v6304
    %v6306 = vsel %vm427, %v6175, 0.0
    %v6307 = vadd.f32 %v6305, %v6306
    %v6308 = vsel %vm427, %v6176, 0.0
    %v6309 = vadd.f32 %v6307, %v6308
    %v6310 = vsel %vm427, %v6177, 0.0
    %v6311 = vadd.f32 %v6309, %v6310
    %v6312 = vsel %vm427, %v6178, 0.0
    %v6313 = vadd.f32 %v6311, %v6312
    %v6314 = vrot.slane %v6313, 4
    %v6315 = vadd.f32 %v6313, %v6314
    %v6316 = vrot.slane %v6315, 2
    %v6317 = vadd.f32 %v6315, %v6316
    %v6318 = vrot.slane %v6317, 1
    %v6319 = vadd.f32 %v6317, %v6318
    %v6320 = vsel %vm427, %v6179, 0.0
    %v6321 = vsel %vm427, %v6180, 0.0
    %v6322 = vadd.f32 %v6320, %v6321
    %v6323 = vsel %vm427, %v6181, 0.0
    %v6324 = vadd.f32 %v6322, %v6323
    %v6325 = vsel %vm427, %v6182, 0.0
    %v6326 = vadd.f32 %v6324, %v6325
    %v6327 = vsel %vm427, %v6183, 0.0
    %v6328 = vadd.f32 %v6326, %v6327
    %v6329 = vsel %vm427, %v6184, 0.0
    %v6330 = vadd.f32 %v6328, %v6329
    %v6331 = vsel %vm427, %v6185, 0.0
    %v6332 = vadd.f32 %v6330, %v6331
    %v6333 = vsel %vm427, %v6186, 0.0
    %v6334 = vadd.f32 %v6332, %v6333
    %v6335 = vrot.slane %v6334, 4
    %v6336 = vadd.f32 %v6334, %v6335
    %v6337 = vrot.slane %v6336, 2
    %v6338 = vadd.f32 %v6336, %v6337
    %v6339 = vrot.slane %v6338, 1
    %v6340 = vadd.f32 %v6338, %v6339
    %v6341 = vsel %vm427, %v6187, 0.0
    %v6342 = vsel %vm427, %v6188, 0.0
    %v6343 = vadd.f32 %v6341, %v6342
    %v6344 = vsel %vm427, %v6189, 0.0
    %v6345 = vadd.f32 %v6343, %v6344
    %v6346 = vsel %vm427, %v6190, 0.0
    %v6347 = vadd.f32 %v6345, %v6346
    %v6348 = vsel %vm427, %v6191, 0.0
    %v6349 = vadd.f32 %v6347, %v6348
    %v6350 = vsel %vm427, %v6192, 0.0
    %v6351 = vadd.f32 %v6349, %v6350
    %v6352 = vsel %vm427, %v6193, 0.0
    %v6353 = vadd.f32 %v6351, %v6352
    %v6354 = vsel %vm427, %v6194, 0.0
    %v6355 = vadd.f32 %v6353, %v6354
    %v6356 = vrot.slane %v6355, 4
    %v6357 = vadd.f32 %v6355, %v6356
    %v6358 = vrot.slane %v6357, 2
    %v6359 = vadd.f32 %v6357, %v6358
    %v6360 = vrot.slane %v6359, 1
    %v6361 = vadd.f32 %v6359, %v6360
    %v6362 = vsel %vm427, %v6195, 0.0
    %v6363 = vsel %vm427, %v6196, 0.0
    %v6364 = vadd.f32 %v6362, %v6363
    %v6365 = vsel %vm427, %v6197, 0.0
    %v6366 = vadd.f32 %v6364, %v6365
    %v6367 = vsel %vm427, %v6198, 0.0
    %v6368 = vadd.f32 %v6366, %v6367
    %v6369 = vsel %vm427, %v6199, 0.0
    %v6370 = vadd.f32 %v6368, %v6369
    %v6371 = vsel %vm427, %v6200, 0.0
    %v6372 = vadd.f32 %v6370, %v6371
    %v6373 = vsel %vm427, %v6201, 0.0
    %v6374 = vadd.f32 %v6372, %v6373
    %v6375 = vsel %vm427, %v6202, 0.0
    %v6376 = vadd.f32 %v6374, %v6375
    %v6377 = vrot.slane %v6376, 4
    %v6378 = vadd.f32 %v6376, %v6377
    %v6379 = vrot.slane %v6378, 2
    %v6380 = vadd.f32 %v6378, %v6379
    %v6381 = vrot.slane %v6380, 1
    %v6382 = vadd.f32 %v6380, %v6381
    %v6383 = vsel %vm427, %v6203, 0.0
    %v6384 = vsel %vm427, %v6204, 0.0
    %v6385 = vadd.f32 %v6383, %v6384
    %v6386 = vsel %vm427, %v6205, 0.0
    %v6387 = vadd.f32 %v6385, %v6386
    %v6388 = vsel %vm427, %v6206, 0.0
    %v6389 = vadd.f32 %v6387, %v6388
    %v6390 = vsel %vm427, %v6207, 0.0
    %v6391 = vadd.f32 %v6389, %v6390
    %v6392 = vsel %vm427, %v6208, 0.0
    %v6393 = vadd.f32 %v6391, %v6392
    %v6394 = vsel %vm427, %v6209, 0.0
    %v6395 = vadd.f32 %v6393, %v6394
    %v6396 = vsel %vm427, %v6210, 0.0
    %v6397 = vadd.f32 %v6395, %v6396
    %v6398 = vrot.slane %v6397, 4
    %v6399 = vadd.f32 %v6397, %v6398
    %v6400 = vrot.slane %v6399, 2
    %v6401 = vadd.f32 %v6399, %v6400
    %v6402 = vrot.slane %v6401, 1
    %v6403 = vadd.f32 %v6401, %v6402
    %v6404 = vsel %vm427, %v6211, 0.0
    %v6405 = vsel %vm427, %v6212, 0.0
    %v6406 = vadd.f32 %v6404, %v6405
    %v6407 = vsel %vm427, %v6213, 0.0
    %v6408 = vadd.f32 %v6406, %v6407
    %v6409 = vsel %vm427, %v6214, 0.0
    %v6410 = vadd.f32 %v6408, %v6409
    %v6411 = vsel %vm427, %v6215, 0.0
    %v6412 = vadd.f32 %v6410, %v6411
    %v6413 = vsel %vm427, %v6216, 0.0
    %v6414 = vadd.f32 %v6412, %v6413
    %v6415 = vsel %vm427, %v6217, 0.0
    %v6416 = vadd.f32 %v6414, %v6415
    %v6417 = vsel %vm427, %v6218, 0.0
    %v6418 = vadd.f32 %v6416, %v6417
    %v6419 = vrot.slane %v6418, 4
    %v6420 = vadd.f32 %v6418, %v6419
    %v6421 = vrot.slane %v6420, 2
    %v6422 = vadd.f32 %v6420, %v6421
    %v6423 = vrot.slane %v6422, 1
    %v6424 = vadd.f32 %v6422, %v6423
    %v6425 = vsel %vm427, %v6219, 0.0
    %v6426 = vsel %vm427, %v6220, 0.0
    %v6427 = vadd.f32 %v6425, %v6426
    %v6428 = vsel %vm427, %v6221, 0.0
    %v6429 = vadd.f32 %v6427, %v6428
    %v6430 = vsel %vm427, %v6222, 0.0
    %v6431 = vadd.f32 %v6429, %v6430
    %v6432 = vsel %vm427, %v6223, 0.0
    %v6433 = vadd.f32 %v6431, %v6432
    %v6434 = vsel %vm427, %v6224, 0.0
    %v6435 = vadd.f32 %v6433, %v6434
    %v6436 = vsel %vm427, %v6225, 0.0
    %v6437 = vadd.f32 %v6435, %v6436
    %v6438 = vsel %vm427, %v6226, 0.0
    %v6439 = vadd.f32 %v6437, %v6438
    %v6440 = vrot.slane %v6439, 4
    %v6441 = vadd.f32 %v6439, %v6440
    %v6442 = vrot.slane %v6441, 2
    %v6443 = vadd.f32 %v6441, %v6442
    %v6444 = vrot.slane %v6443, 1
    %v6445 = vadd.f32 %v6443, %v6444
    %v6446 = vsel %vm427, %v6227, 0.0
    %v6447 = vsel %vm427, %v6228, 0.0
    %v6448 = vadd.f32 %v6446, %v6447
    %v6449 = vsel %vm427, %v6229, 0.0
    %v6450 = vadd.f32 %v6448, %v6449
    %v6451 = vsel %vm427, %v6230, 0.0
    %v6452 = vadd.f32 %v6450, %v6451
    %v6453 = vsel %vm427, %v6231, 0.0
    %v6454 = vadd.f32 %v6452, %v6453
    %v6455 = vsel %vm427, %v6232, 0.0
    %v6456 = vadd.f32 %v6454, %v6455
    %v6457 = vsel %vm427, %v6233, 0.0
    %v6458 = vadd.f32 %v6456, %v6457
    %v6459 = vsel %vm427, %v6234, 0.0
    %v6460 = vadd.f32 %v6458, %v6459
    %v6461 = vrot.slane %v6460, 4
    %v6462 = vadd.f32 %v6460, %v6461
    %v6463 = vrot.slane %v6462, 2
    %v6464 = vadd.f32 %v6462, %v6463
    %v6465 = vrot.slane %v6464, 1
    %v6466 = vadd.f32 %v6464, %v6465
    %v6467 = vsel %vm427, %v6235, 0.0
    %v6468 = vsel %vm427, %v6236, 0.0
    %v6469 = vadd.f32 %v6467, %v6468
    %v6470 = vsel %vm427, %v6237, 0.0
    %v6471 = vadd.f32 %v6469, %v6470
    %v6472 = vsel %vm427, %v6238, 0.0
    %v6473 = vadd.f32 %v6471, %v6472
    %v6474 = vsel %vm427, %v6239, 0.0
    %v6475 = vadd.f32 %v6473, %v6474
    %v6476 = vsel %vm427, %v6240, 0.0
    %v6477 = vadd.f32 %v6475, %v6476
    %v6478 = vsel %vm427, %v6241, 0.0
    %v6479 = vadd.f32 %v6477, %v6478
    %v6480 = vsel %vm427, %v6242, 0.0
    %v6481 = vadd.f32 %v6479, %v6480
    %v6482 = vrot.slane %v6481, 4
    %v6483 = vadd.f32 %v6481, %v6482
    %v6484 = vrot.slane %v6483, 2
    %v6485 = vadd.f32 %v6483, %v6484
    %v6486 = vrot.slane %v6485, 1
    %v6487 = vadd.f32 %v6485, %v6486
    %v6488 = vsel %vm427, %v6243, 0.0
    %v6489 = vsel %vm427, %v6244, 0.0
    %v6490 = vadd.f32 %v6488, %v6489
    %v6491 = vsel %vm427, %v6245, 0.0
    %v6492 = vadd.f32 %v6490, %v6491
    %v6493 = vsel %vm427, %v6246, 0.0
    %v6494 = vadd.f32 %v6492, %v6493
    %v6495 = vsel %vm427, %v6247, 0.0
    %v6496 = vadd.f32 %v6494, %v6495
    %v6497 = vsel %vm427, %v6248, 0.0
    %v6498 = vadd.f32 %v6496, %v6497
    %v6499 = vsel %vm427, %v6249, 0.0
    %v6500 = vadd.f32 %v6498, %v6499
    %v6501 = vsel %vm427, %v6250, 0.0
    %v6502 = vadd.f32 %v6500, %v6501
    %v6503 = vrot.slane %v6502, 4
    %v6504 = vadd.f32 %v6502, %v6503
    %v6505 = vrot.slane %v6504, 2
    %v6506 = vadd.f32 %v6504, %v6505
    %v6507 = vrot.slane %v6506, 1
    %v6508 = vadd.f32 %v6506, %v6507
    %v6509 = vsel %vm427, %v6251, 0.0
    %v6510 = vsel %vm427, %v6252, 0.0
    %v6511 = vadd.f32 %v6509, %v6510
    %v6512 = vsel %vm427, %v6253, 0.0
    %v6513 = vadd.f32 %v6511, %v6512
    %v6514 = vsel %vm427, %v6254, 0.0
    %v6515 = vadd.f32 %v6513, %v6514
    %v6516 = vsel %vm427, %v6255, 0.0
    %v6517 = vadd.f32 %v6515, %v6516
    %v6518 = vsel %vm427, %v6256, 0.0
    %v6519 = vadd.f32 %v6517, %v6518
    %v6520 = vsel %vm427, %v6257, 0.0
    %v6521 = vadd.f32 %v6519, %v6520
    %v6522 = vsel %vm427, %v6258, 0.0
    %v6523 = vadd.f32 %v6521, %v6522
    %v6524 = vrot.slane %v6523, 4
    %v6525 = vadd.f32 %v6523, %v6524
    %v6526 = vrot.slane %v6525, 2
    %v6527 = vadd.f32 %v6525, %v6526
    %v6528 = vrot.slane %v6527, 1
    %v6529 = vadd.f32 %v6527, %v6528
    %v6530 = vsel %vm427, %v6259, 0.0
    %v6531 = vsel %vm427, %v6260, 0.0
    %v6532 = vadd.f32 %v6530, %v6531
    %v6533 = vsel %vm427, %v6261, 0.0
    %v6534 = vadd.f32 %v6532, %v6533
    %v6535 = vsel %vm427, %v6262, 0.0
    %v6536 = vadd.f32 %v6534, %v6535
    %v6537 = vsel %vm427, %v6263, 0.0
    %v6538 = vadd.f32 %v6536, %v6537
    %v6539 = vsel %vm427, %v6264, 0.0
    %v6540 = vadd.f32 %v6538, %v6539
    %v6541 = vsel %vm427, %v6265, 0.0
    %v6542 = vadd.f32 %v6540, %v6541
    %v6543 = vsel %vm427, %v6266, 0.0
    %v6544 = vadd.f32 %v6542, %v6543
    %v6545 = vrot.slane %v6544, 4
    %v6546 = vadd.f32 %v6544, %v6545
    %v6547 = vrot.slane %v6546, 2
    %v6548 = vadd.f32 %v6546, %v6547
    %v6549 = vrot.slane %v6548, 1
    %v6550 = vadd.f32 %v6548, %v6549
    %v6551 = vsel %vm427, %v6267, 0.0
    %v6552 = vsel %vm427, %v6268, 0.0
    %v6553 = vadd.f32 %v6551, %v6552
    %v6554 = vsel %vm427, %v6269, 0.0
    %v6555 = vadd.f32 %v6553, %v6554
    %v6556 = vsel %vm427, %v6270, 0.0
    %v6557 = vadd.f32 %v6555, %v6556
    %v6558 = vsel %vm427, %v6271, 0.0
    %v6559 = vadd.f32 %v6557, %v6558
    %v6560 = vsel %vm427, %v6272, 0.0
    %v6561 = vadd.f32 %v6559, %v6560
    %v6562 = vsel %vm427, %v6273, 0.0
    %v6563 = vadd.f32 %v6561, %v6562
    %v6564 = vsel %vm427, %v6274, 0.0
    %v6565 = vadd.f32 %v6563, %v6564
    %v6566 = vrot.slane %v6565, 4
    %v6567 = vadd.f32 %v6565, %v6566
    %v6568 = vrot.slane %v6567, 2
    %v6569 = vadd.f32 %v6567, %v6568
    %v6570 = vrot.slane %v6569, 1
    %v6571 = vadd.f32 %v6569, %v6570
    %v6572 = vsel %vm427, %v6275, 0.0
    %v6573 = vsel %vm427, %v6276, 0.0
    %v6574 = vadd.f32 %v6572, %v6573
    %v6575 = vsel %vm427, %v6277, 0.0
    %v6576 = vadd.f32 %v6574, %v6575
    %v6577 = vsel %vm427, %v6278, 0.0
    %v6578 = vadd.f32 %v6576, %v6577
    %v6579 = vsel %vm427, %v6279, 0.0
    %v6580 = vadd.f32 %v6578, %v6579
    %v6581 = vsel %vm427, %v6280, 0.0
    %v6582 = vadd.f32 %v6580, %v6581
    %v6583 = vsel %vm427, %v6281, 0.0
    %v6584 = vadd.f32 %v6582, %v6583
    %v6585 = vsel %vm427, %v6282, 0.0
    %v6586 = vadd.f32 %v6584, %v6585
    %v6587 = vrot.slane %v6586, 4
    %v6588 = vadd.f32 %v6586, %v6587
    %v6589 = vrot.slane %v6588, 2
    %v6590 = vadd.f32 %v6588, %v6589
    %v6591 = vrot.slane %v6590, 1
    %v6592 = vadd.f32 %v6590, %v6591
    %v6593 = vsel %vm427, %v6283, 0.0
    %v6594 = vsel %vm427, %v6284, 0.0
    %v6595 = vadd.f32 %v6593, %v6594
    %v6596 = vsel %vm427, %v6285, 0.0
    %v6597 = vadd.f32 %v6595, %v6596
    %v6598 = vsel %vm427, %v6286, 0.0
    %v6599 = vadd.f32 %v6597, %v6598
    %v6600 = vsel %vm427, %v6287, 0.0
    %v6601 = vadd.f32 %v6599, %v6600
    %v6602 = vsel %vm427, %v6288, 0.0
    %v6603 = vadd.f32 %v6601, %v6602
    %v6604 = vsel %vm427, %v6289, 0.0
    %v6605 = vadd.f32 %v6603, %v6604
    %v6606 = vsel %vm427, %v6290, 0.0
    %v6607 = vadd.f32 %v6605, %v6606
    %v6608 = vrot.slane %v6607, 4
    %v6609 = vadd.f32 %v6607, %v6608
    %v6610 = vrot.slane %v6609, 2
    %v6611 = vadd.f32 %v6609, %v6610
    %v6612 = vrot.slane %v6611, 1
    %v6613 = vadd.f32 %v6611, %v6612
    %v6614 = vsel %vm427, %v6291, 0.0
    %v6615 = vsel %vm427, %v6292, 0.0
    %v6616 = vadd.f32 %v6614, %v6615
    %v6617 = vsel %vm427, %v6293, 0.0
    %v6618 = vadd.f32 %v6616, %v6617
    %v6619 = vsel %vm427, %v6294, 0.0
    %v6620 = vadd.f32 %v6618, %v6619
    %v6621 = vsel %vm427, %v6295, 0.0
    %v6622 = vadd.f32 %v6620, %v6621
    %v6623 = vsel %vm427, %v6296, 0.0
    %v6624 = vadd.f32 %v6622, %v6623
    %v6625 = vsel %vm427, %v6297, 0.0
    %v6626 = vadd.f32 %v6624, %v6625
    %v6627 = vsel %vm427, %v6298, 0.0
    %v6628 = vadd.f32 %v6626, %v6627
    %v6629 = vrot.slane %v6628, 4
    %v6630 = vadd.f32 %v6628, %v6629
    %v6631 = vrot.slane %v6630, 2
    %v6632 = vadd.f32 %v6630, %v6631
    %v6633 = vrot.slane %v6632, 1
    %v6634 = vadd.f32 %v6632, %v6633
    %v6635 = vunpack.c.l.bf16 %v2020
    %v6636 = vunpack.c.l.bf16 %v2021
    %vm6653 = vcmask 1041409
    %v6654 = vsel %vm6653, %v5364, %v5343
    %vm6655 = vcmask 1042434
    %v6656 = vsel %vm6655, %v5385, %v6654
    %vm6657 = vcmask 1043459
    %v6658 = vsel %vm6657, %v5406, %v6656
    %vm6659 = vcmask 1044484
    %v6660 = vsel %vm6659, %v5427, %v6658
    %vm6661 = vcmask 1045509
    %v6662 = vsel %vm6661, %v5448, %v6660
    %vm6663 = vcmask 1046534
    %v6664 = vsel %vm6663, %v5469, %v6662
    %vm6665 = vcmask 1047559
    %v6666 = vsel %vm6665, %v5490, %v6664
    %v6667 = vsel %vm6653, %v5532, %v5511
    %v6668 = vsel %vm6655, %v5553, %v6667
    %v6669 = vsel %vm6657, %v5574, %v6668
    %v6670 = vsel %vm6659, %v5595, %v6669
    %v6671 = vsel %vm6661, %v5616, %v6670
    %v6672 = vsel %vm6663, %v5637, %v6671
    %v6673 = vsel %vm6665, %v5658, %v6672
    %v6692 = vsel %vm6653, %v6340, %v6319
    %v6693 = vsel %vm6655, %v6361, %v6692
    %v6694 = vsel %vm6657, %v6382, %v6693
    %v6695 = vsel %vm6659, %v6403, %v6694
    %v6696 = vsel %vm6661, %v6424, %v6695
    %v6697 = vsel %vm6663, %v6445, %v6696
    %v6698 = vsel %vm6665, %v6466, %v6697
    %v6699 = vsel %vm6653, %v6508, %v6487
    %v6700 = vsel %vm6655, %v6529, %v6699
    %v6701 = vsel %vm6657, %v6550, %v6700
    %v6702 = vsel %vm6659, %v6571, %v6701
    %v6703 = vsel %vm6661, %v6592, %v6702
    %v6704 = vsel %vm6663, %v6613, %v6703
    %v6705 = vsel %vm6665, %v6634, %v6704
    %6706 = vrot.lane.b32.xlu0 %v6698, 32
    %v6707 = vpop.permute.xlu0 %6706
    %6708 = vrot.lane.b32.xlu0 %v6705, 32
    %v6709 = vpop.permute.xlu0 %6708
    %6714 = vrot.lane.b32.xlu0 %v6635, 64
    %v6715 = vpop.permute.xlu0 %6714
    %6716 = vrot.lane.b32.xlu0 %v6636, 64
    %v6717 = vpop.permute.xlu0 %6716
    %v6720 = vsel %vm427, %v6666, %v6707
    %v6721 = vsel %vm427, %v6673, %v6709
    %vm6722 = vcmask 523264
    %v6723 = vsel %vm6722, %v6720, %v6715
    %v6724 = vsel %vm6722, %v6721, %v6717
    %v6725 = vpack.c.bf16 %v6724, %v6723
    %v6726 = vld [vmem:[%s8] sm:$0xff]
    %v6727 = vld [vmem:[%s8 + $0x8] sm:$0xff]
    %v6728 = vld [vmem:[%s8 + $0x10] sm:$0xff]
    %v6729 = vld [vmem:[%s8 + $0x18] sm:$0xff]
    %v6730 = vld [vmem:[%s8 + $0x20] sm:$0xff]
    %v6731 = vld [vmem:[%s8 + $0x28] sm:$0xff]
    %v6732 = vld [vmem:[%s8 + $0x30] sm:$0xff]
    %v6733 = vld [vmem:[%s8 + $0x38] sm:$0xff]
    %v6734 = vld [vmem:[%s8 + $0x40] sm:$0xff]
    %v6735 = vld [vmem:[%s8 + $0x48] sm:$0xff]
    %v6736 = vld [vmem:[%s8 + $0x50] sm:$0xff]
    %v6737 = vld [vmem:[%s8 + $0x58] sm:$0xff]
    %v6738 = vld [vmem:[%s8 + $0x60] sm:$0xff]
    %v6739 = vld [vmem:[%s8 + $0x68] sm:$0xff]
    %v6740 = vld [vmem:[%s8 + $0x70] sm:$0xff]
    %v6741 = vld [vmem:[%s8 + $0x78] sm:$0xff]
    %v6742 = vld [vmem:[%s8 + $0x80] sm:$0xff]
    %v6743 = vld [vmem:[%s8 + $0x88] sm:$0xff]
    %v6744 = vld [vmem:[%s8 + $0x90] sm:$0xff]
    %v6745 = vld [vmem:[%s8 + $0x98] sm:$0xff]
    %v6746 = vld [vmem:[%s8 + $0xa0] sm:$0xff]
    %v6747 = vld [vmem:[%s8 + $0xa8] sm:$0xff]
    %v6748 = vld [vmem:[%s8 + $0xb0] sm:$0xff]
    %v6749 = vld [vmem:[%s8 + $0xb8] sm:$0xff]
    %v6750 = vld [vmem:[%s9] sm:$0xf]
    %v6752 = vlaneseq
    %v6753 = vshrl.u32 %v6752, 7
    %v6754 = vsub.s32 0, %v6753
    %v6755 = vrot.slane %v6750, %v6754
    %v6756 = vlaneseq
    %v6757 = vshrl.u32 %v6756, 7
    %v6758 = vsub.s32 1, %v6757
    %v6759 = vrot.slane %v6750, %v6758
    %v6760 = vlaneseq
    %v6761 = vshrl.u32 %v6760, 7
    %v6762 = vsub.s32 2, %v6761
    %v6763 = vrot.slane %v6750, %v6762
    %v6764 = vlaneseq
    %v6765 = vshrl.u32 %v6764, 7
    %v6766 = vsub.s32 3, %v6765
    %v6767 = vrot.slane %v6750, %v6766
    %v6796 = vunpack.c.l.b16 %v6726
    %v6797 = vunpack.c.h.b16 %v6726
    %v6798 = vunpack.c.l.b16 %v6727
    %v6799 = vunpack.c.h.b16 %v6727
    %v6800 = vunpack.c.l.b16 %v6728
    %v6801 = vunpack.c.h.b16 %v6728
    %v6802 = vunpack.c.l.b16 %v6729
    %v6803 = vunpack.c.h.b16 %v6729
    %v6804 = vunpack.c.l.b16 %v6730
    %v6805 = vunpack.c.h.b16 %v6730
    %v6806 = vunpack.c.l.b16 %v6731
    %v6807 = vunpack.c.h.b16 %v6731
    %v6808 = vunpack.c.l.b16 %v6732
    %v6809 = vunpack.c.h.b16 %v6732
    %v6810 = vunpack.c.l.b16 %v6733
    %v6811 = vunpack.c.h.b16 %v6733
    %v6812 = vunpack.c.l.b16 %v6734
    %v6813 = vunpack.c.h.b16 %v6734
    %v6814 = vunpack.c.l.b16 %v6735
    %v6815 = vunpack.c.h.b16 %v6735
    %v6816 = vunpack.c.l.b16 %v6736
    %v6817 = vunpack.c.h.b16 %v6736
    %v6818 = vunpack.c.l.b16 %v6737
    %v6819 = vunpack.c.h.b16 %v6737
    %v6820 = vunpack.c.l.b16 %v6738
    %v6821 = vunpack.c.h.b16 %v6738
    %v6822 = vunpack.c.l.b16 %v6739
    %v6823 = vunpack.c.h.b16 %v6739
    %v6824 = vunpack.c.l.b16 %v6740
    %v6825 = vunpack.c.h.b16 %v6740
    %v6826 = vunpack.c.l.b16 %v6741
    %v6827 = vunpack.c.h.b16 %v6741
    %v6828 = vunpack.c.l.b16 %v6742
    %v6829 = vunpack.c.h.b16 %v6742
    %v6830 = vunpack.c.l.b16 %v6743
    %v6831 = vunpack.c.h.b16 %v6743
    %v6832 = vunpack.c.l.b16 %v6744
    %v6833 = vunpack.c.h.b16 %v6744
    %v6834 = vunpack.c.l.b16 %v6745
    %v6835 = vunpack.c.h.b16 %v6745
    %v6836 = vunpack.c.l.b16 %v6746
    %v6837 = vunpack.c.h.b16 %v6746
    %v6838 = vunpack.c.l.b16 %v6747
    %v6839 = vunpack.c.h.b16 %v6747
    %v6840 = vunpack.c.l.b16 %v6748
    %v6841 = vunpack.c.h.b16 %v6748
    %v6842 = vunpack.c.l.b16 %v6749
    %v6843 = vunpack.c.h.b16 %v6749
    %v6844 = vpack.c.b16 %v6800, %v6796
    %v6845 = vpack.c.b16 %v6801, %v6797
    %v6846 = vpack.c.b16 %v6802, %v6798
    %v6847 = vpack.c.b16 %v6803, %v6799
    %v6848 = vpack.c.b16 %v6808, %v6804
    %v6849 = vpack.c.b16 %v6809, %v6805
    %v6850 = vpack.c.b16 %v6810, %v6806
    %v6851 = vpack.c.b16 %v6811, %v6807
    %v6852 = vpack.c.b16 %v6816, %v6812
    %v6853 = vpack.c.b16 %v6817, %v6813
    %v6854 = vpack.c.b16 %v6818, %v6814
    %v6855 = vpack.c.b16 %v6819, %v6815
    %v6856 = vpack.c.b16 %v6824, %v6820
    %v6857 = vpack.c.b16 %v6825, %v6821
    %v6858 = vpack.c.b16 %v6826, %v6822
    %v6859 = vpack.c.b16 %v6827, %v6823
    %v6860 = vpack.c.b16 %v6832, %v6828
    %v6861 = vpack.c.b16 %v6833, %v6829
    %v6862 = vpack.c.b16 %v6834, %v6830
    %v6863 = vpack.c.b16 %v6835, %v6831
    %v6864 = vpack.c.b16 %v6840, %v6836
    %v6865 = vpack.c.b16 %v6841, %v6837
    %v6866 = vpack.c.b16 %v6842, %v6838
    %v6867 = vpack.c.b16 %v6843, %v6839
    %vm6892 = vcmask 785408
    %v6894 = vsel %vm6892, %v6725, 0
    %6896 = vmatprep.subr.bf16.mxu0 %v6845
    %6897 = vmatpush1.bf16.msra.mxu0 %v6844
    %6898 = vmatprep.subr.bf16.mxu0 %v6849
    %6899 = vmatpush1.bf16.msra.mxu0 %v6848
    %6900 = vmatprep.subr.bf16.mxu0 %v6853
    %6901 = vmatpush1.bf16.msra.mxu0 %v6852
    %6902 = vmatprep.subr.bf16.mxu0 %v6857
    %6903 = vmatpush1.bf16.msra.mxu0 %v6856
    %6904 = vmatprep.subr.bf16.mxu0 %v6861
    %6905 = vmatpush1.bf16.msra.mxu0 %v6860
    %6906 = vmatprep.subr.bf16.mxu0 %v6865
    %6907 = vmatpush1.bf16.msra.mxu0 %v6864
    %6908 = vmatprep.subr.bf16.mxu0 0
    %6909 = vmatpush1.bf16.msra.mxu0 0
    %6910 = vmatprep.subr.bf16.mxu0 0
    %6911 = vmatpush1.bf16.msra.mxu0 0
    %6912 = vmatprep.subr.bf16.mxu0 0
    %6913 = vmatpush1.bf16.msra.mxu0 0
    %6914 = vmatprep.subr.bf16.mxu0 0
    %6915 = vmatpush1.bf16.msra.mxu0 0
    %6916 = vmatprep.subr.bf16.mxu0 0
    %6917 = vmatpush1.bf16.msra.mxu0 0
    %6918 = vmatprep.subr.bf16.mxu0 0
    %6919 = vmatpush1.bf16.msra.mxu0 0
    %6920 = vmatprep.subr.bf16.mxu0 0
    %6921 = vmatpush1.bf16.msra.mxu0 0
    %6922 = vmatprep.subr.bf16.mxu0 0
    %6923 = vmatpush1.bf16.msra.mxu0 0
    %6924 = vmatprep.subr.bf16.mxu0 0
    %6925 = vmatpush1.bf16.msra.mxu0 0
    %6926 = vmatprep.subr.bf16.mxu0 0
    %6927 = vmatpush1.bf16.msra.mxu0 0
    %6928 = vmatprep.mubr.bf16.mxu0 0
    %6929 = vmatmul.mubr.bf16.gmra.mrb[0].mxu0 %v6894
    %v6930 = vpop.f32.mrb[0].mxu0
    %v6931 = vadd.f32 %v6755, %v6930
    %v6932 = vpop.f32.mrb[0].mxu0
    %v6933 = vadd.f32 %v6759, %v6932
    %v6934 = vpop.f32.mrb[0].mxu0
    %v6935 = vadd.f32 %v6755, %v6934
    %v6936 = vpop.f32.mrb[0].mxu0
    %v6937 = vadd.f32 %v6759, %v6936
    %6938 = vdwg.mxu0
    %6939 = vmatprep.subr.bf16.mxu0 %v6847
    %6940 = vmatpush1.bf16.msra.mxu0 %v6846
    %6941 = vmatprep.subr.bf16.mxu0 %v6851
    %6942 = vmatpush1.bf16.msra.mxu0 %v6850
    %6943 = vmatprep.subr.bf16.mxu0 %v6855
    %6944 = vmatpush1.bf16.msra.mxu0 %v6854
    %6945 = vmatprep.subr.bf16.mxu0 %v6859
    %6946 = vmatpush1.bf16.msra.mxu0 %v6858
    %6947 = vmatprep.subr.bf16.mxu0 %v6863
    %6948 = vmatpush1.bf16.msra.mxu0 %v6862
    %6949 = vmatprep.subr.bf16.mxu0 %v6867
    %6950 = vmatpush1.bf16.msra.mxu0 %v6866
    %6951 = vmatprep.subr.bf16.mxu0 0
    %6952 = vmatpush1.bf16.msra.mxu0 0
    %6953 = vmatprep.subr.bf16.mxu0 0
    %6954 = vmatpush1.bf16.msra.mxu0 0
    %6955 = vmatprep.subr.bf16.mxu0 0
    %6956 = vmatpush1.bf16.msra.mxu0 0
    %6957 = vmatprep.subr.bf16.mxu0 0
    %6958 = vmatpush1.bf16.msra.mxu0 0
    %6959 = vmatprep.subr.bf16.mxu0 0
    %6960 = vmatpush1.bf16.msra.mxu0 0
    %6961 = vmatprep.subr.bf16.mxu0 0
    %6962 = vmatpush1.bf16.msra.mxu0 0
    %6963 = vmatprep.subr.bf16.mxu0 0
    %6964 = vmatpush1.bf16.msra.mxu0 0
    %6965 = vmatprep.subr.bf16.mxu0 0
    %6966 = vmatpush1.bf16.msra.mxu0 0
    %6967 = vmatprep.subr.bf16.mxu0 0
    %6968 = vmatpush1.bf16.msra.mxu0 0
    %6969 = vmatprep.subr.bf16.mxu0 0
    %6970 = vmatpush1.bf16.msra.mxu0 0
    %6971 = vmatprep.mubr.bf16.mxu0 0
    %6972 = vmatmul.mubr.bf16.gmra.mrb[0].mxu0 %v6894
    %v6973 = vpop.f32.mrb[0].mxu0
    %v6974 = vadd.f32 %v6763, %v6973
    %v6975 = vpop.f32.mrb[0].mxu0
    %v6976 = vadd.f32 %v6767, %v6975
    %v6977 = vpop.f32.mrb[0].mxu0
    %v6978 = vadd.f32 %v6763, %v6977
    %v6979 = vpop.f32.mrb[0].mxu0
    %v6980 = vadd.f32 %v6767, %v6979
    %6981 = vdwg.mxu0
    %v6982 = vmax.f32 %v6931, 0.0
    %v6983 = vmax.f32 %v6933, 0.0
    %v6984 = vmax.f32 %v6974, 0.0
    %v6985 = vmax.f32 %v6976, 0.0
    %v6986 = vmax.f32 %v6935, 0.0
    %v6987 = vmax.f32 %v6937, 0.0
    %v6988 = vmax.f32 %v6978, 0.0
    %v6989 = vmax.f32 %v6980, 0.0
    %v6990 = vpack.c.bf16 %v6986, %v6982
    %v6991 = vpack.c.bf16 %v6987, %v6983
    %v6992 = vpack.c.bf16 %v6988, %v6984
    %v6993 = vpack.c.bf16 %v6989, %v6985
    %v6994 = vld [vmem:[%s10] sm:$0xf]
    %v6995 = vld [vmem:[%s10 + $0x4] sm:$0xf]
    %v6996 = vld [vmem:[%s10 + $0x8] sm:$0xf]
    %v6997 = vld [vmem:[%s10 + $0xc] sm:$0xf]
    %v6998 = vld [vmem:[%s10 + $0x10] sm:$0xf]
    %v6999 = vld [vmem:[%s10 + $0x14] sm:$0xf]
    %v7000 = vld [vmem:[%s10 + $0x18] sm:$0xf]
    %v7001 = vld [vmem:[%s10 + $0x1c] sm:$0xf]
    %v7002 = vld [vmem:[%s10 + $0x20] sm:$0xf]
    %v7003 = vld [vmem:[%s10 + $0x24] sm:$0xf]
    %v7004 = vld [vmem:[%s10 + $0x28] sm:$0xf]
    %v7005 = vld [vmem:[%s10 + $0x2c] sm:$0xf]
    %v7006 = vld [vmem:[%s10 + $0x30] sm:$0xf]
    %v7007 = vld [vmem:[%s10 + $0x34] sm:$0xf]
    %v7008 = vld [vmem:[%s10 + $0x38] sm:$0xf]
    %v7009 = vld [vmem:[%s10 + $0x3c] sm:$0xf]
    %v7010 = vld [vmem:[%s10 + $0x40] sm:$0xf]
    %v7011 = vld [vmem:[%s10 + $0x44] sm:$0xf]
    %v7012 = vld [vmem:[%s10 + $0x48] sm:$0xf]
    %v7013 = vld [vmem:[%s10 + $0x4c] sm:$0xf]
    %v7014 = vld [vmem:[%s10 + $0x50] sm:$0xf]
    %v7015 = vld [vmem:[%s10 + $0x54] sm:$0xf]
    %v7016 = vld [vmem:[%s10 + $0x58] sm:$0xf]
    %v7017 = vld [vmem:[%s10 + $0x5c] sm:$0xf]
    %v7018 = vld [vmem:[%s10 + $0x60] sm:$0xf]
    %v7019 = vld [vmem:[%s10 + $0x64] sm:$0xf]
    %v7020 = vld [vmem:[%s10 + $0x68] sm:$0xf]
    %v7021 = vld [vmem:[%s10 + $0x6c] sm:$0xf]
    %v7022 = vld [vmem:[%s10 + $0x70] sm:$0xf]
    %v7023 = vld [vmem:[%s10 + $0x74] sm:$0xf]
    %v7024 = vld [vmem:[%s10 + $0x78] sm:$0xf]
    %v7025 = vld [vmem:[%s10 + $0x7c] sm:$0xf]
    %v7026 = vld [vmem:[%s10 + $0x80] sm:$0xf]
    %v7027 = vld [vmem:[%s10 + $0x84] sm:$0xf]
    %v7028 = vld [vmem:[%s10 + $0x88] sm:$0xf]
    %v7029 = vld [vmem:[%s10 + $0x8c] sm:$0xf]
    %v7030 = vld [vmem:[%s10 + $0x90] sm:$0xf]
    %v7031 = vld [vmem:[%s10 + $0x94] sm:$0xf]
    %v7032 = vld [vmem:[%s10 + $0x98] sm:$0xf]
    %v7033 = vld [vmem:[%s10 + $0x9c] sm:$0xf]
    %v7034 = vld [vmem:[%s10 + $0xa0] sm:$0xf]
    %v7035 = vld [vmem:[%s10 + $0xa4] sm:$0xf]
    %v7036 = vld [vmem:[%s10 + $0xa8] sm:$0xf]
    %v7037 = vld [vmem:[%s10 + $0xac] sm:$0xf]
    %v7038 = vld [vmem:[%s10 + $0xb0] sm:$0xf]
    %v7039 = vld [vmem:[%s10 + $0xb4] sm:$0xf]
    %v7040 = vld [vmem:[%s10 + $0xb8] sm:$0xf]
    %v7041 = vld [vmem:[%s10 + $0xbc] sm:$0xf]
    %v7042 = vld [vmem:[%s10 + $0xc0] sm:$0xf]
    %v7043 = vld [vmem:[%s10 + $0xc4] sm:$0xf]
    %v7044 = vld [vmem:[%s10 + $0xc8] sm:$0xf]
    %v7045 = vld [vmem:[%s10 + $0xcc] sm:$0xf]
    %v7046 = vld [vmem:[%s10 + $0xd0] sm:$0xf]
    %v7047 = vld [vmem:[%s10 + $0xd4] sm:$0xf]
    %v7048 = vld [vmem:[%s10 + $0xd8] sm:$0xf]
    %v7049 = vld [vmem:[%s10 + $0xdc] sm:$0xf]
    %v7050 = vld [vmem:[%s10 + $0xe0] sm:$0xf]
    %v7051 = vld [vmem:[%s10 + $0xe4] sm:$0xf]
    %v7052 = vld [vmem:[%s10 + $0xe8] sm:$0xf]
    %v7053 = vld [vmem:[%s10 + $0xec] sm:$0xf]
    %v7054 = vld [vmem:[%s10 + $0xf0] sm:$0xf]
    %v7055 = vld [vmem:[%s10 + $0xf4] sm:$0xf]
    %v7056 = vld [vmem:[%s10 + $0xf8] sm:$0xf]
    %v7057 = vld [vmem:[%s10 + $0xfc] sm:$0xf]
    %v7058 = vld [vmem:[%s11] sm:$0x1]
    %v7060 = vlaneseq
    %v7061 = vshrl.u32 %v7060, 7
    %v7062 = vsub.s32 0, %v7061
    %v7063 = vrot.slane %v7058, %v7062
    %v7129 = vunpack.c.l.b16 %v6994
    %v7130 = vunpack.c.l.b16 %v6995
    %v7131 = vunpack.c.l.b16 %v6996
    %v7132 = vunpack.c.l.b16 %v6997
    %v7133 = vunpack.c.l.b16 %v6998
    %v7134 = vunpack.c.l.b16 %v6999
    %v7135 = vunpack.c.l.b16 %v7000
    %v7136 = vunpack.c.l.b16 %v7001
    %v7137 = vunpack.c.l.b16 %v7002
    %v7138 = vunpack.c.l.b16 %v7003
    %v7139 = vunpack.c.l.b16 %v7004
    %v7140 = vunpack.c.l.b16 %v7005
    %v7141 = vunpack.c.l.b16 %v7006
    %v7142 = vunpack.c.l.b16 %v7007
    %v7143 = vunpack.c.l.b16 %v7008
    %v7144 = vunpack.c.l.b16 %v7009
    %v7145 = vunpack.c.l.b16 %v7010
    %v7146 = vunpack.c.l.b16 %v7011
    %v7147 = vunpack.c.l.b16 %v7012
    %v7148 = vunpack.c.l.b16 %v7013
    %v7149 = vunpack.c.l.b16 %v7014
    %v7150 = vunpack.c.l.b16 %v7015
    %v7151 = vunpack.c.l.b16 %v7016
    %v7152 = vunpack.c.l.b16 %v7017
    %v7153 = vunpack.c.l.b16 %v7018
    %v7154 = vunpack.c.l.b16 %v7019
    %v7155 = vunpack.c.l.b16 %v7020
    %v7156 = vunpack.c.l.b16 %v7021
    %v7157 = vunpack.c.l.b16 %v7022
    %v7158 = vunpack.c.l.b16 %v7023
    %v7159 = vunpack.c.l.b16 %v7024
    %v7160 = vunpack.c.l.b16 %v7025
    %v7161 = vunpack.c.l.b16 %v7026
    %v7162 = vunpack.c.l.b16 %v7027
    %v7163 = vunpack.c.l.b16 %v7028
    %v7164 = vunpack.c.l.b16 %v7029
    %v7165 = vunpack.c.l.b16 %v7030
    %v7166 = vunpack.c.l.b16 %v7031
    %v7167 = vunpack.c.l.b16 %v7032
    %v7168 = vunpack.c.l.b16 %v7033
    %v7169 = vunpack.c.l.b16 %v7034
    %v7170 = vunpack.c.l.b16 %v7035
    %v7171 = vunpack.c.l.b16 %v7036
    %v7172 = vunpack.c.l.b16 %v7037
    %v7173 = vunpack.c.l.b16 %v7038
    %v7174 = vunpack.c.l.b16 %v7039
    %v7175 = vunpack.c.l.b16 %v7040
    %v7176 = vunpack.c.l.b16 %v7041
    %v7177 = vunpack.c.l.b16 %v7042
    %v7178 = vunpack.c.l.b16 %v7043
    %v7179 = vunpack.c.l.b16 %v7044
    %v7180 = vunpack.c.l.b16 %v7045
    %v7181 = vunpack.c.l.b16 %v7046
    %v7182 = vunpack.c.l.b16 %v7047
    %v7183 = vunpack.c.l.b16 %v7048
    %v7184 = vunpack.c.l.b16 %v7049
    %v7185 = vunpack.c.l.b16 %v7050
    %v7186 = vunpack.c.l.b16 %v7051
    %v7187 = vunpack.c.l.b16 %v7052
    %v7188 = vunpack.c.l.b16 %v7053
    %v7189 = vunpack.c.l.b16 %v7054
    %v7190 = vunpack.c.l.b16 %v7055
    %v7191 = vunpack.c.l.b16 %v7056
    %v7192 = vunpack.c.l.b16 %v7057
    %v7193 = vpack.c.b16 %v7130, %v7129
    %v7194 = vpack.c.b16 %v7132, %v7131
    %v7195 = vpack.c.b16 %v7134, %v7133
    %v7196 = vpack.c.b16 %v7136, %v7135
    %v7197 = vpack.c.b16 %v7138, %v7137
    %v7198 = vpack.c.b16 %v7140, %v7139
    %v7199 = vpack.c.b16 %v7142, %v7141
    %v7200 = vpack.c.b16 %v7144, %v7143
    %v7201 = vpack.c.b16 %v7146, %v7145
    %v7202 = vpack.c.b16 %v7148, %v7147
    %v7203 = vpack.c.b16 %v7150, %v7149
    %v7204 = vpack.c.b16 %v7152, %v7151
    %v7205 = vpack.c.b16 %v7154, %v7153
    %v7206 = vpack.c.b16 %v7156, %v7155
    %v7207 = vpack.c.b16 %v7158, %v7157
    %v7208 = vpack.c.b16 %v7160, %v7159
    %v7209 = vpack.c.b16 %v7162, %v7161
    %v7210 = vpack.c.b16 %v7164, %v7163
    %v7211 = vpack.c.b16 %v7166, %v7165
    %v7212 = vpack.c.b16 %v7168, %v7167
    %v7213 = vpack.c.b16 %v7170, %v7169
    %v7214 = vpack.c.b16 %v7172, %v7171
    %v7215 = vpack.c.b16 %v7174, %v7173
    %v7216 = vpack.c.b16 %v7176, %v7175
    %v7217 = vpack.c.b16 %v7178, %v7177
    %v7218 = vpack.c.b16 %v7180, %v7179
    %v7219 = vpack.c.b16 %v7182, %v7181
    %v7220 = vpack.c.b16 %v7184, %v7183
    %v7221 = vpack.c.b16 %v7186, %v7185
    %v7222 = vpack.c.b16 %v7188, %v7187
    %v7223 = vpack.c.b16 %v7190, %v7189
    %v7224 = vpack.c.b16 %v7192, %v7191
    %7257 = vmatprep.subr.bf16.mxu0 0
    %7258 = vmatpush1.bf16.msra.mxu0 %v7193
    %7259 = vmatprep.subr.bf16.mxu0 0
    %7260 = vmatpush1.bf16.msra.mxu0 %v7194
    %7261 = vmatprep.subr.bf16.mxu0 0
    %7262 = vmatpush1.bf16.msra.mxu0 %v7195
    %7263 = vmatprep.subr.bf16.mxu0 0
    %7264 = vmatpush1.bf16.msra.mxu0 %v7196
    %7265 = vmatprep.subr.bf16.mxu0 0
    %7266 = vmatpush1.bf16.msra.mxu0 %v7197
    %7267 = vmatprep.subr.bf16.mxu0 0
    %7268 = vmatpush1.bf16.msra.mxu0 %v7198
    %7269 = vmatprep.subr.bf16.mxu0 0
    %7270 = vmatpush1.bf16.msra.mxu0 %v7199
    %7271 = vmatprep.subr.bf16.mxu0 0
    %7272 = vmatpush1.bf16.msra.mxu0 %v7200
    %7273 = vmatprep.subr.bf16.mxu0 0
    %7274 = vmatpush1.bf16.msra.mxu0 %v7201
    %7275 = vmatprep.subr.bf16.mxu0 0
    %7276 = vmatpush1.bf16.msra.mxu0 %v7202
    %7277 = vmatprep.subr.bf16.mxu0 0
    %7278 = vmatpush1.bf16.msra.mxu0 %v7203
    %7279 = vmatprep.subr.bf16.mxu0 0
    %7280 = vmatpush1.bf16.msra.mxu0 %v7204
    %7281 = vmatprep.subr.bf16.mxu0 0
    %7282 = vmatpush1.bf16.msra.mxu0 %v7205
    %7283 = vmatprep.subr.bf16.mxu0 0
    %7284 = vmatpush1.bf16.msra.mxu0 %v7206
    %7285 = vmatprep.subr.bf16.mxu0 0
    %7286 = vmatpush1.bf16.msra.mxu0 %v7207
    %7287 = vmatprep.subr.bf16.mxu0 0
    %7288 = vmatpush1.bf16.msra.mxu0 %v7208
    %7289 = vmatprep.mubr.bf16.mxu0 %v6991
    %7290 = vmatmul.mubr.bf16.gmra.mrb[0].mxu0 %v6990
    %v7291 = vpop.f32.mrb[0].mxu0
    %v7292 = vadd.f32 %v7063, %v7291
    %v7293 = vpop.f32.mrb[0].mxu0
    %v7294 = vpop.f32.mrb[0].mxu0
    %v7295 = vadd.f32 %v7063, %v7294
    %v7296 = vpop.f32.mrb[0].mxu0
    %7297 = vdwg.mxu0
    %7298 = vmatprep.subr.bf16.mxu0 0
    %7299 = vmatpush1.bf16.msra.mxu0 %v7209
    %7300 = vmatprep.subr.bf16.mxu0 0
    %7301 = vmatpush1.bf16.msra.mxu0 %v7210
    %7302 = vmatprep.subr.bf16.mxu0 0
    %7303 = vmatpush1.bf16.msra.mxu0 %v7211
    %7304 = vmatprep.subr.bf16.mxu0 0
    %7305 = vmatpush1.bf16.msra.mxu0 %v7212
    %7306 = vmatprep.subr.bf16.mxu0 0
    %7307 = vmatpush1.bf16.msra.mxu0 %v7213
    %7308 = vmatprep.subr.bf16.mxu0 0
    %7309 = vmatpush1.bf16.msra.mxu0 %v7214
    %7310 = vmatprep.subr.bf16.mxu0 0
    %7311 = vmatpush1.bf16.msra.mxu0 %v7215
    %7312 = vmatprep.subr.bf16.mxu0 0
    %7313 = vmatpush1.bf16.msra.mxu0 %v7216
    %7314 = vmatprep.subr.bf16.mxu0 0
    %7315 = vmatpush1.bf16.msra.mxu0 %v7217
    %7316 = vmatprep.subr.bf16.mxu0 0
    %7317 = vmatpush1.bf16.msra.mxu0 %v7218
    %7318 = vmatprep.subr.bf16.mxu0 0
    %7319 = vmatpush1.bf16.msra.mxu0 %v7219
    %7320 = vmatprep.subr.bf16.mxu0 0
    %7321 = vmatpush1.bf16.msra.mxu0 %v7220
    %7322 = vmatprep.subr.bf16.mxu0 0
    %7323 = vmatpush1.bf16.msra.mxu0 %v7221
    %7324 = vmatprep.subr.bf16.mxu0 0
    %7325 = vmatpush1.bf16.msra.mxu0 %v7222
    %7326 = vmatprep.subr.bf16.mxu0 0
    %7327 = vmatpush1.bf16.msra.mxu0 %v7223
    %7328 = vmatprep.subr.bf16.mxu0 0
    %7329 = vmatpush1.bf16.msra.mxu0 %v7224
    %7330 = vmatprep.mubr.bf16.mxu0 %v6993
    %7331 = vmatmul.mubr.bf16.gmra.mrb[0].mxu0 %v6992
    %v7332 = vpop.f32.mrb[0].mxu0
    %v7333 = vadd.f32 %v7292, %v7332
    %v7334 = vpop.f32.mrb[0].mxu0
    %v7335 = vpop.f32.mrb[0].mxu0
    %v7336 = vadd.f32 %v7295, %v7335
    %v7337 = vpop.f32.mrb[0].mxu0
    %7338 = vdwg.mxu0
    %7339 = vst [vmem:[#allocation2] sm:$0xff] %v7333
    %7340 = vst [vmem:[#allocation2 + $0x8] sm:$0xff] %v7336
    // Predicated region
    $region50: #{tpu_custom_call.1} parent=1 // pred_check
      _
    $region51: #{tpu_custom_call.1} parent=1 // pred_check_branch
      %7342 = sbr.rel (0) target = $region53
    $region52: #{tpu_custom_call.1} parent=1 // pred_region
      %s7344 = ssub.s32 256, 256
      %7345 = vsyncadd [#allocation3], %s7344
      %s7346 = sshll.u32 [#allocation2], 4
      %s7347 = int_to_ptr.vmem [resolvable:$true] %s7346
      %7352 = dma.vmem_to_hbm [thread:$0]  %s7347, 256, %s12, [#allocation3], 128, 128, 8
    $region53: #{tpu_custom_call.1} parent=1 // pred_fallthru
      _
    // Predicated region
    $region54: #{tpu_custom_call.1} parent=1 // pred_check
      _
    $region55: #{tpu_custom_call.1} parent=1 // pred_check_branch
      %7354 = sbr.rel (0) target = $region57
    $region56: #{tpu_custom_call.1} parent=1 // pred_region
      %7355 = dma.done [#allocation3], 256
    $region57: #{tpu_custom_call.1} parent=1 // pred_fallthru
      _
    %7356 = vsyncpa [#allocation3], 1

</llo_original>
